<compile_context>
chip_gen: v5e
topology: v5e:2x2
jax: 0.10.0
libtpu: 0.0.40
codegen_flags: <defaults>
</compile_context>

<pallas_src>
import functools
import math

import jax
import jax.numpy as jnp
from jax import lax
from jax.experimental import pallas as pl
from jax.experimental.pallas import tpu as pltpu

D_MODEL = 32
N_HEADS = 4
D_K = D_MODEL // N_HEADS
D_FF = 64
N_LAYERS = 2
VOCAB = 16
EPS = 1e-6
NEG_INF = -1e9
LANE = 128


# --------------------------- static slab layout -------------------------------
# Weight slab: all (D_in, D_out) matrices stacked along rows, last dim padded to 128.
# Bias slab:  every bias / LayerNorm vector is one 128-lane row.
# Layout depends only on the architecture constants, so both the packer and the kernel
# can share it as static Python data (no traced ints).

def _build_layout():
    w_idx, b_idx = {}, {}
    w_off, b_off = 0, 0

    def add_w(name, din, dout):
        nonlocal w_off
        w_idx[name] = (w_off, din, dout)
        w_off += din

    def add_b(name, width):
        nonlocal b_off
        b_idx[name] = (b_off, width)
        b_off += 1

    D, F = D_MODEL, D_FF
    for l in range(N_LAYERS):
        add_b(f"enc{l}_ln1_g", D); add_b(f"enc{l}_ln1_b", D)
        add_w(f"enc{l}_wqkv", D, 3 * D); add_b(f"enc{l}_bqkv", 3 * D)
        add_w(f"enc{l}_wo", D, D); add_b(f"enc{l}_bo", D)
        add_b(f"enc{l}_ln2_g", D); add_b(f"enc{l}_ln2_b", D)
        add_w(f"enc{l}_w1", D, F); add_b(f"enc{l}_b1", F)
        add_w(f"enc{l}_w2", F, D); add_b(f"enc{l}_b2", D)
    add_b("enc_norm_g", D); add_b("enc_norm_b", D)
    for l in range(N_LAYERS):
        add_b(f"dec{l}_ln1_g", D); add_b(f"dec{l}_ln1_b", D)
        add_w(f"dec{l}_self_wqkv", D, 3 * D); add_b(f"dec{l}_self_bqkv", 3 * D)
        add_w(f"dec{l}_self_wo", D, D); add_b(f"dec{l}_self_bo", D)
        add_b(f"dec{l}_ln2_g", D); add_b(f"dec{l}_ln2_b", D)
        add_w(f"dec{l}_src_wq", D, D); add_b(f"dec{l}_src_bq", D)
        add_w(f"dec{l}_src_wkv", D, 2 * D); add_b(f"dec{l}_src_bkv", 2 * D)
        add_w(f"dec{l}_src_wo", D, D); add_b(f"dec{l}_src_bo", D)
        add_b(f"dec{l}_ln3_g", D); add_b(f"dec{l}_ln3_b", D)
        add_w(f"dec{l}_w1", D, F); add_b(f"dec{l}_b1", F)
        add_w(f"dec{l}_w2", F, D); add_b(f"dec{l}_b2", D)
    add_b("dec_norm_g", D); add_b("dec_norm_b", D)
    return w_idx, b_idx, w_off, b_off


_W_IDX, _B_IDX, _W_ROWS, _B_ROWS = _build_layout()
_B_ROWS_PAD = -(-_B_ROWS // 8) * 8


# --------------------------- fused Pallas kernel -------------------------------

def _encoder_decoder_kernel(xy_ref, mask_ref, w_ref, b_ref, out_ref, *, B, S):
    D = D_MODEL

    def W(name):                      # static slice of the weight slab (free view)
        r, din, dout = _W_IDX[name]
        return w_ref[r:r + din, 0:dout]

    def Bv(name):                     # (1, width) row of the bias slab
        r, width = _B_IDX[name]
        return b_ref[r:r + 1, 0:width]

    def layer_norm(x, gname, bname):
        # Annotated-Transformer LayerNorm: torch .std() (unbiased, /(d-1)), eps added to
        # std (NOT variance).  Intentional; do not "fix" to nn.LayerNorm semantics.
        mean = jnp.mean(x, axis=-1, keepdims=True)
        xc = x - mean
        var = jnp.sum(xc * xc, axis=-1, keepdims=True) / (x.shape[-1] - 1)
        std = jnp.sqrt(var)
        return Bv(gname) * xc / (std + EPS) + Bv(bname)

    def linear(x, wname, bname, relu=False):
        y = jnp.dot(x, W(wname), preferred_element_type=jnp.float32) + Bv(bname)
        return jnp.maximum(y, 0.0) if relu else y

    def attention(q, k, v, mask_col, wo_name, bo_name):
        # q, k, v: (B*S, D); q already pre-scaled by 1/sqrt(dk) (folded into Wq/bq).
        # mask_col selects lanes [mask_col : mask_col+S] of the packed additive bias.
        wo = W(wo_name)                                         # (D, D) = (H*Dk, D)
        # per-head output projection; sublane-tile-aligned slices (Dk == 8)
        wo_h = jnp.stack([wo[h * D_K:(h + 1) * D_K, :] for h in range(N_HEADS)], axis=0)
        bo = Bv(bo_name)
        outs = []
        for b in range(B):
            qb = q[b * S:(b + 1) * S, :]
            kb = k[b * S:(b + 1) * S, :]
            vb = v[b * S:(b + 1) * S, :]
            qh = jnp.stack([qb[:, h * D_K:(h + 1) * D_K] for h in range(N_HEADS)], 0)
            kh = jnp.stack([kb[:, h * D_K:(h + 1) * D_K] for h in range(N_HEADS)], 0)
            vh = jnp.stack([vb[:, h * D_K:(h + 1) * D_K] for h in range(N_HEADS)], 0)
            # head-batched Q.K^T: (H, S, S)
            s = lax.dot_general(qh, kh, (((2,), (2,)), ((0,), (0,))),
                                preferred_element_type=jnp.float32)
            bias_b = mask_ref[b * S:(b + 1) * S, mask_col:mask_col + S]   # (S, S)
            s = s + bias_b[None, :, :]                                    # one add / batch
            s = s - jnp.max(s, axis=-1, keepdims=True)
            p = jnp.exp(s)
            p = p * pl.reciprocal(jnp.sum(p, axis=-1, keepdims=True), approx=True)
            # head-batched P.V: (H, S, Dk)
            ctx = lax.dot_general(p, vh, (((2,), (1,)), ((0,), (0,))),
                                  preferred_element_type=jnp.float32)
            # fused head-concat + output projection: sum_h ctx_h @ Wo_h  -> (S, D)
            proj = lax.dot_general(ctx, wo_h, (((2,), (1,)), ((0,), (0,))),
                                   preferred_element_type=jnp.float32)   # (H, S, D)
            outs.append(jnp.sum(proj, axis=0) + bo)
        return jnp.concatenate(outs, axis=0)                             # (B*S, D)

    xy = xy_ref[...]                       # (B*S, 128) lane-dense activation slab
    x = xy[:, 0:D]                         # encoder stream (src embeddings)
    y = xy[:, D:2 * D]                     # decoder stream (tgt embeddings)
    SRC_BIAS, TGT_BIAS = 0, S              # lane offsets into the packed mask slab

    # ----------------------------- encoder -----------------------------------
    for l in range(N_LAYERS):
        nx = layer_norm(x, f"enc{l}_ln1_g", f"enc{l}_ln1_b")
        qkv = linear(nx, f"enc{l}_wqkv", f"enc{l}_bqkv")                  # (B*S, 3D)
        x = x + attention(qkv[:, 0:D], qkv[:, D:2 * D], qkv[:, 2 * D:3 * D],
                          SRC_BIAS, f"enc{l}_wo", f"enc{l}_bo")
        nx = layer_norm(x, f"enc{l}_ln2_g", f"enc{l}_ln2_b")
        h = linear(nx, f"enc{l}_w1", f"enc{l}_b1", relu=True)
        x = x + linear(h, f"enc{l}_w2", f"enc{l}_b2")
    memory = layer_norm(x, "enc_norm_g", "enc_norm_b")                    # (B*S, D)

    # ----------------------------- decoder -----------------------------------
    for l in range(N_LAYERS):
        ny = layer_norm(y, f"dec{l}_ln1_g", f"dec{l}_ln1_b")
        qkv = linear(ny, f"dec{l}_self_wqkv", f"dec{l}_self_bqkv")
        y = y + attention(qkv[:, 0:D], qkv[:, D:2 * D], qkv[:, 2 * D:3 * D],
                          TGT_BIAS, f"dec{l}_self_wo", f"dec{l}_self_bo")
        ny = layer_norm(y, f"dec{l}_ln2_g", f"dec{l}_ln2_b")
        q = linear(ny, f"dec{l}_src_wq", f"dec{l}_src_bq")
        kv = linear(memory, f"dec{l}_src_wkv", f"dec{l}_src_bkv")         # (B*S, 2D)
        y = y + attention(q, kv[:, 0:D], kv[:, D:2 * D],
                          SRC_BIAS, f"dec{l}_src_wo", f"dec{l}_src_bo")
        ny = layer_norm(y, f"dec{l}_ln3_g", f"dec{l}_ln3_b")
        h = linear(ny, f"dec{l}_w1", f"dec{l}_b1", relu=True)
        y = y + linear(h, f"dec{l}_w2", f"dec{l}_b2")

    out_ref[...] = layer_norm(y, "dec_norm_g", "dec_norm_b")


# --------------------------- wrapper (glue) -----------------------------------

def positional_encoding(max_len, d):
    pos = jnp.arange(max_len, dtype=jnp.float32)[:, None]
    div = jnp.exp(jnp.arange(0, d, 2, dtype=jnp.float32) * (-math.log(10000.0) / d))
    pe = jnp.zeros((max_len, d), jnp.float32)
    pe = pe.at[:, 0::2].set(jnp.sin(pos * div))
    pe = pe.at[:, 1::2].set(jnp.cos(pos * div))
    return pe


def embed(lut, pe, tokens):
    x = jnp.take(lut, tokens, axis=0) * math.sqrt(D_MODEL)
    return x + pe[None, : tokens.shape[1], :]


def _cost_estimate(B, S):
    T = B * S
    def mm(m, k, n): return 2 * m * k * n
    attn = (mm(B * N_HEADS * S, D_K, S)            # Q.K^T
            + mm(B * N_HEADS * S, S, D_K)          # P.V
            + mm(B * N_HEADS * S, D_K, D_MODEL))   # per-head output projection
    enc_layer = mm(T, D_MODEL, 3 * D_MODEL) + attn + mm(T, D_MODEL, D_FF) + mm(T, D_FF, D_MODEL)
    dec_layer = (mm(T, D_MODEL, 3 * D_MODEL) + attn
                 + mm(T, D_MODEL, D_MODEL) + mm(T, D_MODEL, 2 * D_MODEL) + attn
                 + mm(T, D_MODEL, D_FF) + mm(T, D_FF, D_MODEL))
    flops = N_LAYERS * (enc_layer + dec_layer)
    transcendentals = 3 * N_LAYERS * B * N_HEADS * S * S
    bytes_accessed = 4 * (2 * T * LANE + _W_ROWS * LANE + _B_ROWS_PAD * LANE + T * D_MODEL)
    return pl.CostEstimate(flops=flops, transcendentals=transcendentals,
                           bytes_accessed=bytes_accessed)


def encoder_decoder_forward(packed, src, tgt, src_mask, tgt_mask):
    B, S = src.shape
    D = D_MODEL
    src_x = embed(packed["src_lut"], packed["pe"], src).reshape(B * S, D)
    tgt_x = embed(packed["tgt_lut"], packed["pe"], tgt).reshape(B * S, D)

    # Lane-dense activation slab: [0:D]=src stream, [D:2D]=tgt stream.
    xy = jnp.zeros((B * S, LANE), jnp.float32)
    xy = xy.at[:, 0:D].set(src_x).at[:, D:2 * D].set(tgt_x)

    # Additive mask biases (0 / -1e9), packed lane-dense: [0:S]=src, [S:2S]=tgt.
    src_bias = jnp.where(src_mask == 0, NEG_INF, 0.0).astype(jnp.float32)   # (B,1,S)
    tgt_bias = jnp.where(tgt_mask == 0, NEG_INF, 0.0).astype(jnp.float32)   # (B,S,S)
    src_bias = jnp.broadcast_to(src_bias, (B, S, S)).reshape(B * S, S)
    tgt_bias = tgt_bias.reshape(B * S, S)
    mask = jnp.zeros((B * S, LANE), jnp.float32)
    mask = mask.at[:, 0:S].set(src_bias).at[:, S:2 * S].set(tgt_bias)

    vmem = pl.BlockSpec(memory_space=pltpu.MemorySpace.VMEM)
    out = pl.pallas_call(
        functools.partial(_encoder_decoder_kernel, B=B, S=S),
        out_shape=jax.ShapeDtypeStruct((B * S, D), jnp.float32),
        in_specs=[vmem, vmem, vmem, vmem],
        out_specs=vmem,
        cost_estimate=_cost_estimate(B, S),
        compiler_params=pltpu.CompilerParams(vmem_limit_bytes=32 * 1024 * 1024),
    )(xy, mask, packed["w_slab"], packed["b_slab"])
    return out.reshape(B, S, D)


# --------------------------- deterministic param init -------------------------

def init_params(key):
    keys = iter(jax.random.split(key, 256))

    def w(din, dout):
        return jax.random.normal(next(keys), (din, dout), jnp.float32) * 0.02

    def attn_params():
        p = {}
        for name in ("q", "k", "v", "o"):
            p["w" + name] = w(D_MODEL, D_MODEL)
            p["b" + name] = jnp.zeros((D_MODEL,), jnp.float32)
        return p

    def ff_params():
        return {"w1": w(D_MODEL, D_FF), "b1": jnp.zeros((D_FF,), jnp.float32),
                "w2": w(D_FF, D_MODEL), "b2": jnp.zeros((D_MODEL,), jnp.float32)}

    def ln_params():
        return {"g": jnp.ones((D_MODEL,), jnp.float32),
                "b": jnp.zeros((D_MODEL,), jnp.float32)}

    enc_layers = [{"self_attn": attn_params(), "ff": ff_params(),
                   "ln1": ln_params(), "ln2": ln_params()} for _ in range(N_LAYERS)]
    dec_layers = [{"self_attn": attn_params(), "src_attn": attn_params(),
                   "ff": ff_params(), "ln1": ln_params(), "ln2": ln_params(),
                   "ln3": ln_params()} for _ in range(N_LAYERS)]

    # TODO(synk): generator (Linear + log_softmax) is a member of EncoderDecoder but is
    # not invoked by forward(), so it is not part of this kernel.
    return {
        "src_lut": jax.random.normal(next(keys), (VOCAB, D_MODEL), jnp.float32) * 0.02,
        "tgt_lut": jax.random.normal(next(keys), (VOCAB, D_MODEL), jnp.float32) * 0.02,
        "pe": positional_encoding(64, D_MODEL),
        "encoder": {"layers": enc_layers, "norm": ln_params()},
        "decoder": {"layers": dec_layers, "norm": ln_params()},
    }


def pack_params(params):
    """Pack all weights into one (rows,128) weight slab and one (rows,128) bias slab.

    * wq|wk|wv are concatenated into (D, 3D); the 1/sqrt(dk) attention scale is folded
      into wq/bq (mathematically identical to scaling the scores).
    * Decoder src-attention packs wk|wv into (D, 2D) (applied to encoder memory).
    * Every bias / LayerNorm vector becomes one 128-lane row of the bias slab.
    """
    scale = 1.0 / math.sqrt(D_K)
    flat_w, flat_b = {}, {}

    def qkv_pack(ap):
        wt = jnp.concatenate([ap["wq"] * scale, ap["wk"], ap["wv"]], axis=1)
        bi = jnp.concatenate([ap["bq"] * scale, ap["bk"], ap["bv"]])
        return wt, bi

    for l, L in enumerate(params["encoder"]["layers"]):
        flat_b[f"enc{l}_ln1_g"] = L["ln1"]["g"]; flat_b[f"enc{l}_ln1_b"] = L["ln1"]["b"]
        flat_w[f"enc{l}_wqkv"], flat_b[f"enc{l}_bqkv"] = qkv_pack(L["self_attn"])
        flat_w[f"enc{l}_wo"] = L["self_attn"]["wo"]; flat_b[f"enc{l}_bo"] = L["self_attn"]["bo"]
        flat_b[f"enc{l}_ln2_g"] = L["ln2"]["g"]; flat_b[f"enc{l}_ln2_b"] = L["ln2"]["b"]
        flat_w[f"enc{l}_w1"] = L["ff"]["w1"]; flat_b[f"enc{l}_b1"] = L["ff"]["b1"]
        flat_w[f"enc{l}_w2"] = L["ff"]["w2"]; flat_b[f"enc{l}_b2"] = L["ff"]["b2"]
    flat_b["enc_norm_g"] = params["encoder"]["norm"]["g"]
    flat_b["enc_norm_b"] = params["encoder"]["norm"]["b"]

    for l, L in enumerate(params["decoder"]["layers"]):
        flat_b[f"dec{l}_ln1_g"] = L["ln1"]["g"]; flat_b[f"dec{l}_ln1_b"] = L["ln1"]["b"]
        flat_w[f"dec{l}_self_wqkv"], flat_b[f"dec{l}_self_bqkv"] = qkv_pack(L["self_attn"])
        flat_w[f"dec{l}_self_wo"] = L["self_attn"]["wo"]
        flat_b[f"dec{l}_self_bo"] = L["self_attn"]["bo"]
        flat_b[f"dec{l}_ln2_g"] = L["ln2"]["g"]; flat_b[f"dec{l}_ln2_b"] = L["ln2"]["b"]
        flat_w[f"dec{l}_src_wq"] = L["src_attn"]["wq"] * scale
        flat_b[f"dec{l}_src_bq"] = L["src_attn"]["bq"] * scale
        flat_w[f"dec{l}_src_wkv"] = jnp.concatenate(
            [L["src_attn"]["wk"], L["src_attn"]["wv"]], axis=1)
        flat_b[f"dec{l}_src_bkv"] = jnp.concatenate(
            [L["src_attn"]["bk"], L["src_attn"]["bv"]])
        flat_w[f"dec{l}_src_wo"] = L["src_attn"]["wo"]
        flat_b[f"dec{l}_src_bo"] = L["src_attn"]["bo"]
        flat_b[f"dec{l}_ln3_g"] = L["ln3"]["g"]; flat_b[f"dec{l}_ln3_b"] = L["ln3"]["b"]
        flat_w[f"dec{l}_w1"] = L["ff"]["w1"]; flat_b[f"dec{l}_b1"] = L["ff"]["b1"]
        flat_w[f"dec{l}_w2"] = L["ff"]["w2"]; flat_b[f"dec{l}_b2"] = L["ff"]["b2"]
    flat_b["dec_norm_g"] = params["decoder"]["norm"]["g"]
    flat_b["dec_norm_b"] = params["decoder"]["norm"]["b"]

    w_slab = jnp.zeros((_W_ROWS, LANE), jnp.float32)
    for name, (r, din, dout) in _W_IDX.items():
        mat = jnp.asarray(flat_w[name], jnp.float32)
        assert mat.shape == (din, dout), name
        w_slab = w_slab.at[r:r + din, :dout].set(mat)

    b_slab = jnp.zeros((_B_ROWS_PAD, LANE), jnp.float32)
    for name, (r, width) in _B_IDX.items():
        vec = jnp.asarray(flat_b[name], jnp.float32).reshape(-1)
        assert vec.shape == (width,), name
        b_slab = b_slab.at[r, :width].set(vec)

    return {"src_lut": params["src_lut"], "tgt_lut": params["tgt_lut"],
            "pe": params["pe"], "w_slab": w_slab, "b_slab": b_slab}


# --------------------------- main ----------------------------------------------

if __name__ == "__main__":
    B, S = 2, 8
    key = jax.random.PRNGKey(0)
    k_src, k_tgt = jax.random.split(key)
    src = jax.random.randint(k_src, (B, S), 1, VOCAB)
    tgt = jax.random.randint(k_tgt, (B, S), 1, VOCAB)

    src_mask = jnp.ones((B, 1, S), jnp.int32)                           # (B, 1, S_src)
    tgt_mask = jnp.broadcast_to(jnp.tril(jnp.ones((S, S), jnp.int32))[None],
                                (B, S, S))                              # (B, S_tgt, S_tgt)

    params = init_params(jax.random.PRNGKey(42))
    packed = pack_params(params)

    fwd = jax.jit(encoder_decoder_forward)
    out = fwd(packed, src, tgt, src_mask, tgt_mask)
    out = jax.block_until_ready(out)
    assert out.shape == (B, S, D_MODEL) and out.dtype == jnp.float32
    assert bool(jnp.all(jnp.isfinite(out)))
    print("KERNEL_OK")
</pallas_src>

<mosaic_0001>
module attributes {stable_mosaic.version = 11 : i64} {
  func.func @_encoder_decoder_kernel(%arg0: memref<16x128xf32, #tpu.memory_space<vmem>>, %arg1: memref<16x128xf32, #tpu.memory_space<vmem>>, %arg2: memref<832x128xf32, #tpu.memory_space<vmem>>, %arg3: memref<48x128xf32, #tpu.memory_space<vmem>>, %arg4: memref<16x32xf32, #tpu.memory_space<vmem>>) attributes {dimension_semantics = [], scalar_prefetch = 0 : i64, scratch_operands = 0 : i64, tpu.core_type = #tpu.core_type<tc>} {
    %c0 = arith.constant 0 : index
    %c0_0 = arith.constant 0 : index
    %0 = vector.load %arg0[%c0, %c0_0] : memref<16x128xf32, #tpu.memory_space<vmem>>, vector<16x128xf32>
    %1 = vector.extract_strided_slice %0 {offsets = [0, 0], sizes = [16, 32], strides = [1, 1]} : vector<16x128xf32> to vector<16x32xf32>
    %2 = vector.extract_strided_slice %0 {offsets = [0, 32], sizes = [16, 32], strides = [1, 1]} : vector<16x128xf32> to vector<16x32xf32>
    %cst = arith.constant dense<0.000000e+00> : vector<16xf32>
    %3 = vector.multi_reduction <add>, %1, %cst [1] : vector<16x32xf32> to vector<16xf32>
    %4 = vector.shape_cast %3 : vector<16xf32> to vector<16x1xf32>
    %cst_1 = arith.constant 3.200000e+01 : f32
    %5 = vector.broadcast %cst_1 : f32 to vector<16x1xf32>
    %6 = arith.divf %4, %5 : vector<16x1xf32>
    %7 = vector.broadcast %6 : vector<16x1xf32> to vector<16x32xf32>
    %8 = arith.subf %1, %7 : vector<16x32xf32>
    %9 = arith.mulf %8, %8 : vector<16x32xf32>
    %cst_2 = arith.constant dense<0.000000e+00> : vector<16xf32>
    %10 = vector.multi_reduction <add>, %9, %cst_2 [1] : vector<16x32xf32> to vector<16xf32>
    %11 = vector.shape_cast %10 : vector<16xf32> to vector<16x1xf32>
    %cst_3 = arith.constant 3.100000e+01 : f32
    %12 = vector.broadcast %cst_3 : f32 to vector<16x1xf32>
    %13 = arith.divf %11, %12 : vector<16x1xf32>
    %14 = math.sqrt %13 : vector<16x1xf32>
    %c0_4 = arith.constant 0 : index
    %c0_5 = arith.constant 0 : index
    %15 = vector.load %arg3[%c0_4, %c0_5] : memref<48x128xf32, #tpu.memory_space<vmem>>, vector<1x32xf32>
    %16 = vector.broadcast %15 : vector<1x32xf32> to vector<16x32xf32>
    %17 = arith.mulf %16, %8 : vector<16x32xf32>
    %cst_6 = arith.constant 9.99999997E-7 : f32
    %18 = vector.broadcast %cst_6 : f32 to vector<16x1xf32>
    %19 = arith.addf %14, %18 : vector<16x1xf32>
    %20 = vector.broadcast %19 : vector<16x1xf32> to vector<16x32xf32>
    %21 = arith.divf %17, %20 : vector<16x32xf32>
    %c1 = arith.constant 1 : index
    %c0_7 = arith.constant 0 : index
    %22 = vector.load %arg3[%c1, %c0_7] : memref<48x128xf32, #tpu.memory_space<vmem>>, vector<1x32xf32>
    %23 = vector.broadcast %22 : vector<1x32xf32> to vector<16x32xf32>
    %24 = arith.addf %21, %23 : vector<16x32xf32>
    %c0_8 = arith.constant 0 : index
    %c0_9 = arith.constant 0 : index
    %25 = vector.load %arg2[%c0_8, %c0_9] : memref<832x128xf32, #tpu.memory_space<vmem>>, vector<32x96xf32>
    %cst_10 = arith.constant dense<0.000000e+00> : vector<16x96xf32>
    %26 = tpu.matmul %24, %25, %cst_10 {dimension_numbers = #tpu.dot_dimension_numbers<[1], [0], [0], [1], [0, 0, 1, 1], [], []>} : vector<16x32xf32>, vector<32x96xf32>, vector<16x96xf32> -> vector<16x96xf32>
    %c2 = arith.constant 2 : index
    %c0_11 = arith.constant 0 : index
    %27 = vector.load %arg3[%c2, %c0_11] : memref<48x128xf32, #tpu.memory_space<vmem>>, vector<1x96xf32>
    %28 = vector.broadcast %27 : vector<1x96xf32> to vector<16x96xf32>
    %29 = arith.addf %26, %28 : vector<16x96xf32>
    %30 = vector.extract_strided_slice %29 {offsets = [0, 0], sizes = [16, 32], strides = [1, 1]} : vector<16x96xf32> to vector<16x32xf32>
    %31 = vector.extract_strided_slice %29 {offsets = [0, 32], sizes = [16, 32], strides = [1, 1]} : vector<16x96xf32> to vector<16x32xf32>
    %32 = vector.extract_strided_slice %29 {offsets = [0, 64], sizes = [16, 32], strides = [1, 1]} : vector<16x96xf32> to vector<16x32xf32>
    %c32 = arith.constant 32 : index
    %c0_12 = arith.constant 0 : index
    %33 = vector.load %arg2[%c32, %c0_12] : memref<832x128xf32, #tpu.memory_space<vmem>>, vector<32x32xf32>
    %34 = vector.extract_strided_slice %33 {offsets = [0, 0], sizes = [8, 32], strides = [1, 1]} : vector<32x32xf32> to vector<8x32xf32>
    %35 = vector.extract_strided_slice %33 {offsets = [8, 0], sizes = [8, 32], strides = [1, 1]} : vector<32x32xf32> to vector<8x32xf32>
    %36 = vector.extract_strided_slice %33 {offsets = [16, 0], sizes = [8, 32], strides = [1, 1]} : vector<32x32xf32> to vector<8x32xf32>
    %37 = vector.extract_strided_slice %33 {offsets = [24, 0], sizes = [8, 32], strides = [1, 1]} : vector<32x32xf32> to vector<8x32xf32>
    %38 = vector.shape_cast %34 : vector<8x32xf32> to vector<1x8x32xf32>
    %39 = vector.shape_cast %35 : vector<8x32xf32> to vector<1x8x32xf32>
    %40 = vector.shape_cast %36 : vector<8x32xf32> to vector<1x8x32xf32>
    %41 = vector.shape_cast %37 : vector<8x32xf32> to vector<1x8x32xf32>
    %42 = tpu.concatenate %38, %39, %40, %41 in 0 : vector<1x8x32xf32>, vector<1x8x32xf32>, vector<1x8x32xf32>, vector<1x8x32xf32> -> vector<4x8x32xf32>
    %c3 = arith.constant 3 : index
    %c0_13 = arith.constant 0 : index
    %43 = vector.load %arg3[%c3, %c0_13] : memref<48x128xf32, #tpu.memory_space<vmem>>, vector<1x32xf32>
    %44 = vector.extract_strided_slice %30 {offsets = [0, 0], sizes = [8, 32], strides = [1, 1]} : vector<16x32xf32> to vector<8x32xf32>
    %45 = vector.extract_strided_slice %31 {offsets = [0, 0], sizes = [8, 32], strides = [1, 1]} : vector<16x32xf32> to vector<8x32xf32>
    %46 = vector.extract_strided_slice %32 {offsets = [0, 0], sizes = [8, 32], strides = [1, 1]} : vector<16x32xf32> to vector<8x32xf32>
    %47 = vector.extract_strided_slice %44 {offsets = [0, 0], sizes = [8, 8], strides = [1, 1]} : vector<8x32xf32> to vector<8x8xf32>
    %48 = vector.extract_strided_slice %44 {offsets = [0, 8], sizes = [8, 8], strides = [1, 1]} : vector<8x32xf32> to vector<8x8xf32>
    %49 = vector.extract_strided_slice %44 {offsets = [0, 16], sizes = [8, 8], strides = [1, 1]} : vector<8x32xf32> to vector<8x8xf32>
    %50 = vector.extract_strided_slice %44 {offsets = [0, 24], sizes = [8, 8], strides = [1, 1]} : vector<8x32xf32> to vector<8x8xf32>
    %51 = vector.shape_cast %47 : vector<8x8xf32> to vector<1x8x8xf32>
    %52 = vector.shape_cast %48 : vector<8x8xf32> to vector<1x8x8xf32>
    %53 = vector.shape_cast %49 : vector<8x8xf32> to vector<1x8x8xf32>
    %54 = vector.shape_cast %50 : vector<8x8xf32> to vector<1x8x8xf32>
    %55 = tpu.concatenate %51, %52, %53, %54 in 0 : vector<1x8x8xf32>, vector<1x8x8xf32>, vector<1x8x8xf32>, vector<1x8x8xf32> -> vector<4x8x8xf32>
    %56 = vector.extract_strided_slice %45 {offsets = [0, 0], sizes = [8, 8], strides = [1, 1]} : vector<8x32xf32> to vector<8x8xf32>
    %57 = vector.extract_strided_slice %45 {offsets = [0, 8], sizes = [8, 8], strides = [1, 1]} : vector<8x32xf32> to vector<8x8xf32>
    %58 = vector.extract_strided_slice %45 {offsets = [0, 16], sizes = [8, 8], strides = [1, 1]} : vector<8x32xf32> to vector<8x8xf32>
    %59 = vector.extract_strided_slice %45 {offsets = [0, 24], sizes = [8, 8], strides = [1, 1]} : vector<8x32xf32> to vector<8x8xf32>
    %60 = vector.shape_cast %56 : vector<8x8xf32> to vector<1x8x8xf32>
    %61 = vector.shape_cast %57 : vector<8x8xf32> to vector<1x8x8xf32>
    %62 = vector.shape_cast %58 : vector<8x8xf32> to vector<1x8x8xf32>
    %63 = vector.shape_cast %59 : vector<8x8xf32> to vector<1x8x8xf32>
    %64 = tpu.concatenate %60, %61, %62, %63 in 0 : vector<1x8x8xf32>, vector<1x8x8xf32>, vector<1x8x8xf32>, vector<1x8x8xf32> -> vector<4x8x8xf32>
    %65 = vector.extract_strided_slice %46 {offsets = [0, 0], sizes = [8, 8], strides = [1, 1]} : vector<8x32xf32> to vector<8x8xf32>
    %66 = vector.extract_strided_slice %46 {offsets = [0, 8], sizes = [8, 8], strides = [1, 1]} : vector<8x32xf32> to vector<8x8xf32>
    %67 = vector.extract_strided_slice %46 {offsets = [0, 16], sizes = [8, 8], strides = [1, 1]} : vector<8x32xf32> to vector<8x8xf32>
    %68 = vector.extract_strided_slice %46 {offsets = [0, 24], sizes = [8, 8], strides = [1, 1]} : vector<8x32xf32> to vector<8x8xf32>
    %69 = vector.shape_cast %65 : vector<8x8xf32> to vector<1x8x8xf32>
    %70 = vector.shape_cast %66 : vector<8x8xf32> to vector<1x8x8xf32>
    %71 = vector.shape_cast %67 : vector<8x8xf32> to vector<1x8x8xf32>
    %72 = vector.shape_cast %68 : vector<8x8xf32> to vector<1x8x8xf32>
    %73 = tpu.concatenate %69, %70, %71, %72 in 0 : vector<1x8x8xf32>, vector<1x8x8xf32>, vector<1x8x8xf32>, vector<1x8x8xf32> -> vector<4x8x8xf32>
    %cst_14 = arith.constant dense<0.000000e+00> : vector<4x8x8xf32>
    %74 = tpu.matmul %55, %64, %cst_14 {dimension_numbers = #tpu.dot_dimension_numbers<[2], [2], [1], [1], [0, 0, 0, 1, 1, 1], [0], [0]>} : vector<4x8x8xf32>, vector<4x8x8xf32>, vector<4x8x8xf32> -> vector<4x8x8xf32>
    %c0_15 = arith.constant 0 : index
    %c0_16 = arith.constant 0 : index
    %75 = vector.load %arg1[%c0_15, %c0_16] : memref<16x128xf32, #tpu.memory_space<vmem>>, vector<8x8xf32>
    %76 = vector.shape_cast %75 : vector<8x8xf32> to vector<1x8x8xf32>
    %77 = vector.broadcast %76 : vector<1x8x8xf32> to vector<4x8x8xf32>
    %78 = arith.addf %74, %77 : vector<4x8x8xf32>
    %cst_17 = arith.constant dense<0xFF800000> : vector<4x8xf32>
    %79 = vector.multi_reduction <maximumf>, %78, %cst_17 [2] : vector<4x8x8xf32> to vector<4x8xf32>
    %80 = vector.shape_cast %79 : vector<4x8xf32> to vector<4x8x1xf32>
    %81 = vector.broadcast %80 : vector<4x8x1xf32> to vector<4x8x8xf32>
    %82 = arith.subf %78, %81 : vector<4x8x8xf32>
    %83 = math.exp %82 : vector<4x8x8xf32>
    %cst_18 = arith.constant dense<0.000000e+00> : vector<4x8xf32>
    %84 = vector.multi_reduction <add>, %83, %cst_18 [2] : vector<4x8x8xf32> to vector<4x8xf32>
    %85 = vector.shape_cast %84 : vector<4x8xf32> to vector<4x8x1xf32>
    %86 = tpu.reciprocal %85 {approx = true} : vector<4x8x1xf32> -> vector<4x8x1xf32>
    %87 = vector.broadcast %86 : vector<4x8x1xf32> to vector<4x8x8xf32>
    %88 = arith.mulf %83, %87 : vector<4x8x8xf32>
    %cst_19 = arith.constant dense<0.000000e+00> : vector<4x8x8xf32>
    %89 = tpu.matmul %88, %73, %cst_19 {dimension_numbers = #tpu.dot_dimension_numbers<[2], [1], [1], [2], [0, 0, 0, 1, 1, 2], [0], [0]>} : vector<4x8x8xf32>, vector<4x8x8xf32>, vector<4x8x8xf32> -> vector<4x8x8xf32>
    %cst_20 = arith.constant dense<0.000000e+00> : vector<4x8x32xf32>
    %90 = tpu.matmul %89, %42, %cst_20 {dimension_numbers = #tpu.dot_dimension_numbers<[2], [1], [1], [2], [0, 0, 0, 1, 1, 2], [0], [0]>} : vector<4x8x8xf32>, vector<4x8x32xf32>, vector<4x8x32xf32> -> vector<4x8x32xf32>
    %cst_21 = arith.constant dense<0.000000e+00> : vector<8x32xf32>
    %91 = vector.multi_reduction <add>, %90, %cst_21 [0] : vector<4x8x32xf32> to vector<8x32xf32>
    %92 = vector.broadcast %43 : vector<1x32xf32> to vector<8x32xf32>
    %93 = arith.addf %91, %92 : vector<8x32xf32>
    %94 = vector.extract_strided_slice %30 {offsets = [8, 0], sizes = [8, 32], strides = [1, 1]} : vector<16x32xf32> to vector<8x32xf32>
    %95 = vector.extract_strided_slice %31 {offsets = [8, 0], sizes = [8, 32], strides = [1, 1]} : vector<16x32xf32> to vector<8x32xf32>
    %96 = vector.extract_strided_slice %32 {offsets = [8, 0], sizes = [8, 32], strides = [1, 1]} : vector<16x32xf32> to vector<8x32xf32>
    %97 = vector.extract_strided_slice %94 {offsets = [0, 0], sizes = [8, 8], strides = [1, 1]} : vector<8x32xf32> to vector<8x8xf32>
    %98 = vector.extract_strided_slice %94 {offsets = [0, 8], sizes = [8, 8], strides = [1, 1]} : vector<8x32xf32> to vector<8x8xf32>
    %99 = vector.extract_strided_slice %94 {offsets = [0, 16], sizes = [8, 8], strides = [1, 1]} : vector<8x32xf32> to vector<8x8xf32>
    %100 = vector.extract_strided_slice %94 {offsets = [0, 24], sizes = [8, 8], strides = [1, 1]} : vector<8x32xf32> to vector<8x8xf32>
    %101 = vector.shape_cast %97 : vector<8x8xf32> to vector<1x8x8xf32>
    %102 = vector.shape_cast %98 : vector<8x8xf32> to vector<1x8x8xf32>
    %103 = vector.shape_cast %99 : vector<8x8xf32> to vector<1x8x8xf32>
    %104 = vector.shape_cast %100 : vector<8x8xf32> to vector<1x8x8xf32>
    %105 = tpu.concatenate %101, %102, %103, %104 in 0 : vector<1x8x8xf32>, vector<1x8x8xf32>, vector<1x8x8xf32>, vector<1x8x8xf32> -> vector<4x8x8xf32>
    %106 = vector.extract_strided_slice %95 {offsets = [0, 0], sizes = [8, 8], strides = [1, 1]} : vector<8x32xf32> to vector<8x8xf32>
    %107 = vector.extract_strided_slice %95 {offsets = [0, 8], sizes = [8, 8], strides = [1, 1]} : vector<8x32xf32> to vector<8x8xf32>
    %108 = vector.extract_strided_slice %95 {offsets = [0, 16], sizes = [8, 8], strides = [1, 1]} : vector<8x32xf32> to vector<8x8xf32>
    %109 = vector.extract_strided_slice %95 {offsets = [0, 24], sizes = [8, 8], strides = [1, 1]} : vector<8x32xf32> to vector<8x8xf32>
    %110 = vector.shape_cast %106 : vector<8x8xf32> to vector<1x8x8xf32>
    %111 = vector.shape_cast %107 : vector<8x8xf32> to vector<1x8x8xf32>
    %112 = vector.shape_cast %108 : vector<8x8xf32> to vector<1x8x8xf32>
    %113 = vector.shape_cast %109 : vector<8x8xf32> to vector<1x8x8xf32>
    %114 = tpu.concatenate %110, %111, %112, %113 in 0 : vector<1x8x8xf32>, vector<1x8x8xf32>, vector<1x8x8xf32>, vector<1x8x8xf32> -> vector<4x8x8xf32>
    %115 = vector.extract_strided_slice %96 {offsets = [0, 0], sizes = [8, 8], strides = [1, 1]} : vector<8x32xf32> to vector<8x8xf32>
    %116 = vector.extract_strided_slice %96 {offsets = [0, 8], sizes = [8, 8], strides = [1, 1]} : vector<8x32xf32> to vector<8x8xf32>
    %117 = vector.extract_strided_slice %96 {offsets = [0, 16], sizes = [8, 8], strides = [1, 1]} : vector<8x32xf32> to vector<8x8xf32>
    %118 = vector.extract_strided_slice %96 {offsets = [0, 24], sizes = [8, 8], strides = [1, 1]} : vector<8x32xf32> to vector<8x8xf32>
    %119 = vector.shape_cast %115 : vector<8x8xf32> to vector<1x8x8xf32>
    %120 = vector.shape_cast %116 : vector<8x8xf32> to vector<1x8x8xf32>
    %121 = vector.shape_cast %117 : vector<8x8xf32> to vector<1x8x8xf32>
    %122 = vector.shape_cast %118 : vector<8x8xf32> to vector<1x8x8xf32>
    %123 = tpu.concatenate %119, %120, %121, %122 in 0 : vector<1x8x8xf32>, vector<1x8x8xf32>, vector<1x8x8xf32>, vector<1x8x8xf32> -> vector<4x8x8xf32>
    %cst_22 = arith.constant dense<0.000000e+00> : vector<4x8x8xf32>
    %124 = tpu.matmul %105, %114, %cst_22 {dimension_numbers = #tpu.dot_dimension_numbers<[2], [2], [1], [1], [0, 0, 0, 1, 1, 1], [0], [0]>} : vector<4x8x8xf32>, vector<4x8x8xf32>, vector<4x8x8xf32> -> vector<4x8x8xf32>
    %c8 = arith.constant 8 : index
    %c0_23 = arith.constant 0 : index
    %125 = vector.load %arg1[%c8, %c0_23] : memref<16x128xf32, #tpu.memory_space<vmem>>, vector<8x8xf32>
    %126 = vector.shape_cast %125 : vector<8x8xf32> to vector<1x8x8xf32>
    %127 = vector.broadcast %126 : vector<1x8x8xf32> to vector<4x8x8xf32>
    %128 = arith.addf %124, %127 : vector<4x8x8xf32>
    %cst_24 = arith.constant dense<0xFF800000> : vector<4x8xf32>
    %129 = vector.multi_reduction <maximumf>, %128, %cst_24 [2] : vector<4x8x8xf32> to vector<4x8xf32>
    %130 = vector.shape_cast %129 : vector<4x8xf32> to vector<4x8x1xf32>
    %131 = vector.broadcast %130 : vector<4x8x1xf32> to vector<4x8x8xf32>
    %132 = arith.subf %128, %131 : vector<4x8x8xf32>
    %133 = math.exp %132 : vector<4x8x8xf32>
    %cst_25 = arith.constant dense<0.000000e+00> : vector<4x8xf32>
    %134 = vector.multi_reduction <add>, %133, %cst_25 [2] : vector<4x8x8xf32> to vector<4x8xf32>
    %135 = vector.shape_cast %134 : vector<4x8xf32> to vector<4x8x1xf32>
    %136 = tpu.reciprocal %135 {approx = true} : vector<4x8x1xf32> -> vector<4x8x1xf32>
    %137 = vector.broadcast %136 : vector<4x8x1xf32> to vector<4x8x8xf32>
    %138 = arith.mulf %133, %137 : vector<4x8x8xf32>
    %cst_26 = arith.constant dense<0.000000e+00> : vector<4x8x8xf32>
    %139 = tpu.matmul %138, %123, %cst_26 {dimension_numbers = #tpu.dot_dimension_numbers<[2], [1], [1], [2], [0, 0, 0, 1, 1, 2], [0], [0]>} : vector<4x8x8xf32>, vector<4x8x8xf32>, vector<4x8x8xf32> -> vector<4x8x8xf32>
    %cst_27 = arith.constant dense<0.000000e+00> : vector<4x8x32xf32>
    %140 = tpu.matmul %139, %42, %cst_27 {dimension_numbers = #tpu.dot_dimension_numbers<[2], [1], [1], [2], [0, 0, 0, 1, 1, 2], [0], [0]>} : vector<4x8x8xf32>, vector<4x8x32xf32>, vector<4x8x32xf32> -> vector<4x8x32xf32>
    %cst_28 = arith.constant dense<0.000000e+00> : vector<8x32xf32>
    %141 = vector.multi_reduction <add>, %140, %cst_28 [0] : vector<4x8x32xf32> to vector<8x32xf32>
    %142 = vector.broadcast %43 : vector<1x32xf32> to vector<8x32xf32>
    %143 = arith.addf %141, %142 : vector<8x32xf32>
    %144 = tpu.concatenate %93, %143 in 0 : vector<8x32xf32>, vector<8x32xf32> -> vector<16x32xf32>
    %145 = arith.addf %1, %144 : vector<16x32xf32>
    %cst_29 = arith.constant dense<0.000000e+00> : vector<16xf32>
    %146 = vector.multi_reduction <add>, %145, %cst_29 [1] : vector<16x32xf32> to vector<16xf32>
    %147 = vector.shape_cast %146 : vector<16xf32> to vector<16x1xf32>
    %cst_30 = arith.constant 3.200000e+01 : f32
    %148 = vector.broadcast %cst_30 : f32 to vector<16x1xf32>
    %149 = arith.divf %147, %148 : vector<16x1xf32>
    %150 = vector.broadcast %149 : vector<16x1xf32> to vector<16x32xf32>
    %151 = arith.subf %145, %150 : vector<16x32xf32>
    %152 = arith.mulf %151, %151 : vector<16x32xf32>
    %cst_31 = arith.constant dense<0.000000e+00> : vector<16xf32>
    %153 = vector.multi_reduction <add>, %152, %cst_31 [1] : vector<16x32xf32> to vector<16xf32>
    %154 = vector.shape_cast %153 : vector<16xf32> to vector<16x1xf32>
    %cst_32 = arith.constant 3.100000e+01 : f32
    %155 = vector.broadcast %cst_32 : f32 to vector<16x1xf32>
    %156 = arith.divf %154, %155 : vector<16x1xf32>
    %157 = math.sqrt %156 : vector<16x1xf32>
    %c4 = arith.constant 4 : index
    %c0_33 = arith.constant 0 : index
    %158 = vector.load %arg3[%c4, %c0_33] : memref<48x128xf32, #tpu.memory_space<vmem>>, vector<1x32xf32>
    %159 = vector.broadcast %158 : vector<1x32xf32> to vector<16x32xf32>
    %160 = arith.mulf %159, %151 : vector<16x32xf32>
    %cst_34 = arith.constant 9.99999997E-7 : f32
    %161 = vector.broadcast %cst_34 : f32 to vector<16x1xf32>
    %162 = arith.addf %157, %161 : vector<16x1xf32>
    %163 = vector.broadcast %162 : vector<16x1xf32> to vector<16x32xf32>
    %164 = arith.divf %160, %163 : vector<16x32xf32>
    %c5 = arith.constant 5 : index
    %c0_35 = arith.constant 0 : index
    %165 = vector.load %arg3[%c5, %c0_35] : memref<48x128xf32, #tpu.memory_space<vmem>>, vector<1x32xf32>
    %166 = vector.broadcast %165 : vector<1x32xf32> to vector<16x32xf32>
    %167 = arith.addf %164, %166 : vector<16x32xf32>
    %c64 = arith.constant 64 : index
    %c0_36 = arith.constant 0 : index
    %168 = vector.load %arg2[%c64, %c0_36] : memref<832x128xf32, #tpu.memory_space<vmem>>, vector<32x64xf32>
    %cst_37 = arith.constant dense<0.000000e+00> : vector<16x64xf32>
    %169 = tpu.matmul %167, %168, %cst_37 {dimension_numbers = #tpu.dot_dimension_numbers<[1], [0], [0], [1], [0, 0, 1, 1], [], []>} : vector<16x32xf32>, vector<32x64xf32>, vector<16x64xf32> -> vector<16x64xf32>
    %c6 = arith.constant 6 : index
    %c0_38 = arith.constant 0 : index
    %170 = vector.load %arg3[%c6, %c0_38] : memref<48x128xf32, #tpu.memory_space<vmem>>, vector<1x64xf32>
    %171 = vector.broadcast %170 : vector<1x64xf32> to vector<16x64xf32>
    %172 = arith.addf %169, %171 : vector<16x64xf32>
    %cst_39 = arith.constant 0.000000e+00 : f32
    %173 = vector.broadcast %cst_39 : f32 to vector<16x64xf32>
    %174 = arith.maximumf %172, %173 : vector<16x64xf32>
    %c96 = arith.constant 96 : index
    %c0_40 = arith.constant 0 : index
    %175 = vector.load %arg2[%c96, %c0_40] : memref<832x128xf32, #tpu.memory_space<vmem>>, vector<64x32xf32>
    %cst_41 = arith.constant dense<0.000000e+00> : vector<16x32xf32>
    %176 = tpu.matmul %174, %175, %cst_41 {dimension_numbers = #tpu.dot_dimension_numbers<[1], [0], [0], [1], [0, 0, 1, 1], [], []>} : vector<16x64xf32>, vector<64x32xf32>, vector<16x32xf32> -> vector<16x32xf32>
    %c7 = arith.constant 7 : index
    %c0_42 = arith.constant 0 : index
    %177 = vector.load %arg3[%c7, %c0_42] : memref<48x128xf32, #tpu.memory_space<vmem>>, vector<1x32xf32>
    %178 = vector.broadcast %177 : vector<1x32xf32> to vector<16x32xf32>
    %179 = arith.addf %176, %178 : vector<16x32xf32>
    %180 = arith.addf %145, %179 : vector<16x32xf32>
    %cst_43 = arith.constant dense<0.000000e+00> : vector<16xf32>
    %181 = vector.multi_reduction <add>, %180, %cst_43 [1] : vector<16x32xf32> to vector<16xf32>
    %182 = vector.shape_cast %181 : vector<16xf32> to vector<16x1xf32>
    %cst_44 = arith.constant 3.200000e+01 : f32
    %183 = vector.broadcast %cst_44 : f32 to vector<16x1xf32>
    %184 = arith.divf %182, %183 : vector<16x1xf32>
    %185 = vector.broadcast %184 : vector<16x1xf32> to vector<16x32xf32>
    %186 = arith.subf %180, %185 : vector<16x32xf32>
    %187 = arith.mulf %186, %186 : vector<16x32xf32>
    %cst_45 = arith.constant dense<0.000000e+00> : vector<16xf32>
    %188 = vector.multi_reduction <add>, %187, %cst_45 [1] : vector<16x32xf32> to vector<16xf32>
    %189 = vector.shape_cast %188 : vector<16xf32> to vector<16x1xf32>
    %cst_46 = arith.constant 3.100000e+01 : f32
    %190 = vector.broadcast %cst_46 : f32 to vector<16x1xf32>
    %191 = arith.divf %189, %190 : vector<16x1xf32>
    %192 = math.sqrt %191 : vector<16x1xf32>
    %c8_47 = arith.constant 8 : index
    %c0_48 = arith.constant 0 : index
    %193 = vector.load %arg3[%c8_47, %c0_48] : memref<48x128xf32, #tpu.memory_space<vmem>>, vector<1x32xf32>
    %194 = vector.broadcast %193 : vector<1x32xf32> to vector<16x32xf32>
    %195 = arith.mulf %194, %186 : vector<16x32xf32>
    %cst_49 = arith.constant 9.99999997E-7 : f32
    %196 = vector.broadcast %cst_49 : f32 to vector<16x1xf32>
    %197 = arith.addf %192, %196 : vector<16x1xf32>
    %198 = vector.broadcast %197 : vector<16x1xf32> to vector<16x32xf32>
    %199 = arith.divf %195, %198 : vector<16x32xf32>
    %c9 = arith.constant 9 : index
    %c0_50 = arith.constant 0 : index
    %200 = vector.load %arg3[%c9, %c0_50] : memref<48x128xf32, #tpu.memory_space<vmem>>, vector<1x32xf32>
    %201 = vector.broadcast %200 : vector<1x32xf32> to vector<16x32xf32>
    %202 = arith.addf %199, %201 : vector<16x32xf32>
    %c160 = arith.constant 160 : index
    %c0_51 = arith.constant 0 : index
    %203 = vector.load %arg2[%c160, %c0_51] : memref<832x128xf32, #tpu.memory_space<vmem>>, vector<32x96xf32>
    %cst_52 = arith.constant dense<0.000000e+00> : vector<16x96xf32>
    %204 = tpu.matmul %202, %203, %cst_52 {dimension_numbers = #tpu.dot_dimension_numbers<[1], [0], [0], [1], [0, 0, 1, 1], [], []>} : vector<16x32xf32>, vector<32x96xf32>, vector<16x96xf32> -> vector<16x96xf32>
    %c10 = arith.constant 10 : index
    %c0_53 = arith.constant 0 : index
    %205 = vector.load %arg3[%c10, %c0_53] : memref<48x128xf32, #tpu.memory_space<vmem>>, vector<1x96xf32>
    %206 = vector.broadcast %205 : vector<1x96xf32> to vector<16x96xf32>
    %207 = arith.addf %204, %206 : vector<16x96xf32>
    %208 = vector.extract_strided_slice %207 {offsets = [0, 0], sizes = [16, 32], strides = [1, 1]} : vector<16x96xf32> to vector<16x32xf32>
    %209 = vector.extract_strided_slice %207 {offsets = [0, 32], sizes = [16, 32], strides = [1, 1]} : vector<16x96xf32> to vector<16x32xf32>
    %210 = vector.extract_strided_slice %207 {offsets = [0, 64], sizes = [16, 32], strides = [1, 1]} : vector<16x96xf32> to vector<16x32xf32>
    %c192 = arith.constant 192 : index
    %c0_54 = arith.constant 0 : index
    %211 = vector.load %arg2[%c192, %c0_54] : memref<832x128xf32, #tpu.memory_space<vmem>>, vector<32x32xf32>
    %212 = vector.extract_strided_slice %211 {offsets = [0, 0], sizes = [8, 32], strides = [1, 1]} : vector<32x32xf32> to vector<8x32xf32>
    %213 = vector.extract_strided_slice %211 {offsets = [8, 0], sizes = [8, 32], strides = [1, 1]} : vector<32x32xf32> to vector<8x32xf32>
    %214 = vector.extract_strided_slice %211 {offsets = [16, 0], sizes = [8, 32], strides = [1, 1]} : vector<32x32xf32> to vector<8x32xf32>
    %215 = vector.extract_strided_slice %211 {offsets = [24, 0], sizes = [8, 32], strides = [1, 1]} : vector<32x32xf32> to vector<8x32xf32>
    %216 = vector.shape_cast %212 : vector<8x32xf32> to vector<1x8x32xf32>
    %217 = vector.shape_cast %213 : vector<8x32xf32> to vector<1x8x32xf32>
    %218 = vector.shape_cast %214 : vector<8x32xf32> to vector<1x8x32xf32>
    %219 = vector.shape_cast %215 : vector<8x32xf32> to vector<1x8x32xf32>
    %220 = tpu.concatenate %216, %217, %218, %219 in 0 : vector<1x8x32xf32>, vector<1x8x32xf32>, vector<1x8x32xf32>, vector<1x8x32xf32> -> vector<4x8x32xf32>
    %c11 = arith.constant 11 : index
    %c0_55 = arith.constant 0 : index
    %221 = vector.load %arg3[%c11, %c0_55] : memref<48x128xf32, #tpu.memory_space<vmem>>, vector<1x32xf32>
    %222 = vector.extract_strided_slice %208 {offsets = [0, 0], sizes = [8, 32], strides = [1, 1]} : vector<16x32xf32> to vector<8x32xf32>
    %223 = vector.extract_strided_slice %209 {offsets = [0, 0], sizes = [8, 32], strides = [1, 1]} : vector<16x32xf32> to vector<8x32xf32>
    %224 = vector.extract_strided_slice %210 {offsets = [0, 0], sizes = [8, 32], strides = [1, 1]} : vector<16x32xf32> to vector<8x32xf32>
    %225 = vector.extract_strided_slice %222 {offsets = [0, 0], sizes = [8, 8], strides = [1, 1]} : vector<8x32xf32> to vector<8x8xf32>
    %226 = vector.extract_strided_slice %222 {offsets = [0, 8], sizes = [8, 8], strides = [1, 1]} : vector<8x32xf32> to vector<8x8xf32>
    %227 = vector.extract_strided_slice %222 {offsets = [0, 16], sizes = [8, 8], strides = [1, 1]} : vector<8x32xf32> to vector<8x8xf32>
    %228 = vector.extract_strided_slice %222 {offsets = [0, 24], sizes = [8, 8], strides = [1, 1]} : vector<8x32xf32> to vector<8x8xf32>
    %229 = vector.shape_cast %225 : vector<8x8xf32> to vector<1x8x8xf32>
    %230 = vector.shape_cast %226 : vector<8x8xf32> to vector<1x8x8xf32>
    %231 = vector.shape_cast %227 : vector<8x8xf32> to vector<1x8x8xf32>
    %232 = vector.shape_cast %228 : vector<8x8xf32> to vector<1x8x8xf32>
    %233 = tpu.concatenate %229, %230, %231, %232 in 0 : vector<1x8x8xf32>, vector<1x8x8xf32>, vector<1x8x8xf32>, vector<1x8x8xf32> -> vector<4x8x8xf32>
    %234 = vector.extract_strided_slice %223 {offsets = [0, 0], sizes = [8, 8], strides = [1, 1]} : vector<8x32xf32> to vector<8x8xf32>
    %235 = vector.extract_strided_slice %223 {offsets = [0, 8], sizes = [8, 8], strides = [1, 1]} : vector<8x32xf32> to vector<8x8xf32>
    %236 = vector.extract_strided_slice %223 {offsets = [0, 16], sizes = [8, 8], strides = [1, 1]} : vector<8x32xf32> to vector<8x8xf32>
    %237 = vector.extract_strided_slice %223 {offsets = [0, 24], sizes = [8, 8], strides = [1, 1]} : vector<8x32xf32> to vector<8x8xf32>
    %238 = vector.shape_cast %234 : vector<8x8xf32> to vector<1x8x8xf32>
    %239 = vector.shape_cast %235 : vector<8x8xf32> to vector<1x8x8xf32>
    %240 = vector.shape_cast %236 : vector<8x8xf32> to vector<1x8x8xf32>
    %241 = vector.shape_cast %237 : vector<8x8xf32> to vector<1x8x8xf32>
    %242 = tpu.concatenate %238, %239, %240, %241 in 0 : vector<1x8x8xf32>, vector<1x8x8xf32>, vector<1x8x8xf32>, vector<1x8x8xf32> -> vector<4x8x8xf32>
    %243 = vector.extract_strided_slice %224 {offsets = [0, 0], sizes = [8, 8], strides = [1, 1]} : vector<8x32xf32> to vector<8x8xf32>
    %244 = vector.extract_strided_slice %224 {offsets = [0, 8], sizes = [8, 8], strides = [1, 1]} : vector<8x32xf32> to vector<8x8xf32>
    %245 = vector.extract_strided_slice %224 {offsets = [0, 16], sizes = [8, 8], strides = [1, 1]} : vector<8x32xf32> to vector<8x8xf32>
    %246 = vector.extract_strided_slice %224 {offsets = [0, 24], sizes = [8, 8], strides = [1, 1]} : vector<8x32xf32> to vector<8x8xf32>
    %247 = vector.shape_cast %243 : vector<8x8xf32> to vector<1x8x8xf32>
    %248 = vector.shape_cast %244 : vector<8x8xf32> to vector<1x8x8xf32>
    %249 = vector.shape_cast %245 : vector<8x8xf32> to vector<1x8x8xf32>
    %250 = vector.shape_cast %246 : vector<8x8xf32> to vector<1x8x8xf32>
    %251 = tpu.concatenate %247, %248, %249, %250 in 0 : vector<1x8x8xf32>, vector<1x8x8xf32>, vector<1x8x8xf32>, vector<1x8x8xf32> -> vector<4x8x8xf32>
    %cst_56 = arith.constant dense<0.000000e+00> : vector<4x8x8xf32>
    %252 = tpu.matmul %233, %242, %cst_56 {dimension_numbers = #tpu.dot_dimension_numbers<[2], [2], [1], [1], [0, 0, 0, 1, 1, 1], [0], [0]>} : vector<4x8x8xf32>, vector<4x8x8xf32>, vector<4x8x8xf32> -> vector<4x8x8xf32>
    %c0_57 = arith.constant 0 : index
    %c0_58 = arith.constant 0 : index
    %253 = vector.load %arg1[%c0_57, %c0_58] : memref<16x128xf32, #tpu.memory_space<vmem>>, vector<8x8xf32>
    %254 = vector.shape_cast %253 : vector<8x8xf32> to vector<1x8x8xf32>
    %255 = vector.broadcast %254 : vector<1x8x8xf32> to vector<4x8x8xf32>
    %256 = arith.addf %252, %255 : vector<4x8x8xf32>
    %cst_59 = arith.constant dense<0xFF800000> : vector<4x8xf32>
    %257 = vector.multi_reduction <maximumf>, %256, %cst_59 [2] : vector<4x8x8xf32> to vector<4x8xf32>
    %258 = vector.shape_cast %257 : vector<4x8xf32> to vector<4x8x1xf32>
    %259 = vector.broadcast %258 : vector<4x8x1xf32> to vector<4x8x8xf32>
    %260 = arith.subf %256, %259 : vector<4x8x8xf32>
    %261 = math.exp %260 : vector<4x8x8xf32>
    %cst_60 = arith.constant dense<0.000000e+00> : vector<4x8xf32>
    %262 = vector.multi_reduction <add>, %261, %cst_60 [2] : vector<4x8x8xf32> to vector<4x8xf32>
    %263 = vector.shape_cast %262 : vector<4x8xf32> to vector<4x8x1xf32>
    %264 = tpu.reciprocal %263 {approx = true} : vector<4x8x1xf32> -> vector<4x8x1xf32>
    %265 = vector.broadcast %264 : vector<4x8x1xf32> to vector<4x8x8xf32>
    %266 = arith.mulf %261, %265 : vector<4x8x8xf32>
    %cst_61 = arith.constant dense<0.000000e+00> : vector<4x8x8xf32>
    %267 = tpu.matmul %266, %251, %cst_61 {dimension_numbers = #tpu.dot_dimension_numbers<[2], [1], [1], [2], [0, 0, 0, 1, 1, 2], [0], [0]>} : vector<4x8x8xf32>, vector<4x8x8xf32>, vector<4x8x8xf32> -> vector<4x8x8xf32>
    %cst_62 = arith.constant dense<0.000000e+00> : vector<4x8x32xf32>
    %268 = tpu.matmul %267, %220, %cst_62 {dimension_numbers = #tpu.dot_dimension_numbers<[2], [1], [1], [2], [0, 0, 0, 1, 1, 2], [0], [0]>} : vector<4x8x8xf32>, vector<4x8x32xf32>, vector<4x8x32xf32> -> vector<4x8x32xf32>
    %cst_63 = arith.constant dense<0.000000e+00> : vector<8x32xf32>
    %269 = vector.multi_reduction <add>, %268, %cst_63 [0] : vector<4x8x32xf32> to vector<8x32xf32>
    %270 = vector.broadcast %221 : vector<1x32xf32> to vector<8x32xf32>
    %271 = arith.addf %269, %270 : vector<8x32xf32>
    %272 = vector.extract_strided_slice %208 {offsets = [8, 0], sizes = [8, 32], strides = [1, 1]} : vector<16x32xf32> to vector<8x32xf32>
    %273 = vector.extract_strided_slice %209 {offsets = [8, 0], sizes = [8, 32], strides = [1, 1]} : vector<16x32xf32> to vector<8x32xf32>
    %274 = vector.extract_strided_slice %210 {offsets = [8, 0], sizes = [8, 32], strides = [1, 1]} : vector<16x32xf32> to vector<8x32xf32>
    %275 = vector.extract_strided_slice %272 {offsets = [0, 0], sizes = [8, 8], strides = [1, 1]} : vector<8x32xf32> to vector<8x8xf32>
    %276 = vector.extract_strided_slice %272 {offsets = [0, 8], sizes = [8, 8], strides = [1, 1]} : vector<8x32xf32> to vector<8x8xf32>
    %277 = vector.extract_strided_slice %272 {offsets = [0, 16], sizes = [8, 8], strides = [1, 1]} : vector<8x32xf32> to vector<8x8xf32>
    %278 = vector.extract_strided_slice %272 {offsets = [0, 24], sizes = [8, 8], strides = [1, 1]} : vector<8x32xf32> to vector<8x8xf32>
    %279 = vector.shape_cast %275 : vector<8x8xf32> to vector<1x8x8xf32>
    %280 = vector.shape_cast %276 : vector<8x8xf32> to vector<1x8x8xf32>
    %281 = vector.shape_cast %277 : vector<8x8xf32> to vector<1x8x8xf32>
    %282 = vector.shape_cast %278 : vector<8x8xf32> to vector<1x8x8xf32>
    %283 = tpu.concatenate %279, %280, %281, %282 in 0 : vector<1x8x8xf32>, vector<1x8x8xf32>, vector<1x8x8xf32>, vector<1x8x8xf32> -> vector<4x8x8xf32>
    %284 = vector.extract_strided_slice %273 {offsets = [0, 0], sizes = [8, 8], strides = [1, 1]} : vector<8x32xf32> to vector<8x8xf32>
    %285 = vector.extract_strided_slice %273 {offsets = [0, 8], sizes = [8, 8], strides = [1, 1]} : vector<8x32xf32> to vector<8x8xf32>
    %286 = vector.extract_strided_slice %273 {offsets = [0, 16], sizes = [8, 8], strides = [1, 1]} : vector<8x32xf32> to vector<8x8xf32>
    %287 = vector.extract_strided_slice %273 {offsets = [0, 24], sizes = [8, 8], strides = [1, 1]} : vector<8x32xf32> to vector<8x8xf32>
    %288 = vector.shape_cast %284 : vector<8x8xf32> to vector<1x8x8xf32>
    %289 = vector.shape_cast %285 : vector<8x8xf32> to vector<1x8x8xf32>
    %290 = vector.shape_cast %286 : vector<8x8xf32> to vector<1x8x8xf32>
    %291 = vector.shape_cast %287 : vector<8x8xf32> to vector<1x8x8xf32>
    %292 = tpu.concatenate %288, %289, %290, %291 in 0 : vector<1x8x8xf32>, vector<1x8x8xf32>, vector<1x8x8xf32>, vector<1x8x8xf32> -> vector<4x8x8xf32>
    %293 = vector.extract_strided_slice %274 {offsets = [0, 0], sizes = [8, 8], strides = [1, 1]} : vector<8x32xf32> to vector<8x8xf32>
    %294 = vector.extract_strided_slice %274 {offsets = [0, 8], sizes = [8, 8], strides = [1, 1]} : vector<8x32xf32> to vector<8x8xf32>
    %295 = vector.extract_strided_slice %274 {offsets = [0, 16], sizes = [8, 8], strides = [1, 1]} : vector<8x32xf32> to vector<8x8xf32>
    %296 = vector.extract_strided_slice %274 {offsets = [0, 24], sizes = [8, 8], strides = [1, 1]} : vector<8x32xf32> to vector<8x8xf32>
    %297 = vector.shape_cast %293 : vector<8x8xf32> to vector<1x8x8xf32>
    %298 = vector.shape_cast %294 : vector<8x8xf32> to vector<1x8x8xf32>
    %299 = vector.shape_cast %295 : vector<8x8xf32> to vector<1x8x8xf32>
    %300 = vector.shape_cast %296 : vector<8x8xf32> to vector<1x8x8xf32>
    %301 = tpu.concatenate %297, %298, %299, %300 in 0 : vector<1x8x8xf32>, vector<1x8x8xf32>, vector<1x8x8xf32>, vector<1x8x8xf32> -> vector<4x8x8xf32>
    %cst_64 = arith.constant dense<0.000000e+00> : vector<4x8x8xf32>
    %302 = tpu.matmul %283, %292, %cst_64 {dimension_numbers = #tpu.dot_dimension_numbers<[2], [2], [1], [1], [0, 0, 0, 1, 1, 1], [0], [0]>} : vector<4x8x8xf32>, vector<4x8x8xf32>, vector<4x8x8xf32> -> vector<4x8x8xf32>
    %c8_65 = arith.constant 8 : index
    %c0_66 = arith.constant 0 : index
    %303 = vector.load %arg1[%c8_65, %c0_66] : memref<16x128xf32, #tpu.memory_space<vmem>>, vector<8x8xf32>
    %304 = vector.shape_cast %303 : vector<8x8xf32> to vector<1x8x8xf32>
    %305 = vector.broadcast %304 : vector<1x8x8xf32> to vector<4x8x8xf32>
    %306 = arith.addf %302, %305 : vector<4x8x8xf32>
    %cst_67 = arith.constant dense<0xFF800000> : vector<4x8xf32>
    %307 = vector.multi_reduction <maximumf>, %306, %cst_67 [2] : vector<4x8x8xf32> to vector<4x8xf32>
    %308 = vector.shape_cast %307 : vector<4x8xf32> to vector<4x8x1xf32>
    %309 = vector.broadcast %308 : vector<4x8x1xf32> to vector<4x8x8xf32>
    %310 = arith.subf %306, %309 : vector<4x8x8xf32>
    %311 = math.exp %310 : vector<4x8x8xf32>
    %cst_68 = arith.constant dense<0.000000e+00> : vector<4x8xf32>
    %312 = vector.multi_reduction <add>, %311, %cst_68 [2] : vector<4x8x8xf32> to vector<4x8xf32>
    %313 = vector.shape_cast %312 : vector<4x8xf32> to vector<4x8x1xf32>
    %314 = tpu.reciprocal %313 {approx = true} : vector<4x8x1xf32> -> vector<4x8x1xf32>
    %315 = vector.broadcast %314 : vector<4x8x1xf32> to vector<4x8x8xf32>
    %316 = arith.mulf %311, %315 : vector<4x8x8xf32>
    %cst_69 = arith.constant dense<0.000000e+00> : vector<4x8x8xf32>
    %317 = tpu.matmul %316, %301, %cst_69 {dimension_numbers = #tpu.dot_dimension_numbers<[2], [1], [1], [2], [0, 0, 0, 1, 1, 2], [0], [0]>} : vector<4x8x8xf32>, vector<4x8x8xf32>, vector<4x8x8xf32> -> vector<4x8x8xf32>
    %cst_70 = arith.constant dense<0.000000e+00> : vector<4x8x32xf32>
    %318 = tpu.matmul %317, %220, %cst_70 {dimension_numbers = #tpu.dot_dimension_numbers<[2], [1], [1], [2], [0, 0, 0, 1, 1, 2], [0], [0]>} : vector<4x8x8xf32>, vector<4x8x32xf32>, vector<4x8x32xf32> -> vector<4x8x32xf32>
    %cst_71 = arith.constant dense<0.000000e+00> : vector<8x32xf32>
    %319 = vector.multi_reduction <add>, %318, %cst_71 [0] : vector<4x8x32xf32> to vector<8x32xf32>
    %320 = vector.broadcast %221 : vector<1x32xf32> to vector<8x32xf32>
    %321 = arith.addf %319, %320 : vector<8x32xf32>
    %322 = tpu.concatenate %271, %321 in 0 : vector<8x32xf32>, vector<8x32xf32> -> vector<16x32xf32>
    %323 = arith.addf %180, %322 : vector<16x32xf32>
    %cst_72 = arith.constant dense<0.000000e+00> : vector<16xf32>
    %324 = vector.multi_reduction <add>, %323, %cst_72 [1] : vector<16x32xf32> to vector<16xf32>
    %325 = vector.shape_cast %324 : vector<16xf32> to vector<16x1xf32>
    %cst_73 = arith.constant 3.200000e+01 : f32
    %326 = vector.broadcast %cst_73 : f32 to vector<16x1xf32>
    %327 = arith.divf %325, %326 : vector<16x1xf32>
    %328 = vector.broadcast %327 : vector<16x1xf32> to vector<16x32xf32>
    %329 = arith.subf %323, %328 : vector<16x32xf32>
    %330 = arith.mulf %329, %329 : vector<16x32xf32>
    %cst_74 = arith.constant dense<0.000000e+00> : vector<16xf32>
    %331 = vector.multi_reduction <add>, %330, %cst_74 [1] : vector<16x32xf32> to vector<16xf32>
    %332 = vector.shape_cast %331 : vector<16xf32> to vector<16x1xf32>
    %cst_75 = arith.constant 3.100000e+01 : f32
    %333 = vector.broadcast %cst_75 : f32 to vector<16x1xf32>
    %334 = arith.divf %332, %333 : vector<16x1xf32>
    %335 = math.sqrt %334 : vector<16x1xf32>
    %c12 = arith.constant 12 : index
    %c0_76 = arith.constant 0 : index
    %336 = vector.load %arg3[%c12, %c0_76] : memref<48x128xf32, #tpu.memory_space<vmem>>, vector<1x32xf32>
    %337 = vector.broadcast %336 : vector<1x32xf32> to vector<16x32xf32>
    %338 = arith.mulf %337, %329 : vector<16x32xf32>
    %cst_77 = arith.constant 9.99999997E-7 : f32
    %339 = vector.broadcast %cst_77 : f32 to vector<16x1xf32>
    %340 = arith.addf %335, %339 : vector<16x1xf32>
    %341 = vector.broadcast %340 : vector<16x1xf32> to vector<16x32xf32>
    %342 = arith.divf %338, %341 : vector<16x32xf32>
    %c13 = arith.constant 13 : index
    %c0_78 = arith.constant 0 : index
    %343 = vector.load %arg3[%c13, %c0_78] : memref<48x128xf32, #tpu.memory_space<vmem>>, vector<1x32xf32>
    %344 = vector.broadcast %343 : vector<1x32xf32> to vector<16x32xf32>
    %345 = arith.addf %342, %344 : vector<16x32xf32>
    %c224 = arith.constant 224 : index
    %c0_79 = arith.constant 0 : index
    %346 = vector.load %arg2[%c224, %c0_79] : memref<832x128xf32, #tpu.memory_space<vmem>>, vector<32x64xf32>
    %cst_80 = arith.constant dense<0.000000e+00> : vector<16x64xf32>
    %347 = tpu.matmul %345, %346, %cst_80 {dimension_numbers = #tpu.dot_dimension_numbers<[1], [0], [0], [1], [0, 0, 1, 1], [], []>} : vector<16x32xf32>, vector<32x64xf32>, vector<16x64xf32> -> vector<16x64xf32>
    %c14 = arith.constant 14 : index
    %c0_81 = arith.constant 0 : index
    %348 = vector.load %arg3[%c14, %c0_81] : memref<48x128xf32, #tpu.memory_space<vmem>>, vector<1x64xf32>
    %349 = vector.broadcast %348 : vector<1x64xf32> to vector<16x64xf32>
    %350 = arith.addf %347, %349 : vector<16x64xf32>
    %cst_82 = arith.constant 0.000000e+00 : f32
    %351 = vector.broadcast %cst_82 : f32 to vector<16x64xf32>
    %352 = arith.maximumf %350, %351 : vector<16x64xf32>
    %c256 = arith.constant 256 : index
    %c0_83 = arith.constant 0 : index
    %353 = vector.load %arg2[%c256, %c0_83] : memref<832x128xf32, #tpu.memory_space<vmem>>, vector<64x32xf32>
    %cst_84 = arith.constant dense<0.000000e+00> : vector<16x32xf32>
    %354 = tpu.matmul %352, %353, %cst_84 {dimension_numbers = #tpu.dot_dimension_numbers<[1], [0], [0], [1], [0, 0, 1, 1], [], []>} : vector<16x64xf32>, vector<64x32xf32>, vector<16x32xf32> -> vector<16x32xf32>
    %c15 = arith.constant 15 : index
    %c0_85 = arith.constant 0 : index
    %355 = vector.load %arg3[%c15, %c0_85] : memref<48x128xf32, #tpu.memory_space<vmem>>, vector<1x32xf32>
    %356 = vector.broadcast %355 : vector<1x32xf32> to vector<16x32xf32>
    %357 = arith.addf %354, %356 : vector<16x32xf32>
    %358 = arith.addf %323, %357 : vector<16x32xf32>
    %cst_86 = arith.constant dense<0.000000e+00> : vector<16xf32>
    %359 = vector.multi_reduction <add>, %358, %cst_86 [1] : vector<16x32xf32> to vector<16xf32>
    %360 = vector.shape_cast %359 : vector<16xf32> to vector<16x1xf32>
    %cst_87 = arith.constant 3.200000e+01 : f32
    %361 = vector.broadcast %cst_87 : f32 to vector<16x1xf32>
    %362 = arith.divf %360, %361 : vector<16x1xf32>
    %363 = vector.broadcast %362 : vector<16x1xf32> to vector<16x32xf32>
    %364 = arith.subf %358, %363 : vector<16x32xf32>
    %365 = arith.mulf %364, %364 : vector<16x32xf32>
    %cst_88 = arith.constant dense<0.000000e+00> : vector<16xf32>
    %366 = vector.multi_reduction <add>, %365, %cst_88 [1] : vector<16x32xf32> to vector<16xf32>
    %367 = vector.shape_cast %366 : vector<16xf32> to vector<16x1xf32>
    %cst_89 = arith.constant 3.100000e+01 : f32
    %368 = vector.broadcast %cst_89 : f32 to vector<16x1xf32>
    %369 = arith.divf %367, %368 : vector<16x1xf32>
    %370 = math.sqrt %369 : vector<16x1xf32>
    %c16 = arith.constant 16 : index
    %c0_90 = arith.constant 0 : index
    %371 = vector.load %arg3[%c16, %c0_90] : memref<48x128xf32, #tpu.memory_space<vmem>>, vector<1x32xf32>
    %372 = vector.broadcast %371 : vector<1x32xf32> to vector<16x32xf32>
    %373 = arith.mulf %372, %364 : vector<16x32xf32>
    %cst_91 = arith.constant 9.99999997E-7 : f32
    %374 = vector.broadcast %cst_91 : f32 to vector<16x1xf32>
    %375 = arith.addf %370, %374 : vector<16x1xf32>
    %376 = vector.broadcast %375 : vector<16x1xf32> to vector<16x32xf32>
    %377 = arith.divf %373, %376 : vector<16x32xf32>
    %c17 = arith.constant 17 : index
    %c0_92 = arith.constant 0 : index
    %378 = vector.load %arg3[%c17, %c0_92] : memref<48x128xf32, #tpu.memory_space<vmem>>, vector<1x32xf32>
    %379 = vector.broadcast %378 : vector<1x32xf32> to vector<16x32xf32>
    %380 = arith.addf %377, %379 : vector<16x32xf32>
    %cst_93 = arith.constant dense<0.000000e+00> : vector<16xf32>
    %381 = vector.multi_reduction <add>, %2, %cst_93 [1] : vector<16x32xf32> to vector<16xf32>
    %382 = vector.shape_cast %381 : vector<16xf32> to vector<16x1xf32>
    %cst_94 = arith.constant 3.200000e+01 : f32
    %383 = vector.broadcast %cst_94 : f32 to vector<16x1xf32>
    %384 = arith.divf %382, %383 : vector<16x1xf32>
    %385 = vector.broadcast %384 : vector<16x1xf32> to vector<16x32xf32>
    %386 = arith.subf %2, %385 : vector<16x32xf32>
    %387 = arith.mulf %386, %386 : vector<16x32xf32>
    %cst_95 = arith.constant dense<0.000000e+00> : vector<16xf32>
    %388 = vector.multi_reduction <add>, %387, %cst_95 [1] : vector<16x32xf32> to vector<16xf32>
    %389 = vector.shape_cast %388 : vector<16xf32> to vector<16x1xf32>
    %cst_96 = arith.constant 3.100000e+01 : f32
    %390 = vector.broadcast %cst_96 : f32 to vector<16x1xf32>
    %391 = arith.divf %389, %390 : vector<16x1xf32>
    %392 = math.sqrt %391 : vector<16x1xf32>
    %c18 = arith.constant 18 : index
    %c0_97 = arith.constant 0 : index
    %393 = vector.load %arg3[%c18, %c0_97] : memref<48x128xf32, #tpu.memory_space<vmem>>, vector<1x32xf32>
    %394 = vector.broadcast %393 : vector<1x32xf32> to vector<16x32xf32>
    %395 = arith.mulf %394, %386 : vector<16x32xf32>
    %cst_98 = arith.constant 9.99999997E-7 : f32
    %396 = vector.broadcast %cst_98 : f32 to vector<16x1xf32>
    %397 = arith.addf %392, %396 : vector<16x1xf32>
    %398 = vector.broadcast %397 : vector<16x1xf32> to vector<16x32xf32>
    %399 = arith.divf %395, %398 : vector<16x32xf32>
    %c19 = arith.constant 19 : index
    %c0_99 = arith.constant 0 : index
    %400 = vector.load %arg3[%c19, %c0_99] : memref<48x128xf32, #tpu.memory_space<vmem>>, vector<1x32xf32>
    %401 = vector.broadcast %400 : vector<1x32xf32> to vector<16x32xf32>
    %402 = arith.addf %399, %401 : vector<16x32xf32>
    %c320 = arith.constant 320 : index
    %c0_100 = arith.constant 0 : index
    %403 = vector.load %arg2[%c320, %c0_100] : memref<832x128xf32, #tpu.memory_space<vmem>>, vector<32x96xf32>
    %cst_101 = arith.constant dense<0.000000e+00> : vector<16x96xf32>
    %404 = tpu.matmul %402, %403, %cst_101 {dimension_numbers = #tpu.dot_dimension_numbers<[1], [0], [0], [1], [0, 0, 1, 1], [], []>} : vector<16x32xf32>, vector<32x96xf32>, vector<16x96xf32> -> vector<16x96xf32>
    %c20 = arith.constant 20 : index
    %c0_102 = arith.constant 0 : index
    %405 = vector.load %arg3[%c20, %c0_102] : memref<48x128xf32, #tpu.memory_space<vmem>>, vector<1x96xf32>
    %406 = vector.broadcast %405 : vector<1x96xf32> to vector<16x96xf32>
    %407 = arith.addf %404, %406 : vector<16x96xf32>
    %408 = vector.extract_strided_slice %407 {offsets = [0, 0], sizes = [16, 32], strides = [1, 1]} : vector<16x96xf32> to vector<16x32xf32>
    %409 = vector.extract_strided_slice %407 {offsets = [0, 32], sizes = [16, 32], strides = [1, 1]} : vector<16x96xf32> to vector<16x32xf32>
    %410 = vector.extract_strided_slice %407 {offsets = [0, 64], sizes = [16, 32], strides = [1, 1]} : vector<16x96xf32> to vector<16x32xf32>
    %c352 = arith.constant 352 : index
    %c0_103 = arith.constant 0 : index
    %411 = vector.load %arg2[%c352, %c0_103] : memref<832x128xf32, #tpu.memory_space<vmem>>, vector<32x32xf32>
    %412 = vector.extract_strided_slice %411 {offsets = [0, 0], sizes = [8, 32], strides = [1, 1]} : vector<32x32xf32> to vector<8x32xf32>
    %413 = vector.extract_strided_slice %411 {offsets = [8, 0], sizes = [8, 32], strides = [1, 1]} : vector<32x32xf32> to vector<8x32xf32>
    %414 = vector.extract_strided_slice %411 {offsets = [16, 0], sizes = [8, 32], strides = [1, 1]} : vector<32x32xf32> to vector<8x32xf32>
    %415 = vector.extract_strided_slice %411 {offsets = [24, 0], sizes = [8, 32], strides = [1, 1]} : vector<32x32xf32> to vector<8x32xf32>
    %416 = vector.shape_cast %412 : vector<8x32xf32> to vector<1x8x32xf32>
    %417 = vector.shape_cast %413 : vector<8x32xf32> to vector<1x8x32xf32>
    %418 = vector.shape_cast %414 : vector<8x32xf32> to vector<1x8x32xf32>
    %419 = vector.shape_cast %415 : vector<8x32xf32> to vector<1x8x32xf32>
    %420 = tpu.concatenate %416, %417, %418, %419 in 0 : vector<1x8x32xf32>, vector<1x8x32xf32>, vector<1x8x32xf32>, vector<1x8x32xf32> -> vector<4x8x32xf32>
    %c21 = arith.constant 21 : index
    %c0_104 = arith.constant 0 : index
    %421 = vector.load %arg3[%c21, %c0_104] : memref<48x128xf32, #tpu.memory_space<vmem>>, vector<1x32xf32>
    %422 = vector.extract_strided_slice %408 {offsets = [0, 0], sizes = [8, 32], strides = [1, 1]} : vector<16x32xf32> to vector<8x32xf32>
    %423 = vector.extract_strided_slice %409 {offsets = [0, 0], sizes = [8, 32], strides = [1, 1]} : vector<16x32xf32> to vector<8x32xf32>
    %424 = vector.extract_strided_slice %410 {offsets = [0, 0], sizes = [8, 32], strides = [1, 1]} : vector<16x32xf32> to vector<8x32xf32>
    %425 = vector.extract_strided_slice %422 {offsets = [0, 0], sizes = [8, 8], strides = [1, 1]} : vector<8x32xf32> to vector<8x8xf32>
    %426 = vector.extract_strided_slice %422 {offsets = [0, 8], sizes = [8, 8], strides = [1, 1]} : vector<8x32xf32> to vector<8x8xf32>
    %427 = vector.extract_strided_slice %422 {offsets = [0, 16], sizes = [8, 8], strides = [1, 1]} : vector<8x32xf32> to vector<8x8xf32>
    %428 = vector.extract_strided_slice %422 {offsets = [0, 24], sizes = [8, 8], strides = [1, 1]} : vector<8x32xf32> to vector<8x8xf32>
    %429 = vector.shape_cast %425 : vector<8x8xf32> to vector<1x8x8xf32>
    %430 = vector.shape_cast %426 : vector<8x8xf32> to vector<1x8x8xf32>
    %431 = vector.shape_cast %427 : vector<8x8xf32> to vector<1x8x8xf32>
    %432 = vector.shape_cast %428 : vector<8x8xf32> to vector<1x8x8xf32>
    %433 = tpu.concatenate %429, %430, %431, %432 in 0 : vector<1x8x8xf32>, vector<1x8x8xf32>, vector<1x8x8xf32>, vector<1x8x8xf32> -> vector<4x8x8xf32>
    %434 = vector.extract_strided_slice %423 {offsets = [0, 0], sizes = [8, 8], strides = [1, 1]} : vector<8x32xf32> to vector<8x8xf32>
    %435 = vector.extract_strided_slice %423 {offsets = [0, 8], sizes = [8, 8], strides = [1, 1]} : vector<8x32xf32> to vector<8x8xf32>
    %436 = vector.extract_strided_slice %423 {offsets = [0, 16], sizes = [8, 8], strides = [1, 1]} : vector<8x32xf32> to vector<8x8xf32>
    %437 = vector.extract_strided_slice %423 {offsets = [0, 24], sizes = [8, 8], strides = [1, 1]} : vector<8x32xf32> to vector<8x8xf32>
    %438 = vector.shape_cast %434 : vector<8x8xf32> to vector<1x8x8xf32>
    %439 = vector.shape_cast %435 : vector<8x8xf32> to vector<1x8x8xf32>
    %440 = vector.shape_cast %436 : vector<8x8xf32> to vector<1x8x8xf32>
    %441 = vector.shape_cast %437 : vector<8x8xf32> to vector<1x8x8xf32>
    %442 = tpu.concatenate %438, %439, %440, %441 in 0 : vector<1x8x8xf32>, vector<1x8x8xf32>, vector<1x8x8xf32>, vector<1x8x8xf32> -> vector<4x8x8xf32>
    %443 = vector.extract_strided_slice %424 {offsets = [0, 0], sizes = [8, 8], strides = [1, 1]} : vector<8x32xf32> to vector<8x8xf32>
    %444 = vector.extract_strided_slice %424 {offsets = [0, 8], sizes = [8, 8], strides = [1, 1]} : vector<8x32xf32> to vector<8x8xf32>
    %445 = vector.extract_strided_slice %424 {offsets = [0, 16], sizes = [8, 8], strides = [1, 1]} : vector<8x32xf32> to vector<8x8xf32>
    %446 = vector.extract_strided_slice %424 {offsets = [0, 24], sizes = [8, 8], strides = [1, 1]} : vector<8x32xf32> to vector<8x8xf32>
    %447 = vector.shape_cast %443 : vector<8x8xf32> to vector<1x8x8xf32>
    %448 = vector.shape_cast %444 : vector<8x8xf32> to vector<1x8x8xf32>
    %449 = vector.shape_cast %445 : vector<8x8xf32> to vector<1x8x8xf32>
    %450 = vector.shape_cast %446 : vector<8x8xf32> to vector<1x8x8xf32>
    %451 = tpu.concatenate %447, %448, %449, %450 in 0 : vector<1x8x8xf32>, vector<1x8x8xf32>, vector<1x8x8xf32>, vector<1x8x8xf32> -> vector<4x8x8xf32>
    %cst_105 = arith.constant dense<0.000000e+00> : vector<4x8x8xf32>
    %452 = tpu.matmul %433, %442, %cst_105 {dimension_numbers = #tpu.dot_dimension_numbers<[2], [2], [1], [1], [0, 0, 0, 1, 1, 1], [0], [0]>} : vector<4x8x8xf32>, vector<4x8x8xf32>, vector<4x8x8xf32> -> vector<4x8x8xf32>
    %c0_106 = arith.constant 0 : index
    %c8_107 = arith.constant 8 : index
    %453 = vector.load %arg1[%c0_106, %c8_107] : memref<16x128xf32, #tpu.memory_space<vmem>>, vector<8x8xf32>
    %454 = vector.shape_cast %453 : vector<8x8xf32> to vector<1x8x8xf32>
    %455 = vector.broadcast %454 : vector<1x8x8xf32> to vector<4x8x8xf32>
    %456 = arith.addf %452, %455 : vector<4x8x8xf32>
    %cst_108 = arith.constant dense<0xFF800000> : vector<4x8xf32>
    %457 = vector.multi_reduction <maximumf>, %456, %cst_108 [2] : vector<4x8x8xf32> to vector<4x8xf32>
    %458 = vector.shape_cast %457 : vector<4x8xf32> to vector<4x8x1xf32>
    %459 = vector.broadcast %458 : vector<4x8x1xf32> to vector<4x8x8xf32>
    %460 = arith.subf %456, %459 : vector<4x8x8xf32>
    %461 = math.exp %460 : vector<4x8x8xf32>
    %cst_109 = arith.constant dense<0.000000e+00> : vector<4x8xf32>
    %462 = vector.multi_reduction <add>, %461, %cst_109 [2] : vector<4x8x8xf32> to vector<4x8xf32>
    %463 = vector.shape_cast %462 : vector<4x8xf32> to vector<4x8x1xf32>
    %464 = tpu.reciprocal %463 {approx = true} : vector<4x8x1xf32> -> vector<4x8x1xf32>
    %465 = vector.broadcast %464 : vector<4x8x1xf32> to vector<4x8x8xf32>
    %466 = arith.mulf %461, %465 : vector<4x8x8xf32>
    %cst_110 = arith.constant dense<0.000000e+00> : vector<4x8x8xf32>
    %467 = tpu.matmul %466, %451, %cst_110 {dimension_numbers = #tpu.dot_dimension_numbers<[2], [1], [1], [2], [0, 0, 0, 1, 1, 2], [0], [0]>} : vector<4x8x8xf32>, vector<4x8x8xf32>, vector<4x8x8xf32> -> vector<4x8x8xf32>
    %cst_111 = arith.constant dense<0.000000e+00> : vector<4x8x32xf32>
    %468 = tpu.matmul %467, %420, %cst_111 {dimension_numbers = #tpu.dot_dimension_numbers<[2], [1], [1], [2], [0, 0, 0, 1, 1, 2], [0], [0]>} : vector<4x8x8xf32>, vector<4x8x32xf32>, vector<4x8x32xf32> -> vector<4x8x32xf32>
    %cst_112 = arith.constant dense<0.000000e+00> : vector<8x32xf32>
    %469 = vector.multi_reduction <add>, %468, %cst_112 [0] : vector<4x8x32xf32> to vector<8x32xf32>
    %470 = vector.broadcast %421 : vector<1x32xf32> to vector<8x32xf32>
    %471 = arith.addf %469, %470 : vector<8x32xf32>
    %472 = vector.extract_strided_slice %408 {offsets = [8, 0], sizes = [8, 32], strides = [1, 1]} : vector<16x32xf32> to vector<8x32xf32>
    %473 = vector.extract_strided_slice %409 {offsets = [8, 0], sizes = [8, 32], strides = [1, 1]} : vector<16x32xf32> to vector<8x32xf32>
    %474 = vector.extract_strided_slice %410 {offsets = [8, 0], sizes = [8, 32], strides = [1, 1]} : vector<16x32xf32> to vector<8x32xf32>
    %475 = vector.extract_strided_slice %472 {offsets = [0, 0], sizes = [8, 8], strides = [1, 1]} : vector<8x32xf32> to vector<8x8xf32>
    %476 = vector.extract_strided_slice %472 {offsets = [0, 8], sizes = [8, 8], strides = [1, 1]} : vector<8x32xf32> to vector<8x8xf32>
    %477 = vector.extract_strided_slice %472 {offsets = [0, 16], sizes = [8, 8], strides = [1, 1]} : vector<8x32xf32> to vector<8x8xf32>
    %478 = vector.extract_strided_slice %472 {offsets = [0, 24], sizes = [8, 8], strides = [1, 1]} : vector<8x32xf32> to vector<8x8xf32>
    %479 = vector.shape_cast %475 : vector<8x8xf32> to vector<1x8x8xf32>
    %480 = vector.shape_cast %476 : vector<8x8xf32> to vector<1x8x8xf32>
    %481 = vector.shape_cast %477 : vector<8x8xf32> to vector<1x8x8xf32>
    %482 = vector.shape_cast %478 : vector<8x8xf32> to vector<1x8x8xf32>
    %483 = tpu.concatenate %479, %480, %481, %482 in 0 : vector<1x8x8xf32>, vector<1x8x8xf32>, vector<1x8x8xf32>, vector<1x8x8xf32> -> vector<4x8x8xf32>
    %484 = vector.extract_strided_slice %473 {offsets = [0, 0], sizes = [8, 8], strides = [1, 1]} : vector<8x32xf32> to vector<8x8xf32>
    %485 = vector.extract_strided_slice %473 {offsets = [0, 8], sizes = [8, 8], strides = [1, 1]} : vector<8x32xf32> to vector<8x8xf32>
    %486 = vector.extract_strided_slice %473 {offsets = [0, 16], sizes = [8, 8], strides = [1, 1]} : vector<8x32xf32> to vector<8x8xf32>
    %487 = vector.extract_strided_slice %473 {offsets = [0, 24], sizes = [8, 8], strides = [1, 1]} : vector<8x32xf32> to vector<8x8xf32>
    %488 = vector.shape_cast %484 : vector<8x8xf32> to vector<1x8x8xf32>
    %489 = vector.shape_cast %485 : vector<8x8xf32> to vector<1x8x8xf32>
    %490 = vector.shape_cast %486 : vector<8x8xf32> to vector<1x8x8xf32>
    %491 = vector.shape_cast %487 : vector<8x8xf32> to vector<1x8x8xf32>
    %492 = tpu.concatenate %488, %489, %490, %491 in 0 : vector<1x8x8xf32>, vector<1x8x8xf32>, vector<1x8x8xf32>, vector<1x8x8xf32> -> vector<4x8x8xf32>
    %493 = vector.extract_strided_slice %474 {offsets = [0, 0], sizes = [8, 8], strides = [1, 1]} : vector<8x32xf32> to vector<8x8xf32>
    %494 = vector.extract_strided_slice %474 {offsets = [0, 8], sizes = [8, 8], strides = [1, 1]} : vector<8x32xf32> to vector<8x8xf32>
    %495 = vector.extract_strided_slice %474 {offsets = [0, 16], sizes = [8, 8], strides = [1, 1]} : vector<8x32xf32> to vector<8x8xf32>
    %496 = vector.extract_strided_slice %474 {offsets = [0, 24], sizes = [8, 8], strides = [1, 1]} : vector<8x32xf32> to vector<8x8xf32>
    %497 = vector.shape_cast %493 : vector<8x8xf32> to vector<1x8x8xf32>
    %498 = vector.shape_cast %494 : vector<8x8xf32> to vector<1x8x8xf32>
    %499 = vector.shape_cast %495 : vector<8x8xf32> to vector<1x8x8xf32>
    %500 = vector.shape_cast %496 : vector<8x8xf32> to vector<1x8x8xf32>
    %501 = tpu.concatenate %497, %498, %499, %500 in 0 : vector<1x8x8xf32>, vector<1x8x8xf32>, vector<1x8x8xf32>, vector<1x8x8xf32> -> vector<4x8x8xf32>
    %cst_113 = arith.constant dense<0.000000e+00> : vector<4x8x8xf32>
    %502 = tpu.matmul %483, %492, %cst_113 {dimension_numbers = #tpu.dot_dimension_numbers<[2], [2], [1], [1], [0, 0, 0, 1, 1, 1], [0], [0]>} : vector<4x8x8xf32>, vector<4x8x8xf32>, vector<4x8x8xf32> -> vector<4x8x8xf32>
    %c8_114 = arith.constant 8 : index
    %c8_115 = arith.constant 8 : index
    %503 = vector.load %arg1[%c8_114, %c8_115] : memref<16x128xf32, #tpu.memory_space<vmem>>, vector<8x8xf32>
    %504 = vector.shape_cast %503 : vector<8x8xf32> to vector<1x8x8xf32>
    %505 = vector.broadcast %504 : vector<1x8x8xf32> to vector<4x8x8xf32>
    %506 = arith.addf %502, %505 : vector<4x8x8xf32>
    %cst_116 = arith.constant dense<0xFF800000> : vector<4x8xf32>
    %507 = vector.multi_reduction <maximumf>, %506, %cst_116 [2] : vector<4x8x8xf32> to vector<4x8xf32>
    %508 = vector.shape_cast %507 : vector<4x8xf32> to vector<4x8x1xf32>
    %509 = vector.broadcast %508 : vector<4x8x1xf32> to vector<4x8x8xf32>
    %510 = arith.subf %506, %509 : vector<4x8x8xf32>
    %511 = math.exp %510 : vector<4x8x8xf32>
    %cst_117 = arith.constant dense<0.000000e+00> : vector<4x8xf32>
    %512 = vector.multi_reduction <add>, %511, %cst_117 [2] : vector<4x8x8xf32> to vector<4x8xf32>
    %513 = vector.shape_cast %512 : vector<4x8xf32> to vector<4x8x1xf32>
    %514 = tpu.reciprocal %513 {approx = true} : vector<4x8x1xf32> -> vector<4x8x1xf32>
    %515 = vector.broadcast %514 : vector<4x8x1xf32> to vector<4x8x8xf32>
    %516 = arith.mulf %511, %515 : vector<4x8x8xf32>
    %cst_118 = arith.constant dense<0.000000e+00> : vector<4x8x8xf32>
    %517 = tpu.matmul %516, %501, %cst_118 {dimension_numbers = #tpu.dot_dimension_numbers<[2], [1], [1], [2], [0, 0, 0, 1, 1, 2], [0], [0]>} : vector<4x8x8xf32>, vector<4x8x8xf32>, vector<4x8x8xf32> -> vector<4x8x8xf32>
    %cst_119 = arith.constant dense<0.000000e+00> : vector<4x8x32xf32>
    %518 = tpu.matmul %517, %420, %cst_119 {dimension_numbers = #tpu.dot_dimension_numbers<[2], [1], [1], [2], [0, 0, 0, 1, 1, 2], [0], [0]>} : vector<4x8x8xf32>, vector<4x8x32xf32>, vector<4x8x32xf32> -> vector<4x8x32xf32>
    %cst_120 = arith.constant dense<0.000000e+00> : vector<8x32xf32>
    %519 = vector.multi_reduction <add>, %518, %cst_120 [0] : vector<4x8x32xf32> to vector<8x32xf32>
    %520 = vector.broadcast %421 : vector<1x32xf32> to vector<8x32xf32>
    %521 = arith.addf %519, %520 : vector<8x32xf32>
    %522 = tpu.concatenate %471, %521 in 0 : vector<8x32xf32>, vector<8x32xf32> -> vector<16x32xf32>
    %523 = arith.addf %2, %522 : vector<16x32xf32>
    %cst_121 = arith.constant dense<0.000000e+00> : vector<16xf32>
    %524 = vector.multi_reduction <add>, %523, %cst_121 [1] : vector<16x32xf32> to vector<16xf32>
    %525 = vector.shape_cast %524 : vector<16xf32> to vector<16x1xf32>
    %cst_122 = arith.constant 3.200000e+01 : f32
    %526 = vector.broadcast %cst_122 : f32 to vector<16x1xf32>
    %527 = arith.divf %525, %526 : vector<16x1xf32>
    %528 = vector.broadcast %527 : vector<16x1xf32> to vector<16x32xf32>
    %529 = arith.subf %523, %528 : vector<16x32xf32>
    %530 = arith.mulf %529, %529 : vector<16x32xf32>
    %cst_123 = arith.constant dense<0.000000e+00> : vector<16xf32>
    %531 = vector.multi_reduction <add>, %530, %cst_123 [1] : vector<16x32xf32> to vector<16xf32>
    %532 = vector.shape_cast %531 : vector<16xf32> to vector<16x1xf32>
    %cst_124 = arith.constant 3.100000e+01 : f32
    %533 = vector.broadcast %cst_124 : f32 to vector<16x1xf32>
    %534 = arith.divf %532, %533 : vector<16x1xf32>
    %535 = math.sqrt %534 : vector<16x1xf32>
    %c22 = arith.constant 22 : index
    %c0_125 = arith.constant 0 : index
    %536 = vector.load %arg3[%c22, %c0_125] : memref<48x128xf32, #tpu.memory_space<vmem>>, vector<1x32xf32>
    %537 = vector.broadcast %536 : vector<1x32xf32> to vector<16x32xf32>
    %538 = arith.mulf %537, %529 : vector<16x32xf32>
    %cst_126 = arith.constant 9.99999997E-7 : f32
    %539 = vector.broadcast %cst_126 : f32 to vector<16x1xf32>
    %540 = arith.addf %535, %539 : vector<16x1xf32>
    %541 = vector.broadcast %540 : vector<16x1xf32> to vector<16x32xf32>
    %542 = arith.divf %538, %541 : vector<16x32xf32>
    %c23 = arith.constant 23 : index
    %c0_127 = arith.constant 0 : index
    %543 = vector.load %arg3[%c23, %c0_127] : memref<48x128xf32, #tpu.memory_space<vmem>>, vector<1x32xf32>
    %544 = vector.broadcast %543 : vector<1x32xf32> to vector<16x32xf32>
    %545 = arith.addf %542, %544 : vector<16x32xf32>
    %c384 = arith.constant 384 : index
    %c0_128 = arith.constant 0 : index
    %546 = vector.load %arg2[%c384, %c0_128] : memref<832x128xf32, #tpu.memory_space<vmem>>, vector<32x32xf32>
    %cst_129 = arith.constant dense<0.000000e+00> : vector<16x32xf32>
    %547 = tpu.matmul %545, %546, %cst_129 {dimension_numbers = #tpu.dot_dimension_numbers<[1], [0], [0], [1], [0, 0, 1, 1], [], []>} : vector<16x32xf32>, vector<32x32xf32>, vector<16x32xf32> -> vector<16x32xf32>
    %c24 = arith.constant 24 : index
    %c0_130 = arith.constant 0 : index
    %548 = vector.load %arg3[%c24, %c0_130] : memref<48x128xf32, #tpu.memory_space<vmem>>, vector<1x32xf32>
    %549 = vector.broadcast %548 : vector<1x32xf32> to vector<16x32xf32>
    %550 = arith.addf %547, %549 : vector<16x32xf32>
    %c416 = arith.constant 416 : index
    %c0_131 = arith.constant 0 : index
    %551 = vector.load %arg2[%c416, %c0_131] : memref<832x128xf32, #tpu.memory_space<vmem>>, vector<32x64xf32>
    %cst_132 = arith.constant dense<0.000000e+00> : vector<16x64xf32>
    %552 = tpu.matmul %380, %551, %cst_132 {dimension_numbers = #tpu.dot_dimension_numbers<[1], [0], [0], [1], [0, 0, 1, 1], [], []>} : vector<16x32xf32>, vector<32x64xf32>, vector<16x64xf32> -> vector<16x64xf32>
    %c25 = arith.constant 25 : index
    %c0_133 = arith.constant 0 : index
    %553 = vector.load %arg3[%c25, %c0_133] : memref<48x128xf32, #tpu.memory_space<vmem>>, vector<1x64xf32>
    %554 = vector.broadcast %553 : vector<1x64xf32> to vector<16x64xf32>
    %555 = arith.addf %552, %554 : vector<16x64xf32>
    %556 = vector.extract_strided_slice %555 {offsets = [0, 0], sizes = [16, 32], strides = [1, 1]} : vector<16x64xf32> to vector<16x32xf32>
    %557 = vector.extract_strided_slice %555 {offsets = [0, 32], sizes = [16, 32], strides = [1, 1]} : vector<16x64xf32> to vector<16x32xf32>
    %c448 = arith.constant 448 : index
    %c0_134 = arith.constant 0 : index
    %558 = vector.load %arg2[%c448, %c0_134] : memref<832x128xf32, #tpu.memory_space<vmem>>, vector<32x32xf32>
    %559 = vector.extract_strided_slice %558 {offsets = [0, 0], sizes = [8, 32], strides = [1, 1]} : vector<32x32xf32> to vector<8x32xf32>
    %560 = vector.extract_strided_slice %558 {offsets = [8, 0], sizes = [8, 32], strides = [1, 1]} : vector<32x32xf32> to vector<8x32xf32>
    %561 = vector.extract_strided_slice %558 {offsets = [16, 0], sizes = [8, 32], strides = [1, 1]} : vector<32x32xf32> to vector<8x32xf32>
    %562 = vector.extract_strided_slice %558 {offsets = [24, 0], sizes = [8, 32], strides = [1, 1]} : vector<32x32xf32> to vector<8x32xf32>
    %563 = vector.shape_cast %559 : vector<8x32xf32> to vector<1x8x32xf32>
    %564 = vector.shape_cast %560 : vector<8x32xf32> to vector<1x8x32xf32>
    %565 = vector.shape_cast %561 : vector<8x32xf32> to vector<1x8x32xf32>
    %566 = vector.shape_cast %562 : vector<8x32xf32> to vector<1x8x32xf32>
    %567 = tpu.concatenate %563, %564, %565, %566 in 0 : vector<1x8x32xf32>, vector<1x8x32xf32>, vector<1x8x32xf32>, vector<1x8x32xf32> -> vector<4x8x32xf32>
    %c26 = arith.constant 26 : index
    %c0_135 = arith.constant 0 : index
    %568 = vector.load %arg3[%c26, %c0_135] : memref<48x128xf32, #tpu.memory_space<vmem>>, vector<1x32xf32>
    %569 = vector.extract_strided_slice %550 {offsets = [0, 0], sizes = [8, 32], strides = [1, 1]} : vector<16x32xf32> to vector<8x32xf32>
    %570 = vector.extract_strided_slice %556 {offsets = [0, 0], sizes = [8, 32], strides = [1, 1]} : vector<16x32xf32> to vector<8x32xf32>
    %571 = vector.extract_strided_slice %557 {offsets = [0, 0], sizes = [8, 32], strides = [1, 1]} : vector<16x32xf32> to vector<8x32xf32>
    %572 = vector.extract_strided_slice %569 {offsets = [0, 0], sizes = [8, 8], strides = [1, 1]} : vector<8x32xf32> to vector<8x8xf32>
    %573 = vector.extract_strided_slice %569 {offsets = [0, 8], sizes = [8, 8], strides = [1, 1]} : vector<8x32xf32> to vector<8x8xf32>
    %574 = vector.extract_strided_slice %569 {offsets = [0, 16], sizes = [8, 8], strides = [1, 1]} : vector<8x32xf32> to vector<8x8xf32>
    %575 = vector.extract_strided_slice %569 {offsets = [0, 24], sizes = [8, 8], strides = [1, 1]} : vector<8x32xf32> to vector<8x8xf32>
    %576 = vector.shape_cast %572 : vector<8x8xf32> to vector<1x8x8xf32>
    %577 = vector.shape_cast %573 : vector<8x8xf32> to vector<1x8x8xf32>
    %578 = vector.shape_cast %574 : vector<8x8xf32> to vector<1x8x8xf32>
    %579 = vector.shape_cast %575 : vector<8x8xf32> to vector<1x8x8xf32>
    %580 = tpu.concatenate %576, %577, %578, %579 in 0 : vector<1x8x8xf32>, vector<1x8x8xf32>, vector<1x8x8xf32>, vector<1x8x8xf32> -> vector<4x8x8xf32>
    %581 = vector.extract_strided_slice %570 {offsets = [0, 0], sizes = [8, 8], strides = [1, 1]} : vector<8x32xf32> to vector<8x8xf32>
    %582 = vector.extract_strided_slice %570 {offsets = [0, 8], sizes = [8, 8], strides = [1, 1]} : vector<8x32xf32> to vector<8x8xf32>
    %583 = vector.extract_strided_slice %570 {offsets = [0, 16], sizes = [8, 8], strides = [1, 1]} : vector<8x32xf32> to vector<8x8xf32>
    %584 = vector.extract_strided_slice %570 {offsets = [0, 24], sizes = [8, 8], strides = [1, 1]} : vector<8x32xf32> to vector<8x8xf32>
    %585 = vector.shape_cast %581 : vector<8x8xf32> to vector<1x8x8xf32>
    %586 = vector.shape_cast %582 : vector<8x8xf32> to vector<1x8x8xf32>
    %587 = vector.shape_cast %583 : vector<8x8xf32> to vector<1x8x8xf32>
    %588 = vector.shape_cast %584 : vector<8x8xf32> to vector<1x8x8xf32>
    %589 = tpu.concatenate %585, %586, %587, %588 in 0 : vector<1x8x8xf32>, vector<1x8x8xf32>, vector<1x8x8xf32>, vector<1x8x8xf32> -> vector<4x8x8xf32>
    %590 = vector.extract_strided_slice %571 {offsets = [0, 0], sizes = [8, 8], strides = [1, 1]} : vector<8x32xf32> to vector<8x8xf32>
    %591 = vector.extract_strided_slice %571 {offsets = [0, 8], sizes = [8, 8], strides = [1, 1]} : vector<8x32xf32> to vector<8x8xf32>
    %592 = vector.extract_strided_slice %571 {offsets = [0, 16], sizes = [8, 8], strides = [1, 1]} : vector<8x32xf32> to vector<8x8xf32>
    %593 = vector.extract_strided_slice %571 {offsets = [0, 24], sizes = [8, 8], strides = [1, 1]} : vector<8x32xf32> to vector<8x8xf32>
    %594 = vector.shape_cast %590 : vector<8x8xf32> to vector<1x8x8xf32>
    %595 = vector.shape_cast %591 : vector<8x8xf32> to vector<1x8x8xf32>
    %596 = vector.shape_cast %592 : vector<8x8xf32> to vector<1x8x8xf32>
    %597 = vector.shape_cast %593 : vector<8x8xf32> to vector<1x8x8xf32>
    %598 = tpu.concatenate %594, %595, %596, %597 in 0 : vector<1x8x8xf32>, vector<1x8x8xf32>, vector<1x8x8xf32>, vector<1x8x8xf32> -> vector<4x8x8xf32>
    %cst_136 = arith.constant dense<0.000000e+00> : vector<4x8x8xf32>
    %599 = tpu.matmul %580, %589, %cst_136 {dimension_numbers = #tpu.dot_dimension_numbers<[2], [2], [1], [1], [0, 0, 0, 1, 1, 1], [0], [0]>} : vector<4x8x8xf32>, vector<4x8x8xf32>, vector<4x8x8xf32> -> vector<4x8x8xf32>
    %c0_137 = arith.constant 0 : index
    %c0_138 = arith.constant 0 : index
    %600 = vector.load %arg1[%c0_137, %c0_138] : memref<16x128xf32, #tpu.memory_space<vmem>>, vector<8x8xf32>
    %601 = vector.shape_cast %600 : vector<8x8xf32> to vector<1x8x8xf32>
    %602 = vector.broadcast %601 : vector<1x8x8xf32> to vector<4x8x8xf32>
    %603 = arith.addf %599, %602 : vector<4x8x8xf32>
    %cst_139 = arith.constant dense<0xFF800000> : vector<4x8xf32>
    %604 = vector.multi_reduction <maximumf>, %603, %cst_139 [2] : vector<4x8x8xf32> to vector<4x8xf32>
    %605 = vector.shape_cast %604 : vector<4x8xf32> to vector<4x8x1xf32>
    %606 = vector.broadcast %605 : vector<4x8x1xf32> to vector<4x8x8xf32>
    %607 = arith.subf %603, %606 : vector<4x8x8xf32>
    %608 = math.exp %607 : vector<4x8x8xf32>
    %cst_140 = arith.constant dense<0.000000e+00> : vector<4x8xf32>
    %609 = vector.multi_reduction <add>, %608, %cst_140 [2] : vector<4x8x8xf32> to vector<4x8xf32>
    %610 = vector.shape_cast %609 : vector<4x8xf32> to vector<4x8x1xf32>
    %611 = tpu.reciprocal %610 {approx = true} : vector<4x8x1xf32> -> vector<4x8x1xf32>
    %612 = vector.broadcast %611 : vector<4x8x1xf32> to vector<4x8x8xf32>
    %613 = arith.mulf %608, %612 : vector<4x8x8xf32>
    %cst_141 = arith.constant dense<0.000000e+00> : vector<4x8x8xf32>
    %614 = tpu.matmul %613, %598, %cst_141 {dimension_numbers = #tpu.dot_dimension_numbers<[2], [1], [1], [2], [0, 0, 0, 1, 1, 2], [0], [0]>} : vector<4x8x8xf32>, vector<4x8x8xf32>, vector<4x8x8xf32> -> vector<4x8x8xf32>
    %cst_142 = arith.constant dense<0.000000e+00> : vector<4x8x32xf32>
    %615 = tpu.matmul %614, %567, %cst_142 {dimension_numbers = #tpu.dot_dimension_numbers<[2], [1], [1], [2], [0, 0, 0, 1, 1, 2], [0], [0]>} : vector<4x8x8xf32>, vector<4x8x32xf32>, vector<4x8x32xf32> -> vector<4x8x32xf32>
    %cst_143 = arith.constant dense<0.000000e+00> : vector<8x32xf32>
    %616 = vector.multi_reduction <add>, %615, %cst_143 [0] : vector<4x8x32xf32> to vector<8x32xf32>
    %617 = vector.broadcast %568 : vector<1x32xf32> to vector<8x32xf32>
    %618 = arith.addf %616, %617 : vector<8x32xf32>
    %619 = vector.extract_strided_slice %550 {offsets = [8, 0], sizes = [8, 32], strides = [1, 1]} : vector<16x32xf32> to vector<8x32xf32>
    %620 = vector.extract_strided_slice %556 {offsets = [8, 0], sizes = [8, 32], strides = [1, 1]} : vector<16x32xf32> to vector<8x32xf32>
    %621 = vector.extract_strided_slice %557 {offsets = [8, 0], sizes = [8, 32], strides = [1, 1]} : vector<16x32xf32> to vector<8x32xf32>
    %622 = vector.extract_strided_slice %619 {offsets = [0, 0], sizes = [8, 8], strides = [1, 1]} : vector<8x32xf32> to vector<8x8xf32>
    %623 = vector.extract_strided_slice %619 {offsets = [0, 8], sizes = [8, 8], strides = [1, 1]} : vector<8x32xf32> to vector<8x8xf32>
    %624 = vector.extract_strided_slice %619 {offsets = [0, 16], sizes = [8, 8], strides = [1, 1]} : vector<8x32xf32> to vector<8x8xf32>
    %625 = vector.extract_strided_slice %619 {offsets = [0, 24], sizes = [8, 8], strides = [1, 1]} : vector<8x32xf32> to vector<8x8xf32>
    %626 = vector.shape_cast %622 : vector<8x8xf32> to vector<1x8x8xf32>
    %627 = vector.shape_cast %623 : vector<8x8xf32> to vector<1x8x8xf32>
    %628 = vector.shape_cast %624 : vector<8x8xf32> to vector<1x8x8xf32>
    %629 = vector.shape_cast %625 : vector<8x8xf32> to vector<1x8x8xf32>
    %630 = tpu.concatenate %626, %627, %628, %629 in 0 : vector<1x8x8xf32>, vector<1x8x8xf32>, vector<1x8x8xf32>, vector<1x8x8xf32> -> vector<4x8x8xf32>
    %631 = vector.extract_strided_slice %620 {offsets = [0, 0], sizes = [8, 8], strides = [1, 1]} : vector<8x32xf32> to vector<8x8xf32>
    %632 = vector.extract_strided_slice %620 {offsets = [0, 8], sizes = [8, 8], strides = [1, 1]} : vector<8x32xf32> to vector<8x8xf32>
    %633 = vector.extract_strided_slice %620 {offsets = [0, 16], sizes = [8, 8], strides = [1, 1]} : vector<8x32xf32> to vector<8x8xf32>
    %634 = vector.extract_strided_slice %620 {offsets = [0, 24], sizes = [8, 8], strides = [1, 1]} : vector<8x32xf32> to vector<8x8xf32>
    %635 = vector.shape_cast %631 : vector<8x8xf32> to vector<1x8x8xf32>
    %636 = vector.shape_cast %632 : vector<8x8xf32> to vector<1x8x8xf32>
    %637 = vector.shape_cast %633 : vector<8x8xf32> to vector<1x8x8xf32>
    %638 = vector.shape_cast %634 : vector<8x8xf32> to vector<1x8x8xf32>
    %639 = tpu.concatenate %635, %636, %637, %638 in 0 : vector<1x8x8xf32>, vector<1x8x8xf32>, vector<1x8x8xf32>, vector<1x8x8xf32> -> vector<4x8x8xf32>
    %640 = vector.extract_strided_slice %621 {offsets = [0, 0], sizes = [8, 8], strides = [1, 1]} : vector<8x32xf32> to vector<8x8xf32>
    %641 = vector.extract_strided_slice %621 {offsets = [0, 8], sizes = [8, 8], strides = [1, 1]} : vector<8x32xf32> to vector<8x8xf32>
    %642 = vector.extract_strided_slice %621 {offsets = [0, 16], sizes = [8, 8], strides = [1, 1]} : vector<8x32xf32> to vector<8x8xf32>
    %643 = vector.extract_strided_slice %621 {offsets = [0, 24], sizes = [8, 8], strides = [1, 1]} : vector<8x32xf32> to vector<8x8xf32>
    %644 = vector.shape_cast %640 : vector<8x8xf32> to vector<1x8x8xf32>
    %645 = vector.shape_cast %641 : vector<8x8xf32> to vector<1x8x8xf32>
    %646 = vector.shape_cast %642 : vector<8x8xf32> to vector<1x8x8xf32>
    %647 = vector.shape_cast %643 : vector<8x8xf32> to vector<1x8x8xf32>
    %648 = tpu.concatenate %644, %645, %646, %647 in 0 : vector<1x8x8xf32>, vector<1x8x8xf32>, vector<1x8x8xf32>, vector<1x8x8xf32> -> vector<4x8x8xf32>
    %cst_144 = arith.constant dense<0.000000e+00> : vector<4x8x8xf32>
    %649 = tpu.matmul %630, %639, %cst_144 {dimension_numbers = #tpu.dot_dimension_numbers<[2], [2], [1], [1], [0, 0, 0, 1, 1, 1], [0], [0]>} : vector<4x8x8xf32>, vector<4x8x8xf32>, vector<4x8x8xf32> -> vector<4x8x8xf32>
    %c8_145 = arith.constant 8 : index
    %c0_146 = arith.constant 0 : index
    %650 = vector.load %arg1[%c8_145, %c0_146] : memref<16x128xf32, #tpu.memory_space<vmem>>, vector<8x8xf32>
    %651 = vector.shape_cast %650 : vector<8x8xf32> to vector<1x8x8xf32>
    %652 = vector.broadcast %651 : vector<1x8x8xf32> to vector<4x8x8xf32>
    %653 = arith.addf %649, %652 : vector<4x8x8xf32>
    %cst_147 = arith.constant dense<0xFF800000> : vector<4x8xf32>
    %654 = vector.multi_reduction <maximumf>, %653, %cst_147 [2] : vector<4x8x8xf32> to vector<4x8xf32>
    %655 = vector.shape_cast %654 : vector<4x8xf32> to vector<4x8x1xf32>
    %656 = vector.broadcast %655 : vector<4x8x1xf32> to vector<4x8x8xf32>
    %657 = arith.subf %653, %656 : vector<4x8x8xf32>
    %658 = math.exp %657 : vector<4x8x8xf32>
    %cst_148 = arith.constant dense<0.000000e+00> : vector<4x8xf32>
    %659 = vector.multi_reduction <add>, %658, %cst_148 [2] : vector<4x8x8xf32> to vector<4x8xf32>
    %660 = vector.shape_cast %659 : vector<4x8xf32> to vector<4x8x1xf32>
    %661 = tpu.reciprocal %660 {approx = true} : vector<4x8x1xf32> -> vector<4x8x1xf32>
    %662 = vector.broadcast %661 : vector<4x8x1xf32> to vector<4x8x8xf32>
    %663 = arith.mulf %658, %662 : vector<4x8x8xf32>
    %cst_149 = arith.constant dense<0.000000e+00> : vector<4x8x8xf32>
    %664 = tpu.matmul %663, %648, %cst_149 {dimension_numbers = #tpu.dot_dimension_numbers<[2], [1], [1], [2], [0, 0, 0, 1, 1, 2], [0], [0]>} : vector<4x8x8xf32>, vector<4x8x8xf32>, vector<4x8x8xf32> -> vector<4x8x8xf32>
    %cst_150 = arith.constant dense<0.000000e+00> : vector<4x8x32xf32>
    %665 = tpu.matmul %664, %567, %cst_150 {dimension_numbers = #tpu.dot_dimension_numbers<[2], [1], [1], [2], [0, 0, 0, 1, 1, 2], [0], [0]>} : vector<4x8x8xf32>, vector<4x8x32xf32>, vector<4x8x32xf32> -> vector<4x8x32xf32>
    %cst_151 = arith.constant dense<0.000000e+00> : vector<8x32xf32>
    %666 = vector.multi_reduction <add>, %665, %cst_151 [0] : vector<4x8x32xf32> to vector<8x32xf32>
    %667 = vector.broadcast %568 : vector<1x32xf32> to vector<8x32xf32>
    %668 = arith.addf %666, %667 : vector<8x32xf32>
    %669 = tpu.concatenate %618, %668 in 0 : vector<8x32xf32>, vector<8x32xf32> -> vector<16x32xf32>
    %670 = arith.addf %523, %669 : vector<16x32xf32>
    %cst_152 = arith.constant dense<0.000000e+00> : vector<16xf32>
    %671 = vector.multi_reduction <add>, %670, %cst_152 [1] : vector<16x32xf32> to vector<16xf32>
    %672 = vector.shape_cast %671 : vector<16xf32> to vector<16x1xf32>
    %cst_153 = arith.constant 3.200000e+01 : f32
    %673 = vector.broadcast %cst_153 : f32 to vector<16x1xf32>
    %674 = arith.divf %672, %673 : vector<16x1xf32>
    %675 = vector.broadcast %674 : vector<16x1xf32> to vector<16x32xf32>
    %676 = arith.subf %670, %675 : vector<16x32xf32>
    %677 = arith.mulf %676, %676 : vector<16x32xf32>
    %cst_154 = arith.constant dense<0.000000e+00> : vector<16xf32>
    %678 = vector.multi_reduction <add>, %677, %cst_154 [1] : vector<16x32xf32> to vector<16xf32>
    %679 = vector.shape_cast %678 : vector<16xf32> to vector<16x1xf32>
    %cst_155 = arith.constant 3.100000e+01 : f32
    %680 = vector.broadcast %cst_155 : f32 to vector<16x1xf32>
    %681 = arith.divf %679, %680 : vector<16x1xf32>
    %682 = math.sqrt %681 : vector<16x1xf32>
    %c27 = arith.constant 27 : index
    %c0_156 = arith.constant 0 : index
    %683 = vector.load %arg3[%c27, %c0_156] : memref<48x128xf32, #tpu.memory_space<vmem>>, vector<1x32xf32>
    %684 = vector.broadcast %683 : vector<1x32xf32> to vector<16x32xf32>
    %685 = arith.mulf %684, %676 : vector<16x32xf32>
    %cst_157 = arith.constant 9.99999997E-7 : f32
    %686 = vector.broadcast %cst_157 : f32 to vector<16x1xf32>
    %687 = arith.addf %682, %686 : vector<16x1xf32>
    %688 = vector.broadcast %687 : vector<16x1xf32> to vector<16x32xf32>
    %689 = arith.divf %685, %688 : vector<16x32xf32>
    %c28 = arith.constant 28 : index
    %c0_158 = arith.constant 0 : index
    %690 = vector.load %arg3[%c28, %c0_158] : memref<48x128xf32, #tpu.memory_space<vmem>>, vector<1x32xf32>
    %691 = vector.broadcast %690 : vector<1x32xf32> to vector<16x32xf32>
    %692 = arith.addf %689, %691 : vector<16x32xf32>
    %c480 = arith.constant 480 : index
    %c0_159 = arith.constant 0 : index
    %693 = vector.load %arg2[%c480, %c0_159] : memref<832x128xf32, #tpu.memory_space<vmem>>, vector<32x64xf32>
    %cst_160 = arith.constant dense<0.000000e+00> : vector<16x64xf32>
    %694 = tpu.matmul %692, %693, %cst_160 {dimension_numbers = #tpu.dot_dimension_numbers<[1], [0], [0], [1], [0, 0, 1, 1], [], []>} : vector<16x32xf32>, vector<32x64xf32>, vector<16x64xf32> -> vector<16x64xf32>
    %c29 = arith.constant 29 : index
    %c0_161 = arith.constant 0 : index
    %695 = vector.load %arg3[%c29, %c0_161] : memref<48x128xf32, #tpu.memory_space<vmem>>, vector<1x64xf32>
    %696 = vector.broadcast %695 : vector<1x64xf32> to vector<16x64xf32>
    %697 = arith.addf %694, %696 : vector<16x64xf32>
    %cst_162 = arith.constant 0.000000e+00 : f32
    %698 = vector.broadcast %cst_162 : f32 to vector<16x64xf32>
    %699 = arith.maximumf %697, %698 : vector<16x64xf32>
    %c512 = arith.constant 512 : index
    %c0_163 = arith.constant 0 : index
    %700 = vector.load %arg2[%c512, %c0_163] : memref<832x128xf32, #tpu.memory_space<vmem>>, vector<64x32xf32>
    %cst_164 = arith.constant dense<0.000000e+00> : vector<16x32xf32>
    %701 = tpu.matmul %699, %700, %cst_164 {dimension_numbers = #tpu.dot_dimension_numbers<[1], [0], [0], [1], [0, 0, 1, 1], [], []>} : vector<16x64xf32>, vector<64x32xf32>, vector<16x32xf32> -> vector<16x32xf32>
    %c30 = arith.constant 30 : index
    %c0_165 = arith.constant 0 : index
    %702 = vector.load %arg3[%c30, %c0_165] : memref<48x128xf32, #tpu.memory_space<vmem>>, vector<1x32xf32>
    %703 = vector.broadcast %702 : vector<1x32xf32> to vector<16x32xf32>
    %704 = arith.addf %701, %703 : vector<16x32xf32>
    %705 = arith.addf %670, %704 : vector<16x32xf32>
    %cst_166 = arith.constant dense<0.000000e+00> : vector<16xf32>
    %706 = vector.multi_reduction <add>, %705, %cst_166 [1] : vector<16x32xf32> to vector<16xf32>
    %707 = vector.shape_cast %706 : vector<16xf32> to vector<16x1xf32>
    %cst_167 = arith.constant 3.200000e+01 : f32
    %708 = vector.broadcast %cst_167 : f32 to vector<16x1xf32>
    %709 = arith.divf %707, %708 : vector<16x1xf32>
    %710 = vector.broadcast %709 : vector<16x1xf32> to vector<16x32xf32>
    %711 = arith.subf %705, %710 : vector<16x32xf32>
    %712 = arith.mulf %711, %711 : vector<16x32xf32>
    %cst_168 = arith.constant dense<0.000000e+00> : vector<16xf32>
    %713 = vector.multi_reduction <add>, %712, %cst_168 [1] : vector<16x32xf32> to vector<16xf32>
    %714 = vector.shape_cast %713 : vector<16xf32> to vector<16x1xf32>
    %cst_169 = arith.constant 3.100000e+01 : f32
    %715 = vector.broadcast %cst_169 : f32 to vector<16x1xf32>
    %716 = arith.divf %714, %715 : vector<16x1xf32>
    %717 = math.sqrt %716 : vector<16x1xf32>
    %c31 = arith.constant 31 : index
    %c0_170 = arith.constant 0 : index
    %718 = vector.load %arg3[%c31, %c0_170] : memref<48x128xf32, #tpu.memory_space<vmem>>, vector<1x32xf32>
    %719 = vector.broadcast %718 : vector<1x32xf32> to vector<16x32xf32>
    %720 = arith.mulf %719, %711 : vector<16x32xf32>
    %cst_171 = arith.constant 9.99999997E-7 : f32
    %721 = vector.broadcast %cst_171 : f32 to vector<16x1xf32>
    %722 = arith.addf %717, %721 : vector<16x1xf32>
    %723 = vector.broadcast %722 : vector<16x1xf32> to vector<16x32xf32>
    %724 = arith.divf %720, %723 : vector<16x32xf32>
    %c32_172 = arith.constant 32 : index
    %c0_173 = arith.constant 0 : index
    %725 = vector.load %arg3[%c32_172, %c0_173] : memref<48x128xf32, #tpu.memory_space<vmem>>, vector<1x32xf32>
    %726 = vector.broadcast %725 : vector<1x32xf32> to vector<16x32xf32>
    %727 = arith.addf %724, %726 : vector<16x32xf32>
    %c576 = arith.constant 576 : index
    %c0_174 = arith.constant 0 : index
    %728 = vector.load %arg2[%c576, %c0_174] : memref<832x128xf32, #tpu.memory_space<vmem>>, vector<32x96xf32>
    %cst_175 = arith.constant dense<0.000000e+00> : vector<16x96xf32>
    %729 = tpu.matmul %727, %728, %cst_175 {dimension_numbers = #tpu.dot_dimension_numbers<[1], [0], [0], [1], [0, 0, 1, 1], [], []>} : vector<16x32xf32>, vector<32x96xf32>, vector<16x96xf32> -> vector<16x96xf32>
    %c33 = arith.constant 33 : index
    %c0_176 = arith.constant 0 : index
    %730 = vector.load %arg3[%c33, %c0_176] : memref<48x128xf32, #tpu.memory_space<vmem>>, vector<1x96xf32>
    %731 = vector.broadcast %730 : vector<1x96xf32> to vector<16x96xf32>
    %732 = arith.addf %729, %731 : vector<16x96xf32>
    %733 = vector.extract_strided_slice %732 {offsets = [0, 0], sizes = [16, 32], strides = [1, 1]} : vector<16x96xf32> to vector<16x32xf32>
    %734 = vector.extract_strided_slice %732 {offsets = [0, 32], sizes = [16, 32], strides = [1, 1]} : vector<16x96xf32> to vector<16x32xf32>
    %735 = vector.extract_strided_slice %732 {offsets = [0, 64], sizes = [16, 32], strides = [1, 1]} : vector<16x96xf32> to vector<16x32xf32>
    %c608 = arith.constant 608 : index
    %c0_177 = arith.constant 0 : index
    %736 = vector.load %arg2[%c608, %c0_177] : memref<832x128xf32, #tpu.memory_space<vmem>>, vector<32x32xf32>
    %737 = vector.extract_strided_slice %736 {offsets = [0, 0], sizes = [8, 32], strides = [1, 1]} : vector<32x32xf32> to vector<8x32xf32>
    %738 = vector.extract_strided_slice %736 {offsets = [8, 0], sizes = [8, 32], strides = [1, 1]} : vector<32x32xf32> to vector<8x32xf32>
    %739 = vector.extract_strided_slice %736 {offsets = [16, 0], sizes = [8, 32], strides = [1, 1]} : vector<32x32xf32> to vector<8x32xf32>
    %740 = vector.extract_strided_slice %736 {offsets = [24, 0], sizes = [8, 32], strides = [1, 1]} : vector<32x32xf32> to vector<8x32xf32>
    %741 = vector.shape_cast %737 : vector<8x32xf32> to vector<1x8x32xf32>
    %742 = vector.shape_cast %738 : vector<8x32xf32> to vector<1x8x32xf32>
    %743 = vector.shape_cast %739 : vector<8x32xf32> to vector<1x8x32xf32>
    %744 = vector.shape_cast %740 : vector<8x32xf32> to vector<1x8x32xf32>
    %745 = tpu.concatenate %741, %742, %743, %744 in 0 : vector<1x8x32xf32>, vector<1x8x32xf32>, vector<1x8x32xf32>, vector<1x8x32xf32> -> vector<4x8x32xf32>
    %c34 = arith.constant 34 : index
    %c0_178 = arith.constant 0 : index
    %746 = vector.load %arg3[%c34, %c0_178] : memref<48x128xf32, #tpu.memory_space<vmem>>, vector<1x32xf32>
    %747 = vector.extract_strided_slice %733 {offsets = [0, 0], sizes = [8, 32], strides = [1, 1]} : vector<16x32xf32> to vector<8x32xf32>
    %748 = vector.extract_strided_slice %734 {offsets = [0, 0], sizes = [8, 32], strides = [1, 1]} : vector<16x32xf32> to vector<8x32xf32>
    %749 = vector.extract_strided_slice %735 {offsets = [0, 0], sizes = [8, 32], strides = [1, 1]} : vector<16x32xf32> to vector<8x32xf32>
    %750 = vector.extract_strided_slice %747 {offsets = [0, 0], sizes = [8, 8], strides = [1, 1]} : vector<8x32xf32> to vector<8x8xf32>
    %751 = vector.extract_strided_slice %747 {offsets = [0, 8], sizes = [8, 8], strides = [1, 1]} : vector<8x32xf32> to vector<8x8xf32>
    %752 = vector.extract_strided_slice %747 {offsets = [0, 16], sizes = [8, 8], strides = [1, 1]} : vector<8x32xf32> to vector<8x8xf32>
    %753 = vector.extract_strided_slice %747 {offsets = [0, 24], sizes = [8, 8], strides = [1, 1]} : vector<8x32xf32> to vector<8x8xf32>
    %754 = vector.shape_cast %750 : vector<8x8xf32> to vector<1x8x8xf32>
    %755 = vector.shape_cast %751 : vector<8x8xf32> to vector<1x8x8xf32>
    %756 = vector.shape_cast %752 : vector<8x8xf32> to vector<1x8x8xf32>
    %757 = vector.shape_cast %753 : vector<8x8xf32> to vector<1x8x8xf32>
    %758 = tpu.concatenate %754, %755, %756, %757 in 0 : vector<1x8x8xf32>, vector<1x8x8xf32>, vector<1x8x8xf32>, vector<1x8x8xf32> -> vector<4x8x8xf32>
    %759 = vector.extract_strided_slice %748 {offsets = [0, 0], sizes = [8, 8], strides = [1, 1]} : vector<8x32xf32> to vector<8x8xf32>
    %760 = vector.extract_strided_slice %748 {offsets = [0, 8], sizes = [8, 8], strides = [1, 1]} : vector<8x32xf32> to vector<8x8xf32>
    %761 = vector.extract_strided_slice %748 {offsets = [0, 16], sizes = [8, 8], strides = [1, 1]} : vector<8x32xf32> to vector<8x8xf32>
    %762 = vector.extract_strided_slice %748 {offsets = [0, 24], sizes = [8, 8], strides = [1, 1]} : vector<8x32xf32> to vector<8x8xf32>
    %763 = vector.shape_cast %759 : vector<8x8xf32> to vector<1x8x8xf32>
    %764 = vector.shape_cast %760 : vector<8x8xf32> to vector<1x8x8xf32>
    %765 = vector.shape_cast %761 : vector<8x8xf32> to vector<1x8x8xf32>
    %766 = vector.shape_cast %762 : vector<8x8xf32> to vector<1x8x8xf32>
    %767 = tpu.concatenate %763, %764, %765, %766 in 0 : vector<1x8x8xf32>, vector<1x8x8xf32>, vector<1x8x8xf32>, vector<1x8x8xf32> -> vector<4x8x8xf32>
    %768 = vector.extract_strided_slice %749 {offsets = [0, 0], sizes = [8, 8], strides = [1, 1]} : vector<8x32xf32> to vector<8x8xf32>
    %769 = vector.extract_strided_slice %749 {offsets = [0, 8], sizes = [8, 8], strides = [1, 1]} : vector<8x32xf32> to vector<8x8xf32>
    %770 = vector.extract_strided_slice %749 {offsets = [0, 16], sizes = [8, 8], strides = [1, 1]} : vector<8x32xf32> to vector<8x8xf32>
    %771 = vector.extract_strided_slice %749 {offsets = [0, 24], sizes = [8, 8], strides = [1, 1]} : vector<8x32xf32> to vector<8x8xf32>
    %772 = vector.shape_cast %768 : vector<8x8xf32> to vector<1x8x8xf32>
    %773 = vector.shape_cast %769 : vector<8x8xf32> to vector<1x8x8xf32>
    %774 = vector.shape_cast %770 : vector<8x8xf32> to vector<1x8x8xf32>
    %775 = vector.shape_cast %771 : vector<8x8xf32> to vector<1x8x8xf32>
    %776 = tpu.concatenate %772, %773, %774, %775 in 0 : vector<1x8x8xf32>, vector<1x8x8xf32>, vector<1x8x8xf32>, vector<1x8x8xf32> -> vector<4x8x8xf32>
    %cst_179 = arith.constant dense<0.000000e+00> : vector<4x8x8xf32>
    %777 = tpu.matmul %758, %767, %cst_179 {dimension_numbers = #tpu.dot_dimension_numbers<[2], [2], [1], [1], [0, 0, 0, 1, 1, 1], [0], [0]>} : vector<4x8x8xf32>, vector<4x8x8xf32>, vector<4x8x8xf32> -> vector<4x8x8xf32>
    %c0_180 = arith.constant 0 : index
    %c8_181 = arith.constant 8 : index
    %778 = vector.load %arg1[%c0_180, %c8_181] : memref<16x128xf32, #tpu.memory_space<vmem>>, vector<8x8xf32>
    %779 = vector.shape_cast %778 : vector<8x8xf32> to vector<1x8x8xf32>
    %780 = vector.broadcast %779 : vector<1x8x8xf32> to vector<4x8x8xf32>
    %781 = arith.addf %777, %780 : vector<4x8x8xf32>
    %cst_182 = arith.constant dense<0xFF800000> : vector<4x8xf32>
    %782 = vector.multi_reduction <maximumf>, %781, %cst_182 [2] : vector<4x8x8xf32> to vector<4x8xf32>
    %783 = vector.shape_cast %782 : vector<4x8xf32> to vector<4x8x1xf32>
    %784 = vector.broadcast %783 : vector<4x8x1xf32> to vector<4x8x8xf32>
    %785 = arith.subf %781, %784 : vector<4x8x8xf32>
    %786 = math.exp %785 : vector<4x8x8xf32>
    %cst_183 = arith.constant dense<0.000000e+00> : vector<4x8xf32>
    %787 = vector.multi_reduction <add>, %786, %cst_183 [2] : vector<4x8x8xf32> to vector<4x8xf32>
    %788 = vector.shape_cast %787 : vector<4x8xf32> to vector<4x8x1xf32>
    %789 = tpu.reciprocal %788 {approx = true} : vector<4x8x1xf32> -> vector<4x8x1xf32>
    %790 = vector.broadcast %789 : vector<4x8x1xf32> to vector<4x8x8xf32>
    %791 = arith.mulf %786, %790 : vector<4x8x8xf32>
    %cst_184 = arith.constant dense<0.000000e+00> : vector<4x8x8xf32>
    %792 = tpu.matmul %791, %776, %cst_184 {dimension_numbers = #tpu.dot_dimension_numbers<[2], [1], [1], [2], [0, 0, 0, 1, 1, 2], [0], [0]>} : vector<4x8x8xf32>, vector<4x8x8xf32>, vector<4x8x8xf32> -> vector<4x8x8xf32>
    %cst_185 = arith.constant dense<0.000000e+00> : vector<4x8x32xf32>
    %793 = tpu.matmul %792, %745, %cst_185 {dimension_numbers = #tpu.dot_dimension_numbers<[2], [1], [1], [2], [0, 0, 0, 1, 1, 2], [0], [0]>} : vector<4x8x8xf32>, vector<4x8x32xf32>, vector<4x8x32xf32> -> vector<4x8x32xf32>
    %cst_186 = arith.constant dense<0.000000e+00> : vector<8x32xf32>
    %794 = vector.multi_reduction <add>, %793, %cst_186 [0] : vector<4x8x32xf32> to vector<8x32xf32>
    %795 = vector.broadcast %746 : vector<1x32xf32> to vector<8x32xf32>
    %796 = arith.addf %794, %795 : vector<8x32xf32>
    %797 = vector.extract_strided_slice %733 {offsets = [8, 0], sizes = [8, 32], strides = [1, 1]} : vector<16x32xf32> to vector<8x32xf32>
    %798 = vector.extract_strided_slice %734 {offsets = [8, 0], sizes = [8, 32], strides = [1, 1]} : vector<16x32xf32> to vector<8x32xf32>
    %799 = vector.extract_strided_slice %735 {offsets = [8, 0], sizes = [8, 32], strides = [1, 1]} : vector<16x32xf32> to vector<8x32xf32>
    %800 = vector.extract_strided_slice %797 {offsets = [0, 0], sizes = [8, 8], strides = [1, 1]} : vector<8x32xf32> to vector<8x8xf32>
    %801 = vector.extract_strided_slice %797 {offsets = [0, 8], sizes = [8, 8], strides = [1, 1]} : vector<8x32xf32> to vector<8x8xf32>
    %802 = vector.extract_strided_slice %797 {offsets = [0, 16], sizes = [8, 8], strides = [1, 1]} : vector<8x32xf32> to vector<8x8xf32>
    %803 = vector.extract_strided_slice %797 {offsets = [0, 24], sizes = [8, 8], strides = [1, 1]} : vector<8x32xf32> to vector<8x8xf32>
    %804 = vector.shape_cast %800 : vector<8x8xf32> to vector<1x8x8xf32>
    %805 = vector.shape_cast %801 : vector<8x8xf32> to vector<1x8x8xf32>
    %806 = vector.shape_cast %802 : vector<8x8xf32> to vector<1x8x8xf32>
    %807 = vector.shape_cast %803 : vector<8x8xf32> to vector<1x8x8xf32>
    %808 = tpu.concatenate %804, %805, %806, %807 in 0 : vector<1x8x8xf32>, vector<1x8x8xf32>, vector<1x8x8xf32>, vector<1x8x8xf32> -> vector<4x8x8xf32>
    %809 = vector.extract_strided_slice %798 {offsets = [0, 0], sizes = [8, 8], strides = [1, 1]} : vector<8x32xf32> to vector<8x8xf32>
    %810 = vector.extract_strided_slice %798 {offsets = [0, 8], sizes = [8, 8], strides = [1, 1]} : vector<8x32xf32> to vector<8x8xf32>
    %811 = vector.extract_strided_slice %798 {offsets = [0, 16], sizes = [8, 8], strides = [1, 1]} : vector<8x32xf32> to vector<8x8xf32>
    %812 = vector.extract_strided_slice %798 {offsets = [0, 24], sizes = [8, 8], strides = [1, 1]} : vector<8x32xf32> to vector<8x8xf32>
    %813 = vector.shape_cast %809 : vector<8x8xf32> to vector<1x8x8xf32>
    %814 = vector.shape_cast %810 : vector<8x8xf32> to vector<1x8x8xf32>
    %815 = vector.shape_cast %811 : vector<8x8xf32> to vector<1x8x8xf32>
    %816 = vector.shape_cast %812 : vector<8x8xf32> to vector<1x8x8xf32>
    %817 = tpu.concatenate %813, %814, %815, %816 in 0 : vector<1x8x8xf32>, vector<1x8x8xf32>, vector<1x8x8xf32>, vector<1x8x8xf32> -> vector<4x8x8xf32>
    %818 = vector.extract_strided_slice %799 {offsets = [0, 0], sizes = [8, 8], strides = [1, 1]} : vector<8x32xf32> to vector<8x8xf32>
    %819 = vector.extract_strided_slice %799 {offsets = [0, 8], sizes = [8, 8], strides = [1, 1]} : vector<8x32xf32> to vector<8x8xf32>
    %820 = vector.extract_strided_slice %799 {offsets = [0, 16], sizes = [8, 8], strides = [1, 1]} : vector<8x32xf32> to vector<8x8xf32>
    %821 = vector.extract_strided_slice %799 {offsets = [0, 24], sizes = [8, 8], strides = [1, 1]} : vector<8x32xf32> to vector<8x8xf32>
    %822 = vector.shape_cast %818 : vector<8x8xf32> to vector<1x8x8xf32>
    %823 = vector.shape_cast %819 : vector<8x8xf32> to vector<1x8x8xf32>
    %824 = vector.shape_cast %820 : vector<8x8xf32> to vector<1x8x8xf32>
    %825 = vector.shape_cast %821 : vector<8x8xf32> to vector<1x8x8xf32>
    %826 = tpu.concatenate %822, %823, %824, %825 in 0 : vector<1x8x8xf32>, vector<1x8x8xf32>, vector<1x8x8xf32>, vector<1x8x8xf32> -> vector<4x8x8xf32>
    %cst_187 = arith.constant dense<0.000000e+00> : vector<4x8x8xf32>
    %827 = tpu.matmul %808, %817, %cst_187 {dimension_numbers = #tpu.dot_dimension_numbers<[2], [2], [1], [1], [0, 0, 0, 1, 1, 1], [0], [0]>} : vector<4x8x8xf32>, vector<4x8x8xf32>, vector<4x8x8xf32> -> vector<4x8x8xf32>
    %c8_188 = arith.constant 8 : index
    %c8_189 = arith.constant 8 : index
    %828 = vector.load %arg1[%c8_188, %c8_189] : memref<16x128xf32, #tpu.memory_space<vmem>>, vector<8x8xf32>
    %829 = vector.shape_cast %828 : vector<8x8xf32> to vector<1x8x8xf32>
    %830 = vector.broadcast %829 : vector<1x8x8xf32> to vector<4x8x8xf32>
    %831 = arith.addf %827, %830 : vector<4x8x8xf32>
    %cst_190 = arith.constant dense<0xFF800000> : vector<4x8xf32>
    %832 = vector.multi_reduction <maximumf>, %831, %cst_190 [2] : vector<4x8x8xf32> to vector<4x8xf32>
    %833 = vector.shape_cast %832 : vector<4x8xf32> to vector<4x8x1xf32>
    %834 = vector.broadcast %833 : vector<4x8x1xf32> to vector<4x8x8xf32>
    %835 = arith.subf %831, %834 : vector<4x8x8xf32>
    %836 = math.exp %835 : vector<4x8x8xf32>
    %cst_191 = arith.constant dense<0.000000e+00> : vector<4x8xf32>
    %837 = vector.multi_reduction <add>, %836, %cst_191 [2] : vector<4x8x8xf32> to vector<4x8xf32>
    %838 = vector.shape_cast %837 : vector<4x8xf32> to vector<4x8x1xf32>
    %839 = tpu.reciprocal %838 {approx = true} : vector<4x8x1xf32> -> vector<4x8x1xf32>
    %840 = vector.broadcast %839 : vector<4x8x1xf32> to vector<4x8x8xf32>
    %841 = arith.mulf %836, %840 : vector<4x8x8xf32>
    %cst_192 = arith.constant dense<0.000000e+00> : vector<4x8x8xf32>
    %842 = tpu.matmul %841, %826, %cst_192 {dimension_numbers = #tpu.dot_dimension_numbers<[2], [1], [1], [2], [0, 0, 0, 1, 1, 2], [0], [0]>} : vector<4x8x8xf32>, vector<4x8x8xf32>, vector<4x8x8xf32> -> vector<4x8x8xf32>
    %cst_193 = arith.constant dense<0.000000e+00> : vector<4x8x32xf32>
    %843 = tpu.matmul %842, %745, %cst_193 {dimension_numbers = #tpu.dot_dimension_numbers<[2], [1], [1], [2], [0, 0, 0, 1, 1, 2], [0], [0]>} : vector<4x8x8xf32>, vector<4x8x32xf32>, vector<4x8x32xf32> -> vector<4x8x32xf32>
    %cst_194 = arith.constant dense<0.000000e+00> : vector<8x32xf32>
    %844 = vector.multi_reduction <add>, %843, %cst_194 [0] : vector<4x8x32xf32> to vector<8x32xf32>
    %845 = vector.broadcast %746 : vector<1x32xf32> to vector<8x32xf32>
    %846 = arith.addf %844, %845 : vector<8x32xf32>
    %847 = tpu.concatenate %796, %846 in 0 : vector<8x32xf32>, vector<8x32xf32> -> vector<16x32xf32>
    %848 = arith.addf %705, %847 : vector<16x32xf32>
    %cst_195 = arith.constant dense<0.000000e+00> : vector<16xf32>
    %849 = vector.multi_reduction <add>, %848, %cst_195 [1] : vector<16x32xf32> to vector<16xf32>
    %850 = vector.shape_cast %849 : vector<16xf32> to vector<16x1xf32>
    %cst_196 = arith.constant 3.200000e+01 : f32
    %851 = vector.broadcast %cst_196 : f32 to vector<16x1xf32>
    %852 = arith.divf %850, %851 : vector<16x1xf32>
    %853 = vector.broadcast %852 : vector<16x1xf32> to vector<16x32xf32>
    %854 = arith.subf %848, %853 : vector<16x32xf32>
    %855 = arith.mulf %854, %854 : vector<16x32xf32>
    %cst_197 = arith.constant dense<0.000000e+00> : vector<16xf32>
    %856 = vector.multi_reduction <add>, %855, %cst_197 [1] : vector<16x32xf32> to vector<16xf32>
    %857 = vector.shape_cast %856 : vector<16xf32> to vector<16x1xf32>
    %cst_198 = arith.constant 3.100000e+01 : f32
    %858 = vector.broadcast %cst_198 : f32 to vector<16x1xf32>
    %859 = arith.divf %857, %858 : vector<16x1xf32>
    %860 = math.sqrt %859 : vector<16x1xf32>
    %c35 = arith.constant 35 : index
    %c0_199 = arith.constant 0 : index
    %861 = vector.load %arg3[%c35, %c0_199] : memref<48x128xf32, #tpu.memory_space<vmem>>, vector<1x32xf32>
    %862 = vector.broadcast %861 : vector<1x32xf32> to vector<16x32xf32>
    %863 = arith.mulf %862, %854 : vector<16x32xf32>
    %cst_200 = arith.constant 9.99999997E-7 : f32
    %864 = vector.broadcast %cst_200 : f32 to vector<16x1xf32>
    %865 = arith.addf %860, %864 : vector<16x1xf32>
    %866 = vector.broadcast %865 : vector<16x1xf32> to vector<16x32xf32>
    %867 = arith.divf %863, %866 : vector<16x32xf32>
    %c36 = arith.constant 36 : index
    %c0_201 = arith.constant 0 : index
    %868 = vector.load %arg3[%c36, %c0_201] : memref<48x128xf32, #tpu.memory_space<vmem>>, vector<1x32xf32>
    %869 = vector.broadcast %868 : vector<1x32xf32> to vector<16x32xf32>
    %870 = arith.addf %867, %869 : vector<16x32xf32>
    %c640 = arith.constant 640 : index
    %c0_202 = arith.constant 0 : index
    %871 = vector.load %arg2[%c640, %c0_202] : memref<832x128xf32, #tpu.memory_space<vmem>>, vector<32x32xf32>
    %cst_203 = arith.constant dense<0.000000e+00> : vector<16x32xf32>
    %872 = tpu.matmul %870, %871, %cst_203 {dimension_numbers = #tpu.dot_dimension_numbers<[1], [0], [0], [1], [0, 0, 1, 1], [], []>} : vector<16x32xf32>, vector<32x32xf32>, vector<16x32xf32> -> vector<16x32xf32>
    %c37 = arith.constant 37 : index
    %c0_204 = arith.constant 0 : index
    %873 = vector.load %arg3[%c37, %c0_204] : memref<48x128xf32, #tpu.memory_space<vmem>>, vector<1x32xf32>
    %874 = vector.broadcast %873 : vector<1x32xf32> to vector<16x32xf32>
    %875 = arith.addf %872, %874 : vector<16x32xf32>
    %c672 = arith.constant 672 : index
    %c0_205 = arith.constant 0 : index
    %876 = vector.load %arg2[%c672, %c0_205] : memref<832x128xf32, #tpu.memory_space<vmem>>, vector<32x64xf32>
    %cst_206 = arith.constant dense<0.000000e+00> : vector<16x64xf32>
    %877 = tpu.matmul %380, %876, %cst_206 {dimension_numbers = #tpu.dot_dimension_numbers<[1], [0], [0], [1], [0, 0, 1, 1], [], []>} : vector<16x32xf32>, vector<32x64xf32>, vector<16x64xf32> -> vector<16x64xf32>
    %c38 = arith.constant 38 : index
    %c0_207 = arith.constant 0 : index
    %878 = vector.load %arg3[%c38, %c0_207] : memref<48x128xf32, #tpu.memory_space<vmem>>, vector<1x64xf32>
    %879 = vector.broadcast %878 : vector<1x64xf32> to vector<16x64xf32>
    %880 = arith.addf %877, %879 : vector<16x64xf32>
    %881 = vector.extract_strided_slice %880 {offsets = [0, 0], sizes = [16, 32], strides = [1, 1]} : vector<16x64xf32> to vector<16x32xf32>
    %882 = vector.extract_strided_slice %880 {offsets = [0, 32], sizes = [16, 32], strides = [1, 1]} : vector<16x64xf32> to vector<16x32xf32>
    %c704 = arith.constant 704 : index
    %c0_208 = arith.constant 0 : index
    %883 = vector.load %arg2[%c704, %c0_208] : memref<832x128xf32, #tpu.memory_space<vmem>>, vector<32x32xf32>
    %884 = vector.extract_strided_slice %883 {offsets = [0, 0], sizes = [8, 32], strides = [1, 1]} : vector<32x32xf32> to vector<8x32xf32>
    %885 = vector.extract_strided_slice %883 {offsets = [8, 0], sizes = [8, 32], strides = [1, 1]} : vector<32x32xf32> to vector<8x32xf32>
    %886 = vector.extract_strided_slice %883 {offsets = [16, 0], sizes = [8, 32], strides = [1, 1]} : vector<32x32xf32> to vector<8x32xf32>
    %887 = vector.extract_strided_slice %883 {offsets = [24, 0], sizes = [8, 32], strides = [1, 1]} : vector<32x32xf32> to vector<8x32xf32>
    %888 = vector.shape_cast %884 : vector<8x32xf32> to vector<1x8x32xf32>
    %889 = vector.shape_cast %885 : vector<8x32xf32> to vector<1x8x32xf32>
    %890 = vector.shape_cast %886 : vector<8x32xf32> to vector<1x8x32xf32>
    %891 = vector.shape_cast %887 : vector<8x32xf32> to vector<1x8x32xf32>
    %892 = tpu.concatenate %888, %889, %890, %891 in 0 : vector<1x8x32xf32>, vector<1x8x32xf32>, vector<1x8x32xf32>, vector<1x8x32xf32> -> vector<4x8x32xf32>
    %c39 = arith.constant 39 : index
    %c0_209 = arith.constant 0 : index
    %893 = vector.load %arg3[%c39, %c0_209] : memref<48x128xf32, #tpu.memory_space<vmem>>, vector<1x32xf32>
    %894 = vector.extract_strided_slice %875 {offsets = [0, 0], sizes = [8, 32], strides = [1, 1]} : vector<16x32xf32> to vector<8x32xf32>
    %895 = vector.extract_strided_slice %881 {offsets = [0, 0], sizes = [8, 32], strides = [1, 1]} : vector<16x32xf32> to vector<8x32xf32>
    %896 = vector.extract_strided_slice %882 {offsets = [0, 0], sizes = [8, 32], strides = [1, 1]} : vector<16x32xf32> to vector<8x32xf32>
    %897 = vector.extract_strided_slice %894 {offsets = [0, 0], sizes = [8, 8], strides = [1, 1]} : vector<8x32xf32> to vector<8x8xf32>
    %898 = vector.extract_strided_slice %894 {offsets = [0, 8], sizes = [8, 8], strides = [1, 1]} : vector<8x32xf32> to vector<8x8xf32>
    %899 = vector.extract_strided_slice %894 {offsets = [0, 16], sizes = [8, 8], strides = [1, 1]} : vector<8x32xf32> to vector<8x8xf32>
    %900 = vector.extract_strided_slice %894 {offsets = [0, 24], sizes = [8, 8], strides = [1, 1]} : vector<8x32xf32> to vector<8x8xf32>
    %901 = vector.shape_cast %897 : vector<8x8xf32> to vector<1x8x8xf32>
    %902 = vector.shape_cast %898 : vector<8x8xf32> to vector<1x8x8xf32>
    %903 = vector.shape_cast %899 : vector<8x8xf32> to vector<1x8x8xf32>
    %904 = vector.shape_cast %900 : vector<8x8xf32> to vector<1x8x8xf32>
    %905 = tpu.concatenate %901, %902, %903, %904 in 0 : vector<1x8x8xf32>, vector<1x8x8xf32>, vector<1x8x8xf32>, vector<1x8x8xf32> -> vector<4x8x8xf32>
    %906 = vector.extract_strided_slice %895 {offsets = [0, 0], sizes = [8, 8], strides = [1, 1]} : vector<8x32xf32> to vector<8x8xf32>
    %907 = vector.extract_strided_slice %895 {offsets = [0, 8], sizes = [8, 8], strides = [1, 1]} : vector<8x32xf32> to vector<8x8xf32>
    %908 = vector.extract_strided_slice %895 {offsets = [0, 16], sizes = [8, 8], strides = [1, 1]} : vector<8x32xf32> to vector<8x8xf32>
    %909 = vector.extract_strided_slice %895 {offsets = [0, 24], sizes = [8, 8], strides = [1, 1]} : vector<8x32xf32> to vector<8x8xf32>
    %910 = vector.shape_cast %906 : vector<8x8xf32> to vector<1x8x8xf32>
    %911 = vector.shape_cast %907 : vector<8x8xf32> to vector<1x8x8xf32>
    %912 = vector.shape_cast %908 : vector<8x8xf32> to vector<1x8x8xf32>
    %913 = vector.shape_cast %909 : vector<8x8xf32> to vector<1x8x8xf32>
    %914 = tpu.concatenate %910, %911, %912, %913 in 0 : vector<1x8x8xf32>, vector<1x8x8xf32>, vector<1x8x8xf32>, vector<1x8x8xf32> -> vector<4x8x8xf32>
    %915 = vector.extract_strided_slice %896 {offsets = [0, 0], sizes = [8, 8], strides = [1, 1]} : vector<8x32xf32> to vector<8x8xf32>
    %916 = vector.extract_strided_slice %896 {offsets = [0, 8], sizes = [8, 8], strides = [1, 1]} : vector<8x32xf32> to vector<8x8xf32>
    %917 = vector.extract_strided_slice %896 {offsets = [0, 16], sizes = [8, 8], strides = [1, 1]} : vector<8x32xf32> to vector<8x8xf32>
    %918 = vector.extract_strided_slice %896 {offsets = [0, 24], sizes = [8, 8], strides = [1, 1]} : vector<8x32xf32> to vector<8x8xf32>
    %919 = vector.shape_cast %915 : vector<8x8xf32> to vector<1x8x8xf32>
    %920 = vector.shape_cast %916 : vector<8x8xf32> to vector<1x8x8xf32>
    %921 = vector.shape_cast %917 : vector<8x8xf32> to vector<1x8x8xf32>
    %922 = vector.shape_cast %918 : vector<8x8xf32> to vector<1x8x8xf32>
    %923 = tpu.concatenate %919, %920, %921, %922 in 0 : vector<1x8x8xf32>, vector<1x8x8xf32>, vector<1x8x8xf32>, vector<1x8x8xf32> -> vector<4x8x8xf32>
    %cst_210 = arith.constant dense<0.000000e+00> : vector<4x8x8xf32>
    %924 = tpu.matmul %905, %914, %cst_210 {dimension_numbers = #tpu.dot_dimension_numbers<[2], [2], [1], [1], [0, 0, 0, 1, 1, 1], [0], [0]>} : vector<4x8x8xf32>, vector<4x8x8xf32>, vector<4x8x8xf32> -> vector<4x8x8xf32>
    %c0_211 = arith.constant 0 : index
    %c0_212 = arith.constant 0 : index
    %925 = vector.load %arg1[%c0_211, %c0_212] : memref<16x128xf32, #tpu.memory_space<vmem>>, vector<8x8xf32>
    %926 = vector.shape_cast %925 : vector<8x8xf32> to vector<1x8x8xf32>
    %927 = vector.broadcast %926 : vector<1x8x8xf32> to vector<4x8x8xf32>
    %928 = arith.addf %924, %927 : vector<4x8x8xf32>
    %cst_213 = arith.constant dense<0xFF800000> : vector<4x8xf32>
    %929 = vector.multi_reduction <maximumf>, %928, %cst_213 [2] : vector<4x8x8xf32> to vector<4x8xf32>
    %930 = vector.shape_cast %929 : vector<4x8xf32> to vector<4x8x1xf32>
    %931 = vector.broadcast %930 : vector<4x8x1xf32> to vector<4x8x8xf32>
    %932 = arith.subf %928, %931 : vector<4x8x8xf32>
    %933 = math.exp %932 : vector<4x8x8xf32>
    %cst_214 = arith.constant dense<0.000000e+00> : vector<4x8xf32>
    %934 = vector.multi_reduction <add>, %933, %cst_214 [2] : vector<4x8x8xf32> to vector<4x8xf32>
    %935 = vector.shape_cast %934 : vector<4x8xf32> to vector<4x8x1xf32>
    %936 = tpu.reciprocal %935 {approx = true} : vector<4x8x1xf32> -> vector<4x8x1xf32>
    %937 = vector.broadcast %936 : vector<4x8x1xf32> to vector<4x8x8xf32>
    %938 = arith.mulf %933, %937 : vector<4x8x8xf32>
    %cst_215 = arith.constant dense<0.000000e+00> : vector<4x8x8xf32>
    %939 = tpu.matmul %938, %923, %cst_215 {dimension_numbers = #tpu.dot_dimension_numbers<[2], [1], [1], [2], [0, 0, 0, 1, 1, 2], [0], [0]>} : vector<4x8x8xf32>, vector<4x8x8xf32>, vector<4x8x8xf32> -> vector<4x8x8xf32>
    %cst_216 = arith.constant dense<0.000000e+00> : vector<4x8x32xf32>
    %940 = tpu.matmul %939, %892, %cst_216 {dimension_numbers = #tpu.dot_dimension_numbers<[2], [1], [1], [2], [0, 0, 0, 1, 1, 2], [0], [0]>} : vector<4x8x8xf32>, vector<4x8x32xf32>, vector<4x8x32xf32> -> vector<4x8x32xf32>
    %cst_217 = arith.constant dense<0.000000e+00> : vector<8x32xf32>
    %941 = vector.multi_reduction <add>, %940, %cst_217 [0] : vector<4x8x32xf32> to vector<8x32xf32>
    %942 = vector.broadcast %893 : vector<1x32xf32> to vector<8x32xf32>
    %943 = arith.addf %941, %942 : vector<8x32xf32>
    %944 = vector.extract_strided_slice %875 {offsets = [8, 0], sizes = [8, 32], strides = [1, 1]} : vector<16x32xf32> to vector<8x32xf32>
    %945 = vector.extract_strided_slice %881 {offsets = [8, 0], sizes = [8, 32], strides = [1, 1]} : vector<16x32xf32> to vector<8x32xf32>
    %946 = vector.extract_strided_slice %882 {offsets = [8, 0], sizes = [8, 32], strides = [1, 1]} : vector<16x32xf32> to vector<8x32xf32>
    %947 = vector.extract_strided_slice %944 {offsets = [0, 0], sizes = [8, 8], strides = [1, 1]} : vector<8x32xf32> to vector<8x8xf32>
    %948 = vector.extract_strided_slice %944 {offsets = [0, 8], sizes = [8, 8], strides = [1, 1]} : vector<8x32xf32> to vector<8x8xf32>
    %949 = vector.extract_strided_slice %944 {offsets = [0, 16], sizes = [8, 8], strides = [1, 1]} : vector<8x32xf32> to vector<8x8xf32>
    %950 = vector.extract_strided_slice %944 {offsets = [0, 24], sizes = [8, 8], strides = [1, 1]} : vector<8x32xf32> to vector<8x8xf32>
    %951 = vector.shape_cast %947 : vector<8x8xf32> to vector<1x8x8xf32>
    %952 = vector.shape_cast %948 : vector<8x8xf32> to vector<1x8x8xf32>
    %953 = vector.shape_cast %949 : vector<8x8xf32> to vector<1x8x8xf32>
    %954 = vector.shape_cast %950 : vector<8x8xf32> to vector<1x8x8xf32>
    %955 = tpu.concatenate %951, %952, %953, %954 in 0 : vector<1x8x8xf32>, vector<1x8x8xf32>, vector<1x8x8xf32>, vector<1x8x8xf32> -> vector<4x8x8xf32>
    %956 = vector.extract_strided_slice %945 {offsets = [0, 0], sizes = [8, 8], strides = [1, 1]} : vector<8x32xf32> to vector<8x8xf32>
    %957 = vector.extract_strided_slice %945 {offsets = [0, 8], sizes = [8, 8], strides = [1, 1]} : vector<8x32xf32> to vector<8x8xf32>
    %958 = vector.extract_strided_slice %945 {offsets = [0, 16], sizes = [8, 8], strides = [1, 1]} : vector<8x32xf32> to vector<8x8xf32>
    %959 = vector.extract_strided_slice %945 {offsets = [0, 24], sizes = [8, 8], strides = [1, 1]} : vector<8x32xf32> to vector<8x8xf32>
    %960 = vector.shape_cast %956 : vector<8x8xf32> to vector<1x8x8xf32>
    %961 = vector.shape_cast %957 : vector<8x8xf32> to vector<1x8x8xf32>
    %962 = vector.shape_cast %958 : vector<8x8xf32> to vector<1x8x8xf32>
    %963 = vector.shape_cast %959 : vector<8x8xf32> to vector<1x8x8xf32>
    %964 = tpu.concatenate %960, %961, %962, %963 in 0 : vector<1x8x8xf32>, vector<1x8x8xf32>, vector<1x8x8xf32>, vector<1x8x8xf32> -> vector<4x8x8xf32>
    %965 = vector.extract_strided_slice %946 {offsets = [0, 0], sizes = [8, 8], strides = [1, 1]} : vector<8x32xf32> to vector<8x8xf32>
    %966 = vector.extract_strided_slice %946 {offsets = [0, 8], sizes = [8, 8], strides = [1, 1]} : vector<8x32xf32> to vector<8x8xf32>
    %967 = vector.extract_strided_slice %946 {offsets = [0, 16], sizes = [8, 8], strides = [1, 1]} : vector<8x32xf32> to vector<8x8xf32>
    %968 = vector.extract_strided_slice %946 {offsets = [0, 24], sizes = [8, 8], strides = [1, 1]} : vector<8x32xf32> to vector<8x8xf32>
    %969 = vector.shape_cast %965 : vector<8x8xf32> to vector<1x8x8xf32>
    %970 = vector.shape_cast %966 : vector<8x8xf32> to vector<1x8x8xf32>
    %971 = vector.shape_cast %967 : vector<8x8xf32> to vector<1x8x8xf32>
    %972 = vector.shape_cast %968 : vector<8x8xf32> to vector<1x8x8xf32>
    %973 = tpu.concatenate %969, %970, %971, %972 in 0 : vector<1x8x8xf32>, vector<1x8x8xf32>, vector<1x8x8xf32>, vector<1x8x8xf32> -> vector<4x8x8xf32>
    %cst_218 = arith.constant dense<0.000000e+00> : vector<4x8x8xf32>
    %974 = tpu.matmul %955, %964, %cst_218 {dimension_numbers = #tpu.dot_dimension_numbers<[2], [2], [1], [1], [0, 0, 0, 1, 1, 1], [0], [0]>} : vector<4x8x8xf32>, vector<4x8x8xf32>, vector<4x8x8xf32> -> vector<4x8x8xf32>
    %c8_219 = arith.constant 8 : index
    %c0_220 = arith.constant 0 : index
    %975 = vector.load %arg1[%c8_219, %c0_220] : memref<16x128xf32, #tpu.memory_space<vmem>>, vector<8x8xf32>
    %976 = vector.shape_cast %975 : vector<8x8xf32> to vector<1x8x8xf32>
    %977 = vector.broadcast %976 : vector<1x8x8xf32> to vector<4x8x8xf32>
    %978 = arith.addf %974, %977 : vector<4x8x8xf32>
    %cst_221 = arith.constant dense<0xFF800000> : vector<4x8xf32>
    %979 = vector.multi_reduction <maximumf>, %978, %cst_221 [2] : vector<4x8x8xf32> to vector<4x8xf32>
    %980 = vector.shape_cast %979 : vector<4x8xf32> to vector<4x8x1xf32>
    %981 = vector.broadcast %980 : vector<4x8x1xf32> to vector<4x8x8xf32>
    %982 = arith.subf %978, %981 : vector<4x8x8xf32>
    %983 = math.exp %982 : vector<4x8x8xf32>
    %cst_222 = arith.constant dense<0.000000e+00> : vector<4x8xf32>
    %984 = vector.multi_reduction <add>, %983, %cst_222 [2] : vector<4x8x8xf32> to vector<4x8xf32>
    %985 = vector.shape_cast %984 : vector<4x8xf32> to vector<4x8x1xf32>
    %986 = tpu.reciprocal %985 {approx = true} : vector<4x8x1xf32> -> vector<4x8x1xf32>
    %987 = vector.broadcast %986 : vector<4x8x1xf32> to vector<4x8x8xf32>
    %988 = arith.mulf %983, %987 : vector<4x8x8xf32>
    %cst_223 = arith.constant dense<0.000000e+00> : vector<4x8x8xf32>
    %989 = tpu.matmul %988, %973, %cst_223 {dimension_numbers = #tpu.dot_dimension_numbers<[2], [1], [1], [2], [0, 0, 0, 1, 1, 2], [0], [0]>} : vector<4x8x8xf32>, vector<4x8x8xf32>, vector<4x8x8xf32> -> vector<4x8x8xf32>
    %cst_224 = arith.constant dense<0.000000e+00> : vector<4x8x32xf32>
    %990 = tpu.matmul %989, %892, %cst_224 {dimension_numbers = #tpu.dot_dimension_numbers<[2], [1], [1], [2], [0, 0, 0, 1, 1, 2], [0], [0]>} : vector<4x8x8xf32>, vector<4x8x32xf32>, vector<4x8x32xf32> -> vector<4x8x32xf32>
    %cst_225 = arith.constant dense<0.000000e+00> : vector<8x32xf32>
    %991 = vector.multi_reduction <add>, %990, %cst_225 [0] : vector<4x8x32xf32> to vector<8x32xf32>
    %992 = vector.broadcast %893 : vector<1x32xf32> to vector<8x32xf32>
    %993 = arith.addf %991, %992 : vector<8x32xf32>
    %994 = tpu.concatenate %943, %993 in 0 : vector<8x32xf32>, vector<8x32xf32> -> vector<16x32xf32>
    %995 = arith.addf %848, %994 : vector<16x32xf32>
    %cst_226 = arith.constant dense<0.000000e+00> : vector<16xf32>
    %996 = vector.multi_reduction <add>, %995, %cst_226 [1] : vector<16x32xf32> to vector<16xf32>
    %997 = vector.shape_cast %996 : vector<16xf32> to vector<16x1xf32>
    %cst_227 = arith.constant 3.200000e+01 : f32
    %998 = vector.broadcast %cst_227 : f32 to vector<16x1xf32>
    %999 = arith.divf %997, %998 : vector<16x1xf32>
    %1000 = vector.broadcast %999 : vector<16x1xf32> to vector<16x32xf32>
    %1001 = arith.subf %995, %1000 : vector<16x32xf32>
    %1002 = arith.mulf %1001, %1001 : vector<16x32xf32>
    %cst_228 = arith.constant dense<0.000000e+00> : vector<16xf32>
    %1003 = vector.multi_reduction <add>, %1002, %cst_228 [1] : vector<16x32xf32> to vector<16xf32>
    %1004 = vector.shape_cast %1003 : vector<16xf32> to vector<16x1xf32>
    %cst_229 = arith.constant 3.100000e+01 : f32
    %1005 = vector.broadcast %cst_229 : f32 to vector<16x1xf32>
    %1006 = arith.divf %1004, %1005 : vector<16x1xf32>
    %1007 = math.sqrt %1006 : vector<16x1xf32>
    %c40 = arith.constant 40 : index
    %c0_230 = arith.constant 0 : index
    %1008 = vector.load %arg3[%c40, %c0_230] : memref<48x128xf32, #tpu.memory_space<vmem>>, vector<1x32xf32>
    %1009 = vector.broadcast %1008 : vector<1x32xf32> to vector<16x32xf32>
    %1010 = arith.mulf %1009, %1001 : vector<16x32xf32>
    %cst_231 = arith.constant 9.99999997E-7 : f32
    %1011 = vector.broadcast %cst_231 : f32 to vector<16x1xf32>
    %1012 = arith.addf %1007, %1011 : vector<16x1xf32>
    %1013 = vector.broadcast %1012 : vector<16x1xf32> to vector<16x32xf32>
    %1014 = arith.divf %1010, %1013 : vector<16x32xf32>
    %c41 = arith.constant 41 : index
    %c0_232 = arith.constant 0 : index
    %1015 = vector.load %arg3[%c41, %c0_232] : memref<48x128xf32, #tpu.memory_space<vmem>>, vector<1x32xf32>
    %1016 = vector.broadcast %1015 : vector<1x32xf32> to vector<16x32xf32>
    %1017 = arith.addf %1014, %1016 : vector<16x32xf32>
    %c736 = arith.constant 736 : index
    %c0_233 = arith.constant 0 : index
    %1018 = vector.load %arg2[%c736, %c0_233] : memref<832x128xf32, #tpu.memory_space<vmem>>, vector<32x64xf32>
    %cst_234 = arith.constant dense<0.000000e+00> : vector<16x64xf32>
    %1019 = tpu.matmul %1017, %1018, %cst_234 {dimension_numbers = #tpu.dot_dimension_numbers<[1], [0], [0], [1], [0, 0, 1, 1], [], []>} : vector<16x32xf32>, vector<32x64xf32>, vector<16x64xf32> -> vector<16x64xf32>
    %c42 = arith.constant 42 : index
    %c0_235 = arith.constant 0 : index
    %1020 = vector.load %arg3[%c42, %c0_235] : memref<48x128xf32, #tpu.memory_space<vmem>>, vector<1x64xf32>
    %1021 = vector.broadcast %1020 : vector<1x64xf32> to vector<16x64xf32>
    %1022 = arith.addf %1019, %1021 : vector<16x64xf32>
    %cst_236 = arith.constant 0.000000e+00 : f32
    %1023 = vector.broadcast %cst_236 : f32 to vector<16x64xf32>
    %1024 = arith.maximumf %1022, %1023 : vector<16x64xf32>
    %c768 = arith.constant 768 : index
    %c0_237 = arith.constant 0 : index
    %1025 = vector.load %arg2[%c768, %c0_237] : memref<832x128xf32, #tpu.memory_space<vmem>>, vector<64x32xf32>
    %cst_238 = arith.constant dense<0.000000e+00> : vector<16x32xf32>
    %1026 = tpu.matmul %1024, %1025, %cst_238 {dimension_numbers = #tpu.dot_dimension_numbers<[1], [0], [0], [1], [0, 0, 1, 1], [], []>} : vector<16x64xf32>, vector<64x32xf32>, vector<16x32xf32> -> vector<16x32xf32>
    %c43 = arith.constant 43 : index
    %c0_239 = arith.constant 0 : index
    %1027 = vector.load %arg3[%c43, %c0_239] : memref<48x128xf32, #tpu.memory_space<vmem>>, vector<1x32xf32>
    %1028 = vector.broadcast %1027 : vector<1x32xf32> to vector<16x32xf32>
    %1029 = arith.addf %1026, %1028 : vector<16x32xf32>
    %1030 = arith.addf %995, %1029 : vector<16x32xf32>
    %cst_240 = arith.constant dense<0.000000e+00> : vector<16xf32>
    %1031 = vector.multi_reduction <add>, %1030, %cst_240 [1] : vector<16x32xf32> to vector<16xf32>
    %1032 = vector.shape_cast %1031 : vector<16xf32> to vector<16x1xf32>
    %cst_241 = arith.constant 3.200000e+01 : f32
    %1033 = vector.broadcast %cst_241 : f32 to vector<16x1xf32>
    %1034 = arith.divf %1032, %1033 : vector<16x1xf32>
    %1035 = vector.broadcast %1034 : vector<16x1xf32> to vector<16x32xf32>
    %1036 = arith.subf %1030, %1035 : vector<16x32xf32>
    %1037 = arith.mulf %1036, %1036 : vector<16x32xf32>
    %cst_242 = arith.constant dense<0.000000e+00> : vector<16xf32>
    %1038 = vector.multi_reduction <add>, %1037, %cst_242 [1] : vector<16x32xf32> to vector<16xf32>
    %1039 = vector.shape_cast %1038 : vector<16xf32> to vector<16x1xf32>
    %cst_243 = arith.constant 3.100000e+01 : f32
    %1040 = vector.broadcast %cst_243 : f32 to vector<16x1xf32>
    %1041 = arith.divf %1039, %1040 : vector<16x1xf32>
    %1042 = math.sqrt %1041 : vector<16x1xf32>
    %c44 = arith.constant 44 : index
    %c0_244 = arith.constant 0 : index
    %1043 = vector.load %arg3[%c44, %c0_244] : memref<48x128xf32, #tpu.memory_space<vmem>>, vector<1x32xf32>
    %1044 = vector.broadcast %1043 : vector<1x32xf32> to vector<16x32xf32>
    %1045 = arith.mulf %1044, %1036 : vector<16x32xf32>
    %cst_245 = arith.constant 9.99999997E-7 : f32
    %1046 = vector.broadcast %cst_245 : f32 to vector<16x1xf32>
    %1047 = arith.addf %1042, %1046 : vector<16x1xf32>
    %1048 = vector.broadcast %1047 : vector<16x1xf32> to vector<16x32xf32>
    %1049 = arith.divf %1045, %1048 : vector<16x32xf32>
    %c45 = arith.constant 45 : index
    %c0_246 = arith.constant 0 : index
    %1050 = vector.load %arg3[%c45, %c0_246] : memref<48x128xf32, #tpu.memory_space<vmem>>, vector<1x32xf32>
    %1051 = vector.broadcast %1050 : vector<1x32xf32> to vector<16x32xf32>
    %1052 = arith.addf %1049, %1051 : vector<16x32xf32>
    %c0_247 = arith.constant 0 : index
    %c0_248 = arith.constant 0 : index
    %1053 = vector.load %arg4[%c0_247, %c0_248] : memref<16x32xf32, #tpu.memory_space<vmem>>, vector<16x32xf32>
    tpu.vector_store %arg4[%c0_247, %c0_248], %1052 {strides = array<i32>} : memref<16x32xf32, #tpu.memory_space<vmem>>, vector<16x32xf32>,
    return
  }
}

</mosaic_0001>

<llo_original>
// kernel: encoder_decoder_forward.1
$region0: #{encoder_decoder_forward.1}
  #allocation0 [shape = 'u32[]', space=smem, size = 0x4, offset = 0x4, fixed_abs, tag = 'smem constant byte address 0x4 - core index']
  #allocation1 [shape = 'u32[72,128]{1,0:T(1,128)}', space=vmem, size = 0x9000, scoped, tag = 'internal scratch']
  %s0 = inlined_call_operand.vmem [shape: f32[16,128], index: 0, kind: input, shape index: {}]
  %s1 = inlined_call_operand.vmem [shape: f32[16,128], index: 1, kind: input, shape index: {}]
  %s2 = inlined_call_operand.hbm [shape: f32[832,128], index: 2, kind: input, shape index: {}]
  %s3 = inlined_call_operand.vmem [shape: f32[48,128], index: 3, kind: input, shape index: {}]
  %s4 = inlined_call_operand.hbm [shape: f32[16,32], index: 4, kind: output, shape index: {}]
  %s5 = sld [smem:[#allocation0]]
  $region30: #{encoder_decoder_forward.1} parent=0
    _
  %s7 = ssub.s32 1, %s5
  %s8 = scalar_select 0, %s7, %s5
  $region1: #{encoder_decoder_forward.1} parent=0
    #allocation2 [shape = 'u8[425984]{0}', space=vmem, size = 0x68000, scoped, tag = 'input window, operand 2, single buffered']
    #allocation3 [shape = 's32[1]{0}', space=sflag, size = 0x4, scoped, tag = 'scoped memory for encoder_decoder_forward.1']
    #allocation4 [shape = 's32[1]{0}', space=sflag, size = 0x4, scoped, tag = 'scoped memory for encoder_decoder_forward.1']
    #allocation5 [shape = 'u8[8192]{0}', space=vmem, size = 0x2000, scoped, tag = 'output window, operand 0, single buffered']
    %9 = vsyncpa [#allocation3], 0
    %10 = vsyncpa [#allocation4], 0
    // Predicated region
    $region2: #{encoder_decoder_forward.1} parent=1 // pred_check
      _
    $region3: #{encoder_decoder_forward.1} parent=1 // pred_check_branch
      %12 = sbr.rel (0) target = $region5
    $region4: #{encoder_decoder_forward.1} parent=1 // pred_region
      _
    $region5: #{encoder_decoder_forward.1} parent=1 // pred_fallthru
      _
    // Predicated region
    $region6: #{encoder_decoder_forward.1} parent=1 // pred_check
      _
    $region7: #{encoder_decoder_forward.1} parent=1 // pred_check_branch
      %14 = sbr.rel (0) target = $region9
    $region8: #{encoder_decoder_forward.1} parent=1 // pred_region
      _
    $region9: #{encoder_decoder_forward.1} parent=1 // pred_fallthru
      _
    // Predicated region
    $region10: #{encoder_decoder_forward.1} parent=1 // pred_check
      _
    $region11: #{encoder_decoder_forward.1} parent=1 // pred_check_branch
      %16 = sbr.rel (0) target = $region13
    $region12: #{encoder_decoder_forward.1} parent=1 // pred_region
      %18 = vsyncadd [#allocation3], 0
      %s19 = sshll.u32 %s2, 4
      %s20 = int_to_ptr.hbm [resolvable:$true] %s19
      %s21 = sshll.u32 [#allocation2], 4
      %s22 = int_to_ptr.vmem [resolvable:$true] %s21
      %27 = dma.hbm_to_vmem [thread:$0]  %s20, 13312, %s22, [#allocation3], 128, 128, 8
    $region13: #{encoder_decoder_forward.1} parent=1 // pred_fallthru
      _
    // Predicated region
    $region14: #{encoder_decoder_forward.1} parent=1 // pred_check
      _
    $region15: #{encoder_decoder_forward.1} parent=1 // pred_check_branch
      %29 = sbr.rel (0) target = $region17
    $region16: #{encoder_decoder_forward.1} parent=1 // pred_region
      _
    $region17: #{encoder_decoder_forward.1} parent=1 // pred_fallthru
      _
    // Predicated region
    $region18: #{encoder_decoder_forward.1} parent=1 // pred_check
      _
    $region19: #{encoder_decoder_forward.1} parent=1 // pred_check_branch
      %31 = sbr.rel (0) target = $region21
    $region20: #{encoder_decoder_forward.1} parent=1 // pred_region
      %33 = dma.done [#allocation3], 13312
    $region21: #{encoder_decoder_forward.1} parent=1 // pred_fallthru
      _
    %v34 = vld [vmem:[%s0] sm:$0xff]
    %v35 = vld [vmem:[%s0 + $0x8] sm:$0xff]
    %vm36 = vcmask 261120
    %v37 = vsel %vm36, %v34, 0.0
    %38 = vadd.xlane.f32.xlu0 %v37
    %v39 = vpop.xlane.xlu0 %38
    %v40 = vsel %vm36, %v35, 0.0
    %41 = vadd.xlane.f32.xlu0 %v40
    %v42 = vpop.xlane.xlu0 %41
    %v43 = vrcp.pop 32.0
    %v44 = vmul.f32 32.0, %v43
    %v45 = vsub.f32 1.0, %v44
    %v46 = vmul.f32 %v43, %v45
    %v47 = vadd.f32 %v43, %v46
    %vm48 = vweird.f32 %v43
    %v49 = vsel %vm48, %v43, %v47
    %v50 = vmul.f32 %v39, %v49
    %v51 = vmul.f32 %v42, %v49
    %v52 = vsub.f32 %v34, %v50
    %v53 = vsub.f32 %v35, %v51
    %v54 = vmul.f32 %v52, %v52
    %v55 = vmul.f32 %v53, %v53
    %v56 = vsel %vm36, %v54, 0.0
    %57 = vadd.xlane.f32.xlu0 %v56
    %v58 = vpop.xlane.xlu0 %57
    %v59 = vsel %vm36, %v55, 0.0
    %60 = vadd.xlane.f32.xlu0 %v59
    %v61 = vpop.xlane.xlu0 %60
    %v62 = vrcp.pop 31.0
    %v63 = vmul.f32 31.0, %v62
    %v64 = vsub.f32 1.0, %v63
    %v65 = vmul.f32 %v62, %v64
    %v66 = vadd.f32 %v62, %v65
    %vm67 = vweird.f32 %v62
    %v68 = vsel %vm67, %v62, %v66
    %v69 = vmul.f32 %v58, %v68
    %v70 = vmul.f32 %v61, %v68
    %v71 = vrsqrt.pop %v69
    %v72 = vmul.f32 %v71, %v69
    %v73 = vmul.f32 %v72, %v71
    %v74 = vmul.f32 0.5, %v73
    %v75 = vsub.f32 1.5, %v74
    %v76 = vmul.f32 %v71, %v75
    %v77 = vmul.f32 %v69, %v76
    %vm78 = vcmp.eq.f32.partialorder %v69, inf
    %v79 = vsel %vm78, %v69, %v77
    %vm80 = vcmp.eq.f32.partialorder %v69, 0.0
    %v81 = vand.u32 %v69, 2147483648
    %v82 = vsel %vm80, %v81, %v79
    %v83 = vrsqrt.pop %v70
    %v84 = vmul.f32 %v83, %v70
    %v85 = vmul.f32 %v84, %v83
    %v86 = vmul.f32 0.5, %v85
    %v87 = vsub.f32 1.5, %v86
    %v88 = vmul.f32 %v83, %v87
    %v89 = vmul.f32 %v70, %v88
    %vm90 = vcmp.eq.f32.partialorder %v70, inf
    %v91 = vsel %vm90, %v70, %v89
    %vm92 = vcmp.eq.f32.partialorder %v70, 0.0
    %v93 = vand.u32 %v70, 2147483648
    %v94 = vsel %vm92, %v93, %v91
    %v95 = vld [vmem:[%s3] sm:$0x1]
    %v96 = vperm.slane %v95, 0
    %v97 = vmul.f32 %v96, %v52
    %v98 = vmul.f32 %v96, %v53
    %v99 = vadd.f32 %v82, 1e-06
    %v100 = vadd.f32 %v94, 1e-06
    %v101 = vrcp.pop %v99
    %v102 = vmul.f32 %v99, %v101
    %v103 = vsub.f32 1.0, %v102
    %v104 = vmul.f32 %v101, %v103
    %v105 = vadd.f32 %v101, %v104
    %vm106 = vweird.f32 %v99
    %vm107 = vweird.f32 %v101
    %vm108 = vmor %vm106, %vm107
    %v109 = vsel %vm108, %v101, %v105
    %v110 = vand.u32 2147483647, %v99
    %vm111 = vcmp.eq.f32.partialorder %v110, 8.507059e+37
    %v112 = vand.u32 %v99, 2147483648
    %v113 = vor.u32 1.1754944e-38, %v112
    %v114 = vsel %vm111, %v113, %v109
    %v115 = vmul.f32 %v97, %v114
    %v116 = vrcp.pop %v100
    %v117 = vmul.f32 %v100, %v116
    %v118 = vsub.f32 1.0, %v117
    %v119 = vmul.f32 %v116, %v118
    %v120 = vadd.f32 %v116, %v119
    %vm121 = vweird.f32 %v100
    %vm122 = vweird.f32 %v116
    %vm123 = vmor %vm121, %vm122
    %v124 = vsel %vm123, %v116, %v120
    %v125 = vand.u32 2147483647, %v100
    %vm126 = vcmp.eq.f32.partialorder %v125, 8.507059e+37
    %v127 = vand.u32 %v100, 2147483648
    %v128 = vor.u32 1.1754944e-38, %v127
    %v129 = vsel %vm126, %v128, %v124
    %v130 = vmul.f32 %v98, %v129
    %v131 = vld [vmem:[%s3 + $0x1] sm:$0x1]
    %v132 = vperm.slane %v131, 0
    %v133 = vadd.f32 %v115, %v132
    %v134 = vadd.f32 %v130, %v132
    %v135 = vld [vmem:[#allocation2] sm:$0xff]
    %v136 = vld [vmem:[#allocation2 + $0x8] sm:$0xff]
    %v137 = vld [vmem:[#allocation2 + $0x10] sm:$0xff]
    %v138 = vld [vmem:[#allocation2 + $0x18] sm:$0xff]
    %v139 = vld [vmem:[%s3 + $0x2] sm:$0x1]
    %v140 = vperm.slane %v139, 0
    %v142 = vsel %vm36, %v133, 0
    %v145 = vsel %vm36, %v134, 0
    %147 = vmatpush.msra.mxu0 0.0
    %148 = vmatpush.msra.mxu0 0.0
    %149 = vmatpush.msra.mxu0 0.0
    %150 = vmatpush.msra.mxu0 0.0
    %151 = vmatpush.msra.mxu0 0.0
    %152 = vmatpush.msra.mxu0 0.0
    %153 = vmatpush.msra.mxu0 0.0
    %154 = vmatpush.msra.mxu0 0.0
    %155 = vmatpush.msra.mxu0 0.0
    %156 = vmatpush.msra.mxu0 0.0
    %157 = vmatpush.msra.mxu0 0.0
    %158 = vmatpush.msra.mxu0 0.0
    %159 = vmatpush.msra.mxu0 %v138
    %160 = vmatpush.msra.mxu0 %v137
    %161 = vmatpush.msra.mxu0 %v136
    %162 = vmatpush.msra.mxu0 %v135
    %163 = vmatmul.f32.gmra.mxu0 %v142
    %v164 = vpop.f32.mrf.mxu0
    %v165 = vadd.f32 %v140, %v164
    %166 = vmatmul.f32.gmra.mxu0 %v145
    %v167 = vpop.f32.mrf.mxu0
    %v168 = vadd.f32 %v140, %v167
    %169 = vdwg.mxu0
    %v170 = vld [vmem:[#allocation2 + $0x20] sm:$0xff]
    %v171 = vld [vmem:[#allocation2 + $0x28] sm:$0xff]
    %v172 = vld [vmem:[#allocation2 + $0x30] sm:$0xff]
    %v173 = vld [vmem:[#allocation2 + $0x38] sm:$0xff]
    %v174 = vld [vmem:[%s3 + $0x3] sm:$0x1]
    %176 = vrot.lane.b32.xlu0 %v165, 120
    %v177 = vpop.permute.xlu0 %176
    %178 = vrot.lane.b32.xlu0 %v165, 112
    %v179 = vpop.permute.xlu0 %178
    %180 = vrot.lane.b32.xlu0 %v165, 104
    %v181 = vpop.permute.xlu0 %180
    %v182 = vld [vmem:[%s1] sm:$0xff]
    %183 = vrot.lane.b32.xlu0 %v165, 96
    %v184 = vpop.permute.xlu0 %183
    %vm185 = vcmask 64512
    %v186 = vsel %vm185, %v165, 0
    %v188 = vsel %vm185, %v184, 0
    %190 = vmatpush.xpose.msra.mxu0 0.0
    %191 = vmatpush.xpose.msra.mxu0 0.0
    %192 = vmatpush.xpose.msra.mxu0 0.0
    %193 = vmatpush.xpose.msra.mxu0 0.0
    %194 = vmatpush.xpose.msra.mxu0 0.0
    %195 = vmatpush.xpose.msra.mxu0 0.0
    %196 = vmatpush.xpose.msra.mxu0 0.0
    %197 = vmatpush.xpose.msra.mxu0 0.0
    %198 = vmatpush.xpose.msra.mxu0 0.0
    %199 = vmatpush.xpose.msra.mxu0 0.0
    %200 = vmatpush.xpose.msra.mxu0 0.0
    %201 = vmatpush.xpose.msra.mxu0 0.0
    %202 = vmatpush.xpose.msra.mxu0 0.0
    %203 = vmatpush.xpose.msra.mxu0 0.0
    %204 = vmatpush.xpose.msra.mxu0 0.0
    %205 = vmatpush.xpose.msra.mxu0 %v188
    %206 = vmatmul.f32.gmra.mxu0 %v186
    %v207 = vpop.f32.mrf.mxu0
    %v208 = vadd.f32 %v182, %v207
    %209 = vdwg.mxu0
    %210 = vrot.lane.b32.xlu0 %v177, 96
    %v211 = vpop.permute.xlu0 %210
    %v212 = vsel %vm185, %v177, 0
    %v214 = vsel %vm185, %v211, 0
    %216 = vmatpush.xpose.msra.mxu0 0.0
    %217 = vmatpush.xpose.msra.mxu0 0.0
    %218 = vmatpush.xpose.msra.mxu0 0.0
    %219 = vmatpush.xpose.msra.mxu0 0.0
    %220 = vmatpush.xpose.msra.mxu0 0.0
    %221 = vmatpush.xpose.msra.mxu0 0.0
    %222 = vmatpush.xpose.msra.mxu0 0.0
    %223 = vmatpush.xpose.msra.mxu0 0.0
    %224 = vmatpush.xpose.msra.mxu0 0.0
    %225 = vmatpush.xpose.msra.mxu0 0.0
    %226 = vmatpush.xpose.msra.mxu0 0.0
    %227 = vmatpush.xpose.msra.mxu0 0.0
    %228 = vmatpush.xpose.msra.mxu0 0.0
    %229 = vmatpush.xpose.msra.mxu0 0.0
    %230 = vmatpush.xpose.msra.mxu0 0.0
    %231 = vmatpush.xpose.msra.mxu0 %v214
    %232 = vmatmul.f32.gmra.mxu0 %v212
    %v233 = vpop.f32.mrf.mxu0
    %v234 = vadd.f32 %v182, %v233
    %235 = vdwg.mxu0
    %236 = vrot.lane.b32.xlu0 %v179, 96
    %v237 = vpop.permute.xlu0 %236
    %v238 = vsel %vm185, %v179, 0
    %v240 = vsel %vm185, %v237, 0
    %242 = vmatpush.xpose.msra.mxu0 0.0
    %243 = vmatpush.xpose.msra.mxu0 0.0
    %244 = vmatpush.xpose.msra.mxu0 0.0
    %245 = vmatpush.xpose.msra.mxu0 0.0
    %246 = vmatpush.xpose.msra.mxu0 0.0
    %247 = vmatpush.xpose.msra.mxu0 0.0
    %248 = vmatpush.xpose.msra.mxu0 0.0
    %249 = vmatpush.xpose.msra.mxu0 0.0
    %250 = vmatpush.xpose.msra.mxu0 0.0
    %251 = vmatpush.xpose.msra.mxu0 0.0
    %252 = vmatpush.xpose.msra.mxu0 0.0
    %253 = vmatpush.xpose.msra.mxu0 0.0
    %254 = vmatpush.xpose.msra.mxu0 0.0
    %255 = vmatpush.xpose.msra.mxu0 0.0
    %256 = vmatpush.xpose.msra.mxu0 0.0
    %257 = vmatpush.xpose.msra.mxu0 %v240
    %258 = vmatmul.f32.gmra.mxu0 %v238
    %v259 = vpop.f32.mrf.mxu0
    %v260 = vadd.f32 %v182, %v259
    %261 = vdwg.mxu0
    %262 = vrot.lane.b32.xlu0 %v181, 96
    %v263 = vpop.permute.xlu0 %262
    %v264 = vsel %vm185, %v181, 0
    %v266 = vsel %vm185, %v263, 0
    %268 = vmatpush.xpose.msra.mxu0 0.0
    %269 = vmatpush.xpose.msra.mxu0 0.0
    %270 = vmatpush.xpose.msra.mxu0 0.0
    %271 = vmatpush.xpose.msra.mxu0 0.0
    %272 = vmatpush.xpose.msra.mxu0 0.0
    %273 = vmatpush.xpose.msra.mxu0 0.0
    %274 = vmatpush.xpose.msra.mxu0 0.0
    %275 = vmatpush.xpose.msra.mxu0 0.0
    %276 = vmatpush.xpose.msra.mxu0 0.0
    %277 = vmatpush.xpose.msra.mxu0 0.0
    %278 = vmatpush.xpose.msra.mxu0 0.0
    %279 = vmatpush.xpose.msra.mxu0 0.0
    %280 = vmatpush.xpose.msra.mxu0 0.0
    %281 = vmatpush.xpose.msra.mxu0 0.0
    %282 = vmatpush.xpose.msra.mxu0 0.0
    %283 = vmatpush.xpose.msra.mxu0 %v266
    %284 = vmatmul.f32.gmra.mxu0 %v264
    %v285 = vpop.f32.mrf.mxu0
    %v286 = vadd.f32 %v182, %v285
    %287 = vdwg.mxu0
    %v288 = vsel %vm185, %v208, -inf
    %289 = vmax.xlane.f32.xlu0 %v288
    %v290 = vpop.xlane.xlu0 %289
    %v291 = vsel %vm185, %v234, -inf
    %292 = vmax.xlane.f32.xlu0 %v291
    %v293 = vpop.xlane.xlu0 %292
    %v294 = vsel %vm185, %v260, -inf
    %295 = vmax.xlane.f32.xlu0 %v294
    %v296 = vpop.xlane.xlu0 %295
    %v297 = vsel %vm185, %v286, -inf
    %298 = vmax.xlane.f32.xlu0 %v297
    %v299 = vpop.xlane.xlu0 %298
    %v300 = vsub.f32 %v208, %v290
    %v301 = vsub.f32 %v234, %v293
    %v302 = vsub.f32 %v260, %v296
    %v303 = vsub.f32 %v286, %v299
    %v304 = vmul.f32 %v300, 1.442695
    %v305 = vpow.pop %v304
    %v306 = vmul.f32 %v301, 1.442695
    %v307 = vpow.pop %v306
    %v308 = vmul.f32 %v302, 1.442695
    %v309 = vpow.pop %v308
    %v310 = vmul.f32 %v303, 1.442695
    %v311 = vpow.pop %v310
    %v312 = vsel %vm185, %v305, 0.0
    %313 = vadd.xlane.f32.xlu0 %v312
    %v314 = vpop.xlane.xlu0 %313
    %v315 = vsel %vm185, %v307, 0.0
    %316 = vadd.xlane.f32.xlu0 %v315
    %v317 = vpop.xlane.xlu0 %316
    %v318 = vsel %vm185, %v309, 0.0
    %319 = vadd.xlane.f32.xlu0 %v318
    %v320 = vpop.xlane.xlu0 %319
    %v321 = vsel %vm185, %v311, 0.0
    %322 = vadd.xlane.f32.xlu0 %v321
    %v323 = vpop.xlane.xlu0 %322
    %v324 = vrcp.pop %v314
    %v325 = vrcp.pop %v317
    %v326 = vrcp.pop %v320
    %v327 = vrcp.pop %v323
    %v328 = vmul.f32 %v305, %v324
    %v329 = vmul.f32 %v307, %v325
    %v330 = vmul.f32 %v309, %v326
    %v331 = vmul.f32 %v311, %v327
    %332 = vrot.lane.b32.xlu0 %v165, 64
    %v333 = vpop.permute.xlu0 %332
    %v336 = vsel %vm185, %v328, 0
    %338 = vmatpush.msra.mxu0 0.0
    %339 = vmatpush.msra.mxu0 0.0
    %340 = vmatpush.msra.mxu0 0.0
    %341 = vmatpush.msra.mxu0 0.0
    %342 = vmatpush.msra.mxu0 0.0
    %343 = vmatpush.msra.mxu0 0.0
    %344 = vmatpush.msra.mxu0 0.0
    %345 = vmatpush.msra.mxu0 0.0
    %346 = vmatpush.msra.mxu0 0.0
    %347 = vmatpush.msra.mxu0 0.0
    %348 = vmatpush.msra.mxu0 0.0
    %349 = vmatpush.msra.mxu0 0.0
    %350 = vmatpush.msra.mxu0 0.0
    %351 = vmatpush.msra.mxu0 0.0
    %352 = vmatpush.msra.mxu0 0.0
    %353 = vmatpush.msra.mxu0 %v333
    %354 = vmatmul.f32.gmra.mxu0 %v336
    %v355 = vpop.f32.mrf.mxu0
    %v356 = vadd.f32 0.0, %v355
    %357 = vdwg.mxu0
    %358 = vrot.lane.b32.xlu0 %v177, 64
    %v359 = vpop.permute.xlu0 %358
    %v362 = vsel %vm185, %v329, 0
    %364 = vmatpush.msra.mxu0 0.0
    %365 = vmatpush.msra.mxu0 0.0
    %366 = vmatpush.msra.mxu0 0.0
    %367 = vmatpush.msra.mxu0 0.0
    %368 = vmatpush.msra.mxu0 0.0
    %369 = vmatpush.msra.mxu0 0.0
    %370 = vmatpush.msra.mxu0 0.0
    %371 = vmatpush.msra.mxu0 0.0
    %372 = vmatpush.msra.mxu0 0.0
    %373 = vmatpush.msra.mxu0 0.0
    %374 = vmatpush.msra.mxu0 0.0
    %375 = vmatpush.msra.mxu0 0.0
    %376 = vmatpush.msra.mxu0 0.0
    %377 = vmatpush.msra.mxu0 0.0
    %378 = vmatpush.msra.mxu0 0.0
    %379 = vmatpush.msra.mxu0 %v359
    %380 = vmatmul.f32.gmra.mxu0 %v362
    %v381 = vpop.f32.mrf.mxu0
    %v382 = vadd.f32 0.0, %v381
    %383 = vdwg.mxu0
    %384 = vrot.lane.b32.xlu0 %v179, 64
    %v385 = vpop.permute.xlu0 %384
    %v388 = vsel %vm185, %v330, 0
    %390 = vmatpush.msra.mxu0 0.0
    %391 = vmatpush.msra.mxu0 0.0
    %392 = vmatpush.msra.mxu0 0.0
    %393 = vmatpush.msra.mxu0 0.0
    %394 = vmatpush.msra.mxu0 0.0
    %395 = vmatpush.msra.mxu0 0.0
    %396 = vmatpush.msra.mxu0 0.0
    %397 = vmatpush.msra.mxu0 0.0
    %398 = vmatpush.msra.mxu0 0.0
    %399 = vmatpush.msra.mxu0 0.0
    %400 = vmatpush.msra.mxu0 0.0
    %401 = vmatpush.msra.mxu0 0.0
    %402 = vmatpush.msra.mxu0 0.0
    %403 = vmatpush.msra.mxu0 0.0
    %404 = vmatpush.msra.mxu0 0.0
    %405 = vmatpush.msra.mxu0 %v385
    %406 = vmatmul.f32.gmra.mxu0 %v388
    %v407 = vpop.f32.mrf.mxu0
    %v408 = vadd.f32 0.0, %v407
    %409 = vdwg.mxu0
    %410 = vrot.lane.b32.xlu0 %v181, 64
    %v411 = vpop.permute.xlu0 %410
    %v414 = vsel %vm185, %v331, 0
    %416 = vmatpush.msra.mxu0 0.0
    %417 = vmatpush.msra.mxu0 0.0
    %418 = vmatpush.msra.mxu0 0.0
    %419 = vmatpush.msra.mxu0 0.0
    %420 = vmatpush.msra.mxu0 0.0
    %421 = vmatpush.msra.mxu0 0.0
    %422 = vmatpush.msra.mxu0 0.0
    %423 = vmatpush.msra.mxu0 0.0
    %424 = vmatpush.msra.mxu0 0.0
    %425 = vmatpush.msra.mxu0 0.0
    %426 = vmatpush.msra.mxu0 0.0
    %427 = vmatpush.msra.mxu0 0.0
    %428 = vmatpush.msra.mxu0 0.0
    %429 = vmatpush.msra.mxu0 0.0
    %430 = vmatpush.msra.mxu0 0.0
    %431 = vmatpush.msra.mxu0 %v411
    %432 = vmatmul.f32.gmra.mxu0 %v414
    %v433 = vpop.f32.mrf.mxu0
    %v434 = vadd.f32 0.0, %v433
    %435 = vdwg.mxu0
    %v437 = vsel %vm185, %v356, 0
    %439 = vmatpush.msra.mxu0 0.0
    %440 = vmatpush.msra.mxu0 0.0
    %441 = vmatpush.msra.mxu0 0.0
    %442 = vmatpush.msra.mxu0 0.0
    %443 = vmatpush.msra.mxu0 0.0
    %444 = vmatpush.msra.mxu0 0.0
    %445 = vmatpush.msra.mxu0 0.0
    %446 = vmatpush.msra.mxu0 0.0
    %447 = vmatpush.msra.mxu0 0.0
    %448 = vmatpush.msra.mxu0 0.0
    %449 = vmatpush.msra.mxu0 0.0
    %450 = vmatpush.msra.mxu0 0.0
    %451 = vmatpush.msra.mxu0 0.0
    %452 = vmatpush.msra.mxu0 0.0
    %453 = vmatpush.msra.mxu0 0.0
    %454 = vmatpush.msra.mxu0 %v170
    %455 = vmatmul.f32.gmra.mxu0 %v437
    %v456 = vpop.f32.mrf.mxu0
    %v457 = vadd.f32 0.0, %v456
    %458 = vdwg.mxu0
    %v460 = vsel %vm185, %v382, 0
    %462 = vmatpush.msra.mxu0 0.0
    %463 = vmatpush.msra.mxu0 0.0
    %464 = vmatpush.msra.mxu0 0.0
    %465 = vmatpush.msra.mxu0 0.0
    %466 = vmatpush.msra.mxu0 0.0
    %467 = vmatpush.msra.mxu0 0.0
    %468 = vmatpush.msra.mxu0 0.0
    %469 = vmatpush.msra.mxu0 0.0
    %470 = vmatpush.msra.mxu0 0.0
    %471 = vmatpush.msra.mxu0 0.0
    %472 = vmatpush.msra.mxu0 0.0
    %473 = vmatpush.msra.mxu0 0.0
    %474 = vmatpush.msra.mxu0 0.0
    %475 = vmatpush.msra.mxu0 0.0
    %476 = vmatpush.msra.mxu0 0.0
    %477 = vmatpush.msra.mxu0 %v171
    %478 = vmatmul.f32.gmra.mxu0 %v460
    %v479 = vpop.f32.mrf.mxu0
    %v480 = vadd.f32 0.0, %v479
    %481 = vdwg.mxu0
    %v483 = vsel %vm185, %v408, 0
    %485 = vmatpush.msra.mxu0 0.0
    %486 = vmatpush.msra.mxu0 0.0
    %487 = vmatpush.msra.mxu0 0.0
    %488 = vmatpush.msra.mxu0 0.0
    %489 = vmatpush.msra.mxu0 0.0
    %490 = vmatpush.msra.mxu0 0.0
    %491 = vmatpush.msra.mxu0 0.0
    %492 = vmatpush.msra.mxu0 0.0
    %493 = vmatpush.msra.mxu0 0.0
    %494 = vmatpush.msra.mxu0 0.0
    %495 = vmatpush.msra.mxu0 0.0
    %496 = vmatpush.msra.mxu0 0.0
    %497 = vmatpush.msra.mxu0 0.0
    %498 = vmatpush.msra.mxu0 0.0
    %499 = vmatpush.msra.mxu0 0.0
    %500 = vmatpush.msra.mxu0 %v172
    %501 = vmatmul.f32.gmra.mxu0 %v483
    %v502 = vpop.f32.mrf.mxu0
    %v503 = vadd.f32 0.0, %v502
    %504 = vdwg.mxu0
    %v506 = vsel %vm185, %v434, 0
    %508 = vmatpush.msra.mxu0 0.0
    %509 = vmatpush.msra.mxu0 0.0
    %510 = vmatpush.msra.mxu0 0.0
    %511 = vmatpush.msra.mxu0 0.0
    %512 = vmatpush.msra.mxu0 0.0
    %513 = vmatpush.msra.mxu0 0.0
    %514 = vmatpush.msra.mxu0 0.0
    %515 = vmatpush.msra.mxu0 0.0
    %516 = vmatpush.msra.mxu0 0.0
    %517 = vmatpush.msra.mxu0 0.0
    %518 = vmatpush.msra.mxu0 0.0
    %519 = vmatpush.msra.mxu0 0.0
    %520 = vmatpush.msra.mxu0 0.0
    %521 = vmatpush.msra.mxu0 0.0
    %522 = vmatpush.msra.mxu0 0.0
    %523 = vmatpush.msra.mxu0 %v173
    %524 = vmatmul.f32.gmra.mxu0 %v506
    %v525 = vpop.f32.mrf.mxu0
    %v526 = vadd.f32 0.0, %v525
    %527 = vdwg.mxu0
    %v528 = vsel %vm36, %v457, 0.0
    %v529 = vsel %vm36, %v480, 0.0
    %v530 = vadd.f32 %v528, %v529
    %v531 = vsel %vm36, %v503, 0.0
    %v532 = vadd.f32 %v530, %v531
    %v533 = vsel %vm36, %v526, 0.0
    %v534 = vadd.f32 %v532, %v533
    %v535 = vperm.slane %v174, 0
    %v536 = vadd.f32 %v534, %v535
    %538 = vrot.lane.b32.xlu0 %v168, 120
    %v539 = vpop.permute.xlu0 %538
    %540 = vrot.lane.b32.xlu0 %v168, 112
    %v541 = vpop.permute.xlu0 %540
    %542 = vrot.lane.b32.xlu0 %v168, 104
    %v543 = vpop.permute.xlu0 %542
    %v544 = vld [vmem:[%s1 + $0x8] sm:$0xff]
    %545 = vrot.lane.b32.xlu0 %v168, 96
    %v546 = vpop.permute.xlu0 %545
    %v547 = vsel %vm185, %v168, 0
    %v549 = vsel %vm185, %v546, 0
    %551 = vmatpush.xpose.msra.mxu0 0.0
    %552 = vmatpush.xpose.msra.mxu0 0.0
    %553 = vmatpush.xpose.msra.mxu0 0.0
    %554 = vmatpush.xpose.msra.mxu0 0.0
    %555 = vmatpush.xpose.msra.mxu0 0.0
    %556 = vmatpush.xpose.msra.mxu0 0.0
    %557 = vmatpush.xpose.msra.mxu0 0.0
    %558 = vmatpush.xpose.msra.mxu0 0.0
    %559 = vmatpush.xpose.msra.mxu0 0.0
    %560 = vmatpush.xpose.msra.mxu0 0.0
    %561 = vmatpush.xpose.msra.mxu0 0.0
    %562 = vmatpush.xpose.msra.mxu0 0.0
    %563 = vmatpush.xpose.msra.mxu0 0.0
    %564 = vmatpush.xpose.msra.mxu0 0.0
    %565 = vmatpush.xpose.msra.mxu0 0.0
    %566 = vmatpush.xpose.msra.mxu0 %v549
    %567 = vmatmul.f32.gmra.mxu0 %v547
    %v568 = vpop.f32.mrf.mxu0
    %v569 = vadd.f32 %v544, %v568
    %570 = vdwg.mxu0
    %571 = vrot.lane.b32.xlu0 %v539, 96
    %v572 = vpop.permute.xlu0 %571
    %v573 = vsel %vm185, %v539, 0
    %v575 = vsel %vm185, %v572, 0
    %577 = vmatpush.xpose.msra.mxu0 0.0
    %578 = vmatpush.xpose.msra.mxu0 0.0
    %579 = vmatpush.xpose.msra.mxu0 0.0
    %580 = vmatpush.xpose.msra.mxu0 0.0
    %581 = vmatpush.xpose.msra.mxu0 0.0
    %582 = vmatpush.xpose.msra.mxu0 0.0
    %583 = vmatpush.xpose.msra.mxu0 0.0
    %584 = vmatpush.xpose.msra.mxu0 0.0
    %585 = vmatpush.xpose.msra.mxu0 0.0
    %586 = vmatpush.xpose.msra.mxu0 0.0
    %587 = vmatpush.xpose.msra.mxu0 0.0
    %588 = vmatpush.xpose.msra.mxu0 0.0
    %589 = vmatpush.xpose.msra.mxu0 0.0
    %590 = vmatpush.xpose.msra.mxu0 0.0
    %591 = vmatpush.xpose.msra.mxu0 0.0
    %592 = vmatpush.xpose.msra.mxu0 %v575
    %593 = vmatmul.f32.gmra.mxu0 %v573
    %v594 = vpop.f32.mrf.mxu0
    %v595 = vadd.f32 %v544, %v594
    %596 = vdwg.mxu0
    %597 = vrot.lane.b32.xlu0 %v541, 96
    %v598 = vpop.permute.xlu0 %597
    %v599 = vsel %vm185, %v541, 0
    %v601 = vsel %vm185, %v598, 0
    %603 = vmatpush.xpose.msra.mxu0 0.0
    %604 = vmatpush.xpose.msra.mxu0 0.0
    %605 = vmatpush.xpose.msra.mxu0 0.0
    %606 = vmatpush.xpose.msra.mxu0 0.0
    %607 = vmatpush.xpose.msra.mxu0 0.0
    %608 = vmatpush.xpose.msra.mxu0 0.0
    %609 = vmatpush.xpose.msra.mxu0 0.0
    %610 = vmatpush.xpose.msra.mxu0 0.0
    %611 = vmatpush.xpose.msra.mxu0 0.0
    %612 = vmatpush.xpose.msra.mxu0 0.0
    %613 = vmatpush.xpose.msra.mxu0 0.0
    %614 = vmatpush.xpose.msra.mxu0 0.0
    %615 = vmatpush.xpose.msra.mxu0 0.0
    %616 = vmatpush.xpose.msra.mxu0 0.0
    %617 = vmatpush.xpose.msra.mxu0 0.0
    %618 = vmatpush.xpose.msra.mxu0 %v601
    %619 = vmatmul.f32.gmra.mxu0 %v599
    %v620 = vpop.f32.mrf.mxu0
    %v621 = vadd.f32 %v544, %v620
    %622 = vdwg.mxu0
    %623 = vrot.lane.b32.xlu0 %v543, 96
    %v624 = vpop.permute.xlu0 %623
    %v625 = vsel %vm185, %v543, 0
    %v627 = vsel %vm185, %v624, 0
    %629 = vmatpush.xpose.msra.mxu0 0.0
    %630 = vmatpush.xpose.msra.mxu0 0.0
    %631 = vmatpush.xpose.msra.mxu0 0.0
    %632 = vmatpush.xpose.msra.mxu0 0.0
    %633 = vmatpush.xpose.msra.mxu0 0.0
    %634 = vmatpush.xpose.msra.mxu0 0.0
    %635 = vmatpush.xpose.msra.mxu0 0.0
    %636 = vmatpush.xpose.msra.mxu0 0.0
    %637 = vmatpush.xpose.msra.mxu0 0.0
    %638 = vmatpush.xpose.msra.mxu0 0.0
    %639 = vmatpush.xpose.msra.mxu0 0.0
    %640 = vmatpush.xpose.msra.mxu0 0.0
    %641 = vmatpush.xpose.msra.mxu0 0.0
    %642 = vmatpush.xpose.msra.mxu0 0.0
    %643 = vmatpush.xpose.msra.mxu0 0.0
    %644 = vmatpush.xpose.msra.mxu0 %v627
    %645 = vmatmul.f32.gmra.mxu0 %v625
    %v646 = vpop.f32.mrf.mxu0
    %v647 = vadd.f32 %v544, %v646
    %648 = vdwg.mxu0
    %v649 = vsel %vm185, %v569, -inf
    %650 = vmax.xlane.f32.xlu0 %v649
    %v651 = vpop.xlane.xlu0 %650
    %v652 = vsel %vm185, %v595, -inf
    %653 = vmax.xlane.f32.xlu0 %v652
    %v654 = vpop.xlane.xlu0 %653
    %v655 = vsel %vm185, %v621, -inf
    %656 = vmax.xlane.f32.xlu0 %v655
    %v657 = vpop.xlane.xlu0 %656
    %v658 = vsel %vm185, %v647, -inf
    %659 = vmax.xlane.f32.xlu0 %v658
    %v660 = vpop.xlane.xlu0 %659
    %v661 = vsub.f32 %v569, %v651
    %v662 = vsub.f32 %v595, %v654
    %v663 = vsub.f32 %v621, %v657
    %v664 = vsub.f32 %v647, %v660
    %v665 = vmul.f32 %v661, 1.442695
    %v666 = vpow.pop %v665
    %v667 = vmul.f32 %v662, 1.442695
    %v668 = vpow.pop %v667
    %v669 = vmul.f32 %v663, 1.442695
    %v670 = vpow.pop %v669
    %v671 = vmul.f32 %v664, 1.442695
    %v672 = vpow.pop %v671
    %v673 = vsel %vm185, %v666, 0.0
    %674 = vadd.xlane.f32.xlu0 %v673
    %v675 = vpop.xlane.xlu0 %674
    %v676 = vsel %vm185, %v668, 0.0
    %677 = vadd.xlane.f32.xlu0 %v676
    %v678 = vpop.xlane.xlu0 %677
    %v679 = vsel %vm185, %v670, 0.0
    %680 = vadd.xlane.f32.xlu0 %v679
    %v681 = vpop.xlane.xlu0 %680
    %v682 = vsel %vm185, %v672, 0.0
    %683 = vadd.xlane.f32.xlu0 %v682
    %v684 = vpop.xlane.xlu0 %683
    %v685 = vrcp.pop %v675
    %v686 = vrcp.pop %v678
    %v687 = vrcp.pop %v681
    %v688 = vrcp.pop %v684
    %v689 = vmul.f32 %v666, %v685
    %v690 = vmul.f32 %v668, %v686
    %v691 = vmul.f32 %v670, %v687
    %v692 = vmul.f32 %v672, %v688
    %693 = vrot.lane.b32.xlu0 %v168, 64
    %v694 = vpop.permute.xlu0 %693
    %v697 = vsel %vm185, %v689, 0
    %699 = vmatpush.msra.mxu0 0.0
    %700 = vmatpush.msra.mxu0 0.0
    %701 = vmatpush.msra.mxu0 0.0
    %702 = vmatpush.msra.mxu0 0.0
    %703 = vmatpush.msra.mxu0 0.0
    %704 = vmatpush.msra.mxu0 0.0
    %705 = vmatpush.msra.mxu0 0.0
    %706 = vmatpush.msra.mxu0 0.0
    %707 = vmatpush.msra.mxu0 0.0
    %708 = vmatpush.msra.mxu0 0.0
    %709 = vmatpush.msra.mxu0 0.0
    %710 = vmatpush.msra.mxu0 0.0
    %711 = vmatpush.msra.mxu0 0.0
    %712 = vmatpush.msra.mxu0 0.0
    %713 = vmatpush.msra.mxu0 0.0
    %714 = vmatpush.msra.mxu0 %v694
    %715 = vmatmul.f32.gmra.mxu0 %v697
    %v716 = vpop.f32.mrf.mxu0
    %v717 = vadd.f32 0.0, %v716
    %718 = vdwg.mxu0
    %719 = vrot.lane.b32.xlu0 %v539, 64
    %v720 = vpop.permute.xlu0 %719
    %v723 = vsel %vm185, %v690, 0
    %725 = vmatpush.msra.mxu0 0.0
    %726 = vmatpush.msra.mxu0 0.0
    %727 = vmatpush.msra.mxu0 0.0
    %728 = vmatpush.msra.mxu0 0.0
    %729 = vmatpush.msra.mxu0 0.0
    %730 = vmatpush.msra.mxu0 0.0
    %731 = vmatpush.msra.mxu0 0.0
    %732 = vmatpush.msra.mxu0 0.0
    %733 = vmatpush.msra.mxu0 0.0
    %734 = vmatpush.msra.mxu0 0.0
    %735 = vmatpush.msra.mxu0 0.0
    %736 = vmatpush.msra.mxu0 0.0
    %737 = vmatpush.msra.mxu0 0.0
    %738 = vmatpush.msra.mxu0 0.0
    %739 = vmatpush.msra.mxu0 0.0
    %740 = vmatpush.msra.mxu0 %v720
    %741 = vmatmul.f32.gmra.mxu0 %v723
    %v742 = vpop.f32.mrf.mxu0
    %v743 = vadd.f32 0.0, %v742
    %744 = vdwg.mxu0
    %745 = vrot.lane.b32.xlu0 %v541, 64
    %v746 = vpop.permute.xlu0 %745
    %v749 = vsel %vm185, %v691, 0
    %751 = vmatpush.msra.mxu0 0.0
    %752 = vmatpush.msra.mxu0 0.0
    %753 = vmatpush.msra.mxu0 0.0
    %754 = vmatpush.msra.mxu0 0.0
    %755 = vmatpush.msra.mxu0 0.0
    %756 = vmatpush.msra.mxu0 0.0
    %757 = vmatpush.msra.mxu0 0.0
    %758 = vmatpush.msra.mxu0 0.0
    %759 = vmatpush.msra.mxu0 0.0
    %760 = vmatpush.msra.mxu0 0.0
    %761 = vmatpush.msra.mxu0 0.0
    %762 = vmatpush.msra.mxu0 0.0
    %763 = vmatpush.msra.mxu0 0.0
    %764 = vmatpush.msra.mxu0 0.0
    %765 = vmatpush.msra.mxu0 0.0
    %766 = vmatpush.msra.mxu0 %v746
    %767 = vmatmul.f32.gmra.mxu0 %v749
    %v768 = vpop.f32.mrf.mxu0
    %v769 = vadd.f32 0.0, %v768
    %770 = vdwg.mxu0
    %771 = vrot.lane.b32.xlu0 %v543, 64
    %v772 = vpop.permute.xlu0 %771
    %v775 = vsel %vm185, %v692, 0
    %777 = vmatpush.msra.mxu0 0.0
    %778 = vmatpush.msra.mxu0 0.0
    %779 = vmatpush.msra.mxu0 0.0
    %780 = vmatpush.msra.mxu0 0.0
    %781 = vmatpush.msra.mxu0 0.0
    %782 = vmatpush.msra.mxu0 0.0
    %783 = vmatpush.msra.mxu0 0.0
    %784 = vmatpush.msra.mxu0 0.0
    %785 = vmatpush.msra.mxu0 0.0
    %786 = vmatpush.msra.mxu0 0.0
    %787 = vmatpush.msra.mxu0 0.0
    %788 = vmatpush.msra.mxu0 0.0
    %789 = vmatpush.msra.mxu0 0.0
    %790 = vmatpush.msra.mxu0 0.0
    %791 = vmatpush.msra.mxu0 0.0
    %792 = vmatpush.msra.mxu0 %v772
    %793 = vmatmul.f32.gmra.mxu0 %v775
    %v794 = vpop.f32.mrf.mxu0
    %v795 = vadd.f32 0.0, %v794
    %796 = vdwg.mxu0
    %v798 = vsel %vm185, %v717, 0
    %800 = vmatpush.msra.mxu0 0.0
    %801 = vmatpush.msra.mxu0 0.0
    %802 = vmatpush.msra.mxu0 0.0
    %803 = vmatpush.msra.mxu0 0.0
    %804 = vmatpush.msra.mxu0 0.0
    %805 = vmatpush.msra.mxu0 0.0
    %806 = vmatpush.msra.mxu0 0.0
    %807 = vmatpush.msra.mxu0 0.0
    %808 = vmatpush.msra.mxu0 0.0
    %809 = vmatpush.msra.mxu0 0.0
    %810 = vmatpush.msra.mxu0 0.0
    %811 = vmatpush.msra.mxu0 0.0
    %812 = vmatpush.msra.mxu0 0.0
    %813 = vmatpush.msra.mxu0 0.0
    %814 = vmatpush.msra.mxu0 0.0
    %815 = vmatpush.msra.mxu0 %v170
    %816 = vmatmul.f32.gmra.mxu0 %v798
    %v817 = vpop.f32.mrf.mxu0
    %v818 = vadd.f32 0.0, %v817
    %819 = vdwg.mxu0
    %v821 = vsel %vm185, %v743, 0
    %823 = vmatpush.msra.mxu0 0.0
    %824 = vmatpush.msra.mxu0 0.0
    %825 = vmatpush.msra.mxu0 0.0
    %826 = vmatpush.msra.mxu0 0.0
    %827 = vmatpush.msra.mxu0 0.0
    %828 = vmatpush.msra.mxu0 0.0
    %829 = vmatpush.msra.mxu0 0.0
    %830 = vmatpush.msra.mxu0 0.0
    %831 = vmatpush.msra.mxu0 0.0
    %832 = vmatpush.msra.mxu0 0.0
    %833 = vmatpush.msra.mxu0 0.0
    %834 = vmatpush.msra.mxu0 0.0
    %835 = vmatpush.msra.mxu0 0.0
    %836 = vmatpush.msra.mxu0 0.0
    %837 = vmatpush.msra.mxu0 0.0
    %838 = vmatpush.msra.mxu0 %v171
    %839 = vmatmul.f32.gmra.mxu0 %v821
    %v840 = vpop.f32.mrf.mxu0
    %v841 = vadd.f32 0.0, %v840
    %842 = vdwg.mxu0
    %v844 = vsel %vm185, %v769, 0
    %846 = vmatpush.msra.mxu0 0.0
    %847 = vmatpush.msra.mxu0 0.0
    %848 = vmatpush.msra.mxu0 0.0
    %849 = vmatpush.msra.mxu0 0.0
    %850 = vmatpush.msra.mxu0 0.0
    %851 = vmatpush.msra.mxu0 0.0
    %852 = vmatpush.msra.mxu0 0.0
    %853 = vmatpush.msra.mxu0 0.0
    %854 = vmatpush.msra.mxu0 0.0
    %855 = vmatpush.msra.mxu0 0.0
    %856 = vmatpush.msra.mxu0 0.0
    %857 = vmatpush.msra.mxu0 0.0
    %858 = vmatpush.msra.mxu0 0.0
    %859 = vmatpush.msra.mxu0 0.0
    %860 = vmatpush.msra.mxu0 0.0
    %861 = vmatpush.msra.mxu0 %v172
    %862 = vmatmul.f32.gmra.mxu0 %v844
    %v863 = vpop.f32.mrf.mxu0
    %v864 = vadd.f32 0.0, %v863
    %865 = vdwg.mxu0
    %v867 = vsel %vm185, %v795, 0
    %869 = vmatpush.msra.mxu0 0.0
    %870 = vmatpush.msra.mxu0 0.0
    %871 = vmatpush.msra.mxu0 0.0
    %872 = vmatpush.msra.mxu0 0.0
    %873 = vmatpush.msra.mxu0 0.0
    %874 = vmatpush.msra.mxu0 0.0
    %875 = vmatpush.msra.mxu0 0.0
    %876 = vmatpush.msra.mxu0 0.0
    %877 = vmatpush.msra.mxu0 0.0
    %878 = vmatpush.msra.mxu0 0.0
    %879 = vmatpush.msra.mxu0 0.0
    %880 = vmatpush.msra.mxu0 0.0
    %881 = vmatpush.msra.mxu0 0.0
    %882 = vmatpush.msra.mxu0 0.0
    %883 = vmatpush.msra.mxu0 0.0
    %884 = vmatpush.msra.mxu0 %v173
    %885 = vmatmul.f32.gmra.mxu0 %v867
    %v886 = vpop.f32.mrf.mxu0
    %v887 = vadd.f32 0.0, %v886
    %888 = vdwg.mxu0
    %v889 = vsel %vm36, %v818, 0.0
    %v890 = vsel %vm36, %v841, 0.0
    %v891 = vadd.f32 %v889, %v890
    %v892 = vsel %vm36, %v864, 0.0
    %v893 = vadd.f32 %v891, %v892
    %v894 = vsel %vm36, %v887, 0.0
    %v895 = vadd.f32 %v893, %v894
    %v896 = vadd.f32 %v895, %v535
    %v897 = vadd.f32 %v34, %v536
    %v898 = vadd.f32 %v35, %v896
    %v899 = vsel %vm36, %v897, 0.0
    %900 = vadd.xlane.f32.xlu0 %v899
    %v901 = vpop.xlane.xlu0 %900
    %v902 = vsel %vm36, %v898, 0.0
    %903 = vadd.xlane.f32.xlu0 %v902
    %v904 = vpop.xlane.xlu0 %903
    %v905 = vmul.f32 %v901, %v49
    %v906 = vmul.f32 %v904, %v49
    %v907 = vsub.f32 %v897, %v905
    %v908 = vsub.f32 %v898, %v906
    %v909 = vmul.f32 %v907, %v907
    %v910 = vmul.f32 %v908, %v908
    %v911 = vsel %vm36, %v909, 0.0
    %912 = vadd.xlane.f32.xlu0 %v911
    %v913 = vpop.xlane.xlu0 %912
    %v914 = vsel %vm36, %v910, 0.0
    %915 = vadd.xlane.f32.xlu0 %v914
    %v916 = vpop.xlane.xlu0 %915
    %v917 = vmul.f32 %v913, %v68
    %v918 = vmul.f32 %v916, %v68
    %v919 = vrsqrt.pop %v917
    %v920 = vmul.f32 %v919, %v917
    %v921 = vmul.f32 %v920, %v919
    %v922 = vmul.f32 0.5, %v921
    %v923 = vsub.f32 1.5, %v922
    %v924 = vmul.f32 %v919, %v923
    %v925 = vmul.f32 %v917, %v924
    %vm926 = vcmp.eq.f32.partialorder %v917, inf
    %v927 = vsel %vm926, %v917, %v925
    %vm928 = vcmp.eq.f32.partialorder %v917, 0.0
    %v929 = vand.u32 %v917, 2147483648
    %v930 = vsel %vm928, %v929, %v927
    %v931 = vrsqrt.pop %v918
    %v932 = vmul.f32 %v931, %v918
    %v933 = vmul.f32 %v932, %v931
    %v934 = vmul.f32 0.5, %v933
    %v935 = vsub.f32 1.5, %v934
    %v936 = vmul.f32 %v931, %v935
    %v937 = vmul.f32 %v918, %v936
    %vm938 = vcmp.eq.f32.partialorder %v918, inf
    %v939 = vsel %vm938, %v918, %v937
    %vm940 = vcmp.eq.f32.partialorder %v918, 0.0
    %v941 = vand.u32 %v918, 2147483648
    %v942 = vsel %vm940, %v941, %v939
    %v943 = vld [vmem:[%s3 + $0x4] sm:$0x1]
    %v944 = vperm.slane %v943, 0
    %v945 = vmul.f32 %v944, %v907
    %v946 = vmul.f32 %v944, %v908
    %v947 = vadd.f32 %v930, 1e-06
    %v948 = vadd.f32 %v942, 1e-06
    %v949 = vrcp.pop %v947
    %v950 = vmul.f32 %v947, %v949
    %v951 = vsub.f32 1.0, %v950
    %v952 = vmul.f32 %v949, %v951
    %v953 = vadd.f32 %v949, %v952
    %vm954 = vweird.f32 %v947
    %vm955 = vweird.f32 %v949
    %vm956 = vmor %vm954, %vm955
    %v957 = vsel %vm956, %v949, %v953
    %v958 = vand.u32 2147483647, %v947
    %vm959 = vcmp.eq.f32.partialorder %v958, 8.507059e+37
    %v960 = vand.u32 %v947, 2147483648
    %v961 = vor.u32 1.1754944e-38, %v960
    %v962 = vsel %vm959, %v961, %v957
    %v963 = vmul.f32 %v945, %v962
    %v964 = vrcp.pop %v948
    %v965 = vmul.f32 %v948, %v964
    %v966 = vsub.f32 1.0, %v965
    %v967 = vmul.f32 %v964, %v966
    %v968 = vadd.f32 %v964, %v967
    %vm969 = vweird.f32 %v948
    %vm970 = vweird.f32 %v964
    %vm971 = vmor %vm969, %vm970
    %v972 = vsel %vm971, %v964, %v968
    %v973 = vand.u32 2147483647, %v948
    %vm974 = vcmp.eq.f32.partialorder %v973, 8.507059e+37
    %v975 = vand.u32 %v948, 2147483648
    %v976 = vor.u32 1.1754944e-38, %v975
    %v977 = vsel %vm974, %v976, %v972
    %v978 = vmul.f32 %v946, %v977
    %v979 = vld [vmem:[%s3 + $0x5] sm:$0x1]
    %v980 = vperm.slane %v979, 0
    %v981 = vadd.f32 %v963, %v980
    %v982 = vadd.f32 %v978, %v980
    %v983 = vld [vmem:[#allocation2 + $0x40] sm:$0xff]
    %v984 = vld [vmem:[#allocation2 + $0x48] sm:$0xff]
    %v985 = vld [vmem:[#allocation2 + $0x50] sm:$0xff]
    %v986 = vld [vmem:[#allocation2 + $0x58] sm:$0xff]
    %v987 = vld [vmem:[%s3 + $0x6] sm:$0x1]
    %v988 = vperm.slane %v987, 0
    %v990 = vsel %vm36, %v981, 0
    %v993 = vsel %vm36, %v982, 0
    %995 = vmatpush.msra.mxu0 0.0
    %996 = vmatpush.msra.mxu0 0.0
    %997 = vmatpush.msra.mxu0 0.0
    %998 = vmatpush.msra.mxu0 0.0
    %999 = vmatpush.msra.mxu0 0.0
    %1000 = vmatpush.msra.mxu0 0.0
    %1001 = vmatpush.msra.mxu0 0.0
    %1002 = vmatpush.msra.mxu0 0.0
    %1003 = vmatpush.msra.mxu0 0.0
    %1004 = vmatpush.msra.mxu0 0.0
    %1005 = vmatpush.msra.mxu0 0.0
    %1006 = vmatpush.msra.mxu0 0.0
    %1007 = vmatpush.msra.mxu0 %v986
    %1008 = vmatpush.msra.mxu0 %v985
    %1009 = vmatpush.msra.mxu0 %v984
    %1010 = vmatpush.msra.mxu0 %v983
    %1011 = vmatmul.f32.gmra.mxu0 %v990
    %v1012 = vpop.f32.mrf.mxu0
    %v1013 = vadd.f32 %v988, %v1012
    %1014 = vmatmul.f32.gmra.mxu0 %v993
    %v1015 = vpop.f32.mrf.mxu0
    %v1016 = vadd.f32 %v988, %v1015
    %1017 = vdwg.mxu0
    %v1018 = vmax.f32 %v1013, 0.0
    %v1019 = vmax.f32 %v1016, 0.0
    %v1020 = vld [vmem:[#allocation2 + $0x60] sm:$0xff]
    %v1021 = vld [vmem:[#allocation2 + $0x68] sm:$0xff]
    %v1022 = vld [vmem:[#allocation2 + $0x70] sm:$0xff]
    %v1023 = vld [vmem:[#allocation2 + $0x78] sm:$0xff]
    %v1024 = vld [vmem:[#allocation2 + $0x80] sm:$0xff]
    %v1025 = vld [vmem:[#allocation2 + $0x88] sm:$0xff]
    %v1026 = vld [vmem:[#allocation2 + $0x90] sm:$0xff]
    %v1027 = vld [vmem:[#allocation2 + $0x98] sm:$0xff]
    %v1028 = vld [vmem:[%s3 + $0x7] sm:$0x1]
    %v1029 = vperm.slane %v1028, 0
    %vm1030 = vcmask 523264
    %v1032 = vsel %vm1030, %v1018, 0
    %v1035 = vsel %vm1030, %v1019, 0
    %1037 = vmatpush.msra.mxu0 0.0
    %1038 = vmatpush.msra.mxu0 0.0
    %1039 = vmatpush.msra.mxu0 0.0
    %1040 = vmatpush.msra.mxu0 0.0
    %1041 = vmatpush.msra.mxu0 0.0
    %1042 = vmatpush.msra.mxu0 0.0
    %1043 = vmatpush.msra.mxu0 0.0
    %1044 = vmatpush.msra.mxu0 0.0
    %1045 = vmatpush.msra.mxu0 %v1027
    %1046 = vmatpush.msra.mxu0 %v1026
    %1047 = vmatpush.msra.mxu0 %v1025
    %1048 = vmatpush.msra.mxu0 %v1024
    %1049 = vmatpush.msra.mxu0 %v1023
    %1050 = vmatpush.msra.mxu0 %v1022
    %1051 = vmatpush.msra.mxu0 %v1021
    %1052 = vmatpush.msra.mxu0 %v1020
    %1053 = vmatmul.f32.gmra.mxu0 %v1032
    %v1054 = vpop.f32.mrf.mxu0
    %v1055 = vadd.f32 %v1029, %v1054
    %1056 = vmatmul.f32.gmra.mxu0 %v1035
    %v1057 = vpop.f32.mrf.mxu0
    %v1058 = vadd.f32 %v1029, %v1057
    %1059 = vdwg.mxu0
    %v1060 = vadd.f32 %v897, %v1055
    %v1061 = vadd.f32 %v898, %v1058
    %v1062 = vsel %vm36, %v1060, 0.0
    %1063 = vadd.xlane.f32.xlu0 %v1062
    %v1064 = vpop.xlane.xlu0 %1063
    %v1065 = vsel %vm36, %v1061, 0.0
    %1066 = vadd.xlane.f32.xlu0 %v1065
    %v1067 = vpop.xlane.xlu0 %1066
    %v1068 = vmul.f32 %v1064, %v49
    %v1069 = vmul.f32 %v1067, %v49
    %v1070 = vsub.f32 %v1060, %v1068
    %v1071 = vsub.f32 %v1061, %v1069
    %v1072 = vmul.f32 %v1070, %v1070
    %v1073 = vmul.f32 %v1071, %v1071
    %v1074 = vsel %vm36, %v1072, 0.0
    %1075 = vadd.xlane.f32.xlu0 %v1074
    %v1076 = vpop.xlane.xlu0 %1075
    %v1077 = vsel %vm36, %v1073, 0.0
    %1078 = vadd.xlane.f32.xlu0 %v1077
    %v1079 = vpop.xlane.xlu0 %1078
    %v1080 = vmul.f32 %v1076, %v68
    %v1081 = vmul.f32 %v1079, %v68
    %v1082 = vrsqrt.pop %v1080
    %v1083 = vmul.f32 %v1082, %v1080
    %v1084 = vmul.f32 %v1083, %v1082
    %v1085 = vmul.f32 0.5, %v1084
    %v1086 = vsub.f32 1.5, %v1085
    %v1087 = vmul.f32 %v1082, %v1086
    %v1088 = vmul.f32 %v1080, %v1087
    %vm1089 = vcmp.eq.f32.partialorder %v1080, inf
    %v1090 = vsel %vm1089, %v1080, %v1088
    %vm1091 = vcmp.eq.f32.partialorder %v1080, 0.0
    %v1092 = vand.u32 %v1080, 2147483648
    %v1093 = vsel %vm1091, %v1092, %v1090
    %v1094 = vrsqrt.pop %v1081
    %v1095 = vmul.f32 %v1094, %v1081
    %v1096 = vmul.f32 %v1095, %v1094
    %v1097 = vmul.f32 0.5, %v1096
    %v1098 = vsub.f32 1.5, %v1097
    %v1099 = vmul.f32 %v1094, %v1098
    %v1100 = vmul.f32 %v1081, %v1099
    %vm1101 = vcmp.eq.f32.partialorder %v1081, inf
    %v1102 = vsel %vm1101, %v1081, %v1100
    %vm1103 = vcmp.eq.f32.partialorder %v1081, 0.0
    %v1104 = vand.u32 %v1081, 2147483648
    %v1105 = vsel %vm1103, %v1104, %v1102
    %v1106 = vld [vmem:[%s3 + $0x8] sm:$0x1]
    %v1107 = vperm.slane %v1106, 0
    %v1108 = vmul.f32 %v1107, %v1070
    %v1109 = vmul.f32 %v1107, %v1071
    %v1110 = vadd.f32 %v1093, 1e-06
    %v1111 = vadd.f32 %v1105, 1e-06
    %v1112 = vrcp.pop %v1110
    %v1113 = vmul.f32 %v1110, %v1112
    %v1114 = vsub.f32 1.0, %v1113
    %v1115 = vmul.f32 %v1112, %v1114
    %v1116 = vadd.f32 %v1112, %v1115
    %vm1117 = vweird.f32 %v1110
    %vm1118 = vweird.f32 %v1112
    %vm1119 = vmor %vm1117, %vm1118
    %v1120 = vsel %vm1119, %v1112, %v1116
    %v1121 = vand.u32 2147483647, %v1110
    %vm1122 = vcmp.eq.f32.partialorder %v1121, 8.507059e+37
    %v1123 = vand.u32 %v1110, 2147483648
    %v1124 = vor.u32 1.1754944e-38, %v1123
    %v1125 = vsel %vm1122, %v1124, %v1120
    %v1126 = vmul.f32 %v1108, %v1125
    %v1127 = vrcp.pop %v1111
    %v1128 = vmul.f32 %v1111, %v1127
    %v1129 = vsub.f32 1.0, %v1128
    %v1130 = vmul.f32 %v1127, %v1129
    %v1131 = vadd.f32 %v1127, %v1130
    %vm1132 = vweird.f32 %v1111
    %vm1133 = vweird.f32 %v1127
    %vm1134 = vmor %vm1132, %vm1133
    %v1135 = vsel %vm1134, %v1127, %v1131
    %v1136 = vand.u32 2147483647, %v1111
    %vm1137 = vcmp.eq.f32.partialorder %v1136, 8.507059e+37
    %v1138 = vand.u32 %v1111, 2147483648
    %v1139 = vor.u32 1.1754944e-38, %v1138
    %v1140 = vsel %vm1137, %v1139, %v1135
    %v1141 = vmul.f32 %v1109, %v1140
    %v1142 = vld [vmem:[%s3 + $0x9] sm:$0x1]
    %v1143 = vperm.slane %v1142, 0
    %v1144 = vadd.f32 %v1126, %v1143
    %v1145 = vadd.f32 %v1141, %v1143
    %v1146 = vld [vmem:[#allocation2 + $0xa0] sm:$0xff]
    %v1147 = vld [vmem:[#allocation2 + $0xa8] sm:$0xff]
    %v1148 = vld [vmem:[#allocation2 + $0xb0] sm:$0xff]
    %v1149 = vld [vmem:[#allocation2 + $0xb8] sm:$0xff]
    %v1150 = vld [vmem:[%s3 + $0xa] sm:$0x1]
    %v1151 = vperm.slane %v1150, 0
    %v1153 = vsel %vm36, %v1144, 0
    %v1156 = vsel %vm36, %v1145, 0
    %1158 = vmatpush.msra.mxu0 0.0
    %1159 = vmatpush.msra.mxu0 0.0
    %1160 = vmatpush.msra.mxu0 0.0
    %1161 = vmatpush.msra.mxu0 0.0
    %1162 = vmatpush.msra.mxu0 0.0
    %1163 = vmatpush.msra.mxu0 0.0
    %1164 = vmatpush.msra.mxu0 0.0
    %1165 = vmatpush.msra.mxu0 0.0
    %1166 = vmatpush.msra.mxu0 0.0
    %1167 = vmatpush.msra.mxu0 0.0
    %1168 = vmatpush.msra.mxu0 0.0
    %1169 = vmatpush.msra.mxu0 0.0
    %1170 = vmatpush.msra.mxu0 %v1149
    %1171 = vmatpush.msra.mxu0 %v1148
    %1172 = vmatpush.msra.mxu0 %v1147
    %1173 = vmatpush.msra.mxu0 %v1146
    %1174 = vmatmul.f32.gmra.mxu0 %v1153
    %v1175 = vpop.f32.mrf.mxu0
    %v1176 = vadd.f32 %v1151, %v1175
    %1177 = vmatmul.f32.gmra.mxu0 %v1156
    %v1178 = vpop.f32.mrf.mxu0
    %v1179 = vadd.f32 %v1151, %v1178
    %1180 = vdwg.mxu0
    %v1181 = vld [vmem:[#allocation2 + $0xc0] sm:$0xff]
    %v1182 = vld [vmem:[#allocation2 + $0xc8] sm:$0xff]
    %v1183 = vld [vmem:[#allocation2 + $0xd0] sm:$0xff]
    %v1184 = vld [vmem:[#allocation2 + $0xd8] sm:$0xff]
    %v1185 = vld [vmem:[%s3 + $0xb] sm:$0x1]
    %1187 = vrot.lane.b32.xlu0 %v1176, 120
    %v1188 = vpop.permute.xlu0 %1187
    %1189 = vrot.lane.b32.xlu0 %v1176, 112
    %v1190 = vpop.permute.xlu0 %1189
    %1191 = vrot.lane.b32.xlu0 %v1176, 104
    %v1192 = vpop.permute.xlu0 %1191
    %1193 = vrot.lane.b32.xlu0 %v1176, 96
    %v1194 = vpop.permute.xlu0 %1193
    %v1195 = vsel %vm185, %v1176, 0
    %v1197 = vsel %vm185, %v1194, 0
    %1199 = vmatpush.xpose.msra.mxu0 0.0
    %1200 = vmatpush.xpose.msra.mxu0 0.0
    %1201 = vmatpush.xpose.msra.mxu0 0.0
    %1202 = vmatpush.xpose.msra.mxu0 0.0
    %1203 = vmatpush.xpose.msra.mxu0 0.0
    %1204 = vmatpush.xpose.msra.mxu0 0.0
    %1205 = vmatpush.xpose.msra.mxu0 0.0
    %1206 = vmatpush.xpose.msra.mxu0 0.0
    %1207 = vmatpush.xpose.msra.mxu0 0.0
    %1208 = vmatpush.xpose.msra.mxu0 0.0
    %1209 = vmatpush.xpose.msra.mxu0 0.0
    %1210 = vmatpush.xpose.msra.mxu0 0.0
    %1211 = vmatpush.xpose.msra.mxu0 0.0
    %1212 = vmatpush.xpose.msra.mxu0 0.0
    %1213 = vmatpush.xpose.msra.mxu0 0.0
    %1214 = vmatpush.xpose.msra.mxu0 %v1197
    %1215 = vmatmul.f32.gmra.mxu0 %v1195
    %v1216 = vpop.f32.mrf.mxu0
    %v1217 = vadd.f32 %v182, %v1216
    %1218 = vdwg.mxu0
    %1219 = vrot.lane.b32.xlu0 %v1188, 96
    %v1220 = vpop.permute.xlu0 %1219
    %v1221 = vsel %vm185, %v1188, 0
    %v1223 = vsel %vm185, %v1220, 0
    %1225 = vmatpush.xpose.msra.mxu0 0.0
    %1226 = vmatpush.xpose.msra.mxu0 0.0
    %1227 = vmatpush.xpose.msra.mxu0 0.0
    %1228 = vmatpush.xpose.msra.mxu0 0.0
    %1229 = vmatpush.xpose.msra.mxu0 0.0
    %1230 = vmatpush.xpose.msra.mxu0 0.0
    %1231 = vmatpush.xpose.msra.mxu0 0.0
    %1232 = vmatpush.xpose.msra.mxu0 0.0
    %1233 = vmatpush.xpose.msra.mxu0 0.0
    %1234 = vmatpush.xpose.msra.mxu0 0.0
    %1235 = vmatpush.xpose.msra.mxu0 0.0
    %1236 = vmatpush.xpose.msra.mxu0 0.0
    %1237 = vmatpush.xpose.msra.mxu0 0.0
    %1238 = vmatpush.xpose.msra.mxu0 0.0
    %1239 = vmatpush.xpose.msra.mxu0 0.0
    %1240 = vmatpush.xpose.msra.mxu0 %v1223
    %1241 = vmatmul.f32.gmra.mxu0 %v1221
    %v1242 = vpop.f32.mrf.mxu0
    %v1243 = vadd.f32 %v182, %v1242
    %1244 = vdwg.mxu0
    %1245 = vrot.lane.b32.xlu0 %v1190, 96
    %v1246 = vpop.permute.xlu0 %1245
    %v1247 = vsel %vm185, %v1190, 0
    %v1249 = vsel %vm185, %v1246, 0
    %1251 = vmatpush.xpose.msra.mxu0 0.0
    %1252 = vmatpush.xpose.msra.mxu0 0.0
    %1253 = vmatpush.xpose.msra.mxu0 0.0
    %1254 = vmatpush.xpose.msra.mxu0 0.0
    %1255 = vmatpush.xpose.msra.mxu0 0.0
    %1256 = vmatpush.xpose.msra.mxu0 0.0
    %1257 = vmatpush.xpose.msra.mxu0 0.0
    %1258 = vmatpush.xpose.msra.mxu0 0.0
    %1259 = vmatpush.xpose.msra.mxu0 0.0
    %1260 = vmatpush.xpose.msra.mxu0 0.0
    %1261 = vmatpush.xpose.msra.mxu0 0.0
    %1262 = vmatpush.xpose.msra.mxu0 0.0
    %1263 = vmatpush.xpose.msra.mxu0 0.0
    %1264 = vmatpush.xpose.msra.mxu0 0.0
    %1265 = vmatpush.xpose.msra.mxu0 0.0
    %1266 = vmatpush.xpose.msra.mxu0 %v1249
    %1267 = vmatmul.f32.gmra.mxu0 %v1247
    %v1268 = vpop.f32.mrf.mxu0
    %v1269 = vadd.f32 %v182, %v1268
    %1270 = vdwg.mxu0
    %1271 = vrot.lane.b32.xlu0 %v1192, 96
    %v1272 = vpop.permute.xlu0 %1271
    %v1273 = vsel %vm185, %v1192, 0
    %v1275 = vsel %vm185, %v1272, 0
    %1277 = vmatpush.xpose.msra.mxu0 0.0
    %1278 = vmatpush.xpose.msra.mxu0 0.0
    %1279 = vmatpush.xpose.msra.mxu0 0.0
    %1280 = vmatpush.xpose.msra.mxu0 0.0
    %1281 = vmatpush.xpose.msra.mxu0 0.0
    %1282 = vmatpush.xpose.msra.mxu0 0.0
    %1283 = vmatpush.xpose.msra.mxu0 0.0
    %1284 = vmatpush.xpose.msra.mxu0 0.0
    %1285 = vmatpush.xpose.msra.mxu0 0.0
    %1286 = vmatpush.xpose.msra.mxu0 0.0
    %1287 = vmatpush.xpose.msra.mxu0 0.0
    %1288 = vmatpush.xpose.msra.mxu0 0.0
    %1289 = vmatpush.xpose.msra.mxu0 0.0
    %1290 = vmatpush.xpose.msra.mxu0 0.0
    %1291 = vmatpush.xpose.msra.mxu0 0.0
    %1292 = vmatpush.xpose.msra.mxu0 %v1275
    %1293 = vmatmul.f32.gmra.mxu0 %v1273
    %v1294 = vpop.f32.mrf.mxu0
    %v1295 = vadd.f32 %v182, %v1294
    %1296 = vdwg.mxu0
    %v1297 = vsel %vm185, %v1217, -inf
    %1298 = vmax.xlane.f32.xlu0 %v1297
    %v1299 = vpop.xlane.xlu0 %1298
    %v1300 = vsel %vm185, %v1243, -inf
    %1301 = vmax.xlane.f32.xlu0 %v1300
    %v1302 = vpop.xlane.xlu0 %1301
    %v1303 = vsel %vm185, %v1269, -inf
    %1304 = vmax.xlane.f32.xlu0 %v1303
    %v1305 = vpop.xlane.xlu0 %1304
    %v1306 = vsel %vm185, %v1295, -inf
    %1307 = vmax.xlane.f32.xlu0 %v1306
    %v1308 = vpop.xlane.xlu0 %1307
    %v1309 = vsub.f32 %v1217, %v1299
    %v1310 = vsub.f32 %v1243, %v1302
    %v1311 = vsub.f32 %v1269, %v1305
    %v1312 = vsub.f32 %v1295, %v1308
    %v1313 = vmul.f32 %v1309, 1.442695
    %v1314 = vpow.pop %v1313
    %v1315 = vmul.f32 %v1310, 1.442695
    %v1316 = vpow.pop %v1315
    %v1317 = vmul.f32 %v1311, 1.442695
    %v1318 = vpow.pop %v1317
    %v1319 = vmul.f32 %v1312, 1.442695
    %v1320 = vpow.pop %v1319
    %v1321 = vsel %vm185, %v1314, 0.0
    %1322 = vadd.xlane.f32.xlu0 %v1321
    %v1323 = vpop.xlane.xlu0 %1322
    %v1324 = vsel %vm185, %v1316, 0.0
    %1325 = vadd.xlane.f32.xlu0 %v1324
    %v1326 = vpop.xlane.xlu0 %1325
    %v1327 = vsel %vm185, %v1318, 0.0
    %1328 = vadd.xlane.f32.xlu0 %v1327
    %v1329 = vpop.xlane.xlu0 %1328
    %v1330 = vsel %vm185, %v1320, 0.0
    %1331 = vadd.xlane.f32.xlu0 %v1330
    %v1332 = vpop.xlane.xlu0 %1331
    %v1333 = vrcp.pop %v1323
    %v1334 = vrcp.pop %v1326
    %v1335 = vrcp.pop %v1329
    %v1336 = vrcp.pop %v1332
    %v1337 = vmul.f32 %v1314, %v1333
    %v1338 = vmul.f32 %v1316, %v1334
    %v1339 = vmul.f32 %v1318, %v1335
    %v1340 = vmul.f32 %v1320, %v1336
    %1341 = vrot.lane.b32.xlu0 %v1176, 64
    %v1342 = vpop.permute.xlu0 %1341
    %v1345 = vsel %vm185, %v1337, 0
    %1347 = vmatpush.msra.mxu0 0.0
    %1348 = vmatpush.msra.mxu0 0.0
    %1349 = vmatpush.msra.mxu0 0.0
    %1350 = vmatpush.msra.mxu0 0.0
    %1351 = vmatpush.msra.mxu0 0.0
    %1352 = vmatpush.msra.mxu0 0.0
    %1353 = vmatpush.msra.mxu0 0.0
    %1354 = vmatpush.msra.mxu0 0.0
    %1355 = vmatpush.msra.mxu0 0.0
    %1356 = vmatpush.msra.mxu0 0.0
    %1357 = vmatpush.msra.mxu0 0.0
    %1358 = vmatpush.msra.mxu0 0.0
    %1359 = vmatpush.msra.mxu0 0.0
    %1360 = vmatpush.msra.mxu0 0.0
    %1361 = vmatpush.msra.mxu0 0.0
    %1362 = vmatpush.msra.mxu0 %v1342
    %1363 = vmatmul.f32.gmra.mxu0 %v1345
    %v1364 = vpop.f32.mrf.mxu0
    %v1365 = vadd.f32 0.0, %v1364
    %1366 = vdwg.mxu0
    %1367 = vrot.lane.b32.xlu0 %v1188, 64
    %v1368 = vpop.permute.xlu0 %1367
    %v1371 = vsel %vm185, %v1338, 0
    %1373 = vmatpush.msra.mxu0 0.0
    %1374 = vmatpush.msra.mxu0 0.0
    %1375 = vmatpush.msra.mxu0 0.0
    %1376 = vmatpush.msra.mxu0 0.0
    %1377 = vmatpush.msra.mxu0 0.0
    %1378 = vmatpush.msra.mxu0 0.0
    %1379 = vmatpush.msra.mxu0 0.0
    %1380 = vmatpush.msra.mxu0 0.0
    %1381 = vmatpush.msra.mxu0 0.0
    %1382 = vmatpush.msra.mxu0 0.0
    %1383 = vmatpush.msra.mxu0 0.0
    %1384 = vmatpush.msra.mxu0 0.0
    %1385 = vmatpush.msra.mxu0 0.0
    %1386 = vmatpush.msra.mxu0 0.0
    %1387 = vmatpush.msra.mxu0 0.0
    %1388 = vmatpush.msra.mxu0 %v1368
    %1389 = vmatmul.f32.gmra.mxu0 %v1371
    %v1390 = vpop.f32.mrf.mxu0
    %v1391 = vadd.f32 0.0, %v1390
    %1392 = vdwg.mxu0
    %1393 = vrot.lane.b32.xlu0 %v1190, 64
    %v1394 = vpop.permute.xlu0 %1393
    %v1397 = vsel %vm185, %v1339, 0
    %1399 = vmatpush.msra.mxu0 0.0
    %1400 = vmatpush.msra.mxu0 0.0
    %1401 = vmatpush.msra.mxu0 0.0
    %1402 = vmatpush.msra.mxu0 0.0
    %1403 = vmatpush.msra.mxu0 0.0
    %1404 = vmatpush.msra.mxu0 0.0
    %1405 = vmatpush.msra.mxu0 0.0
    %1406 = vmatpush.msra.mxu0 0.0
    %1407 = vmatpush.msra.mxu0 0.0
    %1408 = vmatpush.msra.mxu0 0.0
    %1409 = vmatpush.msra.mxu0 0.0
    %1410 = vmatpush.msra.mxu0 0.0
    %1411 = vmatpush.msra.mxu0 0.0
    %1412 = vmatpush.msra.mxu0 0.0
    %1413 = vmatpush.msra.mxu0 0.0
    %1414 = vmatpush.msra.mxu0 %v1394
    %1415 = vmatmul.f32.gmra.mxu0 %v1397
    %v1416 = vpop.f32.mrf.mxu0
    %v1417 = vadd.f32 0.0, %v1416
    %1418 = vdwg.mxu0
    %1419 = vrot.lane.b32.xlu0 %v1192, 64
    %v1420 = vpop.permute.xlu0 %1419
    %v1423 = vsel %vm185, %v1340, 0
    %1425 = vmatpush.msra.mxu0 0.0
    %1426 = vmatpush.msra.mxu0 0.0
    %1427 = vmatpush.msra.mxu0 0.0
    %1428 = vmatpush.msra.mxu0 0.0
    %1429 = vmatpush.msra.mxu0 0.0
    %1430 = vmatpush.msra.mxu0 0.0
    %1431 = vmatpush.msra.mxu0 0.0
    %1432 = vmatpush.msra.mxu0 0.0
    %1433 = vmatpush.msra.mxu0 0.0
    %1434 = vmatpush.msra.mxu0 0.0
    %1435 = vmatpush.msra.mxu0 0.0
    %1436 = vmatpush.msra.mxu0 0.0
    %1437 = vmatpush.msra.mxu0 0.0
    %1438 = vmatpush.msra.mxu0 0.0
    %1439 = vmatpush.msra.mxu0 0.0
    %1440 = vmatpush.msra.mxu0 %v1420
    %1441 = vmatmul.f32.gmra.mxu0 %v1423
    %v1442 = vpop.f32.mrf.mxu0
    %v1443 = vadd.f32 0.0, %v1442
    %1444 = vdwg.mxu0
    %v1446 = vsel %vm185, %v1365, 0
    %1448 = vmatpush.msra.mxu0 0.0
    %1449 = vmatpush.msra.mxu0 0.0
    %1450 = vmatpush.msra.mxu0 0.0
    %1451 = vmatpush.msra.mxu0 0.0
    %1452 = vmatpush.msra.mxu0 0.0
    %1453 = vmatpush.msra.mxu0 0.0
    %1454 = vmatpush.msra.mxu0 0.0
    %1455 = vmatpush.msra.mxu0 0.0
    %1456 = vmatpush.msra.mxu0 0.0
    %1457 = vmatpush.msra.mxu0 0.0
    %1458 = vmatpush.msra.mxu0 0.0
    %1459 = vmatpush.msra.mxu0 0.0
    %1460 = vmatpush.msra.mxu0 0.0
    %1461 = vmatpush.msra.mxu0 0.0
    %1462 = vmatpush.msra.mxu0 0.0
    %1463 = vmatpush.msra.mxu0 %v1181
    %1464 = vmatmul.f32.gmra.mxu0 %v1446
    %v1465 = vpop.f32.mrf.mxu0
    %v1466 = vadd.f32 0.0, %v1465
    %1467 = vdwg.mxu0
    %v1469 = vsel %vm185, %v1391, 0
    %1471 = vmatpush.msra.mxu0 0.0
    %1472 = vmatpush.msra.mxu0 0.0
    %1473 = vmatpush.msra.mxu0 0.0
    %1474 = vmatpush.msra.mxu0 0.0
    %1475 = vmatpush.msra.mxu0 0.0
    %1476 = vmatpush.msra.mxu0 0.0
    %1477 = vmatpush.msra.mxu0 0.0
    %1478 = vmatpush.msra.mxu0 0.0
    %1479 = vmatpush.msra.mxu0 0.0
    %1480 = vmatpush.msra.mxu0 0.0
    %1481 = vmatpush.msra.mxu0 0.0
    %1482 = vmatpush.msra.mxu0 0.0
    %1483 = vmatpush.msra.mxu0 0.0
    %1484 = vmatpush.msra.mxu0 0.0
    %1485 = vmatpush.msra.mxu0 0.0
    %1486 = vmatpush.msra.mxu0 %v1182
    %1487 = vmatmul.f32.gmra.mxu0 %v1469
    %v1488 = vpop.f32.mrf.mxu0
    %v1489 = vadd.f32 0.0, %v1488
    %1490 = vdwg.mxu0
    %v1492 = vsel %vm185, %v1417, 0
    %1494 = vmatpush.msra.mxu0 0.0
    %1495 = vmatpush.msra.mxu0 0.0
    %1496 = vmatpush.msra.mxu0 0.0
    %1497 = vmatpush.msra.mxu0 0.0
    %1498 = vmatpush.msra.mxu0 0.0
    %1499 = vmatpush.msra.mxu0 0.0
    %1500 = vmatpush.msra.mxu0 0.0
    %1501 = vmatpush.msra.mxu0 0.0
    %1502 = vmatpush.msra.mxu0 0.0
    %1503 = vmatpush.msra.mxu0 0.0
    %1504 = vmatpush.msra.mxu0 0.0
    %1505 = vmatpush.msra.mxu0 0.0
    %1506 = vmatpush.msra.mxu0 0.0
    %1507 = vmatpush.msra.mxu0 0.0
    %1508 = vmatpush.msra.mxu0 0.0
    %1509 = vmatpush.msra.mxu0 %v1183
    %1510 = vmatmul.f32.gmra.mxu0 %v1492
    %v1511 = vpop.f32.mrf.mxu0
    %v1512 = vadd.f32 0.0, %v1511
    %1513 = vdwg.mxu0
    %v1515 = vsel %vm185, %v1443, 0
    %1517 = vmatpush.msra.mxu0 0.0
    %1518 = vmatpush.msra.mxu0 0.0
    %1519 = vmatpush.msra.mxu0 0.0
    %1520 = vmatpush.msra.mxu0 0.0
    %1521 = vmatpush.msra.mxu0 0.0
    %1522 = vmatpush.msra.mxu0 0.0
    %1523 = vmatpush.msra.mxu0 0.0
    %1524 = vmatpush.msra.mxu0 0.0
    %1525 = vmatpush.msra.mxu0 0.0
    %1526 = vmatpush.msra.mxu0 0.0
    %1527 = vmatpush.msra.mxu0 0.0
    %1528 = vmatpush.msra.mxu0 0.0
    %1529 = vmatpush.msra.mxu0 0.0
    %1530 = vmatpush.msra.mxu0 0.0
    %1531 = vmatpush.msra.mxu0 0.0
    %1532 = vmatpush.msra.mxu0 %v1184
    %1533 = vmatmul.f32.gmra.mxu0 %v1515
    %v1534 = vpop.f32.mrf.mxu0
    %v1535 = vadd.f32 0.0, %v1534
    %1536 = vdwg.mxu0
    %v1537 = vsel %vm36, %v1466, 0.0
    %v1538 = vsel %vm36, %v1489, 0.0
    %v1539 = vadd.f32 %v1537, %v1538
    %v1540 = vsel %vm36, %v1512, 0.0
    %v1541 = vadd.f32 %v1539, %v1540
    %v1542 = vsel %vm36, %v1535, 0.0
    %v1543 = vadd.f32 %v1541, %v1542
    %v1544 = vperm.slane %v1185, 0
    %v1545 = vadd.f32 %v1543, %v1544
    %1547 = vrot.lane.b32.xlu0 %v1179, 120
    %v1548 = vpop.permute.xlu0 %1547
    %1549 = vrot.lane.b32.xlu0 %v1179, 112
    %v1550 = vpop.permute.xlu0 %1549
    %1551 = vrot.lane.b32.xlu0 %v1179, 104
    %v1552 = vpop.permute.xlu0 %1551
    %1553 = vrot.lane.b32.xlu0 %v1179, 96
    %v1554 = vpop.permute.xlu0 %1553
    %v1555 = vsel %vm185, %v1179, 0
    %v1557 = vsel %vm185, %v1554, 0
    %1559 = vmatpush.xpose.msra.mxu0 0.0
    %1560 = vmatpush.xpose.msra.mxu0 0.0
    %1561 = vmatpush.xpose.msra.mxu0 0.0
    %1562 = vmatpush.xpose.msra.mxu0 0.0
    %1563 = vmatpush.xpose.msra.mxu0 0.0
    %1564 = vmatpush.xpose.msra.mxu0 0.0
    %1565 = vmatpush.xpose.msra.mxu0 0.0
    %1566 = vmatpush.xpose.msra.mxu0 0.0
    %1567 = vmatpush.xpose.msra.mxu0 0.0
    %1568 = vmatpush.xpose.msra.mxu0 0.0
    %1569 = vmatpush.xpose.msra.mxu0 0.0
    %1570 = vmatpush.xpose.msra.mxu0 0.0
    %1571 = vmatpush.xpose.msra.mxu0 0.0
    %1572 = vmatpush.xpose.msra.mxu0 0.0
    %1573 = vmatpush.xpose.msra.mxu0 0.0
    %1574 = vmatpush.xpose.msra.mxu0 %v1557
    %1575 = vmatmul.f32.gmra.mxu0 %v1555
    %v1576 = vpop.f32.mrf.mxu0
    %v1577 = vadd.f32 %v544, %v1576
    %1578 = vdwg.mxu0
    %1579 = vrot.lane.b32.xlu0 %v1548, 96
    %v1580 = vpop.permute.xlu0 %1579
    %v1581 = vsel %vm185, %v1548, 0
    %v1583 = vsel %vm185, %v1580, 0
    %1585 = vmatpush.xpose.msra.mxu0 0.0
    %1586 = vmatpush.xpose.msra.mxu0 0.0
    %1587 = vmatpush.xpose.msra.mxu0 0.0
    %1588 = vmatpush.xpose.msra.mxu0 0.0
    %1589 = vmatpush.xpose.msra.mxu0 0.0
    %1590 = vmatpush.xpose.msra.mxu0 0.0
    %1591 = vmatpush.xpose.msra.mxu0 0.0
    %1592 = vmatpush.xpose.msra.mxu0 0.0
    %1593 = vmatpush.xpose.msra.mxu0 0.0
    %1594 = vmatpush.xpose.msra.mxu0 0.0
    %1595 = vmatpush.xpose.msra.mxu0 0.0
    %1596 = vmatpush.xpose.msra.mxu0 0.0
    %1597 = vmatpush.xpose.msra.mxu0 0.0
    %1598 = vmatpush.xpose.msra.mxu0 0.0
    %1599 = vmatpush.xpose.msra.mxu0 0.0
    %1600 = vmatpush.xpose.msra.mxu0 %v1583
    %1601 = vmatmul.f32.gmra.mxu0 %v1581
    %v1602 = vpop.f32.mrf.mxu0
    %v1603 = vadd.f32 %v544, %v1602
    %1604 = vdwg.mxu0
    %1605 = vrot.lane.b32.xlu0 %v1550, 96
    %v1606 = vpop.permute.xlu0 %1605
    %v1607 = vsel %vm185, %v1550, 0
    %v1609 = vsel %vm185, %v1606, 0
    %1611 = vmatpush.xpose.msra.mxu0 0.0
    %1612 = vmatpush.xpose.msra.mxu0 0.0
    %1613 = vmatpush.xpose.msra.mxu0 0.0
    %1614 = vmatpush.xpose.msra.mxu0 0.0
    %1615 = vmatpush.xpose.msra.mxu0 0.0
    %1616 = vmatpush.xpose.msra.mxu0 0.0
    %1617 = vmatpush.xpose.msra.mxu0 0.0
    %1618 = vmatpush.xpose.msra.mxu0 0.0
    %1619 = vmatpush.xpose.msra.mxu0 0.0
    %1620 = vmatpush.xpose.msra.mxu0 0.0
    %1621 = vmatpush.xpose.msra.mxu0 0.0
    %1622 = vmatpush.xpose.msra.mxu0 0.0
    %1623 = vmatpush.xpose.msra.mxu0 0.0
    %1624 = vmatpush.xpose.msra.mxu0 0.0
    %1625 = vmatpush.xpose.msra.mxu0 0.0
    %1626 = vmatpush.xpose.msra.mxu0 %v1609
    %1627 = vmatmul.f32.gmra.mxu0 %v1607
    %v1628 = vpop.f32.mrf.mxu0
    %v1629 = vadd.f32 %v544, %v1628
    %1630 = vdwg.mxu0
    %1631 = vrot.lane.b32.xlu0 %v1552, 96
    %v1632 = vpop.permute.xlu0 %1631
    %v1633 = vsel %vm185, %v1552, 0
    %v1635 = vsel %vm185, %v1632, 0
    %1637 = vmatpush.xpose.msra.mxu0 0.0
    %1638 = vmatpush.xpose.msra.mxu0 0.0
    %1639 = vmatpush.xpose.msra.mxu0 0.0
    %1640 = vmatpush.xpose.msra.mxu0 0.0
    %1641 = vmatpush.xpose.msra.mxu0 0.0
    %1642 = vmatpush.xpose.msra.mxu0 0.0
    %1643 = vmatpush.xpose.msra.mxu0 0.0
    %1644 = vmatpush.xpose.msra.mxu0 0.0
    %1645 = vmatpush.xpose.msra.mxu0 0.0
    %1646 = vmatpush.xpose.msra.mxu0 0.0
    %1647 = vmatpush.xpose.msra.mxu0 0.0
    %1648 = vmatpush.xpose.msra.mxu0 0.0
    %1649 = vmatpush.xpose.msra.mxu0 0.0
    %1650 = vmatpush.xpose.msra.mxu0 0.0
    %1651 = vmatpush.xpose.msra.mxu0 0.0
    %1652 = vmatpush.xpose.msra.mxu0 %v1635
    %1653 = vmatmul.f32.gmra.mxu0 %v1633
    %v1654 = vpop.f32.mrf.mxu0
    %v1655 = vadd.f32 %v544, %v1654
    %1656 = vdwg.mxu0
    %v1657 = vsel %vm185, %v1577, -inf
    %1658 = vmax.xlane.f32.xlu0 %v1657
    %v1659 = vpop.xlane.xlu0 %1658
    %v1660 = vsel %vm185, %v1603, -inf
    %1661 = vmax.xlane.f32.xlu0 %v1660
    %v1662 = vpop.xlane.xlu0 %1661
    %v1663 = vsel %vm185, %v1629, -inf
    %1664 = vmax.xlane.f32.xlu0 %v1663
    %v1665 = vpop.xlane.xlu0 %1664
    %v1666 = vsel %vm185, %v1655, -inf
    %1667 = vmax.xlane.f32.xlu0 %v1666
    %v1668 = vpop.xlane.xlu0 %1667
    %v1669 = vsub.f32 %v1577, %v1659
    %v1670 = vsub.f32 %v1603, %v1662
    %v1671 = vsub.f32 %v1629, %v1665
    %v1672 = vsub.f32 %v1655, %v1668
    %v1673 = vmul.f32 %v1669, 1.442695
    %v1674 = vpow.pop %v1673
    %v1675 = vmul.f32 %v1670, 1.442695
    %v1676 = vpow.pop %v1675
    %v1677 = vmul.f32 %v1671, 1.442695
    %v1678 = vpow.pop %v1677
    %v1679 = vmul.f32 %v1672, 1.442695
    %v1680 = vpow.pop %v1679
    %v1681 = vsel %vm185, %v1674, 0.0
    %1682 = vadd.xlane.f32.xlu0 %v1681
    %v1683 = vpop.xlane.xlu0 %1682
    %v1684 = vsel %vm185, %v1676, 0.0
    %1685 = vadd.xlane.f32.xlu0 %v1684
    %v1686 = vpop.xlane.xlu0 %1685
    %v1687 = vsel %vm185, %v1678, 0.0
    %1688 = vadd.xlane.f32.xlu0 %v1687
    %v1689 = vpop.xlane.xlu0 %1688
    %v1690 = vsel %vm185, %v1680, 0.0
    %1691 = vadd.xlane.f32.xlu0 %v1690
    %v1692 = vpop.xlane.xlu0 %1691
    %v1693 = vrcp.pop %v1683
    %v1694 = vrcp.pop %v1686
    %v1695 = vrcp.pop %v1689
    %v1696 = vrcp.pop %v1692
    %v1697 = vmul.f32 %v1674, %v1693
    %v1698 = vmul.f32 %v1676, %v1694
    %v1699 = vmul.f32 %v1678, %v1695
    %v1700 = vmul.f32 %v1680, %v1696
    %1701 = vrot.lane.b32.xlu0 %v1179, 64
    %v1702 = vpop.permute.xlu0 %1701
    %v1705 = vsel %vm185, %v1697, 0
    %1707 = vmatpush.msra.mxu0 0.0
    %1708 = vmatpush.msra.mxu0 0.0
    %1709 = vmatpush.msra.mxu0 0.0
    %1710 = vmatpush.msra.mxu0 0.0
    %1711 = vmatpush.msra.mxu0 0.0
    %1712 = vmatpush.msra.mxu0 0.0
    %1713 = vmatpush.msra.mxu0 0.0
    %1714 = vmatpush.msra.mxu0 0.0
    %1715 = vmatpush.msra.mxu0 0.0
    %1716 = vmatpush.msra.mxu0 0.0
    %1717 = vmatpush.msra.mxu0 0.0
    %1718 = vmatpush.msra.mxu0 0.0
    %1719 = vmatpush.msra.mxu0 0.0
    %1720 = vmatpush.msra.mxu0 0.0
    %1721 = vmatpush.msra.mxu0 0.0
    %1722 = vmatpush.msra.mxu0 %v1702
    %1723 = vmatmul.f32.gmra.mxu0 %v1705
    %v1724 = vpop.f32.mrf.mxu0
    %v1725 = vadd.f32 0.0, %v1724
    %1726 = vdwg.mxu0
    %1727 = vrot.lane.b32.xlu0 %v1548, 64
    %v1728 = vpop.permute.xlu0 %1727
    %v1731 = vsel %vm185, %v1698, 0
    %1733 = vmatpush.msra.mxu0 0.0
    %1734 = vmatpush.msra.mxu0 0.0
    %1735 = vmatpush.msra.mxu0 0.0
    %1736 = vmatpush.msra.mxu0 0.0
    %1737 = vmatpush.msra.mxu0 0.0
    %1738 = vmatpush.msra.mxu0 0.0
    %1739 = vmatpush.msra.mxu0 0.0
    %1740 = vmatpush.msra.mxu0 0.0
    %1741 = vmatpush.msra.mxu0 0.0
    %1742 = vmatpush.msra.mxu0 0.0
    %1743 = vmatpush.msra.mxu0 0.0
    %1744 = vmatpush.msra.mxu0 0.0
    %1745 = vmatpush.msra.mxu0 0.0
    %1746 = vmatpush.msra.mxu0 0.0
    %1747 = vmatpush.msra.mxu0 0.0
    %1748 = vmatpush.msra.mxu0 %v1728
    %1749 = vmatmul.f32.gmra.mxu0 %v1731
    %v1750 = vpop.f32.mrf.mxu0
    %v1751 = vadd.f32 0.0, %v1750
    %1752 = vdwg.mxu0
    %1753 = vrot.lane.b32.xlu0 %v1550, 64
    %v1754 = vpop.permute.xlu0 %1753
    %v1757 = vsel %vm185, %v1699, 0
    %1759 = vmatpush.msra.mxu0 0.0
    %1760 = vmatpush.msra.mxu0 0.0
    %1761 = vmatpush.msra.mxu0 0.0
    %1762 = vmatpush.msra.mxu0 0.0
    %1763 = vmatpush.msra.mxu0 0.0
    %1764 = vmatpush.msra.mxu0 0.0
    %1765 = vmatpush.msra.mxu0 0.0
    %1766 = vmatpush.msra.mxu0 0.0
    %1767 = vmatpush.msra.mxu0 0.0
    %1768 = vmatpush.msra.mxu0 0.0
    %1769 = vmatpush.msra.mxu0 0.0
    %1770 = vmatpush.msra.mxu0 0.0
    %1771 = vmatpush.msra.mxu0 0.0
    %1772 = vmatpush.msra.mxu0 0.0
    %1773 = vmatpush.msra.mxu0 0.0
    %1774 = vmatpush.msra.mxu0 %v1754
    %1775 = vmatmul.f32.gmra.mxu0 %v1757
    %v1776 = vpop.f32.mrf.mxu0
    %v1777 = vadd.f32 0.0, %v1776
    %1778 = vdwg.mxu0
    %1779 = vrot.lane.b32.xlu0 %v1552, 64
    %v1780 = vpop.permute.xlu0 %1779
    %v1783 = vsel %vm185, %v1700, 0
    %1785 = vmatpush.msra.mxu0 0.0
    %1786 = vmatpush.msra.mxu0 0.0
    %1787 = vmatpush.msra.mxu0 0.0
    %1788 = vmatpush.msra.mxu0 0.0
    %1789 = vmatpush.msra.mxu0 0.0
    %1790 = vmatpush.msra.mxu0 0.0
    %1791 = vmatpush.msra.mxu0 0.0
    %1792 = vmatpush.msra.mxu0 0.0
    %1793 = vmatpush.msra.mxu0 0.0
    %1794 = vmatpush.msra.mxu0 0.0
    %1795 = vmatpush.msra.mxu0 0.0
    %1796 = vmatpush.msra.mxu0 0.0
    %1797 = vmatpush.msra.mxu0 0.0
    %1798 = vmatpush.msra.mxu0 0.0
    %1799 = vmatpush.msra.mxu0 0.0
    %1800 = vmatpush.msra.mxu0 %v1780
    %1801 = vmatmul.f32.gmra.mxu0 %v1783
    %v1802 = vpop.f32.mrf.mxu0
    %v1803 = vadd.f32 0.0, %v1802
    %1804 = vdwg.mxu0
    %v1806 = vsel %vm185, %v1725, 0
    %1808 = vmatpush.msra.mxu0 0.0
    %1809 = vmatpush.msra.mxu0 0.0
    %1810 = vmatpush.msra.mxu0 0.0
    %1811 = vmatpush.msra.mxu0 0.0
    %1812 = vmatpush.msra.mxu0 0.0
    %1813 = vmatpush.msra.mxu0 0.0
    %1814 = vmatpush.msra.mxu0 0.0
    %1815 = vmatpush.msra.mxu0 0.0
    %1816 = vmatpush.msra.mxu0 0.0
    %1817 = vmatpush.msra.mxu0 0.0
    %1818 = vmatpush.msra.mxu0 0.0
    %1819 = vmatpush.msra.mxu0 0.0
    %1820 = vmatpush.msra.mxu0 0.0
    %1821 = vmatpush.msra.mxu0 0.0
    %1822 = vmatpush.msra.mxu0 0.0
    %1823 = vmatpush.msra.mxu0 %v1181
    %1824 = vmatmul.f32.gmra.mxu0 %v1806
    %v1825 = vpop.f32.mrf.mxu0
    %v1826 = vadd.f32 0.0, %v1825
    %1827 = vdwg.mxu0
    %v1829 = vsel %vm185, %v1751, 0
    %1831 = vmatpush.msra.mxu0 0.0
    %1832 = vmatpush.msra.mxu0 0.0
    %1833 = vmatpush.msra.mxu0 0.0
    %1834 = vmatpush.msra.mxu0 0.0
    %1835 = vmatpush.msra.mxu0 0.0
    %1836 = vmatpush.msra.mxu0 0.0
    %1837 = vmatpush.msra.mxu0 0.0
    %1838 = vmatpush.msra.mxu0 0.0
    %1839 = vmatpush.msra.mxu0 0.0
    %1840 = vmatpush.msra.mxu0 0.0
    %1841 = vmatpush.msra.mxu0 0.0
    %1842 = vmatpush.msra.mxu0 0.0
    %1843 = vmatpush.msra.mxu0 0.0
    %1844 = vmatpush.msra.mxu0 0.0
    %1845 = vmatpush.msra.mxu0 0.0
    %1846 = vmatpush.msra.mxu0 %v1182
    %1847 = vmatmul.f32.gmra.mxu0 %v1829
    %v1848 = vpop.f32.mrf.mxu0
    %v1849 = vadd.f32 0.0, %v1848
    %1850 = vdwg.mxu0
    %v1852 = vsel %vm185, %v1777, 0
    %1854 = vmatpush.msra.mxu0 0.0
    %1855 = vmatpush.msra.mxu0 0.0
    %1856 = vmatpush.msra.mxu0 0.0
    %1857 = vmatpush.msra.mxu0 0.0
    %1858 = vmatpush.msra.mxu0 0.0
    %1859 = vmatpush.msra.mxu0 0.0
    %1860 = vmatpush.msra.mxu0 0.0
    %1861 = vmatpush.msra.mxu0 0.0
    %1862 = vmatpush.msra.mxu0 0.0
    %1863 = vmatpush.msra.mxu0 0.0
    %1864 = vmatpush.msra.mxu0 0.0
    %1865 = vmatpush.msra.mxu0 0.0
    %1866 = vmatpush.msra.mxu0 0.0
    %1867 = vmatpush.msra.mxu0 0.0
    %1868 = vmatpush.msra.mxu0 0.0
    %1869 = vmatpush.msra.mxu0 %v1183
    %1870 = vmatmul.f32.gmra.mxu0 %v1852
    %v1871 = vpop.f32.mrf.mxu0
    %v1872 = vadd.f32 0.0, %v1871
    %1873 = vdwg.mxu0
    %v1875 = vsel %vm185, %v1803, 0
    %1877 = vmatpush.msra.mxu0 0.0
    %1878 = vmatpush.msra.mxu0 0.0
    %1879 = vmatpush.msra.mxu0 0.0
    %1880 = vmatpush.msra.mxu0 0.0
    %1881 = vmatpush.msra.mxu0 0.0
    %1882 = vmatpush.msra.mxu0 0.0
    %1883 = vmatpush.msra.mxu0 0.0
    %1884 = vmatpush.msra.mxu0 0.0
    %1885 = vmatpush.msra.mxu0 0.0
    %1886 = vmatpush.msra.mxu0 0.0
    %1887 = vmatpush.msra.mxu0 0.0
    %1888 = vmatpush.msra.mxu0 0.0
    %1889 = vmatpush.msra.mxu0 0.0
    %1890 = vmatpush.msra.mxu0 0.0
    %1891 = vmatpush.msra.mxu0 0.0
    %1892 = vmatpush.msra.mxu0 %v1184
    %1893 = vmatmul.f32.gmra.mxu0 %v1875
    %v1894 = vpop.f32.mrf.mxu0
    %v1895 = vadd.f32 0.0, %v1894
    %1896 = vdwg.mxu0
    %v1897 = vsel %vm36, %v1826, 0.0
    %v1898 = vsel %vm36, %v1849, 0.0
    %v1899 = vadd.f32 %v1897, %v1898
    %v1900 = vsel %vm36, %v1872, 0.0
    %v1901 = vadd.f32 %v1899, %v1900
    %v1902 = vsel %vm36, %v1895, 0.0
    %v1903 = vadd.f32 %v1901, %v1902
    %v1904 = vadd.f32 %v1903, %v1544
    %v1905 = vadd.f32 %v1060, %v1545
    %v1906 = vadd.f32 %v1061, %v1904
    %v1907 = vsel %vm36, %v1905, 0.0
    %1908 = vadd.xlane.f32.xlu0 %v1907
    %v1909 = vpop.xlane.xlu0 %1908
    %v1910 = vsel %vm36, %v1906, 0.0
    %1911 = vadd.xlane.f32.xlu0 %v1910
    %v1912 = vpop.xlane.xlu0 %1911
    %v1913 = vmul.f32 %v1909, %v49
    %v1914 = vmul.f32 %v1912, %v49
    %v1915 = vsub.f32 %v1905, %v1913
    %v1916 = vsub.f32 %v1906, %v1914
    %v1917 = vmul.f32 %v1915, %v1915
    %v1918 = vmul.f32 %v1916, %v1916
    %v1919 = vsel %vm36, %v1917, 0.0
    %1920 = vadd.xlane.f32.xlu0 %v1919
    %v1921 = vpop.xlane.xlu0 %1920
    %v1922 = vsel %vm36, %v1918, 0.0
    %1923 = vadd.xlane.f32.xlu0 %v1922
    %v1924 = vpop.xlane.xlu0 %1923
    %v1925 = vmul.f32 %v1921, %v68
    %v1926 = vmul.f32 %v1924, %v68
    %v1927 = vrsqrt.pop %v1925
    %v1928 = vmul.f32 %v1927, %v1925
    %v1929 = vmul.f32 %v1928, %v1927
    %v1930 = vmul.f32 0.5, %v1929
    %v1931 = vsub.f32 1.5, %v1930
    %v1932 = vmul.f32 %v1927, %v1931
    %v1933 = vmul.f32 %v1925, %v1932
    %vm1934 = vcmp.eq.f32.partialorder %v1925, inf
    %v1935 = vsel %vm1934, %v1925, %v1933
    %vm1936 = vcmp.eq.f32.partialorder %v1925, 0.0
    %v1937 = vand.u32 %v1925, 2147483648
    %v1938 = vsel %vm1936, %v1937, %v1935
    %v1939 = vrsqrt.pop %v1926
    %v1940 = vmul.f32 %v1939, %v1926
    %v1941 = vmul.f32 %v1940, %v1939
    %v1942 = vmul.f32 0.5, %v1941
    %v1943 = vsub.f32 1.5, %v1942
    %v1944 = vmul.f32 %v1939, %v1943
    %v1945 = vmul.f32 %v1926, %v1944
    %vm1946 = vcmp.eq.f32.partialorder %v1926, inf
    %v1947 = vsel %vm1946, %v1926, %v1945
    %vm1948 = vcmp.eq.f32.partialorder %v1926, 0.0
    %v1949 = vand.u32 %v1926, 2147483648
    %v1950 = vsel %vm1948, %v1949, %v1947
    %v1951 = vld [vmem:[%s3 + $0xc] sm:$0x1]
    %v1952 = vperm.slane %v1951, 0
    %v1953 = vmul.f32 %v1952, %v1915
    %v1954 = vmul.f32 %v1952, %v1916
    %v1955 = vadd.f32 %v1938, 1e-06
    %v1956 = vadd.f32 %v1950, 1e-06
    %v1957 = vrcp.pop %v1955
    %v1958 = vmul.f32 %v1955, %v1957
    %v1959 = vsub.f32 1.0, %v1958
    %v1960 = vmul.f32 %v1957, %v1959
    %v1961 = vadd.f32 %v1957, %v1960
    %vm1962 = vweird.f32 %v1955
    %vm1963 = vweird.f32 %v1957
    %vm1964 = vmor %vm1962, %vm1963
    %v1965 = vsel %vm1964, %v1957, %v1961
    %v1966 = vand.u32 2147483647, %v1955
    %vm1967 = vcmp.eq.f32.partialorder %v1966, 8.507059e+37
    %v1968 = vand.u32 %v1955, 2147483648
    %v1969 = vor.u32 1.1754944e-38, %v1968
    %v1970 = vsel %vm1967, %v1969, %v1965
    %v1971 = vmul.f32 %v1953, %v1970
    %v1972 = vrcp.pop %v1956
    %v1973 = vmul.f32 %v1956, %v1972
    %v1974 = vsub.f32 1.0, %v1973
    %v1975 = vmul.f32 %v1972, %v1974
    %v1976 = vadd.f32 %v1972, %v1975
    %vm1977 = vweird.f32 %v1956
    %vm1978 = vweird.f32 %v1972
    %vm1979 = vmor %vm1977, %vm1978
    %v1980 = vsel %vm1979, %v1972, %v1976
    %v1981 = vand.u32 2147483647, %v1956
    %vm1982 = vcmp.eq.f32.partialorder %v1981, 8.507059e+37
    %v1983 = vand.u32 %v1956, 2147483648
    %v1984 = vor.u32 1.1754944e-38, %v1983
    %v1985 = vsel %vm1982, %v1984, %v1980
    %v1986 = vmul.f32 %v1954, %v1985
    %v1987 = vld [vmem:[%s3 + $0xd] sm:$0x1]
    %v1988 = vperm.slane %v1987, 0
    %v1989 = vadd.f32 %v1971, %v1988
    %v1990 = vadd.f32 %v1986, %v1988
    %v1991 = vld [vmem:[#allocation2 + $0xe0] sm:$0xff]
    %v1992 = vld [vmem:[#allocation2 + $0xe8] sm:$0xff]
    %v1993 = vld [vmem:[#allocation2 + $0xf0] sm:$0xff]
    %v1994 = vld [vmem:[#allocation2 + $0xf8] sm:$0xff]
    %v1995 = vld [vmem:[%s3 + $0xe] sm:$0x1]
    %v1996 = vperm.slane %v1995, 0
    %v1998 = vsel %vm36, %v1989, 0
    %v2001 = vsel %vm36, %v1990, 0
    %2003 = vmatpush.msra.mxu0 0.0
    %2004 = vmatpush.msra.mxu0 0.0
    %2005 = vmatpush.msra.mxu0 0.0
    %2006 = vmatpush.msra.mxu0 0.0
    %2007 = vmatpush.msra.mxu0 0.0
    %2008 = vmatpush.msra.mxu0 0.0
    %2009 = vmatpush.msra.mxu0 0.0
    %2010 = vmatpush.msra.mxu0 0.0
    %2011 = vmatpush.msra.mxu0 0.0
    %2012 = vmatpush.msra.mxu0 0.0
    %2013 = vmatpush.msra.mxu0 0.0
    %2014 = vmatpush.msra.mxu0 0.0
    %2015 = vmatpush.msra.mxu0 %v1994
    %2016 = vmatpush.msra.mxu0 %v1993
    %2017 = vmatpush.msra.mxu0 %v1992
    %2018 = vmatpush.msra.mxu0 %v1991
    %2019 = vmatmul.f32.gmra.mxu0 %v1998
    %v2020 = vpop.f32.mrf.mxu0
    %v2021 = vadd.f32 %v1996, %v2020
    %2022 = vmatmul.f32.gmra.mxu0 %v2001
    %v2023 = vpop.f32.mrf.mxu0
    %v2024 = vadd.f32 %v1996, %v2023
    %2025 = vdwg.mxu0
    %v2026 = vmax.f32 %v2021, 0.0
    %v2027 = vmax.f32 %v2024, 0.0
    %v2028 = vld [vmem:[#allocation2 + $0x100] sm:$0xff]
    %v2029 = vld [vmem:[#allocation2 + $0x108] sm:$0xff]
    %v2030 = vld [vmem:[#allocation2 + $0x110] sm:$0xff]
    %v2031 = vld [vmem:[#allocation2 + $0x118] sm:$0xff]
    %v2032 = vld [vmem:[#allocation2 + $0x120] sm:$0xff]
    %v2033 = vld [vmem:[#allocation2 + $0x128] sm:$0xff]
    %v2034 = vld [vmem:[#allocation2 + $0x130] sm:$0xff]
    %v2035 = vld [vmem:[#allocation2 + $0x138] sm:$0xff]
    %v2036 = vld [vmem:[%s3 + $0xf] sm:$0x1]
    %v2037 = vperm.slane %v2036, 0
    %v2039 = vsel %vm1030, %v2026, 0
    %v2042 = vsel %vm1030, %v2027, 0
    %2044 = vmatpush.msra.mxu0 0.0
    %2045 = vmatpush.msra.mxu0 0.0
    %2046 = vmatpush.msra.mxu0 0.0
    %2047 = vmatpush.msra.mxu0 0.0
    %2048 = vmatpush.msra.mxu0 0.0
    %2049 = vmatpush.msra.mxu0 0.0
    %2050 = vmatpush.msra.mxu0 0.0
    %2051 = vmatpush.msra.mxu0 0.0
    %2052 = vmatpush.msra.mxu0 %v2035
    %2053 = vmatpush.msra.mxu0 %v2034
    %2054 = vmatpush.msra.mxu0 %v2033
    %2055 = vmatpush.msra.mxu0 %v2032
    %2056 = vmatpush.msra.mxu0 %v2031
    %2057 = vmatpush.msra.mxu0 %v2030
    %2058 = vmatpush.msra.mxu0 %v2029
    %2059 = vmatpush.msra.mxu0 %v2028
    %2060 = vmatmul.f32.gmra.mxu0 %v2039
    %v2061 = vpop.f32.mrf.mxu0
    %v2062 = vadd.f32 %v2037, %v2061
    %2063 = vmatmul.f32.gmra.mxu0 %v2042
    %v2064 = vpop.f32.mrf.mxu0
    %v2065 = vadd.f32 %v2037, %v2064
    %2066 = vdwg.mxu0
    %v2067 = vadd.f32 %v1905, %v2062
    %v2068 = vadd.f32 %v1906, %v2065
    %v2069 = vsel %vm36, %v2067, 0.0
    %2070 = vadd.xlane.f32.xlu0 %v2069
    %v2071 = vpop.xlane.xlu0 %2070
    %v2072 = vsel %vm36, %v2068, 0.0
    %2073 = vadd.xlane.f32.xlu0 %v2072
    %v2074 = vpop.xlane.xlu0 %2073
    %v2075 = vmul.f32 %v2071, %v49
    %v2076 = vmul.f32 %v2074, %v49
    %v2077 = vsub.f32 %v2067, %v2075
    %v2078 = vsub.f32 %v2068, %v2076
    %v2079 = vmul.f32 %v2077, %v2077
    %v2080 = vmul.f32 %v2078, %v2078
    %v2081 = vsel %vm36, %v2079, 0.0
    %2082 = vadd.xlane.f32.xlu0 %v2081
    %v2083 = vpop.xlane.xlu0 %2082
    %v2084 = vsel %vm36, %v2080, 0.0
    %2085 = vadd.xlane.f32.xlu0 %v2084
    %v2086 = vpop.xlane.xlu0 %2085
    %v2087 = vmul.f32 %v2083, %v68
    %v2088 = vmul.f32 %v2086, %v68
    %v2089 = vrsqrt.pop %v2087
    %v2090 = vmul.f32 %v2089, %v2087
    %v2091 = vmul.f32 %v2090, %v2089
    %v2092 = vmul.f32 0.5, %v2091
    %v2093 = vsub.f32 1.5, %v2092
    %v2094 = vmul.f32 %v2089, %v2093
    %v2095 = vmul.f32 %v2087, %v2094
    %vm2096 = vcmp.eq.f32.partialorder %v2087, inf
    %v2097 = vsel %vm2096, %v2087, %v2095
    %vm2098 = vcmp.eq.f32.partialorder %v2087, 0.0
    %v2099 = vand.u32 %v2087, 2147483648
    %v2100 = vsel %vm2098, %v2099, %v2097
    %v2101 = vrsqrt.pop %v2088
    %v2102 = vmul.f32 %v2101, %v2088
    %v2103 = vmul.f32 %v2102, %v2101
    %v2104 = vmul.f32 0.5, %v2103
    %v2105 = vsub.f32 1.5, %v2104
    %v2106 = vmul.f32 %v2101, %v2105
    %v2107 = vmul.f32 %v2088, %v2106
    %vm2108 = vcmp.eq.f32.partialorder %v2088, inf
    %v2109 = vsel %vm2108, %v2088, %v2107
    %vm2110 = vcmp.eq.f32.partialorder %v2088, 0.0
    %v2111 = vand.u32 %v2088, 2147483648
    %v2112 = vsel %vm2110, %v2111, %v2109
    %v2113 = vld [vmem:[%s3 + $0x10] sm:$0x1]
    %v2114 = vperm.slane %v2113, 0
    %v2115 = vmul.f32 %v2114, %v2077
    %v2116 = vmul.f32 %v2114, %v2078
    %v2117 = vadd.f32 %v2100, 1e-06
    %v2118 = vadd.f32 %v2112, 1e-06
    %v2119 = vrcp.pop %v2117
    %v2120 = vmul.f32 %v2117, %v2119
    %v2121 = vsub.f32 1.0, %v2120
    %v2122 = vmul.f32 %v2119, %v2121
    %v2123 = vadd.f32 %v2119, %v2122
    %vm2124 = vweird.f32 %v2117
    %vm2125 = vweird.f32 %v2119
    %vm2126 = vmor %vm2124, %vm2125
    %v2127 = vsel %vm2126, %v2119, %v2123
    %v2128 = vand.u32 2147483647, %v2117
    %vm2129 = vcmp.eq.f32.partialorder %v2128, 8.507059e+37
    %v2130 = vand.u32 %v2117, 2147483648
    %v2131 = vor.u32 1.1754944e-38, %v2130
    %v2132 = vsel %vm2129, %v2131, %v2127
    %v2133 = vmul.f32 %v2115, %v2132
    %v2134 = vrcp.pop %v2118
    %v2135 = vmul.f32 %v2118, %v2134
    %v2136 = vsub.f32 1.0, %v2135
    %v2137 = vmul.f32 %v2134, %v2136
    %v2138 = vadd.f32 %v2134, %v2137
    %vm2139 = vweird.f32 %v2118
    %vm2140 = vweird.f32 %v2134
    %vm2141 = vmor %vm2139, %vm2140
    %v2142 = vsel %vm2141, %v2134, %v2138
    %v2143 = vand.u32 2147483647, %v2118
    %vm2144 = vcmp.eq.f32.partialorder %v2143, 8.507059e+37
    %v2145 = vand.u32 %v2118, 2147483648
    %v2146 = vor.u32 1.1754944e-38, %v2145
    %v2147 = vsel %vm2144, %v2146, %v2142
    %v2148 = vmul.f32 %v2116, %v2147
    %v2149 = vld [vmem:[%s3 + $0x11] sm:$0x1]
    %v2150 = vperm.slane %v2149, 0
    %v2151 = vadd.f32 %v2133, %v2150
    %v2152 = vadd.f32 %v2148, %v2150
    %2155 = vrot.lane.b32.xlu0 %v34, 96
    %v2156 = vpop.permute.xlu0 %2155
    %2157 = vrot.lane.b32.xlu0 %v35, 96
    %v2158 = vpop.permute.xlu0 %2157
    %v2161 = vsel %vm36, %v2156, 0.0
    %2162 = vadd.xlane.f32.xlu0 %v2161
    %v2163 = vpop.xlane.xlu0 %2162
    %v2164 = vsel %vm36, %v2158, 0.0
    %2165 = vadd.xlane.f32.xlu0 %v2164
    %v2166 = vpop.xlane.xlu0 %2165
    %v2167 = vmul.f32 %v2163, %v49
    %v2168 = vmul.f32 %v2166, %v49
    %v2169 = vsub.f32 %v34, %v2167
    %v2170 = vsub.f32 %v35, %v2168
    %v2171 = vmul.f32 %v2169, %v2169
    %v2172 = vmul.f32 %v2170, %v2170
    %2175 = vrot.lane.b32.xlu0 %v2171, 96
    %v2176 = vpop.permute.xlu0 %2175
    %2177 = vrot.lane.b32.xlu0 %v2172, 96
    %v2178 = vpop.permute.xlu0 %2177
    %v2181 = vsel %vm36, %v2176, 0.0
    %2182 = vadd.xlane.f32.xlu0 %v2181
    %v2183 = vpop.xlane.xlu0 %2182
    %v2184 = vsel %vm36, %v2178, 0.0
    %2185 = vadd.xlane.f32.xlu0 %v2184
    %v2186 = vpop.xlane.xlu0 %2185
    %v2187 = vmul.f32 %v2183, %v68
    %v2188 = vmul.f32 %v2186, %v68
    %v2189 = vrsqrt.pop %v2187
    %v2190 = vmul.f32 %v2189, %v2187
    %v2191 = vmul.f32 %v2190, %v2189
    %v2192 = vmul.f32 0.5, %v2191
    %v2193 = vsub.f32 1.5, %v2192
    %v2194 = vmul.f32 %v2189, %v2193
    %v2195 = vmul.f32 %v2187, %v2194
    %vm2196 = vcmp.eq.f32.partialorder %v2187, inf
    %v2197 = vsel %vm2196, %v2187, %v2195
    %vm2198 = vcmp.eq.f32.partialorder %v2187, 0.0
    %v2199 = vand.u32 %v2187, 2147483648
    %v2200 = vsel %vm2198, %v2199, %v2197
    %v2201 = vrsqrt.pop %v2188
    %v2202 = vmul.f32 %v2201, %v2188
    %v2203 = vmul.f32 %v2202, %v2201
    %v2204 = vmul.f32 0.5, %v2203
    %v2205 = vsub.f32 1.5, %v2204
    %v2206 = vmul.f32 %v2201, %v2205
    %v2207 = vmul.f32 %v2188, %v2206
    %vm2208 = vcmp.eq.f32.partialorder %v2188, inf
    %v2209 = vsel %vm2208, %v2188, %v2207
    %vm2210 = vcmp.eq.f32.partialorder %v2188, 0.0
    %v2211 = vand.u32 %v2188, 2147483648
    %v2212 = vsel %vm2210, %v2211, %v2209
    %v2213 = vld [vmem:[%s3 + $0x12] sm:$0x1]
    %v2214 = vperm.slane %v2213, 0
    %2217 = vrot.lane.b32.xlu0 %v2169, 96
    %v2218 = vpop.permute.xlu0 %2217
    %2219 = vrot.lane.b32.xlu0 %v2170, 96
    %v2220 = vpop.permute.xlu0 %2219
    %v2223 = vmul.f32 %v2214, %v2218
    %v2224 = vmul.f32 %v2214, %v2220
    %v2225 = vadd.f32 %v2200, 1e-06
    %v2226 = vadd.f32 %v2212, 1e-06
    %v2227 = vrcp.pop %v2225
    %v2228 = vmul.f32 %v2225, %v2227
    %v2229 = vsub.f32 1.0, %v2228
    %v2230 = vmul.f32 %v2227, %v2229
    %v2231 = vadd.f32 %v2227, %v2230
    %vm2232 = vweird.f32 %v2225
    %vm2233 = vweird.f32 %v2227
    %vm2234 = vmor %vm2232, %vm2233
    %v2235 = vsel %vm2234, %v2227, %v2231
    %v2236 = vand.u32 2147483647, %v2225
    %vm2237 = vcmp.eq.f32.partialorder %v2236, 8.507059e+37
    %v2238 = vand.u32 %v2225, 2147483648
    %v2239 = vor.u32 1.1754944e-38, %v2238
    %v2240 = vsel %vm2237, %v2239, %v2235
    %v2241 = vmul.f32 %v2223, %v2240
    %v2242 = vrcp.pop %v2226
    %v2243 = vmul.f32 %v2226, %v2242
    %v2244 = vsub.f32 1.0, %v2243
    %v2245 = vmul.f32 %v2242, %v2244
    %v2246 = vadd.f32 %v2242, %v2245
    %vm2247 = vweird.f32 %v2226
    %vm2248 = vweird.f32 %v2242
    %vm2249 = vmor %vm2247, %vm2248
    %v2250 = vsel %vm2249, %v2242, %v2246
    %v2251 = vand.u32 2147483647, %v2226
    %vm2252 = vcmp.eq.f32.partialorder %v2251, 8.507059e+37
    %v2253 = vand.u32 %v2226, 2147483648
    %v2254 = vor.u32 1.1754944e-38, %v2253
    %v2255 = vsel %vm2252, %v2254, %v2250
    %v2256 = vmul.f32 %v2224, %v2255
    %v2257 = vld [vmem:[%s3 + $0x13] sm:$0x1]
    %v2258 = vperm.slane %v2257, 0
    %v2259 = vadd.f32 %v2241, %v2258
    %v2260 = vadd.f32 %v2256, %v2258
    %v2261 = vld [vmem:[#allocation2 + $0x140] sm:$0xff]
    %v2262 = vld [vmem:[#allocation2 + $0x148] sm:$0xff]
    %v2263 = vld [vmem:[#allocation2 + $0x150] sm:$0xff]
    %v2264 = vld [vmem:[#allocation2 + $0x158] sm:$0xff]
    %v2265 = vld [vmem:[%s3 + $0x14] sm:$0x1]
    %v2266 = vperm.slane %v2265, 0
    %v2268 = vsel %vm36, %v2259, 0
    %v2271 = vsel %vm36, %v2260, 0
    %2273 = vmatpush.msra.mxu0 0.0
    %2274 = vmatpush.msra.mxu0 0.0
    %2275 = vmatpush.msra.mxu0 0.0
    %2276 = vmatpush.msra.mxu0 0.0
    %2277 = vmatpush.msra.mxu0 0.0
    %2278 = vmatpush.msra.mxu0 0.0
    %2279 = vmatpush.msra.mxu0 0.0
    %2280 = vmatpush.msra.mxu0 0.0
    %2281 = vmatpush.msra.mxu0 0.0
    %2282 = vmatpush.msra.mxu0 0.0
    %2283 = vmatpush.msra.mxu0 0.0
    %2284 = vmatpush.msra.mxu0 0.0
    %2285 = vmatpush.msra.mxu0 %v2264
    %2286 = vmatpush.msra.mxu0 %v2263
    %2287 = vmatpush.msra.mxu0 %v2262
    %2288 = vmatpush.msra.mxu0 %v2261
    %2289 = vmatmul.f32.gmra.mxu0 %v2268
    %v2290 = vpop.f32.mrf.mxu0
    %v2291 = vadd.f32 %v2266, %v2290
    %2292 = vmatmul.f32.gmra.mxu0 %v2271
    %v2293 = vpop.f32.mrf.mxu0
    %v2294 = vadd.f32 %v2266, %v2293
    %2295 = vdwg.mxu0
    %v2296 = vld [vmem:[#allocation2 + $0x160] sm:$0xff]
    %v2297 = vld [vmem:[#allocation2 + $0x168] sm:$0xff]
    %v2298 = vld [vmem:[#allocation2 + $0x170] sm:$0xff]
    %v2299 = vld [vmem:[#allocation2 + $0x178] sm:$0xff]
    %v2300 = vld [vmem:[%s3 + $0x15] sm:$0x1]
    %2302 = vrot.lane.b32.xlu0 %v2291, 120
    %v2303 = vpop.permute.xlu0 %2302
    %2304 = vrot.lane.b32.xlu0 %v2291, 112
    %v2305 = vpop.permute.xlu0 %2304
    %2306 = vrot.lane.b32.xlu0 %v2291, 104
    %v2307 = vpop.permute.xlu0 %2306
    %2308 = vrot.lane.b32.xlu0 %v2291, 96
    %v2309 = vpop.permute.xlu0 %2308
    %2311 = vrot.lane.b32.xlu0 %v182, 120
    %v2312 = vpop.permute.xlu0 %2311
    %v2314 = vsel %vm185, %v2291, 0
    %v2316 = vsel %vm185, %v2309, 0
    %2318 = vmatpush.xpose.msra.mxu0 0.0
    %2319 = vmatpush.xpose.msra.mxu0 0.0
    %2320 = vmatpush.xpose.msra.mxu0 0.0
    %2321 = vmatpush.xpose.msra.mxu0 0.0
    %2322 = vmatpush.xpose.msra.mxu0 0.0
    %2323 = vmatpush.xpose.msra.mxu0 0.0
    %2324 = vmatpush.xpose.msra.mxu0 0.0
    %2325 = vmatpush.xpose.msra.mxu0 0.0
    %2326 = vmatpush.xpose.msra.mxu0 0.0
    %2327 = vmatpush.xpose.msra.mxu0 0.0
    %2328 = vmatpush.xpose.msra.mxu0 0.0
    %2329 = vmatpush.xpose.msra.mxu0 0.0
    %2330 = vmatpush.xpose.msra.mxu0 0.0
    %2331 = vmatpush.xpose.msra.mxu0 0.0
    %2332 = vmatpush.xpose.msra.mxu0 0.0
    %2333 = vmatpush.xpose.msra.mxu0 %v2316
    %2334 = vmatmul.f32.gmra.mxu0 %v2314
    %v2335 = vpop.f32.mrf.mxu0
    %v2336 = vadd.f32 %v2312, %v2335
    %2337 = vdwg.mxu0
    %2338 = vrot.lane.b32.xlu0 %v2303, 96
    %v2339 = vpop.permute.xlu0 %2338
    %v2340 = vsel %vm185, %v2303, 0
    %v2342 = vsel %vm185, %v2339, 0
    %2344 = vmatpush.xpose.msra.mxu0 0.0
    %2345 = vmatpush.xpose.msra.mxu0 0.0
    %2346 = vmatpush.xpose.msra.mxu0 0.0
    %2347 = vmatpush.xpose.msra.mxu0 0.0
    %2348 = vmatpush.xpose.msra.mxu0 0.0
    %2349 = vmatpush.xpose.msra.mxu0 0.0
    %2350 = vmatpush.xpose.msra.mxu0 0.0
    %2351 = vmatpush.xpose.msra.mxu0 0.0
    %2352 = vmatpush.xpose.msra.mxu0 0.0
    %2353 = vmatpush.xpose.msra.mxu0 0.0
    %2354 = vmatpush.xpose.msra.mxu0 0.0
    %2355 = vmatpush.xpose.msra.mxu0 0.0
    %2356 = vmatpush.xpose.msra.mxu0 0.0
    %2357 = vmatpush.xpose.msra.mxu0 0.0
    %2358 = vmatpush.xpose.msra.mxu0 0.0
    %2359 = vmatpush.xpose.msra.mxu0 %v2342
    %2360 = vmatmul.f32.gmra.mxu0 %v2340
    %v2361 = vpop.f32.mrf.mxu0
    %v2362 = vadd.f32 %v2312, %v2361
    %2363 = vdwg.mxu0
    %2364 = vrot.lane.b32.xlu0 %v2305, 96
    %v2365 = vpop.permute.xlu0 %2364
    %v2366 = vsel %vm185, %v2305, 0
    %v2368 = vsel %vm185, %v2365, 0
    %2370 = vmatpush.xpose.msra.mxu0 0.0
    %2371 = vmatpush.xpose.msra.mxu0 0.0
    %2372 = vmatpush.xpose.msra.mxu0 0.0
    %2373 = vmatpush.xpose.msra.mxu0 0.0
    %2374 = vmatpush.xpose.msra.mxu0 0.0
    %2375 = vmatpush.xpose.msra.mxu0 0.0
    %2376 = vmatpush.xpose.msra.mxu0 0.0
    %2377 = vmatpush.xpose.msra.mxu0 0.0
    %2378 = vmatpush.xpose.msra.mxu0 0.0
    %2379 = vmatpush.xpose.msra.mxu0 0.0
    %2380 = vmatpush.xpose.msra.mxu0 0.0
    %2381 = vmatpush.xpose.msra.mxu0 0.0
    %2382 = vmatpush.xpose.msra.mxu0 0.0
    %2383 = vmatpush.xpose.msra.mxu0 0.0
    %2384 = vmatpush.xpose.msra.mxu0 0.0
    %2385 = vmatpush.xpose.msra.mxu0 %v2368
    %2386 = vmatmul.f32.gmra.mxu0 %v2366
    %v2387 = vpop.f32.mrf.mxu0
    %v2388 = vadd.f32 %v2312, %v2387
    %2389 = vdwg.mxu0
    %2390 = vrot.lane.b32.xlu0 %v2307, 96
    %v2391 = vpop.permute.xlu0 %2390
    %v2392 = vsel %vm185, %v2307, 0
    %v2394 = vsel %vm185, %v2391, 0
    %2396 = vmatpush.xpose.msra.mxu0 0.0
    %2397 = vmatpush.xpose.msra.mxu0 0.0
    %2398 = vmatpush.xpose.msra.mxu0 0.0
    %2399 = vmatpush.xpose.msra.mxu0 0.0
    %2400 = vmatpush.xpose.msra.mxu0 0.0
    %2401 = vmatpush.xpose.msra.mxu0 0.0
    %2402 = vmatpush.xpose.msra.mxu0 0.0
    %2403 = vmatpush.xpose.msra.mxu0 0.0
    %2404 = vmatpush.xpose.msra.mxu0 0.0
    %2405 = vmatpush.xpose.msra.mxu0 0.0
    %2406 = vmatpush.xpose.msra.mxu0 0.0
    %2407 = vmatpush.xpose.msra.mxu0 0.0
    %2408 = vmatpush.xpose.msra.mxu0 0.0
    %2409 = vmatpush.xpose.msra.mxu0 0.0
    %2410 = vmatpush.xpose.msra.mxu0 0.0
    %2411 = vmatpush.xpose.msra.mxu0 %v2394
    %2412 = vmatmul.f32.gmra.mxu0 %v2392
    %v2413 = vpop.f32.mrf.mxu0
    %v2414 = vadd.f32 %v2312, %v2413
    %2415 = vdwg.mxu0
    %v2416 = vsel %vm185, %v2336, -inf
    %2417 = vmax.xlane.f32.xlu0 %v2416
    %v2418 = vpop.xlane.xlu0 %2417
    %v2419 = vsel %vm185, %v2362, -inf
    %2420 = vmax.xlane.f32.xlu0 %v2419
    %v2421 = vpop.xlane.xlu0 %2420
    %v2422 = vsel %vm185, %v2388, -inf
    %2423 = vmax.xlane.f32.xlu0 %v2422
    %v2424 = vpop.xlane.xlu0 %2423
    %v2425 = vsel %vm185, %v2414, -inf
    %2426 = vmax.xlane.f32.xlu0 %v2425
    %v2427 = vpop.xlane.xlu0 %2426
    %v2428 = vsub.f32 %v2336, %v2418
    %v2429 = vsub.f32 %v2362, %v2421
    %v2430 = vsub.f32 %v2388, %v2424
    %v2431 = vsub.f32 %v2414, %v2427
    %v2432 = vmul.f32 %v2428, 1.442695
    %v2433 = vpow.pop %v2432
    %v2434 = vmul.f32 %v2429, 1.442695
    %v2435 = vpow.pop %v2434
    %v2436 = vmul.f32 %v2430, 1.442695
    %v2437 = vpow.pop %v2436
    %v2438 = vmul.f32 %v2431, 1.442695
    %v2439 = vpow.pop %v2438
    %v2440 = vsel %vm185, %v2433, 0.0
    %2441 = vadd.xlane.f32.xlu0 %v2440
    %v2442 = vpop.xlane.xlu0 %2441
    %v2443 = vsel %vm185, %v2435, 0.0
    %2444 = vadd.xlane.f32.xlu0 %v2443
    %v2445 = vpop.xlane.xlu0 %2444
    %v2446 = vsel %vm185, %v2437, 0.0
    %2447 = vadd.xlane.f32.xlu0 %v2446
    %v2448 = vpop.xlane.xlu0 %2447
    %v2449 = vsel %vm185, %v2439, 0.0
    %2450 = vadd.xlane.f32.xlu0 %v2449
    %v2451 = vpop.xlane.xlu0 %2450
    %v2452 = vrcp.pop %v2442
    %v2453 = vrcp.pop %v2445
    %v2454 = vrcp.pop %v2448
    %v2455 = vrcp.pop %v2451
    %v2456 = vmul.f32 %v2433, %v2452
    %v2457 = vmul.f32 %v2435, %v2453
    %v2458 = vmul.f32 %v2437, %v2454
    %v2459 = vmul.f32 %v2439, %v2455
    %2460 = vrot.lane.b32.xlu0 %v2291, 64
    %v2461 = vpop.permute.xlu0 %2460
    %v2464 = vsel %vm185, %v2456, 0
    %2466 = vmatpush.msra.mxu0 0.0
    %2467 = vmatpush.msra.mxu0 0.0
    %2468 = vmatpush.msra.mxu0 0.0
    %2469 = vmatpush.msra.mxu0 0.0
    %2470 = vmatpush.msra.mxu0 0.0
    %2471 = vmatpush.msra.mxu0 0.0
    %2472 = vmatpush.msra.mxu0 0.0
    %2473 = vmatpush.msra.mxu0 0.0
    %2474 = vmatpush.msra.mxu0 0.0
    %2475 = vmatpush.msra.mxu0 0.0
    %2476 = vmatpush.msra.mxu0 0.0
    %2477 = vmatpush.msra.mxu0 0.0
    %2478 = vmatpush.msra.mxu0 0.0
    %2479 = vmatpush.msra.mxu0 0.0
    %2480 = vmatpush.msra.mxu0 0.0
    %2481 = vmatpush.msra.mxu0 %v2461
    %2482 = vmatmul.f32.gmra.mxu0 %v2464
    %v2483 = vpop.f32.mrf.mxu0
    %v2484 = vadd.f32 0.0, %v2483
    %2485 = vdwg.mxu0
    %2486 = vrot.lane.b32.xlu0 %v2303, 64
    %v2487 = vpop.permute.xlu0 %2486
    %v2490 = vsel %vm185, %v2457, 0
    %2492 = vmatpush.msra.mxu0 0.0
    %2493 = vmatpush.msra.mxu0 0.0
    %2494 = vmatpush.msra.mxu0 0.0
    %2495 = vmatpush.msra.mxu0 0.0
    %2496 = vmatpush.msra.mxu0 0.0
    %2497 = vmatpush.msra.mxu0 0.0
    %2498 = vmatpush.msra.mxu0 0.0
    %2499 = vmatpush.msra.mxu0 0.0
    %2500 = vmatpush.msra.mxu0 0.0
    %2501 = vmatpush.msra.mxu0 0.0
    %2502 = vmatpush.msra.mxu0 0.0
    %2503 = vmatpush.msra.mxu0 0.0
    %2504 = vmatpush.msra.mxu0 0.0
    %2505 = vmatpush.msra.mxu0 0.0
    %2506 = vmatpush.msra.mxu0 0.0
    %2507 = vmatpush.msra.mxu0 %v2487
    %2508 = vmatmul.f32.gmra.mxu0 %v2490
    %v2509 = vpop.f32.mrf.mxu0
    %v2510 = vadd.f32 0.0, %v2509
    %2511 = vdwg.mxu0
    %2512 = vrot.lane.b32.xlu0 %v2305, 64
    %v2513 = vpop.permute.xlu0 %2512
    %v2516 = vsel %vm185, %v2458, 0
    %2518 = vmatpush.msra.mxu0 0.0
    %2519 = vmatpush.msra.mxu0 0.0
    %2520 = vmatpush.msra.mxu0 0.0
    %2521 = vmatpush.msra.mxu0 0.0
    %2522 = vmatpush.msra.mxu0 0.0
    %2523 = vmatpush.msra.mxu0 0.0
    %2524 = vmatpush.msra.mxu0 0.0
    %2525 = vmatpush.msra.mxu0 0.0
    %2526 = vmatpush.msra.mxu0 0.0
    %2527 = vmatpush.msra.mxu0 0.0
    %2528 = vmatpush.msra.mxu0 0.0
    %2529 = vmatpush.msra.mxu0 0.0
    %2530 = vmatpush.msra.mxu0 0.0
    %2531 = vmatpush.msra.mxu0 0.0
    %2532 = vmatpush.msra.mxu0 0.0
    %2533 = vmatpush.msra.mxu0 %v2513
    %2534 = vmatmul.f32.gmra.mxu0 %v2516
    %v2535 = vpop.f32.mrf.mxu0
    %v2536 = vadd.f32 0.0, %v2535
    %2537 = vdwg.mxu0
    %2538 = vrot.lane.b32.xlu0 %v2307, 64
    %v2539 = vpop.permute.xlu0 %2538
    %v2542 = vsel %vm185, %v2459, 0
    %2544 = vmatpush.msra.mxu0 0.0
    %2545 = vmatpush.msra.mxu0 0.0
    %2546 = vmatpush.msra.mxu0 0.0
    %2547 = vmatpush.msra.mxu0 0.0
    %2548 = vmatpush.msra.mxu0 0.0
    %2549 = vmatpush.msra.mxu0 0.0
    %2550 = vmatpush.msra.mxu0 0.0
    %2551 = vmatpush.msra.mxu0 0.0
    %2552 = vmatpush.msra.mxu0 0.0
    %2553 = vmatpush.msra.mxu0 0.0
    %2554 = vmatpush.msra.mxu0 0.0
    %2555 = vmatpush.msra.mxu0 0.0
    %2556 = vmatpush.msra.mxu0 0.0
    %2557 = vmatpush.msra.mxu0 0.0
    %2558 = vmatpush.msra.mxu0 0.0
    %2559 = vmatpush.msra.mxu0 %v2539
    %2560 = vmatmul.f32.gmra.mxu0 %v2542
    %v2561 = vpop.f32.mrf.mxu0
    %v2562 = vadd.f32 0.0, %v2561
    %2563 = vdwg.mxu0
    %v2565 = vsel %vm185, %v2484, 0
    %2567 = vmatpush.msra.mxu0 0.0
    %2568 = vmatpush.msra.mxu0 0.0
    %2569 = vmatpush.msra.mxu0 0.0
    %2570 = vmatpush.msra.mxu0 0.0
    %2571 = vmatpush.msra.mxu0 0.0
    %2572 = vmatpush.msra.mxu0 0.0
    %2573 = vmatpush.msra.mxu0 0.0
    %2574 = vmatpush.msra.mxu0 0.0
    %2575 = vmatpush.msra.mxu0 0.0
    %2576 = vmatpush.msra.mxu0 0.0
    %2577 = vmatpush.msra.mxu0 0.0
    %2578 = vmatpush.msra.mxu0 0.0
    %2579 = vmatpush.msra.mxu0 0.0
    %2580 = vmatpush.msra.mxu0 0.0
    %2581 = vmatpush.msra.mxu0 0.0
    %2582 = vmatpush.msra.mxu0 %v2296
    %2583 = vmatmul.f32.gmra.mxu0 %v2565
    %v2584 = vpop.f32.mrf.mxu0
    %v2585 = vadd.f32 0.0, %v2584
    %2586 = vdwg.mxu0
    %v2588 = vsel %vm185, %v2510, 0
    %2590 = vmatpush.msra.mxu0 0.0
    %2591 = vmatpush.msra.mxu0 0.0
    %2592 = vmatpush.msra.mxu0 0.0
    %2593 = vmatpush.msra.mxu0 0.0
    %2594 = vmatpush.msra.mxu0 0.0
    %2595 = vmatpush.msra.mxu0 0.0
    %2596 = vmatpush.msra.mxu0 0.0
    %2597 = vmatpush.msra.mxu0 0.0
    %2598 = vmatpush.msra.mxu0 0.0
    %2599 = vmatpush.msra.mxu0 0.0
    %2600 = vmatpush.msra.mxu0 0.0
    %2601 = vmatpush.msra.mxu0 0.0
    %2602 = vmatpush.msra.mxu0 0.0
    %2603 = vmatpush.msra.mxu0 0.0
    %2604 = vmatpush.msra.mxu0 0.0
    %2605 = vmatpush.msra.mxu0 %v2297
    %2606 = vmatmul.f32.gmra.mxu0 %v2588
    %v2607 = vpop.f32.mrf.mxu0
    %v2608 = vadd.f32 0.0, %v2607
    %2609 = vdwg.mxu0
    %v2611 = vsel %vm185, %v2536, 0
    %2613 = vmatpush.msra.mxu0 0.0
    %2614 = vmatpush.msra.mxu0 0.0
    %2615 = vmatpush.msra.mxu0 0.0
    %2616 = vmatpush.msra.mxu0 0.0
    %2617 = vmatpush.msra.mxu0 0.0
    %2618 = vmatpush.msra.mxu0 0.0
    %2619 = vmatpush.msra.mxu0 0.0
    %2620 = vmatpush.msra.mxu0 0.0
    %2621 = vmatpush.msra.mxu0 0.0
    %2622 = vmatpush.msra.mxu0 0.0
    %2623 = vmatpush.msra.mxu0 0.0
    %2624 = vmatpush.msra.mxu0 0.0
    %2625 = vmatpush.msra.mxu0 0.0
    %2626 = vmatpush.msra.mxu0 0.0
    %2627 = vmatpush.msra.mxu0 0.0
    %2628 = vmatpush.msra.mxu0 %v2298
    %2629 = vmatmul.f32.gmra.mxu0 %v2611
    %v2630 = vpop.f32.mrf.mxu0
    %v2631 = vadd.f32 0.0, %v2630
    %2632 = vdwg.mxu0
    %v2634 = vsel %vm185, %v2562, 0
    %2636 = vmatpush.msra.mxu0 0.0
    %2637 = vmatpush.msra.mxu0 0.0
    %2638 = vmatpush.msra.mxu0 0.0
    %2639 = vmatpush.msra.mxu0 0.0
    %2640 = vmatpush.msra.mxu0 0.0
    %2641 = vmatpush.msra.mxu0 0.0
    %2642 = vmatpush.msra.mxu0 0.0
    %2643 = vmatpush.msra.mxu0 0.0
    %2644 = vmatpush.msra.mxu0 0.0
    %2645 = vmatpush.msra.mxu0 0.0
    %2646 = vmatpush.msra.mxu0 0.0
    %2647 = vmatpush.msra.mxu0 0.0
    %2648 = vmatpush.msra.mxu0 0.0
    %2649 = vmatpush.msra.mxu0 0.0
    %2650 = vmatpush.msra.mxu0 0.0
    %2651 = vmatpush.msra.mxu0 %v2299
    %2652 = vmatmul.f32.gmra.mxu0 %v2634
    %v2653 = vpop.f32.mrf.mxu0
    %v2654 = vadd.f32 0.0, %v2653
    %2655 = vdwg.mxu0
    %v2656 = vsel %vm36, %v2585, 0.0
    %v2657 = vsel %vm36, %v2608, 0.0
    %v2658 = vadd.f32 %v2656, %v2657
    %v2659 = vsel %vm36, %v2631, 0.0
    %v2660 = vadd.f32 %v2658, %v2659
    %v2661 = vsel %vm36, %v2654, 0.0
    %v2662 = vadd.f32 %v2660, %v2661
    %v2663 = vperm.slane %v2300, 0
    %v2664 = vadd.f32 %v2662, %v2663
    %2666 = vrot.lane.b32.xlu0 %v2294, 120
    %v2667 = vpop.permute.xlu0 %2666
    %2668 = vrot.lane.b32.xlu0 %v2294, 112
    %v2669 = vpop.permute.xlu0 %2668
    %2670 = vrot.lane.b32.xlu0 %v2294, 104
    %v2671 = vpop.permute.xlu0 %2670
    %2672 = vrot.lane.b32.xlu0 %v2294, 96
    %v2673 = vpop.permute.xlu0 %2672
    %2675 = vrot.lane.b32.xlu0 %v544, 120
    %v2676 = vpop.permute.xlu0 %2675
    %v2678 = vsel %vm185, %v2294, 0
    %v2680 = vsel %vm185, %v2673, 0
    %2682 = vmatpush.xpose.msra.mxu0 0.0
    %2683 = vmatpush.xpose.msra.mxu0 0.0
    %2684 = vmatpush.xpose.msra.mxu0 0.0
    %2685 = vmatpush.xpose.msra.mxu0 0.0
    %2686 = vmatpush.xpose.msra.mxu0 0.0
    %2687 = vmatpush.xpose.msra.mxu0 0.0
    %2688 = vmatpush.xpose.msra.mxu0 0.0
    %2689 = vmatpush.xpose.msra.mxu0 0.0
    %2690 = vmatpush.xpose.msra.mxu0 0.0
    %2691 = vmatpush.xpose.msra.mxu0 0.0
    %2692 = vmatpush.xpose.msra.mxu0 0.0
    %2693 = vmatpush.xpose.msra.mxu0 0.0
    %2694 = vmatpush.xpose.msra.mxu0 0.0
    %2695 = vmatpush.xpose.msra.mxu0 0.0
    %2696 = vmatpush.xpose.msra.mxu0 0.0
    %2697 = vmatpush.xpose.msra.mxu0 %v2680
    %2698 = vmatmul.f32.gmra.mxu0 %v2678
    %v2699 = vpop.f32.mrf.mxu0
    %v2700 = vadd.f32 %v2676, %v2699
    %2701 = vdwg.mxu0
    %2702 = vrot.lane.b32.xlu0 %v2667, 96
    %v2703 = vpop.permute.xlu0 %2702
    %v2704 = vsel %vm185, %v2667, 0
    %v2706 = vsel %vm185, %v2703, 0
    %2708 = vmatpush.xpose.msra.mxu0 0.0
    %2709 = vmatpush.xpose.msra.mxu0 0.0
    %2710 = vmatpush.xpose.msra.mxu0 0.0
    %2711 = vmatpush.xpose.msra.mxu0 0.0
    %2712 = vmatpush.xpose.msra.mxu0 0.0
    %2713 = vmatpush.xpose.msra.mxu0 0.0
    %2714 = vmatpush.xpose.msra.mxu0 0.0
    %2715 = vmatpush.xpose.msra.mxu0 0.0
    %2716 = vmatpush.xpose.msra.mxu0 0.0
    %2717 = vmatpush.xpose.msra.mxu0 0.0
    %2718 = vmatpush.xpose.msra.mxu0 0.0
    %2719 = vmatpush.xpose.msra.mxu0 0.0
    %2720 = vmatpush.xpose.msra.mxu0 0.0
    %2721 = vmatpush.xpose.msra.mxu0 0.0
    %2722 = vmatpush.xpose.msra.mxu0 0.0
    %2723 = vmatpush.xpose.msra.mxu0 %v2706
    %2724 = vmatmul.f32.gmra.mxu0 %v2704
    %v2725 = vpop.f32.mrf.mxu0
    %v2726 = vadd.f32 %v2676, %v2725
    %2727 = vdwg.mxu0
    %2728 = vrot.lane.b32.xlu0 %v2669, 96
    %v2729 = vpop.permute.xlu0 %2728
    %v2730 = vsel %vm185, %v2669, 0
    %v2732 = vsel %vm185, %v2729, 0
    %2734 = vmatpush.xpose.msra.mxu0 0.0
    %2735 = vmatpush.xpose.msra.mxu0 0.0
    %2736 = vmatpush.xpose.msra.mxu0 0.0
    %2737 = vmatpush.xpose.msra.mxu0 0.0
    %2738 = vmatpush.xpose.msra.mxu0 0.0
    %2739 = vmatpush.xpose.msra.mxu0 0.0
    %2740 = vmatpush.xpose.msra.mxu0 0.0
    %2741 = vmatpush.xpose.msra.mxu0 0.0
    %2742 = vmatpush.xpose.msra.mxu0 0.0
    %2743 = vmatpush.xpose.msra.mxu0 0.0
    %2744 = vmatpush.xpose.msra.mxu0 0.0
    %2745 = vmatpush.xpose.msra.mxu0 0.0
    %2746 = vmatpush.xpose.msra.mxu0 0.0
    %2747 = vmatpush.xpose.msra.mxu0 0.0
    %2748 = vmatpush.xpose.msra.mxu0 0.0
    %2749 = vmatpush.xpose.msra.mxu0 %v2732
    %2750 = vmatmul.f32.gmra.mxu0 %v2730
    %v2751 = vpop.f32.mrf.mxu0
    %v2752 = vadd.f32 %v2676, %v2751
    %2753 = vdwg.mxu0
    %2754 = vrot.lane.b32.xlu0 %v2671, 96
    %v2755 = vpop.permute.xlu0 %2754
    %v2756 = vsel %vm185, %v2671, 0
    %v2758 = vsel %vm185, %v2755, 0
    %2760 = vmatpush.xpose.msra.mxu0 0.0
    %2761 = vmatpush.xpose.msra.mxu0 0.0
    %2762 = vmatpush.xpose.msra.mxu0 0.0
    %2763 = vmatpush.xpose.msra.mxu0 0.0
    %2764 = vmatpush.xpose.msra.mxu0 0.0
    %2765 = vmatpush.xpose.msra.mxu0 0.0
    %2766 = vmatpush.xpose.msra.mxu0 0.0
    %2767 = vmatpush.xpose.msra.mxu0 0.0
    %2768 = vmatpush.xpose.msra.mxu0 0.0
    %2769 = vmatpush.xpose.msra.mxu0 0.0
    %2770 = vmatpush.xpose.msra.mxu0 0.0
    %2771 = vmatpush.xpose.msra.mxu0 0.0
    %2772 = vmatpush.xpose.msra.mxu0 0.0
    %2773 = vmatpush.xpose.msra.mxu0 0.0
    %2774 = vmatpush.xpose.msra.mxu0 0.0
    %2775 = vmatpush.xpose.msra.mxu0 %v2758
    %2776 = vmatmul.f32.gmra.mxu0 %v2756
    %v2777 = vpop.f32.mrf.mxu0
    %v2778 = vadd.f32 %v2676, %v2777
    %2779 = vdwg.mxu0
    %v2780 = vsel %vm185, %v2700, -inf
    %2781 = vmax.xlane.f32.xlu0 %v2780
    %v2782 = vpop.xlane.xlu0 %2781
    %v2783 = vsel %vm185, %v2726, -inf
    %2784 = vmax.xlane.f32.xlu0 %v2783
    %v2785 = vpop.xlane.xlu0 %2784
    %v2786 = vsel %vm185, %v2752, -inf
    %2787 = vmax.xlane.f32.xlu0 %v2786
    %v2788 = vpop.xlane.xlu0 %2787
    %v2789 = vsel %vm185, %v2778, -inf
    %2790 = vmax.xlane.f32.xlu0 %v2789
    %v2791 = vpop.xlane.xlu0 %2790
    %v2792 = vsub.f32 %v2700, %v2782
    %v2793 = vsub.f32 %v2726, %v2785
    %v2794 = vsub.f32 %v2752, %v2788
    %v2795 = vsub.f32 %v2778, %v2791
    %v2796 = vmul.f32 %v2792, 1.442695
    %v2797 = vpow.pop %v2796
    %v2798 = vmul.f32 %v2793, 1.442695
    %v2799 = vpow.pop %v2798
    %v2800 = vmul.f32 %v2794, 1.442695
    %v2801 = vpow.pop %v2800
    %v2802 = vmul.f32 %v2795, 1.442695
    %v2803 = vpow.pop %v2802
    %v2804 = vsel %vm185, %v2797, 0.0
    %2805 = vadd.xlane.f32.xlu0 %v2804
    %v2806 = vpop.xlane.xlu0 %2805
    %v2807 = vsel %vm185, %v2799, 0.0
    %2808 = vadd.xlane.f32.xlu0 %v2807
    %v2809 = vpop.xlane.xlu0 %2808
    %v2810 = vsel %vm185, %v2801, 0.0
    %2811 = vadd.xlane.f32.xlu0 %v2810
    %v2812 = vpop.xlane.xlu0 %2811
    %v2813 = vsel %vm185, %v2803, 0.0
    %2814 = vadd.xlane.f32.xlu0 %v2813
    %v2815 = vpop.xlane.xlu0 %2814
    %v2816 = vrcp.pop %v2806
    %v2817 = vrcp.pop %v2809
    %v2818 = vrcp.pop %v2812
    %v2819 = vrcp.pop %v2815
    %v2820 = vmul.f32 %v2797, %v2816
    %v2821 = vmul.f32 %v2799, %v2817
    %v2822 = vmul.f32 %v2801, %v2818
    %v2823 = vmul.f32 %v2803, %v2819
    %2824 = vrot.lane.b32.xlu0 %v2294, 64
    %v2825 = vpop.permute.xlu0 %2824
    %v2828 = vsel %vm185, %v2820, 0
    %2830 = vmatpush.msra.mxu0 0.0
    %2831 = vmatpush.msra.mxu0 0.0
    %2832 = vmatpush.msra.mxu0 0.0
    %2833 = vmatpush.msra.mxu0 0.0
    %2834 = vmatpush.msra.mxu0 0.0
    %2835 = vmatpush.msra.mxu0 0.0
    %2836 = vmatpush.msra.mxu0 0.0
    %2837 = vmatpush.msra.mxu0 0.0
    %2838 = vmatpush.msra.mxu0 0.0
    %2839 = vmatpush.msra.mxu0 0.0
    %2840 = vmatpush.msra.mxu0 0.0
    %2841 = vmatpush.msra.mxu0 0.0
    %2842 = vmatpush.msra.mxu0 0.0
    %2843 = vmatpush.msra.mxu0 0.0
    %2844 = vmatpush.msra.mxu0 0.0
    %2845 = vmatpush.msra.mxu0 %v2825
    %2846 = vmatmul.f32.gmra.mxu0 %v2828
    %v2847 = vpop.f32.mrf.mxu0
    %v2848 = vadd.f32 0.0, %v2847
    %2849 = vdwg.mxu0
    %2850 = vrot.lane.b32.xlu0 %v2667, 64
    %v2851 = vpop.permute.xlu0 %2850
    %v2854 = vsel %vm185, %v2821, 0
    %2856 = vmatpush.msra.mxu0 0.0
    %2857 = vmatpush.msra.mxu0 0.0
    %2858 = vmatpush.msra.mxu0 0.0
    %2859 = vmatpush.msra.mxu0 0.0
    %2860 = vmatpush.msra.mxu0 0.0
    %2861 = vmatpush.msra.mxu0 0.0
    %2862 = vmatpush.msra.mxu0 0.0
    %2863 = vmatpush.msra.mxu0 0.0
    %2864 = vmatpush.msra.mxu0 0.0
    %2865 = vmatpush.msra.mxu0 0.0
    %2866 = vmatpush.msra.mxu0 0.0
    %2867 = vmatpush.msra.mxu0 0.0
    %2868 = vmatpush.msra.mxu0 0.0
    %2869 = vmatpush.msra.mxu0 0.0
    %2870 = vmatpush.msra.mxu0 0.0
    %2871 = vmatpush.msra.mxu0 %v2851
    %2872 = vmatmul.f32.gmra.mxu0 %v2854
    %v2873 = vpop.f32.mrf.mxu0
    %v2874 = vadd.f32 0.0, %v2873
    %2875 = vdwg.mxu0
    %2876 = vrot.lane.b32.xlu0 %v2669, 64
    %v2877 = vpop.permute.xlu0 %2876
    %v2880 = vsel %vm185, %v2822, 0
    %2882 = vmatpush.msra.mxu0 0.0
    %2883 = vmatpush.msra.mxu0 0.0
    %2884 = vmatpush.msra.mxu0 0.0
    %2885 = vmatpush.msra.mxu0 0.0
    %2886 = vmatpush.msra.mxu0 0.0
    %2887 = vmatpush.msra.mxu0 0.0
    %2888 = vmatpush.msra.mxu0 0.0
    %2889 = vmatpush.msra.mxu0 0.0
    %2890 = vmatpush.msra.mxu0 0.0
    %2891 = vmatpush.msra.mxu0 0.0
    %2892 = vmatpush.msra.mxu0 0.0
    %2893 = vmatpush.msra.mxu0 0.0
    %2894 = vmatpush.msra.mxu0 0.0
    %2895 = vmatpush.msra.mxu0 0.0
    %2896 = vmatpush.msra.mxu0 0.0
    %2897 = vmatpush.msra.mxu0 %v2877
    %2898 = vmatmul.f32.gmra.mxu0 %v2880
    %v2899 = vpop.f32.mrf.mxu0
    %v2900 = vadd.f32 0.0, %v2899
    %2901 = vdwg.mxu0
    %2902 = vrot.lane.b32.xlu0 %v2671, 64
    %v2903 = vpop.permute.xlu0 %2902
    %v2906 = vsel %vm185, %v2823, 0
    %2908 = vmatpush.msra.mxu0 0.0
    %2909 = vmatpush.msra.mxu0 0.0
    %2910 = vmatpush.msra.mxu0 0.0
    %2911 = vmatpush.msra.mxu0 0.0
    %2912 = vmatpush.msra.mxu0 0.0
    %2913 = vmatpush.msra.mxu0 0.0
    %2914 = vmatpush.msra.mxu0 0.0
    %2915 = vmatpush.msra.mxu0 0.0
    %2916 = vmatpush.msra.mxu0 0.0
    %2917 = vmatpush.msra.mxu0 0.0
    %2918 = vmatpush.msra.mxu0 0.0
    %2919 = vmatpush.msra.mxu0 0.0
    %2920 = vmatpush.msra.mxu0 0.0
    %2921 = vmatpush.msra.mxu0 0.0
    %2922 = vmatpush.msra.mxu0 0.0
    %2923 = vmatpush.msra.mxu0 %v2903
    %2924 = vmatmul.f32.gmra.mxu0 %v2906
    %v2925 = vpop.f32.mrf.mxu0
    %v2926 = vadd.f32 0.0, %v2925
    %2927 = vdwg.mxu0
    %v2929 = vsel %vm185, %v2848, 0
    %2931 = vmatpush.msra.mxu0 0.0
    %2932 = vmatpush.msra.mxu0 0.0
    %2933 = vmatpush.msra.mxu0 0.0
    %2934 = vmatpush.msra.mxu0 0.0
    %2935 = vmatpush.msra.mxu0 0.0
    %2936 = vmatpush.msra.mxu0 0.0
    %2937 = vmatpush.msra.mxu0 0.0
    %2938 = vmatpush.msra.mxu0 0.0
    %2939 = vmatpush.msra.mxu0 0.0
    %2940 = vmatpush.msra.mxu0 0.0
    %2941 = vmatpush.msra.mxu0 0.0
    %2942 = vmatpush.msra.mxu0 0.0
    %2943 = vmatpush.msra.mxu0 0.0
    %2944 = vmatpush.msra.mxu0 0.0
    %2945 = vmatpush.msra.mxu0 0.0
    %2946 = vmatpush.msra.mxu0 %v2296
    %2947 = vmatmul.f32.gmra.mxu0 %v2929
    %v2948 = vpop.f32.mrf.mxu0
    %v2949 = vadd.f32 0.0, %v2948
    %2950 = vdwg.mxu0
    %v2952 = vsel %vm185, %v2874, 0
    %2954 = vmatpush.msra.mxu0 0.0
    %2955 = vmatpush.msra.mxu0 0.0
    %2956 = vmatpush.msra.mxu0 0.0
    %2957 = vmatpush.msra.mxu0 0.0
    %2958 = vmatpush.msra.mxu0 0.0
    %2959 = vmatpush.msra.mxu0 0.0
    %2960 = vmatpush.msra.mxu0 0.0
    %2961 = vmatpush.msra.mxu0 0.0
    %2962 = vmatpush.msra.mxu0 0.0
    %2963 = vmatpush.msra.mxu0 0.0
    %2964 = vmatpush.msra.mxu0 0.0
    %2965 = vmatpush.msra.mxu0 0.0
    %2966 = vmatpush.msra.mxu0 0.0
    %2967 = vmatpush.msra.mxu0 0.0
    %2968 = vmatpush.msra.mxu0 0.0
    %2969 = vmatpush.msra.mxu0 %v2297
    %2970 = vmatmul.f32.gmra.mxu0 %v2952
    %v2971 = vpop.f32.mrf.mxu0
    %v2972 = vadd.f32 0.0, %v2971
    %2973 = vdwg.mxu0
    %v2975 = vsel %vm185, %v2900, 0
    %2977 = vmatpush.msra.mxu0 0.0
    %2978 = vmatpush.msra.mxu0 0.0
    %2979 = vmatpush.msra.mxu0 0.0
    %2980 = vmatpush.msra.mxu0 0.0
    %2981 = vmatpush.msra.mxu0 0.0
    %2982 = vmatpush.msra.mxu0 0.0
    %2983 = vmatpush.msra.mxu0 0.0
    %2984 = vmatpush.msra.mxu0 0.0
    %2985 = vmatpush.msra.mxu0 0.0
    %2986 = vmatpush.msra.mxu0 0.0
    %2987 = vmatpush.msra.mxu0 0.0
    %2988 = vmatpush.msra.mxu0 0.0
    %2989 = vmatpush.msra.mxu0 0.0
    %2990 = vmatpush.msra.mxu0 0.0
    %2991 = vmatpush.msra.mxu0 0.0
    %2992 = vmatpush.msra.mxu0 %v2298
    %2993 = vmatmul.f32.gmra.mxu0 %v2975
    %v2994 = vpop.f32.mrf.mxu0
    %v2995 = vadd.f32 0.0, %v2994
    %2996 = vdwg.mxu0
    %v2998 = vsel %vm185, %v2926, 0
    %3000 = vmatpush.msra.mxu0 0.0
    %3001 = vmatpush.msra.mxu0 0.0
    %3002 = vmatpush.msra.mxu0 0.0
    %3003 = vmatpush.msra.mxu0 0.0
    %3004 = vmatpush.msra.mxu0 0.0
    %3005 = vmatpush.msra.mxu0 0.0
    %3006 = vmatpush.msra.mxu0 0.0
    %3007 = vmatpush.msra.mxu0 0.0
    %3008 = vmatpush.msra.mxu0 0.0
    %3009 = vmatpush.msra.mxu0 0.0
    %3010 = vmatpush.msra.mxu0 0.0
    %3011 = vmatpush.msra.mxu0 0.0
    %3012 = vmatpush.msra.mxu0 0.0
    %3013 = vmatpush.msra.mxu0 0.0
    %3014 = vmatpush.msra.mxu0 0.0
    %3015 = vmatpush.msra.mxu0 %v2299
    %3016 = vmatmul.f32.gmra.mxu0 %v2998
    %v3017 = vpop.f32.mrf.mxu0
    %v3018 = vadd.f32 0.0, %v3017
    %3019 = vdwg.mxu0
    %v3020 = vsel %vm36, %v2949, 0.0
    %v3021 = vsel %vm36, %v2972, 0.0
    %v3022 = vadd.f32 %v3020, %v3021
    %v3023 = vsel %vm36, %v2995, 0.0
    %v3024 = vadd.f32 %v3022, %v3023
    %v3025 = vsel %vm36, %v3018, 0.0
    %v3026 = vadd.f32 %v3024, %v3025
    %v3027 = vadd.f32 %v3026, %v2663
    %3030 = vrot.lane.b32.xlu0 %v2664, 32
    %v3031 = vpop.permute.xlu0 %3030
    %3032 = vrot.lane.b32.xlu0 %v3027, 32
    %v3033 = vpop.permute.xlu0 %3032
    %v3036 = vadd.f32 %v34, %v3031
    %v3037 = vadd.f32 %v35, %v3033
    %3040 = vrot.lane.b32.xlu0 %v3036, 96
    %v3041 = vpop.permute.xlu0 %3040
    %3042 = vrot.lane.b32.xlu0 %v3037, 96
    %v3043 = vpop.permute.xlu0 %3042
    %v3046 = vsel %vm36, %v3041, 0.0
    %3047 = vadd.xlane.f32.xlu0 %v3046
    %v3048 = vpop.xlane.xlu0 %3047
    %v3049 = vsel %vm36, %v3043, 0.0
    %3050 = vadd.xlane.f32.xlu0 %v3049
    %v3051 = vpop.xlane.xlu0 %3050
    %v3052 = vmul.f32 %v3048, %v49
    %v3053 = vmul.f32 %v3051, %v49
    %v3054 = vsub.f32 %v3036, %v3052
    %v3055 = vsub.f32 %v3037, %v3053
    %v3056 = vmul.f32 %v3054, %v3054
    %v3057 = vmul.f32 %v3055, %v3055
    %3060 = vrot.lane.b32.xlu0 %v3056, 96
    %v3061 = vpop.permute.xlu0 %3060
    %3062 = vrot.lane.b32.xlu0 %v3057, 96
    %v3063 = vpop.permute.xlu0 %3062
    %v3066 = vsel %vm36, %v3061, 0.0
    %3067 = vadd.xlane.f32.xlu0 %v3066
    %v3068 = vpop.xlane.xlu0 %3067
    %v3069 = vsel %vm36, %v3063, 0.0
    %3070 = vadd.xlane.f32.xlu0 %v3069
    %v3071 = vpop.xlane.xlu0 %3070
    %v3072 = vmul.f32 %v3068, %v68
    %v3073 = vmul.f32 %v3071, %v68
    %v3074 = vrsqrt.pop %v3072
    %v3075 = vmul.f32 %v3074, %v3072
    %v3076 = vmul.f32 %v3075, %v3074
    %v3077 = vmul.f32 0.5, %v3076
    %v3078 = vsub.f32 1.5, %v3077
    %v3079 = vmul.f32 %v3074, %v3078
    %v3080 = vmul.f32 %v3072, %v3079
    %vm3081 = vcmp.eq.f32.partialorder %v3072, inf
    %v3082 = vsel %vm3081, %v3072, %v3080
    %vm3083 = vcmp.eq.f32.partialorder %v3072, 0.0
    %v3084 = vand.u32 %v3072, 2147483648
    %v3085 = vsel %vm3083, %v3084, %v3082
    %v3086 = vrsqrt.pop %v3073
    %v3087 = vmul.f32 %v3086, %v3073
    %v3088 = vmul.f32 %v3087, %v3086
    %v3089 = vmul.f32 0.5, %v3088
    %v3090 = vsub.f32 1.5, %v3089
    %v3091 = vmul.f32 %v3086, %v3090
    %v3092 = vmul.f32 %v3073, %v3091
    %vm3093 = vcmp.eq.f32.partialorder %v3073, inf
    %v3094 = vsel %vm3093, %v3073, %v3092
    %vm3095 = vcmp.eq.f32.partialorder %v3073, 0.0
    %v3096 = vand.u32 %v3073, 2147483648
    %v3097 = vsel %vm3095, %v3096, %v3094
    %v3098 = vld [vmem:[%s3 + $0x16] sm:$0x1]
    %v3099 = vperm.slane %v3098, 0
    %3102 = vrot.lane.b32.xlu0 %v3054, 96
    %v3103 = vpop.permute.xlu0 %3102
    %3104 = vrot.lane.b32.xlu0 %v3055, 96
    %v3105 = vpop.permute.xlu0 %3104
    %v3108 = vmul.f32 %v3099, %v3103
    %v3109 = vmul.f32 %v3099, %v3105
    %v3110 = vadd.f32 %v3085, 1e-06
    %v3111 = vadd.f32 %v3097, 1e-06
    %v3112 = vrcp.pop %v3110
    %v3113 = vmul.f32 %v3110, %v3112
    %v3114 = vsub.f32 1.0, %v3113
    %v3115 = vmul.f32 %v3112, %v3114
    %v3116 = vadd.f32 %v3112, %v3115
    %vm3117 = vweird.f32 %v3110
    %vm3118 = vweird.f32 %v3112
    %vm3119 = vmor %vm3117, %vm3118
    %v3120 = vsel %vm3119, %v3112, %v3116
    %v3121 = vand.u32 2147483647, %v3110
    %vm3122 = vcmp.eq.f32.partialorder %v3121, 8.507059e+37
    %v3123 = vand.u32 %v3110, 2147483648
    %v3124 = vor.u32 1.1754944e-38, %v3123
    %v3125 = vsel %vm3122, %v3124, %v3120
    %v3126 = vmul.f32 %v3108, %v3125
    %v3127 = vrcp.pop %v3111
    %v3128 = vmul.f32 %v3111, %v3127
    %v3129 = vsub.f32 1.0, %v3128
    %v3130 = vmul.f32 %v3127, %v3129
    %v3131 = vadd.f32 %v3127, %v3130
    %vm3132 = vweird.f32 %v3111
    %vm3133 = vweird.f32 %v3127
    %vm3134 = vmor %vm3132, %vm3133
    %v3135 = vsel %vm3134, %v3127, %v3131
    %v3136 = vand.u32 2147483647, %v3111
    %vm3137 = vcmp.eq.f32.partialorder %v3136, 8.507059e+37
    %v3138 = vand.u32 %v3111, 2147483648
    %v3139 = vor.u32 1.1754944e-38, %v3138
    %v3140 = vsel %vm3137, %v3139, %v3135
    %v3141 = vmul.f32 %v3109, %v3140
    %v3142 = vld [vmem:[%s3 + $0x17] sm:$0x1]
    %v3143 = vperm.slane %v3142, 0
    %v3144 = vadd.f32 %v3126, %v3143
    %v3145 = vadd.f32 %v3141, %v3143
    %v3146 = vld [vmem:[#allocation2 + $0x180] sm:$0xff]
    %v3147 = vld [vmem:[#allocation2 + $0x188] sm:$0xff]
    %v3148 = vld [vmem:[#allocation2 + $0x190] sm:$0xff]
    %v3149 = vld [vmem:[#allocation2 + $0x198] sm:$0xff]
    %v3150 = vld [vmem:[%s3 + $0x18] sm:$0x1]
    %v3151 = vperm.slane %v3150, 0
    %v3153 = vsel %vm36, %v3144, 0
    %v3156 = vsel %vm36, %v3145, 0
    %3158 = vmatpush.msra.mxu0 0.0
    %3159 = vmatpush.msra.mxu0 0.0
    %3160 = vmatpush.msra.mxu0 0.0
    %3161 = vmatpush.msra.mxu0 0.0
    %3162 = vmatpush.msra.mxu0 0.0
    %3163 = vmatpush.msra.mxu0 0.0
    %3164 = vmatpush.msra.mxu0 0.0
    %3165 = vmatpush.msra.mxu0 0.0
    %3166 = vmatpush.msra.mxu0 0.0
    %3167 = vmatpush.msra.mxu0 0.0
    %3168 = vmatpush.msra.mxu0 0.0
    %3169 = vmatpush.msra.mxu0 0.0
    %3170 = vmatpush.msra.mxu0 %v3149
    %3171 = vmatpush.msra.mxu0 %v3148
    %3172 = vmatpush.msra.mxu0 %v3147
    %3173 = vmatpush.msra.mxu0 %v3146
    %3174 = vmatmul.f32.gmra.mxu0 %v3153
    %v3175 = vpop.f32.mrf.mxu0
    %v3176 = vadd.f32 %v3151, %v3175
    %3177 = vmatmul.f32.gmra.mxu0 %v3156
    %v3178 = vpop.f32.mrf.mxu0
    %v3179 = vadd.f32 %v3151, %v3178
    %3180 = vdwg.mxu0
    %v3181 = vld [vmem:[#allocation2 + $0x1a0] sm:$0xff]
    %v3182 = vld [vmem:[#allocation2 + $0x1a8] sm:$0xff]
    %v3183 = vld [vmem:[#allocation2 + $0x1b0] sm:$0xff]
    %v3184 = vld [vmem:[#allocation2 + $0x1b8] sm:$0xff]
    %v3185 = vld [vmem:[%s3 + $0x19] sm:$0x1]
    %v3186 = vperm.slane %v3185, 0
    %v3188 = vsel %vm36, %v2151, 0
    %v3191 = vsel %vm36, %v2152, 0
    %3193 = vmatpush.msra.mxu0 0.0
    %3194 = vmatpush.msra.mxu0 0.0
    %3195 = vmatpush.msra.mxu0 0.0
    %3196 = vmatpush.msra.mxu0 0.0
    %3197 = vmatpush.msra.mxu0 0.0
    %3198 = vmatpush.msra.mxu0 0.0
    %3199 = vmatpush.msra.mxu0 0.0
    %3200 = vmatpush.msra.mxu0 0.0
    %3201 = vmatpush.msra.mxu0 0.0
    %3202 = vmatpush.msra.mxu0 0.0
    %3203 = vmatpush.msra.mxu0 0.0
    %3204 = vmatpush.msra.mxu0 0.0
    %3205 = vmatpush.msra.mxu0 %v3184
    %3206 = vmatpush.msra.mxu0 %v3183
    %3207 = vmatpush.msra.mxu0 %v3182
    %3208 = vmatpush.msra.mxu0 %v3181
    %3209 = vmatmul.f32.gmra.mxu0 %v3188
    %v3210 = vpop.f32.mrf.mxu0
    %v3211 = vadd.f32 %v3186, %v3210
    %3212 = vmatmul.f32.gmra.mxu0 %v3191
    %v3213 = vpop.f32.mrf.mxu0
    %v3214 = vadd.f32 %v3186, %v3213
    %3215 = vdwg.mxu0
    %v3216 = vld [vmem:[#allocation2 + $0x1c0] sm:$0xff]
    %v3217 = vld [vmem:[#allocation2 + $0x1c8] sm:$0xff]
    %v3218 = vld [vmem:[#allocation2 + $0x1d0] sm:$0xff]
    %v3219 = vld [vmem:[#allocation2 + $0x1d8] sm:$0xff]
    %v3220 = vld [vmem:[%s3 + $0x1a] sm:$0x1]
    %3222 = vrot.lane.b32.xlu0 %v3176, 120
    %v3223 = vpop.permute.xlu0 %3222
    %3224 = vrot.lane.b32.xlu0 %v3176, 112
    %v3225 = vpop.permute.xlu0 %3224
    %3226 = vrot.lane.b32.xlu0 %v3176, 104
    %v3227 = vpop.permute.xlu0 %3226
    %3229 = vrot.lane.b32.xlu0 %v3211, 120
    %v3230 = vpop.permute.xlu0 %3229
    %3231 = vrot.lane.b32.xlu0 %v3211, 112
    %v3232 = vpop.permute.xlu0 %3231
    %3233 = vrot.lane.b32.xlu0 %v3211, 104
    %v3234 = vpop.permute.xlu0 %3233
    %v3235 = vsel %vm185, %v3176, 0
    %v3237 = vsel %vm185, %v3211, 0
    %3239 = vmatpush.xpose.msra.mxu0 0.0
    %3240 = vmatpush.xpose.msra.mxu0 0.0
    %3241 = vmatpush.xpose.msra.mxu0 0.0
    %3242 = vmatpush.xpose.msra.mxu0 0.0
    %3243 = vmatpush.xpose.msra.mxu0 0.0
    %3244 = vmatpush.xpose.msra.mxu0 0.0
    %3245 = vmatpush.xpose.msra.mxu0 0.0
    %3246 = vmatpush.xpose.msra.mxu0 0.0
    %3247 = vmatpush.xpose.msra.mxu0 0.0
    %3248 = vmatpush.xpose.msra.mxu0 0.0
    %3249 = vmatpush.xpose.msra.mxu0 0.0
    %3250 = vmatpush.xpose.msra.mxu0 0.0
    %3251 = vmatpush.xpose.msra.mxu0 0.0
    %3252 = vmatpush.xpose.msra.mxu0 0.0
    %3253 = vmatpush.xpose.msra.mxu0 0.0
    %3254 = vmatpush.xpose.msra.mxu0 %v3237
    %3255 = vmatmul.f32.gmra.mxu0 %v3235
    %v3256 = vpop.f32.mrf.mxu0
    %v3257 = vadd.f32 %v182, %v3256
    %3258 = vdwg.mxu0
    %v3259 = vsel %vm185, %v3223, 0
    %v3261 = vsel %vm185, %v3230, 0
    %3263 = vmatpush.xpose.msra.mxu0 0.0
    %3264 = vmatpush.xpose.msra.mxu0 0.0
    %3265 = vmatpush.xpose.msra.mxu0 0.0
    %3266 = vmatpush.xpose.msra.mxu0 0.0
    %3267 = vmatpush.xpose.msra.mxu0 0.0
    %3268 = vmatpush.xpose.msra.mxu0 0.0
    %3269 = vmatpush.xpose.msra.mxu0 0.0
    %3270 = vmatpush.xpose.msra.mxu0 0.0
    %3271 = vmatpush.xpose.msra.mxu0 0.0
    %3272 = vmatpush.xpose.msra.mxu0 0.0
    %3273 = vmatpush.xpose.msra.mxu0 0.0
    %3274 = vmatpush.xpose.msra.mxu0 0.0
    %3275 = vmatpush.xpose.msra.mxu0 0.0
    %3276 = vmatpush.xpose.msra.mxu0 0.0
    %3277 = vmatpush.xpose.msra.mxu0 0.0
    %3278 = vmatpush.xpose.msra.mxu0 %v3261
    %3279 = vmatmul.f32.gmra.mxu0 %v3259
    %v3280 = vpop.f32.mrf.mxu0
    %v3281 = vadd.f32 %v182, %v3280
    %3282 = vdwg.mxu0
    %v3283 = vsel %vm185, %v3225, 0
    %v3285 = vsel %vm185, %v3232, 0
    %3287 = vmatpush.xpose.msra.mxu0 0.0
    %3288 = vmatpush.xpose.msra.mxu0 0.0
    %3289 = vmatpush.xpose.msra.mxu0 0.0
    %3290 = vmatpush.xpose.msra.mxu0 0.0
    %3291 = vmatpush.xpose.msra.mxu0 0.0
    %3292 = vmatpush.xpose.msra.mxu0 0.0
    %3293 = vmatpush.xpose.msra.mxu0 0.0
    %3294 = vmatpush.xpose.msra.mxu0 0.0
    %3295 = vmatpush.xpose.msra.mxu0 0.0
    %3296 = vmatpush.xpose.msra.mxu0 0.0
    %3297 = vmatpush.xpose.msra.mxu0 0.0
    %3298 = vmatpush.xpose.msra.mxu0 0.0
    %3299 = vmatpush.xpose.msra.mxu0 0.0
    %3300 = vmatpush.xpose.msra.mxu0 0.0
    %3301 = vmatpush.xpose.msra.mxu0 0.0
    %3302 = vmatpush.xpose.msra.mxu0 %v3285
    %3303 = vmatmul.f32.gmra.mxu0 %v3283
    %v3304 = vpop.f32.mrf.mxu0
    %v3305 = vadd.f32 %v182, %v3304
    %3306 = vdwg.mxu0
    %v3307 = vsel %vm185, %v3227, 0
    %v3309 = vsel %vm185, %v3234, 0
    %3311 = vmatpush.xpose.msra.mxu0 0.0
    %3312 = vmatpush.xpose.msra.mxu0 0.0
    %3313 = vmatpush.xpose.msra.mxu0 0.0
    %3314 = vmatpush.xpose.msra.mxu0 0.0
    %3315 = vmatpush.xpose.msra.mxu0 0.0
    %3316 = vmatpush.xpose.msra.mxu0 0.0
    %3317 = vmatpush.xpose.msra.mxu0 0.0
    %3318 = vmatpush.xpose.msra.mxu0 0.0
    %3319 = vmatpush.xpose.msra.mxu0 0.0
    %3320 = vmatpush.xpose.msra.mxu0 0.0
    %3321 = vmatpush.xpose.msra.mxu0 0.0
    %3322 = vmatpush.xpose.msra.mxu0 0.0
    %3323 = vmatpush.xpose.msra.mxu0 0.0
    %3324 = vmatpush.xpose.msra.mxu0 0.0
    %3325 = vmatpush.xpose.msra.mxu0 0.0
    %3326 = vmatpush.xpose.msra.mxu0 %v3309
    %3327 = vmatmul.f32.gmra.mxu0 %v3307
    %v3328 = vpop.f32.mrf.mxu0
    %v3329 = vadd.f32 %v182, %v3328
    %3330 = vdwg.mxu0
    %v3331 = vsel %vm185, %v3257, -inf
    %3332 = vmax.xlane.f32.xlu0 %v3331
    %v3333 = vpop.xlane.xlu0 %3332
    %v3334 = vsel %vm185, %v3281, -inf
    %3335 = vmax.xlane.f32.xlu0 %v3334
    %v3336 = vpop.xlane.xlu0 %3335
    %v3337 = vsel %vm185, %v3305, -inf
    %3338 = vmax.xlane.f32.xlu0 %v3337
    %v3339 = vpop.xlane.xlu0 %3338
    %v3340 = vsel %vm185, %v3329, -inf
    %3341 = vmax.xlane.f32.xlu0 %v3340
    %v3342 = vpop.xlane.xlu0 %3341
    %v3343 = vsub.f32 %v3257, %v3333
    %v3344 = vsub.f32 %v3281, %v3336
    %v3345 = vsub.f32 %v3305, %v3339
    %v3346 = vsub.f32 %v3329, %v3342
    %v3347 = vmul.f32 %v3343, 1.442695
    %v3348 = vpow.pop %v3347
    %v3349 = vmul.f32 %v3344, 1.442695
    %v3350 = vpow.pop %v3349
    %v3351 = vmul.f32 %v3345, 1.442695
    %v3352 = vpow.pop %v3351
    %v3353 = vmul.f32 %v3346, 1.442695
    %v3354 = vpow.pop %v3353
    %v3355 = vsel %vm185, %v3348, 0.0
    %3356 = vadd.xlane.f32.xlu0 %v3355
    %v3357 = vpop.xlane.xlu0 %3356
    %v3358 = vsel %vm185, %v3350, 0.0
    %3359 = vadd.xlane.f32.xlu0 %v3358
    %v3360 = vpop.xlane.xlu0 %3359
    %v3361 = vsel %vm185, %v3352, 0.0
    %3362 = vadd.xlane.f32.xlu0 %v3361
    %v3363 = vpop.xlane.xlu0 %3362
    %v3364 = vsel %vm185, %v3354, 0.0
    %3365 = vadd.xlane.f32.xlu0 %v3364
    %v3366 = vpop.xlane.xlu0 %3365
    %v3367 = vrcp.pop %v3357
    %v3368 = vrcp.pop %v3360
    %v3369 = vrcp.pop %v3363
    %v3370 = vrcp.pop %v3366
    %v3371 = vmul.f32 %v3348, %v3367
    %v3372 = vmul.f32 %v3350, %v3368
    %v3373 = vmul.f32 %v3352, %v3369
    %v3374 = vmul.f32 %v3354, %v3370
    %3375 = vrot.lane.b32.xlu0 %v3211, 96
    %v3376 = vpop.permute.xlu0 %3375
    %v3379 = vsel %vm185, %v3371, 0
    %3381 = vmatpush.msra.mxu0 0.0
    %3382 = vmatpush.msra.mxu0 0.0
    %3383 = vmatpush.msra.mxu0 0.0
    %3384 = vmatpush.msra.mxu0 0.0
    %3385 = vmatpush.msra.mxu0 0.0
    %3386 = vmatpush.msra.mxu0 0.0
    %3387 = vmatpush.msra.mxu0 0.0
    %3388 = vmatpush.msra.mxu0 0.0
    %3389 = vmatpush.msra.mxu0 0.0
    %3390 = vmatpush.msra.mxu0 0.0
    %3391 = vmatpush.msra.mxu0 0.0
    %3392 = vmatpush.msra.mxu0 0.0
    %3393 = vmatpush.msra.mxu0 0.0
    %3394 = vmatpush.msra.mxu0 0.0
    %3395 = vmatpush.msra.mxu0 0.0
    %3396 = vmatpush.msra.mxu0 %v3376
    %3397 = vmatmul.f32.gmra.mxu0 %v3379
    %v3398 = vpop.f32.mrf.mxu0
    %v3399 = vadd.f32 0.0, %v3398
    %3400 = vdwg.mxu0
    %3401 = vrot.lane.b32.xlu0 %v3230, 96
    %v3402 = vpop.permute.xlu0 %3401
    %v3405 = vsel %vm185, %v3372, 0
    %3407 = vmatpush.msra.mxu0 0.0
    %3408 = vmatpush.msra.mxu0 0.0
    %3409 = vmatpush.msra.mxu0 0.0
    %3410 = vmatpush.msra.mxu0 0.0
    %3411 = vmatpush.msra.mxu0 0.0
    %3412 = vmatpush.msra.mxu0 0.0
    %3413 = vmatpush.msra.mxu0 0.0
    %3414 = vmatpush.msra.mxu0 0.0
    %3415 = vmatpush.msra.mxu0 0.0
    %3416 = vmatpush.msra.mxu0 0.0
    %3417 = vmatpush.msra.mxu0 0.0
    %3418 = vmatpush.msra.mxu0 0.0
    %3419 = vmatpush.msra.mxu0 0.0
    %3420 = vmatpush.msra.mxu0 0.0
    %3421 = vmatpush.msra.mxu0 0.0
    %3422 = vmatpush.msra.mxu0 %v3402
    %3423 = vmatmul.f32.gmra.mxu0 %v3405
    %v3424 = vpop.f32.mrf.mxu0
    %v3425 = vadd.f32 0.0, %v3424
    %3426 = vdwg.mxu0
    %3427 = vrot.lane.b32.xlu0 %v3232, 96
    %v3428 = vpop.permute.xlu0 %3427
    %v3431 = vsel %vm185, %v3373, 0
    %3433 = vmatpush.msra.mxu0 0.0
    %3434 = vmatpush.msra.mxu0 0.0
    %3435 = vmatpush.msra.mxu0 0.0
    %3436 = vmatpush.msra.mxu0 0.0
    %3437 = vmatpush.msra.mxu0 0.0
    %3438 = vmatpush.msra.mxu0 0.0
    %3439 = vmatpush.msra.mxu0 0.0
    %3440 = vmatpush.msra.mxu0 0.0
    %3441 = vmatpush.msra.mxu0 0.0
    %3442 = vmatpush.msra.mxu0 0.0
    %3443 = vmatpush.msra.mxu0 0.0
    %3444 = vmatpush.msra.mxu0 0.0
    %3445 = vmatpush.msra.mxu0 0.0
    %3446 = vmatpush.msra.mxu0 0.0
    %3447 = vmatpush.msra.mxu0 0.0
    %3448 = vmatpush.msra.mxu0 %v3428
    %3449 = vmatmul.f32.gmra.mxu0 %v3431
    %v3450 = vpop.f32.mrf.mxu0
    %v3451 = vadd.f32 0.0, %v3450
    %3452 = vdwg.mxu0
    %3453 = vrot.lane.b32.xlu0 %v3234, 96
    %v3454 = vpop.permute.xlu0 %3453
    %v3457 = vsel %vm185, %v3374, 0
    %3459 = vmatpush.msra.mxu0 0.0
    %3460 = vmatpush.msra.mxu0 0.0
    %3461 = vmatpush.msra.mxu0 0.0
    %3462 = vmatpush.msra.mxu0 0.0
    %3463 = vmatpush.msra.mxu0 0.0
    %3464 = vmatpush.msra.mxu0 0.0
    %3465 = vmatpush.msra.mxu0 0.0
    %3466 = vmatpush.msra.mxu0 0.0
    %3467 = vmatpush.msra.mxu0 0.0
    %3468 = vmatpush.msra.mxu0 0.0
    %3469 = vmatpush.msra.mxu0 0.0
    %3470 = vmatpush.msra.mxu0 0.0
    %3471 = vmatpush.msra.mxu0 0.0
    %3472 = vmatpush.msra.mxu0 0.0
    %3473 = vmatpush.msra.mxu0 0.0
    %3474 = vmatpush.msra.mxu0 %v3454
    %3475 = vmatmul.f32.gmra.mxu0 %v3457
    %v3476 = vpop.f32.mrf.mxu0
    %v3477 = vadd.f32 0.0, %v3476
    %3478 = vdwg.mxu0
    %v3480 = vsel %vm185, %v3399, 0
    %3482 = vmatpush.msra.mxu0 0.0
    %3483 = vmatpush.msra.mxu0 0.0
    %3484 = vmatpush.msra.mxu0 0.0
    %3485 = vmatpush.msra.mxu0 0.0
    %3486 = vmatpush.msra.mxu0 0.0
    %3487 = vmatpush.msra.mxu0 0.0
    %3488 = vmatpush.msra.mxu0 0.0
    %3489 = vmatpush.msra.mxu0 0.0
    %3490 = vmatpush.msra.mxu0 0.0
    %3491 = vmatpush.msra.mxu0 0.0
    %3492 = vmatpush.msra.mxu0 0.0
    %3493 = vmatpush.msra.mxu0 0.0
    %3494 = vmatpush.msra.mxu0 0.0
    %3495 = vmatpush.msra.mxu0 0.0
    %3496 = vmatpush.msra.mxu0 0.0
    %3497 = vmatpush.msra.mxu0 %v3216
    %3498 = vmatmul.f32.gmra.mxu0 %v3480
    %v3499 = vpop.f32.mrf.mxu0
    %v3500 = vadd.f32 0.0, %v3499
    %3501 = vdwg.mxu0
    %v3503 = vsel %vm185, %v3425, 0
    %3505 = vmatpush.msra.mxu0 0.0
    %3506 = vmatpush.msra.mxu0 0.0
    %3507 = vmatpush.msra.mxu0 0.0
    %3508 = vmatpush.msra.mxu0 0.0
    %3509 = vmatpush.msra.mxu0 0.0
    %3510 = vmatpush.msra.mxu0 0.0
    %3511 = vmatpush.msra.mxu0 0.0
    %3512 = vmatpush.msra.mxu0 0.0
    %3513 = vmatpush.msra.mxu0 0.0
    %3514 = vmatpush.msra.mxu0 0.0
    %3515 = vmatpush.msra.mxu0 0.0
    %3516 = vmatpush.msra.mxu0 0.0
    %3517 = vmatpush.msra.mxu0 0.0
    %3518 = vmatpush.msra.mxu0 0.0
    %3519 = vmatpush.msra.mxu0 0.0
    %3520 = vmatpush.msra.mxu0 %v3217
    %3521 = vmatmul.f32.gmra.mxu0 %v3503
    %v3522 = vpop.f32.mrf.mxu0
    %v3523 = vadd.f32 0.0, %v3522
    %3524 = vdwg.mxu0
    %v3526 = vsel %vm185, %v3451, 0
    %3528 = vmatpush.msra.mxu0 0.0
    %3529 = vmatpush.msra.mxu0 0.0
    %3530 = vmatpush.msra.mxu0 0.0
    %3531 = vmatpush.msra.mxu0 0.0
    %3532 = vmatpush.msra.mxu0 0.0
    %3533 = vmatpush.msra.mxu0 0.0
    %3534 = vmatpush.msra.mxu0 0.0
    %3535 = vmatpush.msra.mxu0 0.0
    %3536 = vmatpush.msra.mxu0 0.0
    %3537 = vmatpush.msra.mxu0 0.0
    %3538 = vmatpush.msra.mxu0 0.0
    %3539 = vmatpush.msra.mxu0 0.0
    %3540 = vmatpush.msra.mxu0 0.0
    %3541 = vmatpush.msra.mxu0 0.0
    %3542 = vmatpush.msra.mxu0 0.0
    %3543 = vmatpush.msra.mxu0 %v3218
    %3544 = vmatmul.f32.gmra.mxu0 %v3526
    %v3545 = vpop.f32.mrf.mxu0
    %v3546 = vadd.f32 0.0, %v3545
    %3547 = vdwg.mxu0
    %v3549 = vsel %vm185, %v3477, 0
    %3551 = vmatpush.msra.mxu0 0.0
    %3552 = vmatpush.msra.mxu0 0.0
    %3553 = vmatpush.msra.mxu0 0.0
    %3554 = vmatpush.msra.mxu0 0.0
    %3555 = vmatpush.msra.mxu0 0.0
    %3556 = vmatpush.msra.mxu0 0.0
    %3557 = vmatpush.msra.mxu0 0.0
    %3558 = vmatpush.msra.mxu0 0.0
    %3559 = vmatpush.msra.mxu0 0.0
    %3560 = vmatpush.msra.mxu0 0.0
    %3561 = vmatpush.msra.mxu0 0.0
    %3562 = vmatpush.msra.mxu0 0.0
    %3563 = vmatpush.msra.mxu0 0.0
    %3564 = vmatpush.msra.mxu0 0.0
    %3565 = vmatpush.msra.mxu0 0.0
    %3566 = vmatpush.msra.mxu0 %v3219
    %3567 = vmatmul.f32.gmra.mxu0 %v3549
    %v3568 = vpop.f32.mrf.mxu0
    %v3569 = vadd.f32 0.0, %v3568
    %3570 = vdwg.mxu0
    %v3571 = vsel %vm36, %v3500, 0.0
    %v3572 = vsel %vm36, %v3523, 0.0
    %v3573 = vadd.f32 %v3571, %v3572
    %v3574 = vsel %vm36, %v3546, 0.0
    %v3575 = vadd.f32 %v3573, %v3574
    %v3576 = vsel %vm36, %v3569, 0.0
    %v3577 = vadd.f32 %v3575, %v3576
    %v3578 = vperm.slane %v3220, 0
    %v3579 = vadd.f32 %v3577, %v3578
    %3581 = vrot.lane.b32.xlu0 %v3179, 120
    %v3582 = vpop.permute.xlu0 %3581
    %3583 = vrot.lane.b32.xlu0 %v3179, 112
    %v3584 = vpop.permute.xlu0 %3583
    %3585 = vrot.lane.b32.xlu0 %v3179, 104
    %v3586 = vpop.permute.xlu0 %3585
    %3588 = vrot.lane.b32.xlu0 %v3214, 120
    %v3589 = vpop.permute.xlu0 %3588
    %3590 = vrot.lane.b32.xlu0 %v3214, 112
    %v3591 = vpop.permute.xlu0 %3590
    %3592 = vrot.lane.b32.xlu0 %v3214, 104
    %v3593 = vpop.permute.xlu0 %3592
    %v3594 = vsel %vm185, %v3179, 0
    %v3596 = vsel %vm185, %v3214, 0
    %3598 = vmatpush.xpose.msra.mxu0 0.0
    %3599 = vmatpush.xpose.msra.mxu0 0.0
    %3600 = vmatpush.xpose.msra.mxu0 0.0
    %3601 = vmatpush.xpose.msra.mxu0 0.0
    %3602 = vmatpush.xpose.msra.mxu0 0.0
    %3603 = vmatpush.xpose.msra.mxu0 0.0
    %3604 = vmatpush.xpose.msra.mxu0 0.0
    %3605 = vmatpush.xpose.msra.mxu0 0.0
    %3606 = vmatpush.xpose.msra.mxu0 0.0
    %3607 = vmatpush.xpose.msra.mxu0 0.0
    %3608 = vmatpush.xpose.msra.mxu0 0.0
    %3609 = vmatpush.xpose.msra.mxu0 0.0
    %3610 = vmatpush.xpose.msra.mxu0 0.0
    %3611 = vmatpush.xpose.msra.mxu0 0.0
    %3612 = vmatpush.xpose.msra.mxu0 0.0
    %3613 = vmatpush.xpose.msra.mxu0 %v3596
    %3614 = vmatmul.f32.gmra.mxu0 %v3594
    %v3615 = vpop.f32.mrf.mxu0
    %v3616 = vadd.f32 %v544, %v3615
    %3617 = vdwg.mxu0
    %v3618 = vsel %vm185, %v3582, 0
    %v3620 = vsel %vm185, %v3589, 0
    %3622 = vmatpush.xpose.msra.mxu0 0.0
    %3623 = vmatpush.xpose.msra.mxu0 0.0
    %3624 = vmatpush.xpose.msra.mxu0 0.0
    %3625 = vmatpush.xpose.msra.mxu0 0.0
    %3626 = vmatpush.xpose.msra.mxu0 0.0
    %3627 = vmatpush.xpose.msra.mxu0 0.0
    %3628 = vmatpush.xpose.msra.mxu0 0.0
    %3629 = vmatpush.xpose.msra.mxu0 0.0
    %3630 = vmatpush.xpose.msra.mxu0 0.0
    %3631 = vmatpush.xpose.msra.mxu0 0.0
    %3632 = vmatpush.xpose.msra.mxu0 0.0
    %3633 = vmatpush.xpose.msra.mxu0 0.0
    %3634 = vmatpush.xpose.msra.mxu0 0.0
    %3635 = vmatpush.xpose.msra.mxu0 0.0
    %3636 = vmatpush.xpose.msra.mxu0 0.0
    %3637 = vmatpush.xpose.msra.mxu0 %v3620
    %3638 = vmatmul.f32.gmra.mxu0 %v3618
    %v3639 = vpop.f32.mrf.mxu0
    %v3640 = vadd.f32 %v544, %v3639
    %3641 = vdwg.mxu0
    %v3642 = vsel %vm185, %v3584, 0
    %v3644 = vsel %vm185, %v3591, 0
    %3646 = vmatpush.xpose.msra.mxu0 0.0
    %3647 = vmatpush.xpose.msra.mxu0 0.0
    %3648 = vmatpush.xpose.msra.mxu0 0.0
    %3649 = vmatpush.xpose.msra.mxu0 0.0
    %3650 = vmatpush.xpose.msra.mxu0 0.0
    %3651 = vmatpush.xpose.msra.mxu0 0.0
    %3652 = vmatpush.xpose.msra.mxu0 0.0
    %3653 = vmatpush.xpose.msra.mxu0 0.0
    %3654 = vmatpush.xpose.msra.mxu0 0.0
    %3655 = vmatpush.xpose.msra.mxu0 0.0
    %3656 = vmatpush.xpose.msra.mxu0 0.0
    %3657 = vmatpush.xpose.msra.mxu0 0.0
    %3658 = vmatpush.xpose.msra.mxu0 0.0
    %3659 = vmatpush.xpose.msra.mxu0 0.0
    %3660 = vmatpush.xpose.msra.mxu0 0.0
    %3661 = vmatpush.xpose.msra.mxu0 %v3644
    %3662 = vmatmul.f32.gmra.mxu0 %v3642
    %v3663 = vpop.f32.mrf.mxu0
    %v3664 = vadd.f32 %v544, %v3663
    %3665 = vdwg.mxu0
    %v3666 = vsel %vm185, %v3586, 0
    %v3668 = vsel %vm185, %v3593, 0
    %3670 = vmatpush.xpose.msra.mxu0 0.0
    %3671 = vmatpush.xpose.msra.mxu0 0.0
    %3672 = vmatpush.xpose.msra.mxu0 0.0
    %3673 = vmatpush.xpose.msra.mxu0 0.0
    %3674 = vmatpush.xpose.msra.mxu0 0.0
    %3675 = vmatpush.xpose.msra.mxu0 0.0
    %3676 = vmatpush.xpose.msra.mxu0 0.0
    %3677 = vmatpush.xpose.msra.mxu0 0.0
    %3678 = vmatpush.xpose.msra.mxu0 0.0
    %3679 = vmatpush.xpose.msra.mxu0 0.0
    %3680 = vmatpush.xpose.msra.mxu0 0.0
    %3681 = vmatpush.xpose.msra.mxu0 0.0
    %3682 = vmatpush.xpose.msra.mxu0 0.0
    %3683 = vmatpush.xpose.msra.mxu0 0.0
    %3684 = vmatpush.xpose.msra.mxu0 0.0
    %3685 = vmatpush.xpose.msra.mxu0 %v3668
    %3686 = vmatmul.f32.gmra.mxu0 %v3666
    %v3687 = vpop.f32.mrf.mxu0
    %v3688 = vadd.f32 %v544, %v3687
    %3689 = vdwg.mxu0
    %v3690 = vsel %vm185, %v3616, -inf
    %3691 = vmax.xlane.f32.xlu0 %v3690
    %v3692 = vpop.xlane.xlu0 %3691
    %v3693 = vsel %vm185, %v3640, -inf
    %3694 = vmax.xlane.f32.xlu0 %v3693
    %v3695 = vpop.xlane.xlu0 %3694
    %v3696 = vsel %vm185, %v3664, -inf
    %3697 = vmax.xlane.f32.xlu0 %v3696
    %v3698 = vpop.xlane.xlu0 %3697
    %v3699 = vsel %vm185, %v3688, -inf
    %3700 = vmax.xlane.f32.xlu0 %v3699
    %v3701 = vpop.xlane.xlu0 %3700
    %v3702 = vsub.f32 %v3616, %v3692
    %v3703 = vsub.f32 %v3640, %v3695
    %v3704 = vsub.f32 %v3664, %v3698
    %v3705 = vsub.f32 %v3688, %v3701
    %v3706 = vmul.f32 %v3702, 1.442695
    %v3707 = vpow.pop %v3706
    %v3708 = vmul.f32 %v3703, 1.442695
    %v3709 = vpow.pop %v3708
    %v3710 = vmul.f32 %v3704, 1.442695
    %v3711 = vpow.pop %v3710
    %v3712 = vmul.f32 %v3705, 1.442695
    %v3713 = vpow.pop %v3712
    %v3714 = vsel %vm185, %v3707, 0.0
    %3715 = vadd.xlane.f32.xlu0 %v3714
    %v3716 = vpop.xlane.xlu0 %3715
    %v3717 = vsel %vm185, %v3709, 0.0
    %3718 = vadd.xlane.f32.xlu0 %v3717
    %v3719 = vpop.xlane.xlu0 %3718
    %v3720 = vsel %vm185, %v3711, 0.0
    %3721 = vadd.xlane.f32.xlu0 %v3720
    %v3722 = vpop.xlane.xlu0 %3721
    %v3723 = vsel %vm185, %v3713, 0.0
    %3724 = vadd.xlane.f32.xlu0 %v3723
    %v3725 = vpop.xlane.xlu0 %3724
    %v3726 = vrcp.pop %v3716
    %v3727 = vrcp.pop %v3719
    %v3728 = vrcp.pop %v3722
    %v3729 = vrcp.pop %v3725
    %v3730 = vmul.f32 %v3707, %v3726
    %v3731 = vmul.f32 %v3709, %v3727
    %v3732 = vmul.f32 %v3711, %v3728
    %v3733 = vmul.f32 %v3713, %v3729
    %3734 = vrot.lane.b32.xlu0 %v3214, 96
    %v3735 = vpop.permute.xlu0 %3734
    %v3738 = vsel %vm185, %v3730, 0
    %3740 = vmatpush.msra.mxu0 0.0
    %3741 = vmatpush.msra.mxu0 0.0
    %3742 = vmatpush.msra.mxu0 0.0
    %3743 = vmatpush.msra.mxu0 0.0
    %3744 = vmatpush.msra.mxu0 0.0
    %3745 = vmatpush.msra.mxu0 0.0
    %3746 = vmatpush.msra.mxu0 0.0
    %3747 = vmatpush.msra.mxu0 0.0
    %3748 = vmatpush.msra.mxu0 0.0
    %3749 = vmatpush.msra.mxu0 0.0
    %3750 = vmatpush.msra.mxu0 0.0
    %3751 = vmatpush.msra.mxu0 0.0
    %3752 = vmatpush.msra.mxu0 0.0
    %3753 = vmatpush.msra.mxu0 0.0
    %3754 = vmatpush.msra.mxu0 0.0
    %3755 = vmatpush.msra.mxu0 %v3735
    %3756 = vmatmul.f32.gmra.mxu0 %v3738
    %v3757 = vpop.f32.mrf.mxu0
    %v3758 = vadd.f32 0.0, %v3757
    %3759 = vdwg.mxu0
    %3760 = vrot.lane.b32.xlu0 %v3589, 96
    %v3761 = vpop.permute.xlu0 %3760
    %v3764 = vsel %vm185, %v3731, 0
    %3766 = vmatpush.msra.mxu0 0.0
    %3767 = vmatpush.msra.mxu0 0.0
    %3768 = vmatpush.msra.mxu0 0.0
    %3769 = vmatpush.msra.mxu0 0.0
    %3770 = vmatpush.msra.mxu0 0.0
    %3771 = vmatpush.msra.mxu0 0.0
    %3772 = vmatpush.msra.mxu0 0.0
    %3773 = vmatpush.msra.mxu0 0.0
    %3774 = vmatpush.msra.mxu0 0.0
    %3775 = vmatpush.msra.mxu0 0.0
    %3776 = vmatpush.msra.mxu0 0.0
    %3777 = vmatpush.msra.mxu0 0.0
    %3778 = vmatpush.msra.mxu0 0.0
    %3779 = vmatpush.msra.mxu0 0.0
    %3780 = vmatpush.msra.mxu0 0.0
    %3781 = vmatpush.msra.mxu0 %v3761
    %3782 = vmatmul.f32.gmra.mxu0 %v3764
    %v3783 = vpop.f32.mrf.mxu0
    %v3784 = vadd.f32 0.0, %v3783
    %3785 = vdwg.mxu0
    %3786 = vrot.lane.b32.xlu0 %v3591, 96
    %v3787 = vpop.permute.xlu0 %3786
    %v3790 = vsel %vm185, %v3732, 0
    %3792 = vmatpush.msra.mxu0 0.0
    %3793 = vmatpush.msra.mxu0 0.0
    %3794 = vmatpush.msra.mxu0 0.0
    %3795 = vmatpush.msra.mxu0 0.0
    %3796 = vmatpush.msra.mxu0 0.0
    %3797 = vmatpush.msra.mxu0 0.0
    %3798 = vmatpush.msra.mxu0 0.0
    %3799 = vmatpush.msra.mxu0 0.0
    %3800 = vmatpush.msra.mxu0 0.0
    %3801 = vmatpush.msra.mxu0 0.0
    %3802 = vmatpush.msra.mxu0 0.0
    %3803 = vmatpush.msra.mxu0 0.0
    %3804 = vmatpush.msra.mxu0 0.0
    %3805 = vmatpush.msra.mxu0 0.0
    %3806 = vmatpush.msra.mxu0 0.0
    %3807 = vmatpush.msra.mxu0 %v3787
    %3808 = vmatmul.f32.gmra.mxu0 %v3790
    %v3809 = vpop.f32.mrf.mxu0
    %v3810 = vadd.f32 0.0, %v3809
    %3811 = vdwg.mxu0
    %3812 = vrot.lane.b32.xlu0 %v3593, 96
    %v3813 = vpop.permute.xlu0 %3812
    %v3816 = vsel %vm185, %v3733, 0
    %3818 = vmatpush.msra.mxu0 0.0
    %3819 = vmatpush.msra.mxu0 0.0
    %3820 = vmatpush.msra.mxu0 0.0
    %3821 = vmatpush.msra.mxu0 0.0
    %3822 = vmatpush.msra.mxu0 0.0
    %3823 = vmatpush.msra.mxu0 0.0
    %3824 = vmatpush.msra.mxu0 0.0
    %3825 = vmatpush.msra.mxu0 0.0
    %3826 = vmatpush.msra.mxu0 0.0
    %3827 = vmatpush.msra.mxu0 0.0
    %3828 = vmatpush.msra.mxu0 0.0
    %3829 = vmatpush.msra.mxu0 0.0
    %3830 = vmatpush.msra.mxu0 0.0
    %3831 = vmatpush.msra.mxu0 0.0
    %3832 = vmatpush.msra.mxu0 0.0
    %3833 = vmatpush.msra.mxu0 %v3813
    %3834 = vmatmul.f32.gmra.mxu0 %v3816
    %v3835 = vpop.f32.mrf.mxu0
    %v3836 = vadd.f32 0.0, %v3835
    %3837 = vdwg.mxu0
    %v3839 = vsel %vm185, %v3758, 0
    %3841 = vmatpush.msra.mxu0 0.0
    %3842 = vmatpush.msra.mxu0 0.0
    %3843 = vmatpush.msra.mxu0 0.0
    %3844 = vmatpush.msra.mxu0 0.0
    %3845 = vmatpush.msra.mxu0 0.0
    %3846 = vmatpush.msra.mxu0 0.0
    %3847 = vmatpush.msra.mxu0 0.0
    %3848 = vmatpush.msra.mxu0 0.0
    %3849 = vmatpush.msra.mxu0 0.0
    %3850 = vmatpush.msra.mxu0 0.0
    %3851 = vmatpush.msra.mxu0 0.0
    %3852 = vmatpush.msra.mxu0 0.0
    %3853 = vmatpush.msra.mxu0 0.0
    %3854 = vmatpush.msra.mxu0 0.0
    %3855 = vmatpush.msra.mxu0 0.0
    %3856 = vmatpush.msra.mxu0 %v3216
    %3857 = vmatmul.f32.gmra.mxu0 %v3839
    %v3858 = vpop.f32.mrf.mxu0
    %v3859 = vadd.f32 0.0, %v3858
    %3860 = vdwg.mxu0
    %v3862 = vsel %vm185, %v3784, 0
    %3864 = vmatpush.msra.mxu0 0.0
    %3865 = vmatpush.msra.mxu0 0.0
    %3866 = vmatpush.msra.mxu0 0.0
    %3867 = vmatpush.msra.mxu0 0.0
    %3868 = vmatpush.msra.mxu0 0.0
    %3869 = vmatpush.msra.mxu0 0.0
    %3870 = vmatpush.msra.mxu0 0.0
    %3871 = vmatpush.msra.mxu0 0.0
    %3872 = vmatpush.msra.mxu0 0.0
    %3873 = vmatpush.msra.mxu0 0.0
    %3874 = vmatpush.msra.mxu0 0.0
    %3875 = vmatpush.msra.mxu0 0.0
    %3876 = vmatpush.msra.mxu0 0.0
    %3877 = vmatpush.msra.mxu0 0.0
    %3878 = vmatpush.msra.mxu0 0.0
    %3879 = vmatpush.msra.mxu0 %v3217
    %3880 = vmatmul.f32.gmra.mxu0 %v3862
    %v3881 = vpop.f32.mrf.mxu0
    %v3882 = vadd.f32 0.0, %v3881
    %3883 = vdwg.mxu0
    %v3885 = vsel %vm185, %v3810, 0
    %3887 = vmatpush.msra.mxu0 0.0
    %3888 = vmatpush.msra.mxu0 0.0
    %3889 = vmatpush.msra.mxu0 0.0
    %3890 = vmatpush.msra.mxu0 0.0
    %3891 = vmatpush.msra.mxu0 0.0
    %3892 = vmatpush.msra.mxu0 0.0
    %3893 = vmatpush.msra.mxu0 0.0
    %3894 = vmatpush.msra.mxu0 0.0
    %3895 = vmatpush.msra.mxu0 0.0
    %3896 = vmatpush.msra.mxu0 0.0
    %3897 = vmatpush.msra.mxu0 0.0
    %3898 = vmatpush.msra.mxu0 0.0
    %3899 = vmatpush.msra.mxu0 0.0
    %3900 = vmatpush.msra.mxu0 0.0
    %3901 = vmatpush.msra.mxu0 0.0
    %3902 = vmatpush.msra.mxu0 %v3218
    %3903 = vmatmul.f32.gmra.mxu0 %v3885
    %v3904 = vpop.f32.mrf.mxu0
    %v3905 = vadd.f32 0.0, %v3904
    %3906 = vdwg.mxu0
    %v3908 = vsel %vm185, %v3836, 0
    %3910 = vmatpush.msra.mxu0 0.0
    %3911 = vmatpush.msra.mxu0 0.0
    %3912 = vmatpush.msra.mxu0 0.0
    %3913 = vmatpush.msra.mxu0 0.0
    %3914 = vmatpush.msra.mxu0 0.0
    %3915 = vmatpush.msra.mxu0 0.0
    %3916 = vmatpush.msra.mxu0 0.0
    %3917 = vmatpush.msra.mxu0 0.0
    %3918 = vmatpush.msra.mxu0 0.0
    %3919 = vmatpush.msra.mxu0 0.0
    %3920 = vmatpush.msra.mxu0 0.0
    %3921 = vmatpush.msra.mxu0 0.0
    %3922 = vmatpush.msra.mxu0 0.0
    %3923 = vmatpush.msra.mxu0 0.0
    %3924 = vmatpush.msra.mxu0 0.0
    %3925 = vmatpush.msra.mxu0 %v3219
    %3926 = vmatmul.f32.gmra.mxu0 %v3908
    %v3927 = vpop.f32.mrf.mxu0
    %v3928 = vadd.f32 0.0, %v3927
    %3929 = vdwg.mxu0
    %v3930 = vsel %vm36, %v3859, 0.0
    %v3931 = vsel %vm36, %v3882, 0.0
    %v3932 = vadd.f32 %v3930, %v3931
    %v3933 = vsel %vm36, %v3905, 0.0
    %v3934 = vadd.f32 %v3932, %v3933
    %v3935 = vsel %vm36, %v3928, 0.0
    %v3936 = vadd.f32 %v3934, %v3935
    %v3937 = vadd.f32 %v3936, %v3578
    %3940 = vrot.lane.b32.xlu0 %v3579, 32
    %v3941 = vpop.permute.xlu0 %3940
    %3942 = vrot.lane.b32.xlu0 %v3937, 32
    %v3943 = vpop.permute.xlu0 %3942
    %v3946 = vadd.f32 %v3036, %v3941
    %v3947 = vadd.f32 %v3037, %v3943
    %3950 = vrot.lane.b32.xlu0 %v3946, 96
    %v3951 = vpop.permute.xlu0 %3950
    %3952 = vrot.lane.b32.xlu0 %v3947, 96
    %v3953 = vpop.permute.xlu0 %3952
    %v3956 = vsel %vm36, %v3951, 0.0
    %3957 = vadd.xlane.f32.xlu0 %v3956
    %v3958 = vpop.xlane.xlu0 %3957
    %v3959 = vsel %vm36, %v3953, 0.0
    %3960 = vadd.xlane.f32.xlu0 %v3959
    %v3961 = vpop.xlane.xlu0 %3960
    %v3962 = vmul.f32 %v3958, %v49
    %v3963 = vmul.f32 %v3961, %v49
    %v3964 = vsub.f32 %v3946, %v3962
    %v3965 = vsub.f32 %v3947, %v3963
    %v3966 = vmul.f32 %v3964, %v3964
    %v3967 = vmul.f32 %v3965, %v3965
    %3970 = vrot.lane.b32.xlu0 %v3966, 96
    %v3971 = vpop.permute.xlu0 %3970
    %3972 = vrot.lane.b32.xlu0 %v3967, 96
    %v3973 = vpop.permute.xlu0 %3972
    %v3976 = vsel %vm36, %v3971, 0.0
    %3977 = vadd.xlane.f32.xlu0 %v3976
    %v3978 = vpop.xlane.xlu0 %3977
    %v3979 = vsel %vm36, %v3973, 0.0
    %3980 = vadd.xlane.f32.xlu0 %v3979
    %v3981 = vpop.xlane.xlu0 %3980
    %v3982 = vmul.f32 %v3978, %v68
    %v3983 = vmul.f32 %v3981, %v68
    %v3984 = vrsqrt.pop %v3982
    %v3985 = vmul.f32 %v3984, %v3982
    %v3986 = vmul.f32 %v3985, %v3984
    %v3987 = vmul.f32 0.5, %v3986
    %v3988 = vsub.f32 1.5, %v3987
    %v3989 = vmul.f32 %v3984, %v3988
    %v3990 = vmul.f32 %v3982, %v3989
    %vm3991 = vcmp.eq.f32.partialorder %v3982, inf
    %v3992 = vsel %vm3991, %v3982, %v3990
    %vm3993 = vcmp.eq.f32.partialorder %v3982, 0.0
    %v3994 = vand.u32 %v3982, 2147483648
    %v3995 = vsel %vm3993, %v3994, %v3992
    %v3996 = vrsqrt.pop %v3983
    %v3997 = vmul.f32 %v3996, %v3983
    %v3998 = vmul.f32 %v3997, %v3996
    %v3999 = vmul.f32 0.5, %v3998
    %v4000 = vsub.f32 1.5, %v3999
    %v4001 = vmul.f32 %v3996, %v4000
    %v4002 = vmul.f32 %v3983, %v4001
    %vm4003 = vcmp.eq.f32.partialorder %v3983, inf
    %v4004 = vsel %vm4003, %v3983, %v4002
    %vm4005 = vcmp.eq.f32.partialorder %v3983, 0.0
    %v4006 = vand.u32 %v3983, 2147483648
    %v4007 = vsel %vm4005, %v4006, %v4004
    %v4008 = vld [vmem:[%s3 + $0x1b] sm:$0x1]
    %v4009 = vperm.slane %v4008, 0
    %4012 = vrot.lane.b32.xlu0 %v3964, 96
    %v4013 = vpop.permute.xlu0 %4012
    %4014 = vrot.lane.b32.xlu0 %v3965, 96
    %v4015 = vpop.permute.xlu0 %4014
    %v4018 = vmul.f32 %v4009, %v4013
    %v4019 = vmul.f32 %v4009, %v4015
    %v4020 = vadd.f32 %v3995, 1e-06
    %v4021 = vadd.f32 %v4007, 1e-06
    %v4022 = vrcp.pop %v4020
    %v4023 = vmul.f32 %v4020, %v4022
    %v4024 = vsub.f32 1.0, %v4023
    %v4025 = vmul.f32 %v4022, %v4024
    %v4026 = vadd.f32 %v4022, %v4025
    %vm4027 = vweird.f32 %v4020
    %vm4028 = vweird.f32 %v4022
    %vm4029 = vmor %vm4027, %vm4028
    %v4030 = vsel %vm4029, %v4022, %v4026
    %v4031 = vand.u32 2147483647, %v4020
    %vm4032 = vcmp.eq.f32.partialorder %v4031, 8.507059e+37
    %v4033 = vand.u32 %v4020, 2147483648
    %v4034 = vor.u32 1.1754944e-38, %v4033
    %v4035 = vsel %vm4032, %v4034, %v4030
    %v4036 = vmul.f32 %v4018, %v4035
    %v4037 = vrcp.pop %v4021
    %v4038 = vmul.f32 %v4021, %v4037
    %v4039 = vsub.f32 1.0, %v4038
    %v4040 = vmul.f32 %v4037, %v4039
    %v4041 = vadd.f32 %v4037, %v4040
    %vm4042 = vweird.f32 %v4021
    %vm4043 = vweird.f32 %v4037
    %vm4044 = vmor %vm4042, %vm4043
    %v4045 = vsel %vm4044, %v4037, %v4041
    %v4046 = vand.u32 2147483647, %v4021
    %vm4047 = vcmp.eq.f32.partialorder %v4046, 8.507059e+37
    %v4048 = vand.u32 %v4021, 2147483648
    %v4049 = vor.u32 1.1754944e-38, %v4048
    %v4050 = vsel %vm4047, %v4049, %v4045
    %v4051 = vmul.f32 %v4019, %v4050
    %v4052 = vld [vmem:[%s3 + $0x1c] sm:$0x1]
    %v4053 = vperm.slane %v4052, 0
    %v4054 = vadd.f32 %v4036, %v4053
    %v4055 = vadd.f32 %v4051, %v4053
    %v4056 = vld [vmem:[#allocation2 + $0x1e0] sm:$0xff]
    %v4057 = vld [vmem:[#allocation2 + $0x1e8] sm:$0xff]
    %v4058 = vld [vmem:[#allocation2 + $0x1f0] sm:$0xff]
    %v4059 = vld [vmem:[#allocation2 + $0x1f8] sm:$0xff]
    %v4060 = vld [vmem:[%s3 + $0x1d] sm:$0x1]
    %v4061 = vperm.slane %v4060, 0
    %v4063 = vsel %vm36, %v4054, 0
    %v4066 = vsel %vm36, %v4055, 0
    %4068 = vmatpush.msra.mxu0 0.0
    %4069 = vmatpush.msra.mxu0 0.0
    %4070 = vmatpush.msra.mxu0 0.0
    %4071 = vmatpush.msra.mxu0 0.0
    %4072 = vmatpush.msra.mxu0 0.0
    %4073 = vmatpush.msra.mxu0 0.0
    %4074 = vmatpush.msra.mxu0 0.0
    %4075 = vmatpush.msra.mxu0 0.0
    %4076 = vmatpush.msra.mxu0 0.0
    %4077 = vmatpush.msra.mxu0 0.0
    %4078 = vmatpush.msra.mxu0 0.0
    %4079 = vmatpush.msra.mxu0 0.0
    %4080 = vmatpush.msra.mxu0 %v4059
    %4081 = vmatpush.msra.mxu0 %v4058
    %4082 = vmatpush.msra.mxu0 %v4057
    %4083 = vmatpush.msra.mxu0 %v4056
    %4084 = vmatmul.f32.gmra.mxu0 %v4063
    %v4085 = vpop.f32.mrf.mxu0
    %v4086 = vadd.f32 %v4061, %v4085
    %4087 = vmatmul.f32.gmra.mxu0 %v4066
    %v4088 = vpop.f32.mrf.mxu0
    %v4089 = vadd.f32 %v4061, %v4088
    %4090 = vdwg.mxu0
    %v4091 = vmax.f32 %v4086, 0.0
    %v4092 = vmax.f32 %v4089, 0.0
    %v4093 = vld [vmem:[#allocation2 + $0x200] sm:$0xff]
    %v4094 = vld [vmem:[#allocation2 + $0x208] sm:$0xff]
    %v4095 = vld [vmem:[#allocation2 + $0x210] sm:$0xff]
    %v4096 = vld [vmem:[#allocation2 + $0x218] sm:$0xff]
    %v4097 = vld [vmem:[#allocation2 + $0x220] sm:$0xff]
    %v4098 = vld [vmem:[#allocation2 + $0x228] sm:$0xff]
    %v4099 = vld [vmem:[#allocation2 + $0x230] sm:$0xff]
    %v4100 = vld [vmem:[#allocation2 + $0x238] sm:$0xff]
    %v4101 = vld [vmem:[%s3 + $0x1e] sm:$0x1]
    %v4102 = vperm.slane %v4101, 0
    %v4104 = vsel %vm1030, %v4091, 0
    %v4107 = vsel %vm1030, %v4092, 0
    %4109 = vmatpush.msra.mxu0 0.0
    %4110 = vmatpush.msra.mxu0 0.0
    %4111 = vmatpush.msra.mxu0 0.0
    %4112 = vmatpush.msra.mxu0 0.0
    %4113 = vmatpush.msra.mxu0 0.0
    %4114 = vmatpush.msra.mxu0 0.0
    %4115 = vmatpush.msra.mxu0 0.0
    %4116 = vmatpush.msra.mxu0 0.0
    %4117 = vmatpush.msra.mxu0 %v4100
    %4118 = vmatpush.msra.mxu0 %v4099
    %4119 = vmatpush.msra.mxu0 %v4098
    %4120 = vmatpush.msra.mxu0 %v4097
    %4121 = vmatpush.msra.mxu0 %v4096
    %4122 = vmatpush.msra.mxu0 %v4095
    %4123 = vmatpush.msra.mxu0 %v4094
    %4124 = vmatpush.msra.mxu0 %v4093
    %4125 = vmatmul.f32.gmra.mxu0 %v4104
    %v4126 = vpop.f32.mrf.mxu0
    %v4127 = vadd.f32 %v4102, %v4126
    %4128 = vmatmul.f32.gmra.mxu0 %v4107
    %v4129 = vpop.f32.mrf.mxu0
    %v4130 = vadd.f32 %v4102, %v4129
    %4131 = vdwg.mxu0
    %4134 = vrot.lane.b32.xlu0 %v4127, 32
    %v4135 = vpop.permute.xlu0 %4134
    %4136 = vrot.lane.b32.xlu0 %v4130, 32
    %v4137 = vpop.permute.xlu0 %4136
    %v4140 = vadd.f32 %v3946, %v4135
    %v4141 = vadd.f32 %v3947, %v4137
    %4144 = vrot.lane.b32.xlu0 %v4140, 96
    %v4145 = vpop.permute.xlu0 %4144
    %4146 = vrot.lane.b32.xlu0 %v4141, 96
    %v4147 = vpop.permute.xlu0 %4146
    %v4150 = vsel %vm36, %v4145, 0.0
    %4151 = vadd.xlane.f32.xlu0 %v4150
    %v4152 = vpop.xlane.xlu0 %4151
    %v4153 = vsel %vm36, %v4147, 0.0
    %4154 = vadd.xlane.f32.xlu0 %v4153
    %v4155 = vpop.xlane.xlu0 %4154
    %v4156 = vmul.f32 %v4152, %v49
    %v4157 = vmul.f32 %v4155, %v49
    %v4158 = vsub.f32 %v4140, %v4156
    %v4159 = vsub.f32 %v4141, %v4157
    %v4160 = vmul.f32 %v4158, %v4158
    %v4161 = vmul.f32 %v4159, %v4159
    %4164 = vrot.lane.b32.xlu0 %v4160, 96
    %v4165 = vpop.permute.xlu0 %4164
    %4166 = vrot.lane.b32.xlu0 %v4161, 96
    %v4167 = vpop.permute.xlu0 %4166
    %v4170 = vsel %vm36, %v4165, 0.0
    %4171 = vadd.xlane.f32.xlu0 %v4170
    %v4172 = vpop.xlane.xlu0 %4171
    %v4173 = vsel %vm36, %v4167, 0.0
    %4174 = vadd.xlane.f32.xlu0 %v4173
    %v4175 = vpop.xlane.xlu0 %4174
    %v4176 = vmul.f32 %v4172, %v68
    %v4177 = vmul.f32 %v4175, %v68
    %v4178 = vrsqrt.pop %v4176
    %v4179 = vmul.f32 %v4178, %v4176
    %v4180 = vmul.f32 %v4179, %v4178
    %v4181 = vmul.f32 0.5, %v4180
    %v4182 = vsub.f32 1.5, %v4181
    %v4183 = vmul.f32 %v4178, %v4182
    %v4184 = vmul.f32 %v4176, %v4183
    %vm4185 = vcmp.eq.f32.partialorder %v4176, inf
    %v4186 = vsel %vm4185, %v4176, %v4184
    %vm4187 = vcmp.eq.f32.partialorder %v4176, 0.0
    %v4188 = vand.u32 %v4176, 2147483648
    %v4189 = vsel %vm4187, %v4188, %v4186
    %v4190 = vrsqrt.pop %v4177
    %v4191 = vmul.f32 %v4190, %v4177
    %v4192 = vmul.f32 %v4191, %v4190
    %v4193 = vmul.f32 0.5, %v4192
    %v4194 = vsub.f32 1.5, %v4193
    %v4195 = vmul.f32 %v4190, %v4194
    %v4196 = vmul.f32 %v4177, %v4195
    %vm4197 = vcmp.eq.f32.partialorder %v4177, inf
    %v4198 = vsel %vm4197, %v4177, %v4196
    %vm4199 = vcmp.eq.f32.partialorder %v4177, 0.0
    %v4200 = vand.u32 %v4177, 2147483648
    %v4201 = vsel %vm4199, %v4200, %v4198
    %v4202 = vld [vmem:[%s3 + $0x1f] sm:$0x1]
    %v4203 = vperm.slane %v4202, 0
    %4206 = vrot.lane.b32.xlu0 %v4158, 96
    %v4207 = vpop.permute.xlu0 %4206
    %4208 = vrot.lane.b32.xlu0 %v4159, 96
    %v4209 = vpop.permute.xlu0 %4208
    %v4212 = vmul.f32 %v4203, %v4207
    %v4213 = vmul.f32 %v4203, %v4209
    %v4214 = vadd.f32 %v4189, 1e-06
    %v4215 = vadd.f32 %v4201, 1e-06
    %v4216 = vrcp.pop %v4214
    %v4217 = vmul.f32 %v4214, %v4216
    %v4218 = vsub.f32 1.0, %v4217
    %v4219 = vmul.f32 %v4216, %v4218
    %v4220 = vadd.f32 %v4216, %v4219
    %vm4221 = vweird.f32 %v4214
    %vm4222 = vweird.f32 %v4216
    %vm4223 = vmor %vm4221, %vm4222
    %v4224 = vsel %vm4223, %v4216, %v4220
    %v4225 = vand.u32 2147483647, %v4214
    %vm4226 = vcmp.eq.f32.partialorder %v4225, 8.507059e+37
    %v4227 = vand.u32 %v4214, 2147483648
    %v4228 = vor.u32 1.1754944e-38, %v4227
    %v4229 = vsel %vm4226, %v4228, %v4224
    %v4230 = vmul.f32 %v4212, %v4229
    %v4231 = vrcp.pop %v4215
    %v4232 = vmul.f32 %v4215, %v4231
    %v4233 = vsub.f32 1.0, %v4232
    %v4234 = vmul.f32 %v4231, %v4233
    %v4235 = vadd.f32 %v4231, %v4234
    %vm4236 = vweird.f32 %v4215
    %vm4237 = vweird.f32 %v4231
    %vm4238 = vmor %vm4236, %vm4237
    %v4239 = vsel %vm4238, %v4231, %v4235
    %v4240 = vand.u32 2147483647, %v4215
    %vm4241 = vcmp.eq.f32.partialorder %v4240, 8.507059e+37
    %v4242 = vand.u32 %v4215, 2147483648
    %v4243 = vor.u32 1.1754944e-38, %v4242
    %v4244 = vsel %vm4241, %v4243, %v4239
    %v4245 = vmul.f32 %v4213, %v4244
    %v4246 = vld [vmem:[%s3 + $0x20] sm:$0x1]
    %v4247 = vperm.slane %v4246, 0
    %v4248 = vadd.f32 %v4230, %v4247
    %v4249 = vadd.f32 %v4245, %v4247
    %v4250 = vld [vmem:[#allocation2 + $0x240] sm:$0xff]
    %v4251 = vld [vmem:[#allocation2 + $0x248] sm:$0xff]
    %v4252 = vld [vmem:[#allocation2 + $0x250] sm:$0xff]
    %v4253 = vld [vmem:[#allocation2 + $0x258] sm:$0xff]
    %v4254 = vld [vmem:[%s3 + $0x21] sm:$0x1]
    %v4255 = vperm.slane %v4254, 0
    %v4257 = vsel %vm36, %v4248, 0
    %v4260 = vsel %vm36, %v4249, 0
    %4262 = vmatpush.msra.mxu0 0.0
    %4263 = vmatpush.msra.mxu0 0.0
    %4264 = vmatpush.msra.mxu0 0.0
    %4265 = vmatpush.msra.mxu0 0.0
    %4266 = vmatpush.msra.mxu0 0.0
    %4267 = vmatpush.msra.mxu0 0.0
    %4268 = vmatpush.msra.mxu0 0.0
    %4269 = vmatpush.msra.mxu0 0.0
    %4270 = vmatpush.msra.mxu0 0.0
    %4271 = vmatpush.msra.mxu0 0.0
    %4272 = vmatpush.msra.mxu0 0.0
    %4273 = vmatpush.msra.mxu0 0.0
    %4274 = vmatpush.msra.mxu0 %v4253
    %4275 = vmatpush.msra.mxu0 %v4252
    %4276 = vmatpush.msra.mxu0 %v4251
    %4277 = vmatpush.msra.mxu0 %v4250
    %4278 = vmatmul.f32.gmra.mxu0 %v4257
    %v4279 = vpop.f32.mrf.mxu0
    %v4280 = vadd.f32 %v4255, %v4279
    %4281 = vmatmul.f32.gmra.mxu0 %v4260
    %v4282 = vpop.f32.mrf.mxu0
    %v4283 = vadd.f32 %v4255, %v4282
    %4284 = vdwg.mxu0
    %v4285 = vld [vmem:[#allocation2 + $0x260] sm:$0xff]
    %v4286 = vld [vmem:[#allocation2 + $0x268] sm:$0xff]
    %v4287 = vld [vmem:[#allocation2 + $0x270] sm:$0xff]
    %v4288 = vld [vmem:[#allocation2 + $0x278] sm:$0xff]
    %v4289 = vld [vmem:[%s3 + $0x22] sm:$0x1]
    %4291 = vrot.lane.b32.xlu0 %v4280, 120
    %v4292 = vpop.permute.xlu0 %4291
    %4293 = vrot.lane.b32.xlu0 %v4280, 112
    %v4294 = vpop.permute.xlu0 %4293
    %4295 = vrot.lane.b32.xlu0 %v4280, 104
    %v4296 = vpop.permute.xlu0 %4295
    %4297 = vrot.lane.b32.xlu0 %v4280, 96
    %v4298 = vpop.permute.xlu0 %4297
    %v4299 = vsel %vm185, %v4280, 0
    %v4301 = vsel %vm185, %v4298, 0
    %4303 = vmatpush.xpose.msra.mxu0 0.0
    %4304 = vmatpush.xpose.msra.mxu0 0.0
    %4305 = vmatpush.xpose.msra.mxu0 0.0
    %4306 = vmatpush.xpose.msra.mxu0 0.0
    %4307 = vmatpush.xpose.msra.mxu0 0.0
    %4308 = vmatpush.xpose.msra.mxu0 0.0
    %4309 = vmatpush.xpose.msra.mxu0 0.0
    %4310 = vmatpush.xpose.msra.mxu0 0.0
    %4311 = vmatpush.xpose.msra.mxu0 0.0
    %4312 = vmatpush.xpose.msra.mxu0 0.0
    %4313 = vmatpush.xpose.msra.mxu0 0.0
    %4314 = vmatpush.xpose.msra.mxu0 0.0
    %4315 = vmatpush.xpose.msra.mxu0 0.0
    %4316 = vmatpush.xpose.msra.mxu0 0.0
    %4317 = vmatpush.xpose.msra.mxu0 0.0
    %4318 = vmatpush.xpose.msra.mxu0 %v4301
    %4319 = vmatmul.f32.gmra.mxu0 %v4299
    %v4320 = vpop.f32.mrf.mxu0
    %v4321 = vadd.f32 %v2312, %v4320
    %4322 = vdwg.mxu0
    %4323 = vrot.lane.b32.xlu0 %v4292, 96
    %v4324 = vpop.permute.xlu0 %4323
    %v4325 = vsel %vm185, %v4292, 0
    %v4327 = vsel %vm185, %v4324, 0
    %4329 = vmatpush.xpose.msra.mxu0 0.0
    %4330 = vmatpush.xpose.msra.mxu0 0.0
    %4331 = vmatpush.xpose.msra.mxu0 0.0
    %4332 = vmatpush.xpose.msra.mxu0 0.0
    %4333 = vmatpush.xpose.msra.mxu0 0.0
    %4334 = vmatpush.xpose.msra.mxu0 0.0
    %4335 = vmatpush.xpose.msra.mxu0 0.0
    %4336 = vmatpush.xpose.msra.mxu0 0.0
    %4337 = vmatpush.xpose.msra.mxu0 0.0
    %4338 = vmatpush.xpose.msra.mxu0 0.0
    %4339 = vmatpush.xpose.msra.mxu0 0.0
    %4340 = vmatpush.xpose.msra.mxu0 0.0
    %4341 = vmatpush.xpose.msra.mxu0 0.0
    %4342 = vmatpush.xpose.msra.mxu0 0.0
    %4343 = vmatpush.xpose.msra.mxu0 0.0
    %4344 = vmatpush.xpose.msra.mxu0 %v4327
    %4345 = vmatmul.f32.gmra.mxu0 %v4325
    %v4346 = vpop.f32.mrf.mxu0
    %v4347 = vadd.f32 %v2312, %v4346
    %4348 = vdwg.mxu0
    %4349 = vrot.lane.b32.xlu0 %v4294, 96
    %v4350 = vpop.permute.xlu0 %4349
    %v4351 = vsel %vm185, %v4294, 0
    %v4353 = vsel %vm185, %v4350, 0
    %4355 = vmatpush.xpose.msra.mxu0 0.0
    %4356 = vmatpush.xpose.msra.mxu0 0.0
    %4357 = vmatpush.xpose.msra.mxu0 0.0
    %4358 = vmatpush.xpose.msra.mxu0 0.0
    %4359 = vmatpush.xpose.msra.mxu0 0.0
    %4360 = vmatpush.xpose.msra.mxu0 0.0
    %4361 = vmatpush.xpose.msra.mxu0 0.0
    %4362 = vmatpush.xpose.msra.mxu0 0.0
    %4363 = vmatpush.xpose.msra.mxu0 0.0
    %4364 = vmatpush.xpose.msra.mxu0 0.0
    %4365 = vmatpush.xpose.msra.mxu0 0.0
    %4366 = vmatpush.xpose.msra.mxu0 0.0
    %4367 = vmatpush.xpose.msra.mxu0 0.0
    %4368 = vmatpush.xpose.msra.mxu0 0.0
    %4369 = vmatpush.xpose.msra.mxu0 0.0
    %4370 = vmatpush.xpose.msra.mxu0 %v4353
    %4371 = vmatmul.f32.gmra.mxu0 %v4351
    %v4372 = vpop.f32.mrf.mxu0
    %v4373 = vadd.f32 %v2312, %v4372
    %4374 = vdwg.mxu0
    %4375 = vrot.lane.b32.xlu0 %v4296, 96
    %v4376 = vpop.permute.xlu0 %4375
    %v4377 = vsel %vm185, %v4296, 0
    %v4379 = vsel %vm185, %v4376, 0
    %4381 = vmatpush.xpose.msra.mxu0 0.0
    %4382 = vmatpush.xpose.msra.mxu0 0.0
    %4383 = vmatpush.xpose.msra.mxu0 0.0
    %4384 = vmatpush.xpose.msra.mxu0 0.0
    %4385 = vmatpush.xpose.msra.mxu0 0.0
    %4386 = vmatpush.xpose.msra.mxu0 0.0
    %4387 = vmatpush.xpose.msra.mxu0 0.0
    %4388 = vmatpush.xpose.msra.mxu0 0.0
    %4389 = vmatpush.xpose.msra.mxu0 0.0
    %4390 = vmatpush.xpose.msra.mxu0 0.0
    %4391 = vmatpush.xpose.msra.mxu0 0.0
    %4392 = vmatpush.xpose.msra.mxu0 0.0
    %4393 = vmatpush.xpose.msra.mxu0 0.0
    %4394 = vmatpush.xpose.msra.mxu0 0.0
    %4395 = vmatpush.xpose.msra.mxu0 0.0
    %4396 = vmatpush.xpose.msra.mxu0 %v4379
    %4397 = vmatmul.f32.gmra.mxu0 %v4377
    %v4398 = vpop.f32.mrf.mxu0
    %v4399 = vadd.f32 %v2312, %v4398
    %4400 = vdwg.mxu0
    %v4401 = vsel %vm185, %v4321, -inf
    %4402 = vmax.xlane.f32.xlu0 %v4401
    %v4403 = vpop.xlane.xlu0 %4402
    %v4404 = vsel %vm185, %v4347, -inf
    %4405 = vmax.xlane.f32.xlu0 %v4404
    %v4406 = vpop.xlane.xlu0 %4405
    %v4407 = vsel %vm185, %v4373, -inf
    %4408 = vmax.xlane.f32.xlu0 %v4407
    %v4409 = vpop.xlane.xlu0 %4408
    %v4410 = vsel %vm185, %v4399, -inf
    %4411 = vmax.xlane.f32.xlu0 %v4410
    %v4412 = vpop.xlane.xlu0 %4411
    %v4413 = vsub.f32 %v4321, %v4403
    %v4414 = vsub.f32 %v4347, %v4406
    %v4415 = vsub.f32 %v4373, %v4409
    %v4416 = vsub.f32 %v4399, %v4412
    %v4417 = vmul.f32 %v4413, 1.442695
    %v4418 = vpow.pop %v4417
    %v4419 = vmul.f32 %v4414, 1.442695
    %v4420 = vpow.pop %v4419
    %v4421 = vmul.f32 %v4415, 1.442695
    %v4422 = vpow.pop %v4421
    %v4423 = vmul.f32 %v4416, 1.442695
    %v4424 = vpow.pop %v4423
    %v4425 = vsel %vm185, %v4418, 0.0
    %4426 = vadd.xlane.f32.xlu0 %v4425
    %v4427 = vpop.xlane.xlu0 %4426
    %v4428 = vsel %vm185, %v4420, 0.0
    %4429 = vadd.xlane.f32.xlu0 %v4428
    %v4430 = vpop.xlane.xlu0 %4429
    %v4431 = vsel %vm185, %v4422, 0.0
    %4432 = vadd.xlane.f32.xlu0 %v4431
    %v4433 = vpop.xlane.xlu0 %4432
    %v4434 = vsel %vm185, %v4424, 0.0
    %4435 = vadd.xlane.f32.xlu0 %v4434
    %v4436 = vpop.xlane.xlu0 %4435
    %v4437 = vrcp.pop %v4427
    %v4438 = vrcp.pop %v4430
    %v4439 = vrcp.pop %v4433
    %v4440 = vrcp.pop %v4436
    %v4441 = vmul.f32 %v4418, %v4437
    %v4442 = vmul.f32 %v4420, %v4438
    %v4443 = vmul.f32 %v4422, %v4439
    %v4444 = vmul.f32 %v4424, %v4440
    %4445 = vrot.lane.b32.xlu0 %v4280, 64
    %v4446 = vpop.permute.xlu0 %4445
    %v4449 = vsel %vm185, %v4441, 0
    %4451 = vmatpush.msra.mxu0 0.0
    %4452 = vmatpush.msra.mxu0 0.0
    %4453 = vmatpush.msra.mxu0 0.0
    %4454 = vmatpush.msra.mxu0 0.0
    %4455 = vmatpush.msra.mxu0 0.0
    %4456 = vmatpush.msra.mxu0 0.0
    %4457 = vmatpush.msra.mxu0 0.0
    %4458 = vmatpush.msra.mxu0 0.0
    %4459 = vmatpush.msra.mxu0 0.0
    %4460 = vmatpush.msra.mxu0 0.0
    %4461 = vmatpush.msra.mxu0 0.0
    %4462 = vmatpush.msra.mxu0 0.0
    %4463 = vmatpush.msra.mxu0 0.0
    %4464 = vmatpush.msra.mxu0 0.0
    %4465 = vmatpush.msra.mxu0 0.0
    %4466 = vmatpush.msra.mxu0 %v4446
    %4467 = vmatmul.f32.gmra.mxu0 %v4449
    %v4468 = vpop.f32.mrf.mxu0
    %v4469 = vadd.f32 0.0, %v4468
    %4470 = vdwg.mxu0
    %4471 = vrot.lane.b32.xlu0 %v4292, 64
    %v4472 = vpop.permute.xlu0 %4471
    %v4475 = vsel %vm185, %v4442, 0
    %4477 = vmatpush.msra.mxu0 0.0
    %4478 = vmatpush.msra.mxu0 0.0
    %4479 = vmatpush.msra.mxu0 0.0
    %4480 = vmatpush.msra.mxu0 0.0
    %4481 = vmatpush.msra.mxu0 0.0
    %4482 = vmatpush.msra.mxu0 0.0
    %4483 = vmatpush.msra.mxu0 0.0
    %4484 = vmatpush.msra.mxu0 0.0
    %4485 = vmatpush.msra.mxu0 0.0
    %4486 = vmatpush.msra.mxu0 0.0
    %4487 = vmatpush.msra.mxu0 0.0
    %4488 = vmatpush.msra.mxu0 0.0
    %4489 = vmatpush.msra.mxu0 0.0
    %4490 = vmatpush.msra.mxu0 0.0
    %4491 = vmatpush.msra.mxu0 0.0
    %4492 = vmatpush.msra.mxu0 %v4472
    %4493 = vmatmul.f32.gmra.mxu0 %v4475
    %v4494 = vpop.f32.mrf.mxu0
    %v4495 = vadd.f32 0.0, %v4494
    %4496 = vdwg.mxu0
    %4497 = vrot.lane.b32.xlu0 %v4294, 64
    %v4498 = vpop.permute.xlu0 %4497
    %v4501 = vsel %vm185, %v4443, 0
    %4503 = vmatpush.msra.mxu0 0.0
    %4504 = vmatpush.msra.mxu0 0.0
    %4505 = vmatpush.msra.mxu0 0.0
    %4506 = vmatpush.msra.mxu0 0.0
    %4507 = vmatpush.msra.mxu0 0.0
    %4508 = vmatpush.msra.mxu0 0.0
    %4509 = vmatpush.msra.mxu0 0.0
    %4510 = vmatpush.msra.mxu0 0.0
    %4511 = vmatpush.msra.mxu0 0.0
    %4512 = vmatpush.msra.mxu0 0.0
    %4513 = vmatpush.msra.mxu0 0.0
    %4514 = vmatpush.msra.mxu0 0.0
    %4515 = vmatpush.msra.mxu0 0.0
    %4516 = vmatpush.msra.mxu0 0.0
    %4517 = vmatpush.msra.mxu0 0.0
    %4518 = vmatpush.msra.mxu0 %v4498
    %4519 = vmatmul.f32.gmra.mxu0 %v4501
    %v4520 = vpop.f32.mrf.mxu0
    %v4521 = vadd.f32 0.0, %v4520
    %4522 = vdwg.mxu0
    %4523 = vrot.lane.b32.xlu0 %v4296, 64
    %v4524 = vpop.permute.xlu0 %4523
    %v4527 = vsel %vm185, %v4444, 0
    %4529 = vmatpush.msra.mxu0 0.0
    %4530 = vmatpush.msra.mxu0 0.0
    %4531 = vmatpush.msra.mxu0 0.0
    %4532 = vmatpush.msra.mxu0 0.0
    %4533 = vmatpush.msra.mxu0 0.0
    %4534 = vmatpush.msra.mxu0 0.0
    %4535 = vmatpush.msra.mxu0 0.0
    %4536 = vmatpush.msra.mxu0 0.0
    %4537 = vmatpush.msra.mxu0 0.0
    %4538 = vmatpush.msra.mxu0 0.0
    %4539 = vmatpush.msra.mxu0 0.0
    %4540 = vmatpush.msra.mxu0 0.0
    %4541 = vmatpush.msra.mxu0 0.0
    %4542 = vmatpush.msra.mxu0 0.0
    %4543 = vmatpush.msra.mxu0 0.0
    %4544 = vmatpush.msra.mxu0 %v4524
    %4545 = vmatmul.f32.gmra.mxu0 %v4527
    %v4546 = vpop.f32.mrf.mxu0
    %v4547 = vadd.f32 0.0, %v4546
    %4548 = vdwg.mxu0
    %v4550 = vsel %vm185, %v4469, 0
    %4552 = vmatpush.msra.mxu0 0.0
    %4553 = vmatpush.msra.mxu0 0.0
    %4554 = vmatpush.msra.mxu0 0.0
    %4555 = vmatpush.msra.mxu0 0.0
    %4556 = vmatpush.msra.mxu0 0.0
    %4557 = vmatpush.msra.mxu0 0.0
    %4558 = vmatpush.msra.mxu0 0.0
    %4559 = vmatpush.msra.mxu0 0.0
    %4560 = vmatpush.msra.mxu0 0.0
    %4561 = vmatpush.msra.mxu0 0.0
    %4562 = vmatpush.msra.mxu0 0.0
    %4563 = vmatpush.msra.mxu0 0.0
    %4564 = vmatpush.msra.mxu0 0.0
    %4565 = vmatpush.msra.mxu0 0.0
    %4566 = vmatpush.msra.mxu0 0.0
    %4567 = vmatpush.msra.mxu0 %v4285
    %4568 = vmatmul.f32.gmra.mxu0 %v4550
    %v4569 = vpop.f32.mrf.mxu0
    %v4570 = vadd.f32 0.0, %v4569
    %4571 = vdwg.mxu0
    %v4573 = vsel %vm185, %v4495, 0
    %4575 = vmatpush.msra.mxu0 0.0
    %4576 = vmatpush.msra.mxu0 0.0
    %4577 = vmatpush.msra.mxu0 0.0
    %4578 = vmatpush.msra.mxu0 0.0
    %4579 = vmatpush.msra.mxu0 0.0
    %4580 = vmatpush.msra.mxu0 0.0
    %4581 = vmatpush.msra.mxu0 0.0
    %4582 = vmatpush.msra.mxu0 0.0
    %4583 = vmatpush.msra.mxu0 0.0
    %4584 = vmatpush.msra.mxu0 0.0
    %4585 = vmatpush.msra.mxu0 0.0
    %4586 = vmatpush.msra.mxu0 0.0
    %4587 = vmatpush.msra.mxu0 0.0
    %4588 = vmatpush.msra.mxu0 0.0
    %4589 = vmatpush.msra.mxu0 0.0
    %4590 = vmatpush.msra.mxu0 %v4286
    %4591 = vmatmul.f32.gmra.mxu0 %v4573
    %v4592 = vpop.f32.mrf.mxu0
    %v4593 = vadd.f32 0.0, %v4592
    %4594 = vdwg.mxu0
    %v4596 = vsel %vm185, %v4521, 0
    %4598 = vmatpush.msra.mxu0 0.0
    %4599 = vmatpush.msra.mxu0 0.0
    %4600 = vmatpush.msra.mxu0 0.0
    %4601 = vmatpush.msra.mxu0 0.0
    %4602 = vmatpush.msra.mxu0 0.0
    %4603 = vmatpush.msra.mxu0 0.0
    %4604 = vmatpush.msra.mxu0 0.0
    %4605 = vmatpush.msra.mxu0 0.0
    %4606 = vmatpush.msra.mxu0 0.0
    %4607 = vmatpush.msra.mxu0 0.0
    %4608 = vmatpush.msra.mxu0 0.0
    %4609 = vmatpush.msra.mxu0 0.0
    %4610 = vmatpush.msra.mxu0 0.0
    %4611 = vmatpush.msra.mxu0 0.0
    %4612 = vmatpush.msra.mxu0 0.0
    %4613 = vmatpush.msra.mxu0 %v4287
    %4614 = vmatmul.f32.gmra.mxu0 %v4596
    %v4615 = vpop.f32.mrf.mxu0
    %v4616 = vadd.f32 0.0, %v4615
    %4617 = vdwg.mxu0
    %v4619 = vsel %vm185, %v4547, 0
    %4621 = vmatpush.msra.mxu0 0.0
    %4622 = vmatpush.msra.mxu0 0.0
    %4623 = vmatpush.msra.mxu0 0.0
    %4624 = vmatpush.msra.mxu0 0.0
    %4625 = vmatpush.msra.mxu0 0.0
    %4626 = vmatpush.msra.mxu0 0.0
    %4627 = vmatpush.msra.mxu0 0.0
    %4628 = vmatpush.msra.mxu0 0.0
    %4629 = vmatpush.msra.mxu0 0.0
    %4630 = vmatpush.msra.mxu0 0.0
    %4631 = vmatpush.msra.mxu0 0.0
    %4632 = vmatpush.msra.mxu0 0.0
    %4633 = vmatpush.msra.mxu0 0.0
    %4634 = vmatpush.msra.mxu0 0.0
    %4635 = vmatpush.msra.mxu0 0.0
    %4636 = vmatpush.msra.mxu0 %v4288
    %4637 = vmatmul.f32.gmra.mxu0 %v4619
    %v4638 = vpop.f32.mrf.mxu0
    %v4639 = vadd.f32 0.0, %v4638
    %4640 = vdwg.mxu0
    %v4641 = vsel %vm36, %v4570, 0.0
    %v4642 = vsel %vm36, %v4593, 0.0
    %v4643 = vadd.f32 %v4641, %v4642
    %v4644 = vsel %vm36, %v4616, 0.0
    %v4645 = vadd.f32 %v4643, %v4644
    %v4646 = vsel %vm36, %v4639, 0.0
    %v4647 = vadd.f32 %v4645, %v4646
    %v4648 = vperm.slane %v4289, 0
    %v4649 = vadd.f32 %v4647, %v4648
    %4651 = vrot.lane.b32.xlu0 %v4283, 120
    %v4652 = vpop.permute.xlu0 %4651
    %4653 = vrot.lane.b32.xlu0 %v4283, 112
    %v4654 = vpop.permute.xlu0 %4653
    %4655 = vrot.lane.b32.xlu0 %v4283, 104
    %v4656 = vpop.permute.xlu0 %4655
    %4657 = vrot.lane.b32.xlu0 %v4283, 96
    %v4658 = vpop.permute.xlu0 %4657
    %v4659 = vsel %vm185, %v4283, 0
    %v4661 = vsel %vm185, %v4658, 0
    %4663 = vmatpush.xpose.msra.mxu0 0.0
    %4664 = vmatpush.xpose.msra.mxu0 0.0
    %4665 = vmatpush.xpose.msra.mxu0 0.0
    %4666 = vmatpush.xpose.msra.mxu0 0.0
    %4667 = vmatpush.xpose.msra.mxu0 0.0
    %4668 = vmatpush.xpose.msra.mxu0 0.0
    %4669 = vmatpush.xpose.msra.mxu0 0.0
    %4670 = vmatpush.xpose.msra.mxu0 0.0
    %4671 = vmatpush.xpose.msra.mxu0 0.0
    %4672 = vmatpush.xpose.msra.mxu0 0.0
    %4673 = vmatpush.xpose.msra.mxu0 0.0
    %4674 = vmatpush.xpose.msra.mxu0 0.0
    %4675 = vmatpush.xpose.msra.mxu0 0.0
    %4676 = vmatpush.xpose.msra.mxu0 0.0
    %4677 = vmatpush.xpose.msra.mxu0 0.0
    %4678 = vmatpush.xpose.msra.mxu0 %v4661
    %4679 = vmatmul.f32.gmra.mxu0 %v4659
    %v4680 = vpop.f32.mrf.mxu0
    %v4681 = vadd.f32 %v2676, %v4680
    %4682 = vdwg.mxu0
    %4683 = vrot.lane.b32.xlu0 %v4652, 96
    %v4684 = vpop.permute.xlu0 %4683
    %v4685 = vsel %vm185, %v4652, 0
    %v4687 = vsel %vm185, %v4684, 0
    %4689 = vmatpush.xpose.msra.mxu0 0.0
    %4690 = vmatpush.xpose.msra.mxu0 0.0
    %4691 = vmatpush.xpose.msra.mxu0 0.0
    %4692 = vmatpush.xpose.msra.mxu0 0.0
    %4693 = vmatpush.xpose.msra.mxu0 0.0
    %4694 = vmatpush.xpose.msra.mxu0 0.0
    %4695 = vmatpush.xpose.msra.mxu0 0.0
    %4696 = vmatpush.xpose.msra.mxu0 0.0
    %4697 = vmatpush.xpose.msra.mxu0 0.0
    %4698 = vmatpush.xpose.msra.mxu0 0.0
    %4699 = vmatpush.xpose.msra.mxu0 0.0
    %4700 = vmatpush.xpose.msra.mxu0 0.0
    %4701 = vmatpush.xpose.msra.mxu0 0.0
    %4702 = vmatpush.xpose.msra.mxu0 0.0
    %4703 = vmatpush.xpose.msra.mxu0 0.0
    %4704 = vmatpush.xpose.msra.mxu0 %v4687
    %4705 = vmatmul.f32.gmra.mxu0 %v4685
    %v4706 = vpop.f32.mrf.mxu0
    %v4707 = vadd.f32 %v2676, %v4706
    %4708 = vdwg.mxu0
    %4709 = vrot.lane.b32.xlu0 %v4654, 96
    %v4710 = vpop.permute.xlu0 %4709
    %v4711 = vsel %vm185, %v4654, 0
    %v4713 = vsel %vm185, %v4710, 0
    %4715 = vmatpush.xpose.msra.mxu0 0.0
    %4716 = vmatpush.xpose.msra.mxu0 0.0
    %4717 = vmatpush.xpose.msra.mxu0 0.0
    %4718 = vmatpush.xpose.msra.mxu0 0.0
    %4719 = vmatpush.xpose.msra.mxu0 0.0
    %4720 = vmatpush.xpose.msra.mxu0 0.0
    %4721 = vmatpush.xpose.msra.mxu0 0.0
    %4722 = vmatpush.xpose.msra.mxu0 0.0
    %4723 = vmatpush.xpose.msra.mxu0 0.0
    %4724 = vmatpush.xpose.msra.mxu0 0.0
    %4725 = vmatpush.xpose.msra.mxu0 0.0
    %4726 = vmatpush.xpose.msra.mxu0 0.0
    %4727 = vmatpush.xpose.msra.mxu0 0.0
    %4728 = vmatpush.xpose.msra.mxu0 0.0
    %4729 = vmatpush.xpose.msra.mxu0 0.0
    %4730 = vmatpush.xpose.msra.mxu0 %v4713
    %4731 = vmatmul.f32.gmra.mxu0 %v4711
    %v4732 = vpop.f32.mrf.mxu0
    %v4733 = vadd.f32 %v2676, %v4732
    %4734 = vdwg.mxu0
    %4735 = vrot.lane.b32.xlu0 %v4656, 96
    %v4736 = vpop.permute.xlu0 %4735
    %v4737 = vsel %vm185, %v4656, 0
    %v4739 = vsel %vm185, %v4736, 0
    %4741 = vmatpush.xpose.msra.mxu0 0.0
    %4742 = vmatpush.xpose.msra.mxu0 0.0
    %4743 = vmatpush.xpose.msra.mxu0 0.0
    %4744 = vmatpush.xpose.msra.mxu0 0.0
    %4745 = vmatpush.xpose.msra.mxu0 0.0
    %4746 = vmatpush.xpose.msra.mxu0 0.0
    %4747 = vmatpush.xpose.msra.mxu0 0.0
    %4748 = vmatpush.xpose.msra.mxu0 0.0
    %4749 = vmatpush.xpose.msra.mxu0 0.0
    %4750 = vmatpush.xpose.msra.mxu0 0.0
    %4751 = vmatpush.xpose.msra.mxu0 0.0
    %4752 = vmatpush.xpose.msra.mxu0 0.0
    %4753 = vmatpush.xpose.msra.mxu0 0.0
    %4754 = vmatpush.xpose.msra.mxu0 0.0
    %4755 = vmatpush.xpose.msra.mxu0 0.0
    %4756 = vmatpush.xpose.msra.mxu0 %v4739
    %4757 = vmatmul.f32.gmra.mxu0 %v4737
    %v4758 = vpop.f32.mrf.mxu0
    %v4759 = vadd.f32 %v2676, %v4758
    %4760 = vdwg.mxu0
    %v4761 = vsel %vm185, %v4681, -inf
    %4762 = vmax.xlane.f32.xlu0 %v4761
    %v4763 = vpop.xlane.xlu0 %4762
    %v4764 = vsel %vm185, %v4707, -inf
    %4765 = vmax.xlane.f32.xlu0 %v4764
    %v4766 = vpop.xlane.xlu0 %4765
    %v4767 = vsel %vm185, %v4733, -inf
    %4768 = vmax.xlane.f32.xlu0 %v4767
    %v4769 = vpop.xlane.xlu0 %4768
    %v4770 = vsel %vm185, %v4759, -inf
    %4771 = vmax.xlane.f32.xlu0 %v4770
    %v4772 = vpop.xlane.xlu0 %4771
    %v4773 = vsub.f32 %v4681, %v4763
    %v4774 = vsub.f32 %v4707, %v4766
    %v4775 = vsub.f32 %v4733, %v4769
    %v4776 = vsub.f32 %v4759, %v4772
    %v4777 = vmul.f32 %v4773, 1.442695
    %v4778 = vpow.pop %v4777
    %v4779 = vmul.f32 %v4774, 1.442695
    %v4780 = vpow.pop %v4779
    %v4781 = vmul.f32 %v4775, 1.442695
    %v4782 = vpow.pop %v4781
    %v4783 = vmul.f32 %v4776, 1.442695
    %v4784 = vpow.pop %v4783
    %v4785 = vsel %vm185, %v4778, 0.0
    %4786 = vadd.xlane.f32.xlu0 %v4785
    %v4787 = vpop.xlane.xlu0 %4786
    %v4788 = vsel %vm185, %v4780, 0.0
    %4789 = vadd.xlane.f32.xlu0 %v4788
    %v4790 = vpop.xlane.xlu0 %4789
    %v4791 = vsel %vm185, %v4782, 0.0
    %4792 = vadd.xlane.f32.xlu0 %v4791
    %v4793 = vpop.xlane.xlu0 %4792
    %v4794 = vsel %vm185, %v4784, 0.0
    %4795 = vadd.xlane.f32.xlu0 %v4794
    %v4796 = vpop.xlane.xlu0 %4795
    %v4797 = vrcp.pop %v4787
    %v4798 = vrcp.pop %v4790
    %v4799 = vrcp.pop %v4793
    %v4800 = vrcp.pop %v4796
    %v4801 = vmul.f32 %v4778, %v4797
    %v4802 = vmul.f32 %v4780, %v4798
    %v4803 = vmul.f32 %v4782, %v4799
    %v4804 = vmul.f32 %v4784, %v4800
    %4805 = vrot.lane.b32.xlu0 %v4283, 64
    %v4806 = vpop.permute.xlu0 %4805
    %v4809 = vsel %vm185, %v4801, 0
    %4811 = vmatpush.msra.mxu0 0.0
    %4812 = vmatpush.msra.mxu0 0.0
    %4813 = vmatpush.msra.mxu0 0.0
    %4814 = vmatpush.msra.mxu0 0.0
    %4815 = vmatpush.msra.mxu0 0.0
    %4816 = vmatpush.msra.mxu0 0.0
    %4817 = vmatpush.msra.mxu0 0.0
    %4818 = vmatpush.msra.mxu0 0.0
    %4819 = vmatpush.msra.mxu0 0.0
    %4820 = vmatpush.msra.mxu0 0.0
    %4821 = vmatpush.msra.mxu0 0.0
    %4822 = vmatpush.msra.mxu0 0.0
    %4823 = vmatpush.msra.mxu0 0.0
    %4824 = vmatpush.msra.mxu0 0.0
    %4825 = vmatpush.msra.mxu0 0.0
    %4826 = vmatpush.msra.mxu0 %v4806
    %4827 = vmatmul.f32.gmra.mxu0 %v4809
    %v4828 = vpop.f32.mrf.mxu0
    %v4829 = vadd.f32 0.0, %v4828
    %4830 = vdwg.mxu0
    %4831 = vrot.lane.b32.xlu0 %v4652, 64
    %v4832 = vpop.permute.xlu0 %4831
    %v4835 = vsel %vm185, %v4802, 0
    %4837 = vmatpush.msra.mxu0 0.0
    %4838 = vmatpush.msra.mxu0 0.0
    %4839 = vmatpush.msra.mxu0 0.0
    %4840 = vmatpush.msra.mxu0 0.0
    %4841 = vmatpush.msra.mxu0 0.0
    %4842 = vmatpush.msra.mxu0 0.0
    %4843 = vmatpush.msra.mxu0 0.0
    %4844 = vmatpush.msra.mxu0 0.0
    %4845 = vmatpush.msra.mxu0 0.0
    %4846 = vmatpush.msra.mxu0 0.0
    %4847 = vmatpush.msra.mxu0 0.0
    %4848 = vmatpush.msra.mxu0 0.0
    %4849 = vmatpush.msra.mxu0 0.0
    %4850 = vmatpush.msra.mxu0 0.0
    %4851 = vmatpush.msra.mxu0 0.0
    %4852 = vmatpush.msra.mxu0 %v4832
    %4853 = vmatmul.f32.gmra.mxu0 %v4835
    %v4854 = vpop.f32.mrf.mxu0
    %v4855 = vadd.f32 0.0, %v4854
    %4856 = vdwg.mxu0
    %4857 = vrot.lane.b32.xlu0 %v4654, 64
    %v4858 = vpop.permute.xlu0 %4857
    %v4861 = vsel %vm185, %v4803, 0
    %4863 = vmatpush.msra.mxu0 0.0
    %4864 = vmatpush.msra.mxu0 0.0
    %4865 = vmatpush.msra.mxu0 0.0
    %4866 = vmatpush.msra.mxu0 0.0
    %4867 = vmatpush.msra.mxu0 0.0
    %4868 = vmatpush.msra.mxu0 0.0
    %4869 = vmatpush.msra.mxu0 0.0
    %4870 = vmatpush.msra.mxu0 0.0
    %4871 = vmatpush.msra.mxu0 0.0
    %4872 = vmatpush.msra.mxu0 0.0
    %4873 = vmatpush.msra.mxu0 0.0
    %4874 = vmatpush.msra.mxu0 0.0
    %4875 = vmatpush.msra.mxu0 0.0
    %4876 = vmatpush.msra.mxu0 0.0
    %4877 = vmatpush.msra.mxu0 0.0
    %4878 = vmatpush.msra.mxu0 %v4858
    %4879 = vmatmul.f32.gmra.mxu0 %v4861
    %v4880 = vpop.f32.mrf.mxu0
    %v4881 = vadd.f32 0.0, %v4880
    %4882 = vdwg.mxu0
    %4883 = vrot.lane.b32.xlu0 %v4656, 64
    %v4884 = vpop.permute.xlu0 %4883
    %v4887 = vsel %vm185, %v4804, 0
    %4889 = vmatpush.msra.mxu0 0.0
    %4890 = vmatpush.msra.mxu0 0.0
    %4891 = vmatpush.msra.mxu0 0.0
    %4892 = vmatpush.msra.mxu0 0.0
    %4893 = vmatpush.msra.mxu0 0.0
    %4894 = vmatpush.msra.mxu0 0.0
    %4895 = vmatpush.msra.mxu0 0.0
    %4896 = vmatpush.msra.mxu0 0.0
    %4897 = vmatpush.msra.mxu0 0.0
    %4898 = vmatpush.msra.mxu0 0.0
    %4899 = vmatpush.msra.mxu0 0.0
    %4900 = vmatpush.msra.mxu0 0.0
    %4901 = vmatpush.msra.mxu0 0.0
    %4902 = vmatpush.msra.mxu0 0.0
    %4903 = vmatpush.msra.mxu0 0.0
    %4904 = vmatpush.msra.mxu0 %v4884
    %4905 = vmatmul.f32.gmra.mxu0 %v4887
    %v4906 = vpop.f32.mrf.mxu0
    %v4907 = vadd.f32 0.0, %v4906
    %4908 = vdwg.mxu0
    %v4910 = vsel %vm185, %v4829, 0
    %4912 = vmatpush.msra.mxu0 0.0
    %4913 = vmatpush.msra.mxu0 0.0
    %4914 = vmatpush.msra.mxu0 0.0
    %4915 = vmatpush.msra.mxu0 0.0
    %4916 = vmatpush.msra.mxu0 0.0
    %4917 = vmatpush.msra.mxu0 0.0
    %4918 = vmatpush.msra.mxu0 0.0
    %4919 = vmatpush.msra.mxu0 0.0
    %4920 = vmatpush.msra.mxu0 0.0
    %4921 = vmatpush.msra.mxu0 0.0
    %4922 = vmatpush.msra.mxu0 0.0
    %4923 = vmatpush.msra.mxu0 0.0
    %4924 = vmatpush.msra.mxu0 0.0
    %4925 = vmatpush.msra.mxu0 0.0
    %4926 = vmatpush.msra.mxu0 0.0
    %4927 = vmatpush.msra.mxu0 %v4285
    %4928 = vmatmul.f32.gmra.mxu0 %v4910
    %v4929 = vpop.f32.mrf.mxu0
    %v4930 = vadd.f32 0.0, %v4929
    %4931 = vdwg.mxu0
    %v4933 = vsel %vm185, %v4855, 0
    %4935 = vmatpush.msra.mxu0 0.0
    %4936 = vmatpush.msra.mxu0 0.0
    %4937 = vmatpush.msra.mxu0 0.0
    %4938 = vmatpush.msra.mxu0 0.0
    %4939 = vmatpush.msra.mxu0 0.0
    %4940 = vmatpush.msra.mxu0 0.0
    %4941 = vmatpush.msra.mxu0 0.0
    %4942 = vmatpush.msra.mxu0 0.0
    %4943 = vmatpush.msra.mxu0 0.0
    %4944 = vmatpush.msra.mxu0 0.0
    %4945 = vmatpush.msra.mxu0 0.0
    %4946 = vmatpush.msra.mxu0 0.0
    %4947 = vmatpush.msra.mxu0 0.0
    %4948 = vmatpush.msra.mxu0 0.0
    %4949 = vmatpush.msra.mxu0 0.0
    %4950 = vmatpush.msra.mxu0 %v4286
    %4951 = vmatmul.f32.gmra.mxu0 %v4933
    %v4952 = vpop.f32.mrf.mxu0
    %v4953 = vadd.f32 0.0, %v4952
    %4954 = vdwg.mxu0
    %v4956 = vsel %vm185, %v4881, 0
    %4958 = vmatpush.msra.mxu0 0.0
    %4959 = vmatpush.msra.mxu0 0.0
    %4960 = vmatpush.msra.mxu0 0.0
    %4961 = vmatpush.msra.mxu0 0.0
    %4962 = vmatpush.msra.mxu0 0.0
    %4963 = vmatpush.msra.mxu0 0.0
    %4964 = vmatpush.msra.mxu0 0.0
    %4965 = vmatpush.msra.mxu0 0.0
    %4966 = vmatpush.msra.mxu0 0.0
    %4967 = vmatpush.msra.mxu0 0.0
    %4968 = vmatpush.msra.mxu0 0.0
    %4969 = vmatpush.msra.mxu0 0.0
    %4970 = vmatpush.msra.mxu0 0.0
    %4971 = vmatpush.msra.mxu0 0.0
    %4972 = vmatpush.msra.mxu0 0.0
    %4973 = vmatpush.msra.mxu0 %v4287
    %4974 = vmatmul.f32.gmra.mxu0 %v4956
    %v4975 = vpop.f32.mrf.mxu0
    %v4976 = vadd.f32 0.0, %v4975
    %4977 = vdwg.mxu0
    %v4979 = vsel %vm185, %v4907, 0
    %4981 = vmatpush.msra.mxu0 0.0
    %4982 = vmatpush.msra.mxu0 0.0
    %4983 = vmatpush.msra.mxu0 0.0
    %4984 = vmatpush.msra.mxu0 0.0
    %4985 = vmatpush.msra.mxu0 0.0
    %4986 = vmatpush.msra.mxu0 0.0
    %4987 = vmatpush.msra.mxu0 0.0
    %4988 = vmatpush.msra.mxu0 0.0
    %4989 = vmatpush.msra.mxu0 0.0
    %4990 = vmatpush.msra.mxu0 0.0
    %4991 = vmatpush.msra.mxu0 0.0
    %4992 = vmatpush.msra.mxu0 0.0
    %4993 = vmatpush.msra.mxu0 0.0
    %4994 = vmatpush.msra.mxu0 0.0
    %4995 = vmatpush.msra.mxu0 0.0
    %4996 = vmatpush.msra.mxu0 %v4288
    %4997 = vmatmul.f32.gmra.mxu0 %v4979
    %v4998 = vpop.f32.mrf.mxu0
    %v4999 = vadd.f32 0.0, %v4998
    %5000 = vdwg.mxu0
    %v5001 = vsel %vm36, %v4930, 0.0
    %v5002 = vsel %vm36, %v4953, 0.0
    %v5003 = vadd.f32 %v5001, %v5002
    %v5004 = vsel %vm36, %v4976, 0.0
    %v5005 = vadd.f32 %v5003, %v5004
    %v5006 = vsel %vm36, %v4999, 0.0
    %v5007 = vadd.f32 %v5005, %v5006
    %v5008 = vadd.f32 %v5007, %v4648
    %5011 = vrot.lane.b32.xlu0 %v4649, 32
    %v5012 = vpop.permute.xlu0 %5011
    %5013 = vrot.lane.b32.xlu0 %v5008, 32
    %v5014 = vpop.permute.xlu0 %5013
    %v5017 = vadd.f32 %v4140, %v5012
    %v5018 = vadd.f32 %v4141, %v5014
    %5021 = vrot.lane.b32.xlu0 %v5017, 96
    %v5022 = vpop.permute.xlu0 %5021
    %5023 = vrot.lane.b32.xlu0 %v5018, 96
    %v5024 = vpop.permute.xlu0 %5023
    %v5027 = vsel %vm36, %v5022, 0.0
    %5028 = vadd.xlane.f32.xlu0 %v5027
    %v5029 = vpop.xlane.xlu0 %5028
    %v5030 = vsel %vm36, %v5024, 0.0
    %5031 = vadd.xlane.f32.xlu0 %v5030
    %v5032 = vpop.xlane.xlu0 %5031
    %v5033 = vmul.f32 %v5029, %v49
    %v5034 = vmul.f32 %v5032, %v49
    %v5035 = vsub.f32 %v5017, %v5033
    %v5036 = vsub.f32 %v5018, %v5034
    %v5037 = vmul.f32 %v5035, %v5035
    %v5038 = vmul.f32 %v5036, %v5036
    %5041 = vrot.lane.b32.xlu0 %v5037, 96
    %v5042 = vpop.permute.xlu0 %5041
    %5043 = vrot.lane.b32.xlu0 %v5038, 96
    %v5044 = vpop.permute.xlu0 %5043
    %v5047 = vsel %vm36, %v5042, 0.0
    %5048 = vadd.xlane.f32.xlu0 %v5047
    %v5049 = vpop.xlane.xlu0 %5048
    %v5050 = vsel %vm36, %v5044, 0.0
    %5051 = vadd.xlane.f32.xlu0 %v5050
    %v5052 = vpop.xlane.xlu0 %5051
    %v5053 = vmul.f32 %v5049, %v68
    %v5054 = vmul.f32 %v5052, %v68
    %v5055 = vrsqrt.pop %v5053
    %v5056 = vmul.f32 %v5055, %v5053
    %v5057 = vmul.f32 %v5056, %v5055
    %v5058 = vmul.f32 0.5, %v5057
    %v5059 = vsub.f32 1.5, %v5058
    %v5060 = vmul.f32 %v5055, %v5059
    %v5061 = vmul.f32 %v5053, %v5060
    %vm5062 = vcmp.eq.f32.partialorder %v5053, inf
    %v5063 = vsel %vm5062, %v5053, %v5061
    %vm5064 = vcmp.eq.f32.partialorder %v5053, 0.0
    %v5065 = vand.u32 %v5053, 2147483648
    %v5066 = vsel %vm5064, %v5065, %v5063
    %v5067 = vrsqrt.pop %v5054
    %v5068 = vmul.f32 %v5067, %v5054
    %v5069 = vmul.f32 %v5068, %v5067
    %v5070 = vmul.f32 0.5, %v5069
    %v5071 = vsub.f32 1.5, %v5070
    %v5072 = vmul.f32 %v5067, %v5071
    %v5073 = vmul.f32 %v5054, %v5072
    %vm5074 = vcmp.eq.f32.partialorder %v5054, inf
    %v5075 = vsel %vm5074, %v5054, %v5073
    %vm5076 = vcmp.eq.f32.partialorder %v5054, 0.0
    %v5077 = vand.u32 %v5054, 2147483648
    %v5078 = vsel %vm5076, %v5077, %v5075
    %v5079 = vld [vmem:[%s3 + $0x23] sm:$0x1]
    %v5080 = vperm.slane %v5079, 0
    %5083 = vrot.lane.b32.xlu0 %v5035, 96
    %v5084 = vpop.permute.xlu0 %5083
    %5085 = vrot.lane.b32.xlu0 %v5036, 96
    %v5086 = vpop.permute.xlu0 %5085
    %v5089 = vmul.f32 %v5080, %v5084
    %v5090 = vmul.f32 %v5080, %v5086
    %v5091 = vadd.f32 %v5066, 1e-06
    %v5092 = vadd.f32 %v5078, 1e-06
    %v5093 = vrcp.pop %v5091
    %v5094 = vmul.f32 %v5091, %v5093
    %v5095 = vsub.f32 1.0, %v5094
    %v5096 = vmul.f32 %v5093, %v5095
    %v5097 = vadd.f32 %v5093, %v5096
    %vm5098 = vweird.f32 %v5091
    %vm5099 = vweird.f32 %v5093
    %vm5100 = vmor %vm5098, %vm5099
    %v5101 = vsel %vm5100, %v5093, %v5097
    %v5102 = vand.u32 2147483647, %v5091
    %vm5103 = vcmp.eq.f32.partialorder %v5102, 8.507059e+37
    %v5104 = vand.u32 %v5091, 2147483648
    %v5105 = vor.u32 1.1754944e-38, %v5104
    %v5106 = vsel %vm5103, %v5105, %v5101
    %v5107 = vmul.f32 %v5089, %v5106
    %v5108 = vrcp.pop %v5092
    %v5109 = vmul.f32 %v5092, %v5108
    %v5110 = vsub.f32 1.0, %v5109
    %v5111 = vmul.f32 %v5108, %v5110
    %v5112 = vadd.f32 %v5108, %v5111
    %vm5113 = vweird.f32 %v5092
    %vm5114 = vweird.f32 %v5108
    %vm5115 = vmor %vm5113, %vm5114
    %v5116 = vsel %vm5115, %v5108, %v5112
    %v5117 = vand.u32 2147483647, %v5092
    %vm5118 = vcmp.eq.f32.partialorder %v5117, 8.507059e+37
    %v5119 = vand.u32 %v5092, 2147483648
    %v5120 = vor.u32 1.1754944e-38, %v5119
    %v5121 = vsel %vm5118, %v5120, %v5116
    %v5122 = vmul.f32 %v5090, %v5121
    %v5123 = vld [vmem:[%s3 + $0x24] sm:$0x1]
    %v5124 = vperm.slane %v5123, 0
    %v5125 = vadd.f32 %v5107, %v5124
    %v5126 = vadd.f32 %v5122, %v5124
    %v5127 = vld [vmem:[#allocation2 + $0x280] sm:$0xff]
    %v5128 = vld [vmem:[#allocation2 + $0x288] sm:$0xff]
    %v5129 = vld [vmem:[#allocation2 + $0x290] sm:$0xff]
    %v5130 = vld [vmem:[#allocation2 + $0x298] sm:$0xff]
    %v5131 = vld [vmem:[%s3 + $0x25] sm:$0x1]
    %v5132 = vperm.slane %v5131, 0
    %v5134 = vsel %vm36, %v5125, 0
    %v5137 = vsel %vm36, %v5126, 0
    %5139 = vmatpush.msra.mxu0 0.0
    %5140 = vmatpush.msra.mxu0 0.0
    %5141 = vmatpush.msra.mxu0 0.0
    %5142 = vmatpush.msra.mxu0 0.0
    %5143 = vmatpush.msra.mxu0 0.0
    %5144 = vmatpush.msra.mxu0 0.0
    %5145 = vmatpush.msra.mxu0 0.0
    %5146 = vmatpush.msra.mxu0 0.0
    %5147 = vmatpush.msra.mxu0 0.0
    %5148 = vmatpush.msra.mxu0 0.0
    %5149 = vmatpush.msra.mxu0 0.0
    %5150 = vmatpush.msra.mxu0 0.0
    %5151 = vmatpush.msra.mxu0 %v5130
    %5152 = vmatpush.msra.mxu0 %v5129
    %5153 = vmatpush.msra.mxu0 %v5128
    %5154 = vmatpush.msra.mxu0 %v5127
    %5155 = vmatmul.f32.gmra.mxu0 %v5134
    %v5156 = vpop.f32.mrf.mxu0
    %v5157 = vadd.f32 %v5132, %v5156
    %5158 = vmatmul.f32.gmra.mxu0 %v5137
    %v5159 = vpop.f32.mrf.mxu0
    %v5160 = vadd.f32 %v5132, %v5159
    %5161 = vdwg.mxu0
    %v5162 = vld [vmem:[#allocation2 + $0x2a0] sm:$0xff]
    %v5163 = vld [vmem:[#allocation2 + $0x2a8] sm:$0xff]
    %v5164 = vld [vmem:[#allocation2 + $0x2b0] sm:$0xff]
    %v5165 = vld [vmem:[#allocation2 + $0x2b8] sm:$0xff]
    %v5166 = vld [vmem:[%s3 + $0x26] sm:$0x1]
    %v5167 = vperm.slane %v5166, 0
    %5168 = vmatpush.msra.mxu0 0.0
    %5169 = vmatpush.msra.mxu0 0.0
    %5170 = vmatpush.msra.mxu0 0.0
    %5171 = vmatpush.msra.mxu0 0.0
    %5172 = vmatpush.msra.mxu0 0.0
    %5173 = vmatpush.msra.mxu0 0.0
    %5174 = vmatpush.msra.mxu0 0.0
    %5175 = vmatpush.msra.mxu0 0.0
    %5176 = vmatpush.msra.mxu0 0.0
    %5177 = vmatpush.msra.mxu0 0.0
    %5178 = vmatpush.msra.mxu0 0.0
    %5179 = vmatpush.msra.mxu0 0.0
    %5180 = vmatpush.msra.mxu0 %v5165
    %5181 = vmatpush.msra.mxu0 %v5164
    %5182 = vmatpush.msra.mxu0 %v5163
    %5183 = vmatpush.msra.mxu0 %v5162
    %5184 = vmatmul.f32.gmra.mxu0 %v3188
    %v5185 = vpop.f32.mrf.mxu0
    %v5186 = vadd.f32 %v5167, %v5185
    %5187 = vmatmul.f32.gmra.mxu0 %v3191
    %v5188 = vpop.f32.mrf.mxu0
    %v5189 = vadd.f32 %v5167, %v5188
    %5190 = vdwg.mxu0
    %v5191 = vld [vmem:[#allocation2 + $0x2c0] sm:$0xff]
    %v5192 = vld [vmem:[#allocation2 + $0x2c8] sm:$0xff]
    %v5193 = vld [vmem:[#allocation2 + $0x2d0] sm:$0xff]
    %v5194 = vld [vmem:[#allocation2 + $0x2d8] sm:$0xff]
    %v5195 = vld [vmem:[%s3 + $0x27] sm:$0x1]
    %5197 = vrot.lane.b32.xlu0 %v5157, 120
    %v5198 = vpop.permute.xlu0 %5197
    %5199 = vrot.lane.b32.xlu0 %v5157, 112
    %v5200 = vpop.permute.xlu0 %5199
    %5201 = vrot.lane.b32.xlu0 %v5157, 104
    %v5202 = vpop.permute.xlu0 %5201
    %5204 = vrot.lane.b32.xlu0 %v5186, 120
    %v5205 = vpop.permute.xlu0 %5204
    %5206 = vrot.lane.b32.xlu0 %v5186, 112
    %v5207 = vpop.permute.xlu0 %5206
    %5208 = vrot.lane.b32.xlu0 %v5186, 104
    %v5209 = vpop.permute.xlu0 %5208
    %v5210 = vsel %vm185, %v5157, 0
    %v5212 = vsel %vm185, %v5186, 0
    %5214 = vmatpush.xpose.msra.mxu0 0.0
    %5215 = vmatpush.xpose.msra.mxu0 0.0
    %5216 = vmatpush.xpose.msra.mxu0 0.0
    %5217 = vmatpush.xpose.msra.mxu0 0.0
    %5218 = vmatpush.xpose.msra.mxu0 0.0
    %5219 = vmatpush.xpose.msra.mxu0 0.0
    %5220 = vmatpush.xpose.msra.mxu0 0.0
    %5221 = vmatpush.xpose.msra.mxu0 0.0
    %5222 = vmatpush.xpose.msra.mxu0 0.0
    %5223 = vmatpush.xpose.msra.mxu0 0.0
    %5224 = vmatpush.xpose.msra.mxu0 0.0
    %5225 = vmatpush.xpose.msra.mxu0 0.0
    %5226 = vmatpush.xpose.msra.mxu0 0.0
    %5227 = vmatpush.xpose.msra.mxu0 0.0
    %5228 = vmatpush.xpose.msra.mxu0 0.0
    %5229 = vmatpush.xpose.msra.mxu0 %v5212
    %5230 = vmatmul.f32.gmra.mxu0 %v5210
    %v5231 = vpop.f32.mrf.mxu0
    %v5232 = vadd.f32 %v182, %v5231
    %5233 = vdwg.mxu0
    %v5234 = vsel %vm185, %v5198, 0
    %v5236 = vsel %vm185, %v5205, 0
    %5238 = vmatpush.xpose.msra.mxu0 0.0
    %5239 = vmatpush.xpose.msra.mxu0 0.0
    %5240 = vmatpush.xpose.msra.mxu0 0.0
    %5241 = vmatpush.xpose.msra.mxu0 0.0
    %5242 = vmatpush.xpose.msra.mxu0 0.0
    %5243 = vmatpush.xpose.msra.mxu0 0.0
    %5244 = vmatpush.xpose.msra.mxu0 0.0
    %5245 = vmatpush.xpose.msra.mxu0 0.0
    %5246 = vmatpush.xpose.msra.mxu0 0.0
    %5247 = vmatpush.xpose.msra.mxu0 0.0
    %5248 = vmatpush.xpose.msra.mxu0 0.0
    %5249 = vmatpush.xpose.msra.mxu0 0.0
    %5250 = vmatpush.xpose.msra.mxu0 0.0
    %5251 = vmatpush.xpose.msra.mxu0 0.0
    %5252 = vmatpush.xpose.msra.mxu0 0.0
    %5253 = vmatpush.xpose.msra.mxu0 %v5236
    %5254 = vmatmul.f32.gmra.mxu0 %v5234
    %v5255 = vpop.f32.mrf.mxu0
    %v5256 = vadd.f32 %v182, %v5255
    %5257 = vdwg.mxu0
    %v5258 = vsel %vm185, %v5200, 0
    %v5260 = vsel %vm185, %v5207, 0
    %5262 = vmatpush.xpose.msra.mxu0 0.0
    %5263 = vmatpush.xpose.msra.mxu0 0.0
    %5264 = vmatpush.xpose.msra.mxu0 0.0
    %5265 = vmatpush.xpose.msra.mxu0 0.0
    %5266 = vmatpush.xpose.msra.mxu0 0.0
    %5267 = vmatpush.xpose.msra.mxu0 0.0
    %5268 = vmatpush.xpose.msra.mxu0 0.0
    %5269 = vmatpush.xpose.msra.mxu0 0.0
    %5270 = vmatpush.xpose.msra.mxu0 0.0
    %5271 = vmatpush.xpose.msra.mxu0 0.0
    %5272 = vmatpush.xpose.msra.mxu0 0.0
    %5273 = vmatpush.xpose.msra.mxu0 0.0
    %5274 = vmatpush.xpose.msra.mxu0 0.0
    %5275 = vmatpush.xpose.msra.mxu0 0.0
    %5276 = vmatpush.xpose.msra.mxu0 0.0
    %5277 = vmatpush.xpose.msra.mxu0 %v5260
    %5278 = vmatmul.f32.gmra.mxu0 %v5258
    %v5279 = vpop.f32.mrf.mxu0
    %v5280 = vadd.f32 %v182, %v5279
    %5281 = vdwg.mxu0
    %v5282 = vsel %vm185, %v5202, 0
    %v5284 = vsel %vm185, %v5209, 0
    %5286 = vmatpush.xpose.msra.mxu0 0.0
    %5287 = vmatpush.xpose.msra.mxu0 0.0
    %5288 = vmatpush.xpose.msra.mxu0 0.0
    %5289 = vmatpush.xpose.msra.mxu0 0.0
    %5290 = vmatpush.xpose.msra.mxu0 0.0
    %5291 = vmatpush.xpose.msra.mxu0 0.0
    %5292 = vmatpush.xpose.msra.mxu0 0.0
    %5293 = vmatpush.xpose.msra.mxu0 0.0
    %5294 = vmatpush.xpose.msra.mxu0 0.0
    %5295 = vmatpush.xpose.msra.mxu0 0.0
    %5296 = vmatpush.xpose.msra.mxu0 0.0
    %5297 = vmatpush.xpose.msra.mxu0 0.0
    %5298 = vmatpush.xpose.msra.mxu0 0.0
    %5299 = vmatpush.xpose.msra.mxu0 0.0
    %5300 = vmatpush.xpose.msra.mxu0 0.0
    %5301 = vmatpush.xpose.msra.mxu0 %v5284
    %5302 = vmatmul.f32.gmra.mxu0 %v5282
    %v5303 = vpop.f32.mrf.mxu0
    %v5304 = vadd.f32 %v182, %v5303
    %5305 = vdwg.mxu0
    %v5306 = vsel %vm185, %v5232, -inf
    %5307 = vmax.xlane.f32.xlu0 %v5306
    %v5308 = vpop.xlane.xlu0 %5307
    %v5309 = vsel %vm185, %v5256, -inf
    %5310 = vmax.xlane.f32.xlu0 %v5309
    %v5311 = vpop.xlane.xlu0 %5310
    %v5312 = vsel %vm185, %v5280, -inf
    %5313 = vmax.xlane.f32.xlu0 %v5312
    %v5314 = vpop.xlane.xlu0 %5313
    %v5315 = vsel %vm185, %v5304, -inf
    %5316 = vmax.xlane.f32.xlu0 %v5315
    %v5317 = vpop.xlane.xlu0 %5316
    %v5318 = vsub.f32 %v5232, %v5308
    %v5319 = vsub.f32 %v5256, %v5311
    %v5320 = vsub.f32 %v5280, %v5314
    %v5321 = vsub.f32 %v5304, %v5317
    %v5322 = vmul.f32 %v5318, 1.442695
    %v5323 = vpow.pop %v5322
    %v5324 = vmul.f32 %v5319, 1.442695
    %v5325 = vpow.pop %v5324
    %v5326 = vmul.f32 %v5320, 1.442695
    %v5327 = vpow.pop %v5326
    %v5328 = vmul.f32 %v5321, 1.442695
    %v5329 = vpow.pop %v5328
    %v5330 = vsel %vm185, %v5323, 0.0
    %5331 = vadd.xlane.f32.xlu0 %v5330
    %v5332 = vpop.xlane.xlu0 %5331
    %v5333 = vsel %vm185, %v5325, 0.0
    %5334 = vadd.xlane.f32.xlu0 %v5333
    %v5335 = vpop.xlane.xlu0 %5334
    %v5336 = vsel %vm185, %v5327, 0.0
    %5337 = vadd.xlane.f32.xlu0 %v5336
    %v5338 = vpop.xlane.xlu0 %5337
    %v5339 = vsel %vm185, %v5329, 0.0
    %5340 = vadd.xlane.f32.xlu0 %v5339
    %v5341 = vpop.xlane.xlu0 %5340
    %v5342 = vrcp.pop %v5332
    %v5343 = vrcp.pop %v5335
    %v5344 = vrcp.pop %v5338
    %v5345 = vrcp.pop %v5341
    %v5346 = vmul.f32 %v5323, %v5342
    %v5347 = vmul.f32 %v5325, %v5343
    %v5348 = vmul.f32 %v5327, %v5344
    %v5349 = vmul.f32 %v5329, %v5345
    %5350 = vrot.lane.b32.xlu0 %v5186, 96
    %v5351 = vpop.permute.xlu0 %5350
    %v5354 = vsel %vm185, %v5346, 0
    %5356 = vmatpush.msra.mxu0 0.0
    %5357 = vmatpush.msra.mxu0 0.0
    %5358 = vmatpush.msra.mxu0 0.0
    %5359 = vmatpush.msra.mxu0 0.0
    %5360 = vmatpush.msra.mxu0 0.0
    %5361 = vmatpush.msra.mxu0 0.0
    %5362 = vmatpush.msra.mxu0 0.0
    %5363 = vmatpush.msra.mxu0 0.0
    %5364 = vmatpush.msra.mxu0 0.0
    %5365 = vmatpush.msra.mxu0 0.0
    %5366 = vmatpush.msra.mxu0 0.0
    %5367 = vmatpush.msra.mxu0 0.0
    %5368 = vmatpush.msra.mxu0 0.0
    %5369 = vmatpush.msra.mxu0 0.0
    %5370 = vmatpush.msra.mxu0 0.0
    %5371 = vmatpush.msra.mxu0 %v5351
    %5372 = vmatmul.f32.gmra.mxu0 %v5354
    %v5373 = vpop.f32.mrf.mxu0
    %v5374 = vadd.f32 0.0, %v5373
    %5375 = vdwg.mxu0
    %5376 = vrot.lane.b32.xlu0 %v5205, 96
    %v5377 = vpop.permute.xlu0 %5376
    %v5380 = vsel %vm185, %v5347, 0
    %5382 = vmatpush.msra.mxu0 0.0
    %5383 = vmatpush.msra.mxu0 0.0
    %5384 = vmatpush.msra.mxu0 0.0
    %5385 = vmatpush.msra.mxu0 0.0
    %5386 = vmatpush.msra.mxu0 0.0
    %5387 = vmatpush.msra.mxu0 0.0
    %5388 = vmatpush.msra.mxu0 0.0
    %5389 = vmatpush.msra.mxu0 0.0
    %5390 = vmatpush.msra.mxu0 0.0
    %5391 = vmatpush.msra.mxu0 0.0
    %5392 = vmatpush.msra.mxu0 0.0
    %5393 = vmatpush.msra.mxu0 0.0
    %5394 = vmatpush.msra.mxu0 0.0
    %5395 = vmatpush.msra.mxu0 0.0
    %5396 = vmatpush.msra.mxu0 0.0
    %5397 = vmatpush.msra.mxu0 %v5377
    %5398 = vmatmul.f32.gmra.mxu0 %v5380
    %v5399 = vpop.f32.mrf.mxu0
    %v5400 = vadd.f32 0.0, %v5399
    %5401 = vdwg.mxu0
    %5402 = vrot.lane.b32.xlu0 %v5207, 96
    %v5403 = vpop.permute.xlu0 %5402
    %v5406 = vsel %vm185, %v5348, 0
    %5408 = vmatpush.msra.mxu0 0.0
    %5409 = vmatpush.msra.mxu0 0.0
    %5410 = vmatpush.msra.mxu0 0.0
    %5411 = vmatpush.msra.mxu0 0.0
    %5412 = vmatpush.msra.mxu0 0.0
    %5413 = vmatpush.msra.mxu0 0.0
    %5414 = vmatpush.msra.mxu0 0.0
    %5415 = vmatpush.msra.mxu0 0.0
    %5416 = vmatpush.msra.mxu0 0.0
    %5417 = vmatpush.msra.mxu0 0.0
    %5418 = vmatpush.msra.mxu0 0.0
    %5419 = vmatpush.msra.mxu0 0.0
    %5420 = vmatpush.msra.mxu0 0.0
    %5421 = vmatpush.msra.mxu0 0.0
    %5422 = vmatpush.msra.mxu0 0.0
    %5423 = vmatpush.msra.mxu0 %v5403
    %5424 = vmatmul.f32.gmra.mxu0 %v5406
    %v5425 = vpop.f32.mrf.mxu0
    %v5426 = vadd.f32 0.0, %v5425
    %5427 = vdwg.mxu0
    %5428 = vrot.lane.b32.xlu0 %v5209, 96
    %v5429 = vpop.permute.xlu0 %5428
    %v5432 = vsel %vm185, %v5349, 0
    %5434 = vmatpush.msra.mxu0 0.0
    %5435 = vmatpush.msra.mxu0 0.0
    %5436 = vmatpush.msra.mxu0 0.0
    %5437 = vmatpush.msra.mxu0 0.0
    %5438 = vmatpush.msra.mxu0 0.0
    %5439 = vmatpush.msra.mxu0 0.0
    %5440 = vmatpush.msra.mxu0 0.0
    %5441 = vmatpush.msra.mxu0 0.0
    %5442 = vmatpush.msra.mxu0 0.0
    %5443 = vmatpush.msra.mxu0 0.0
    %5444 = vmatpush.msra.mxu0 0.0
    %5445 = vmatpush.msra.mxu0 0.0
    %5446 = vmatpush.msra.mxu0 0.0
    %5447 = vmatpush.msra.mxu0 0.0
    %5448 = vmatpush.msra.mxu0 0.0
    %5449 = vmatpush.msra.mxu0 %v5429
    %5450 = vmatmul.f32.gmra.mxu0 %v5432
    %v5451 = vpop.f32.mrf.mxu0
    %v5452 = vadd.f32 0.0, %v5451
    %5453 = vdwg.mxu0
    %v5455 = vsel %vm185, %v5374, 0
    %5457 = vmatpush.msra.mxu0 0.0
    %5458 = vmatpush.msra.mxu0 0.0
    %5459 = vmatpush.msra.mxu0 0.0
    %5460 = vmatpush.msra.mxu0 0.0
    %5461 = vmatpush.msra.mxu0 0.0
    %5462 = vmatpush.msra.mxu0 0.0
    %5463 = vmatpush.msra.mxu0 0.0
    %5464 = vmatpush.msra.mxu0 0.0
    %5465 = vmatpush.msra.mxu0 0.0
    %5466 = vmatpush.msra.mxu0 0.0
    %5467 = vmatpush.msra.mxu0 0.0
    %5468 = vmatpush.msra.mxu0 0.0
    %5469 = vmatpush.msra.mxu0 0.0
    %5470 = vmatpush.msra.mxu0 0.0
    %5471 = vmatpush.msra.mxu0 0.0
    %5472 = vmatpush.msra.mxu0 %v5191
    %5473 = vmatmul.f32.gmra.mxu0 %v5455
    %v5474 = vpop.f32.mrf.mxu0
    %v5475 = vadd.f32 0.0, %v5474
    %5476 = vdwg.mxu0
    %v5478 = vsel %vm185, %v5400, 0
    %5480 = vmatpush.msra.mxu0 0.0
    %5481 = vmatpush.msra.mxu0 0.0
    %5482 = vmatpush.msra.mxu0 0.0
    %5483 = vmatpush.msra.mxu0 0.0
    %5484 = vmatpush.msra.mxu0 0.0
    %5485 = vmatpush.msra.mxu0 0.0
    %5486 = vmatpush.msra.mxu0 0.0
    %5487 = vmatpush.msra.mxu0 0.0
    %5488 = vmatpush.msra.mxu0 0.0
    %5489 = vmatpush.msra.mxu0 0.0
    %5490 = vmatpush.msra.mxu0 0.0
    %5491 = vmatpush.msra.mxu0 0.0
    %5492 = vmatpush.msra.mxu0 0.0
    %5493 = vmatpush.msra.mxu0 0.0
    %5494 = vmatpush.msra.mxu0 0.0
    %5495 = vmatpush.msra.mxu0 %v5192
    %5496 = vmatmul.f32.gmra.mxu0 %v5478
    %v5497 = vpop.f32.mrf.mxu0
    %v5498 = vadd.f32 0.0, %v5497
    %5499 = vdwg.mxu0
    %v5501 = vsel %vm185, %v5426, 0
    %5503 = vmatpush.msra.mxu0 0.0
    %5504 = vmatpush.msra.mxu0 0.0
    %5505 = vmatpush.msra.mxu0 0.0
    %5506 = vmatpush.msra.mxu0 0.0
    %5507 = vmatpush.msra.mxu0 0.0
    %5508 = vmatpush.msra.mxu0 0.0
    %5509 = vmatpush.msra.mxu0 0.0
    %5510 = vmatpush.msra.mxu0 0.0
    %5511 = vmatpush.msra.mxu0 0.0
    %5512 = vmatpush.msra.mxu0 0.0
    %5513 = vmatpush.msra.mxu0 0.0
    %5514 = vmatpush.msra.mxu0 0.0
    %5515 = vmatpush.msra.mxu0 0.0
    %5516 = vmatpush.msra.mxu0 0.0
    %5517 = vmatpush.msra.mxu0 0.0
    %5518 = vmatpush.msra.mxu0 %v5193
    %5519 = vmatmul.f32.gmra.mxu0 %v5501
    %v5520 = vpop.f32.mrf.mxu0
    %v5521 = vadd.f32 0.0, %v5520
    %5522 = vdwg.mxu0
    %v5524 = vsel %vm185, %v5452, 0
    %5526 = vmatpush.msra.mxu0 0.0
    %5527 = vmatpush.msra.mxu0 0.0
    %5528 = vmatpush.msra.mxu0 0.0
    %5529 = vmatpush.msra.mxu0 0.0
    %5530 = vmatpush.msra.mxu0 0.0
    %5531 = vmatpush.msra.mxu0 0.0
    %5532 = vmatpush.msra.mxu0 0.0
    %5533 = vmatpush.msra.mxu0 0.0
    %5534 = vmatpush.msra.mxu0 0.0
    %5535 = vmatpush.msra.mxu0 0.0
    %5536 = vmatpush.msra.mxu0 0.0
    %5537 = vmatpush.msra.mxu0 0.0
    %5538 = vmatpush.msra.mxu0 0.0
    %5539 = vmatpush.msra.mxu0 0.0
    %5540 = vmatpush.msra.mxu0 0.0
    %5541 = vmatpush.msra.mxu0 %v5194
    %5542 = vmatmul.f32.gmra.mxu0 %v5524
    %v5543 = vpop.f32.mrf.mxu0
    %v5544 = vadd.f32 0.0, %v5543
    %5545 = vdwg.mxu0
    %v5546 = vsel %vm36, %v5475, 0.0
    %v5547 = vsel %vm36, %v5498, 0.0
    %v5548 = vadd.f32 %v5546, %v5547
    %v5549 = vsel %vm36, %v5521, 0.0
    %v5550 = vadd.f32 %v5548, %v5549
    %v5551 = vsel %vm36, %v5544, 0.0
    %v5552 = vadd.f32 %v5550, %v5551
    %v5553 = vperm.slane %v5195, 0
    %v5554 = vadd.f32 %v5552, %v5553
    %5556 = vrot.lane.b32.xlu0 %v5160, 120
    %v5557 = vpop.permute.xlu0 %5556
    %5558 = vrot.lane.b32.xlu0 %v5160, 112
    %v5559 = vpop.permute.xlu0 %5558
    %5560 = vrot.lane.b32.xlu0 %v5160, 104
    %v5561 = vpop.permute.xlu0 %5560
    %5563 = vrot.lane.b32.xlu0 %v5189, 120
    %v5564 = vpop.permute.xlu0 %5563
    %5565 = vrot.lane.b32.xlu0 %v5189, 112
    %v5566 = vpop.permute.xlu0 %5565
    %5567 = vrot.lane.b32.xlu0 %v5189, 104
    %v5568 = vpop.permute.xlu0 %5567
    %v5569 = vsel %vm185, %v5160, 0
    %v5571 = vsel %vm185, %v5189, 0
    %5573 = vmatpush.xpose.msra.mxu0 0.0
    %5574 = vmatpush.xpose.msra.mxu0 0.0
    %5575 = vmatpush.xpose.msra.mxu0 0.0
    %5576 = vmatpush.xpose.msra.mxu0 0.0
    %5577 = vmatpush.xpose.msra.mxu0 0.0
    %5578 = vmatpush.xpose.msra.mxu0 0.0
    %5579 = vmatpush.xpose.msra.mxu0 0.0
    %5580 = vmatpush.xpose.msra.mxu0 0.0
    %5581 = vmatpush.xpose.msra.mxu0 0.0
    %5582 = vmatpush.xpose.msra.mxu0 0.0
    %5583 = vmatpush.xpose.msra.mxu0 0.0
    %5584 = vmatpush.xpose.msra.mxu0 0.0
    %5585 = vmatpush.xpose.msra.mxu0 0.0
    %5586 = vmatpush.xpose.msra.mxu0 0.0
    %5587 = vmatpush.xpose.msra.mxu0 0.0
    %5588 = vmatpush.xpose.msra.mxu0 %v5571
    %5589 = vmatmul.f32.gmra.mxu0 %v5569
    %v5590 = vpop.f32.mrf.mxu0
    %v5591 = vadd.f32 %v544, %v5590
    %5592 = vdwg.mxu0
    %v5593 = vsel %vm185, %v5557, 0
    %v5595 = vsel %vm185, %v5564, 0
    %5597 = vmatpush.xpose.msra.mxu0 0.0
    %5598 = vmatpush.xpose.msra.mxu0 0.0
    %5599 = vmatpush.xpose.msra.mxu0 0.0
    %5600 = vmatpush.xpose.msra.mxu0 0.0
    %5601 = vmatpush.xpose.msra.mxu0 0.0
    %5602 = vmatpush.xpose.msra.mxu0 0.0
    %5603 = vmatpush.xpose.msra.mxu0 0.0
    %5604 = vmatpush.xpose.msra.mxu0 0.0
    %5605 = vmatpush.xpose.msra.mxu0 0.0
    %5606 = vmatpush.xpose.msra.mxu0 0.0
    %5607 = vmatpush.xpose.msra.mxu0 0.0
    %5608 = vmatpush.xpose.msra.mxu0 0.0
    %5609 = vmatpush.xpose.msra.mxu0 0.0
    %5610 = vmatpush.xpose.msra.mxu0 0.0
    %5611 = vmatpush.xpose.msra.mxu0 0.0
    %5612 = vmatpush.xpose.msra.mxu0 %v5595
    %5613 = vmatmul.f32.gmra.mxu0 %v5593
    %v5614 = vpop.f32.mrf.mxu0
    %v5615 = vadd.f32 %v544, %v5614
    %5616 = vdwg.mxu0
    %v5617 = vsel %vm185, %v5559, 0
    %v5619 = vsel %vm185, %v5566, 0
    %5621 = vmatpush.xpose.msra.mxu0 0.0
    %5622 = vmatpush.xpose.msra.mxu0 0.0
    %5623 = vmatpush.xpose.msra.mxu0 0.0
    %5624 = vmatpush.xpose.msra.mxu0 0.0
    %5625 = vmatpush.xpose.msra.mxu0 0.0
    %5626 = vmatpush.xpose.msra.mxu0 0.0
    %5627 = vmatpush.xpose.msra.mxu0 0.0
    %5628 = vmatpush.xpose.msra.mxu0 0.0
    %5629 = vmatpush.xpose.msra.mxu0 0.0
    %5630 = vmatpush.xpose.msra.mxu0 0.0
    %5631 = vmatpush.xpose.msra.mxu0 0.0
    %5632 = vmatpush.xpose.msra.mxu0 0.0
    %5633 = vmatpush.xpose.msra.mxu0 0.0
    %5634 = vmatpush.xpose.msra.mxu0 0.0
    %5635 = vmatpush.xpose.msra.mxu0 0.0
    %5636 = vmatpush.xpose.msra.mxu0 %v5619
    %5637 = vmatmul.f32.gmra.mxu0 %v5617
    %v5638 = vpop.f32.mrf.mxu0
    %v5639 = vadd.f32 %v544, %v5638
    %5640 = vdwg.mxu0
    %v5641 = vsel %vm185, %v5561, 0
    %v5643 = vsel %vm185, %v5568, 0
    %5645 = vmatpush.xpose.msra.mxu0 0.0
    %5646 = vmatpush.xpose.msra.mxu0 0.0
    %5647 = vmatpush.xpose.msra.mxu0 0.0
    %5648 = vmatpush.xpose.msra.mxu0 0.0
    %5649 = vmatpush.xpose.msra.mxu0 0.0
    %5650 = vmatpush.xpose.msra.mxu0 0.0
    %5651 = vmatpush.xpose.msra.mxu0 0.0
    %5652 = vmatpush.xpose.msra.mxu0 0.0
    %5653 = vmatpush.xpose.msra.mxu0 0.0
    %5654 = vmatpush.xpose.msra.mxu0 0.0
    %5655 = vmatpush.xpose.msra.mxu0 0.0
    %5656 = vmatpush.xpose.msra.mxu0 0.0
    %5657 = vmatpush.xpose.msra.mxu0 0.0
    %5658 = vmatpush.xpose.msra.mxu0 0.0
    %5659 = vmatpush.xpose.msra.mxu0 0.0
    %5660 = vmatpush.xpose.msra.mxu0 %v5643
    %5661 = vmatmul.f32.gmra.mxu0 %v5641
    %v5662 = vpop.f32.mrf.mxu0
    %v5663 = vadd.f32 %v544, %v5662
    %5664 = vdwg.mxu0
    %v5665 = vsel %vm185, %v5591, -inf
    %5666 = vmax.xlane.f32.xlu0 %v5665
    %v5667 = vpop.xlane.xlu0 %5666
    %v5668 = vsel %vm185, %v5615, -inf
    %5669 = vmax.xlane.f32.xlu0 %v5668
    %v5670 = vpop.xlane.xlu0 %5669
    %v5671 = vsel %vm185, %v5639, -inf
    %5672 = vmax.xlane.f32.xlu0 %v5671
    %v5673 = vpop.xlane.xlu0 %5672
    %v5674 = vsel %vm185, %v5663, -inf
    %5675 = vmax.xlane.f32.xlu0 %v5674
    %v5676 = vpop.xlane.xlu0 %5675
    %v5677 = vsub.f32 %v5591, %v5667
    %v5678 = vsub.f32 %v5615, %v5670
    %v5679 = vsub.f32 %v5639, %v5673
    %v5680 = vsub.f32 %v5663, %v5676
    %v5681 = vmul.f32 %v5677, 1.442695
    %v5682 = vpow.pop %v5681
    %v5683 = vmul.f32 %v5678, 1.442695
    %v5684 = vpow.pop %v5683
    %v5685 = vmul.f32 %v5679, 1.442695
    %v5686 = vpow.pop %v5685
    %v5687 = vmul.f32 %v5680, 1.442695
    %v5688 = vpow.pop %v5687
    %v5689 = vsel %vm185, %v5682, 0.0
    %5690 = vadd.xlane.f32.xlu0 %v5689
    %v5691 = vpop.xlane.xlu0 %5690
    %v5692 = vsel %vm185, %v5684, 0.0
    %5693 = vadd.xlane.f32.xlu0 %v5692
    %v5694 = vpop.xlane.xlu0 %5693
    %v5695 = vsel %vm185, %v5686, 0.0
    %5696 = vadd.xlane.f32.xlu0 %v5695
    %v5697 = vpop.xlane.xlu0 %5696
    %v5698 = vsel %vm185, %v5688, 0.0
    %5699 = vadd.xlane.f32.xlu0 %v5698
    %v5700 = vpop.xlane.xlu0 %5699
    %v5701 = vrcp.pop %v5691
    %v5702 = vrcp.pop %v5694
    %v5703 = vrcp.pop %v5697
    %v5704 = vrcp.pop %v5700
    %v5705 = vmul.f32 %v5682, %v5701
    %v5706 = vmul.f32 %v5684, %v5702
    %v5707 = vmul.f32 %v5686, %v5703
    %v5708 = vmul.f32 %v5688, %v5704
    %5709 = vrot.lane.b32.xlu0 %v5189, 96
    %v5710 = vpop.permute.xlu0 %5709
    %v5713 = vsel %vm185, %v5705, 0
    %5715 = vmatpush.msra.mxu0 0.0
    %5716 = vmatpush.msra.mxu0 0.0
    %5717 = vmatpush.msra.mxu0 0.0
    %5718 = vmatpush.msra.mxu0 0.0
    %5719 = vmatpush.msra.mxu0 0.0
    %5720 = vmatpush.msra.mxu0 0.0
    %5721 = vmatpush.msra.mxu0 0.0
    %5722 = vmatpush.msra.mxu0 0.0
    %5723 = vmatpush.msra.mxu0 0.0
    %5724 = vmatpush.msra.mxu0 0.0
    %5725 = vmatpush.msra.mxu0 0.0
    %5726 = vmatpush.msra.mxu0 0.0
    %5727 = vmatpush.msra.mxu0 0.0
    %5728 = vmatpush.msra.mxu0 0.0
    %5729 = vmatpush.msra.mxu0 0.0
    %5730 = vmatpush.msra.mxu0 %v5710
    %5731 = vmatmul.f32.gmra.mxu0 %v5713
    %v5732 = vpop.f32.mrf.mxu0
    %v5733 = vadd.f32 0.0, %v5732
    %5734 = vdwg.mxu0
    %5735 = vrot.lane.b32.xlu0 %v5564, 96
    %v5736 = vpop.permute.xlu0 %5735
    %v5739 = vsel %vm185, %v5706, 0
    %5741 = vmatpush.msra.mxu0 0.0
    %5742 = vmatpush.msra.mxu0 0.0
    %5743 = vmatpush.msra.mxu0 0.0
    %5744 = vmatpush.msra.mxu0 0.0
    %5745 = vmatpush.msra.mxu0 0.0
    %5746 = vmatpush.msra.mxu0 0.0
    %5747 = vmatpush.msra.mxu0 0.0
    %5748 = vmatpush.msra.mxu0 0.0
    %5749 = vmatpush.msra.mxu0 0.0
    %5750 = vmatpush.msra.mxu0 0.0
    %5751 = vmatpush.msra.mxu0 0.0
    %5752 = vmatpush.msra.mxu0 0.0
    %5753 = vmatpush.msra.mxu0 0.0
    %5754 = vmatpush.msra.mxu0 0.0
    %5755 = vmatpush.msra.mxu0 0.0
    %5756 = vmatpush.msra.mxu0 %v5736
    %5757 = vmatmul.f32.gmra.mxu0 %v5739
    %v5758 = vpop.f32.mrf.mxu0
    %v5759 = vadd.f32 0.0, %v5758
    %5760 = vdwg.mxu0
    %5761 = vrot.lane.b32.xlu0 %v5566, 96
    %v5762 = vpop.permute.xlu0 %5761
    %v5765 = vsel %vm185, %v5707, 0
    %5767 = vmatpush.msra.mxu0 0.0
    %5768 = vmatpush.msra.mxu0 0.0
    %5769 = vmatpush.msra.mxu0 0.0
    %5770 = vmatpush.msra.mxu0 0.0
    %5771 = vmatpush.msra.mxu0 0.0
    %5772 = vmatpush.msra.mxu0 0.0
    %5773 = vmatpush.msra.mxu0 0.0
    %5774 = vmatpush.msra.mxu0 0.0
    %5775 = vmatpush.msra.mxu0 0.0
    %5776 = vmatpush.msra.mxu0 0.0
    %5777 = vmatpush.msra.mxu0 0.0
    %5778 = vmatpush.msra.mxu0 0.0
    %5779 = vmatpush.msra.mxu0 0.0
    %5780 = vmatpush.msra.mxu0 0.0
    %5781 = vmatpush.msra.mxu0 0.0
    %5782 = vmatpush.msra.mxu0 %v5762
    %5783 = vmatmul.f32.gmra.mxu0 %v5765
    %v5784 = vpop.f32.mrf.mxu0
    %v5785 = vadd.f32 0.0, %v5784
    %5786 = vdwg.mxu0
    %5787 = vrot.lane.b32.xlu0 %v5568, 96
    %v5788 = vpop.permute.xlu0 %5787
    %v5791 = vsel %vm185, %v5708, 0
    %5793 = vmatpush.msra.mxu0 0.0
    %5794 = vmatpush.msra.mxu0 0.0
    %5795 = vmatpush.msra.mxu0 0.0
    %5796 = vmatpush.msra.mxu0 0.0
    %5797 = vmatpush.msra.mxu0 0.0
    %5798 = vmatpush.msra.mxu0 0.0
    %5799 = vmatpush.msra.mxu0 0.0
    %5800 = vmatpush.msra.mxu0 0.0
    %5801 = vmatpush.msra.mxu0 0.0
    %5802 = vmatpush.msra.mxu0 0.0
    %5803 = vmatpush.msra.mxu0 0.0
    %5804 = vmatpush.msra.mxu0 0.0
    %5805 = vmatpush.msra.mxu0 0.0
    %5806 = vmatpush.msra.mxu0 0.0
    %5807 = vmatpush.msra.mxu0 0.0
    %5808 = vmatpush.msra.mxu0 %v5788
    %5809 = vmatmul.f32.gmra.mxu0 %v5791
    %v5810 = vpop.f32.mrf.mxu0
    %v5811 = vadd.f32 0.0, %v5810
    %5812 = vdwg.mxu0
    %v5814 = vsel %vm185, %v5733, 0
    %5816 = vmatpush.msra.mxu0 0.0
    %5817 = vmatpush.msra.mxu0 0.0
    %5818 = vmatpush.msra.mxu0 0.0
    %5819 = vmatpush.msra.mxu0 0.0
    %5820 = vmatpush.msra.mxu0 0.0
    %5821 = vmatpush.msra.mxu0 0.0
    %5822 = vmatpush.msra.mxu0 0.0
    %5823 = vmatpush.msra.mxu0 0.0
    %5824 = vmatpush.msra.mxu0 0.0
    %5825 = vmatpush.msra.mxu0 0.0
    %5826 = vmatpush.msra.mxu0 0.0
    %5827 = vmatpush.msra.mxu0 0.0
    %5828 = vmatpush.msra.mxu0 0.0
    %5829 = vmatpush.msra.mxu0 0.0
    %5830 = vmatpush.msra.mxu0 0.0
    %5831 = vmatpush.msra.mxu0 %v5191
    %5832 = vmatmul.f32.gmra.mxu0 %v5814
    %v5833 = vpop.f32.mrf.mxu0
    %v5834 = vadd.f32 0.0, %v5833
    %5835 = vdwg.mxu0
    %v5837 = vsel %vm185, %v5759, 0
    %5839 = vmatpush.msra.mxu0 0.0
    %5840 = vmatpush.msra.mxu0 0.0
    %5841 = vmatpush.msra.mxu0 0.0
    %5842 = vmatpush.msra.mxu0 0.0
    %5843 = vmatpush.msra.mxu0 0.0
    %5844 = vmatpush.msra.mxu0 0.0
    %5845 = vmatpush.msra.mxu0 0.0
    %5846 = vmatpush.msra.mxu0 0.0
    %5847 = vmatpush.msra.mxu0 0.0
    %5848 = vmatpush.msra.mxu0 0.0
    %5849 = vmatpush.msra.mxu0 0.0
    %5850 = vmatpush.msra.mxu0 0.0
    %5851 = vmatpush.msra.mxu0 0.0
    %5852 = vmatpush.msra.mxu0 0.0
    %5853 = vmatpush.msra.mxu0 0.0
    %5854 = vmatpush.msra.mxu0 %v5192
    %5855 = vmatmul.f32.gmra.mxu0 %v5837
    %v5856 = vpop.f32.mrf.mxu0
    %v5857 = vadd.f32 0.0, %v5856
    %5858 = vdwg.mxu0
    %v5860 = vsel %vm185, %v5785, 0
    %5862 = vmatpush.msra.mxu0 0.0
    %5863 = vmatpush.msra.mxu0 0.0
    %5864 = vmatpush.msra.mxu0 0.0
    %5865 = vmatpush.msra.mxu0 0.0
    %5866 = vmatpush.msra.mxu0 0.0
    %5867 = vmatpush.msra.mxu0 0.0
    %5868 = vmatpush.msra.mxu0 0.0
    %5869 = vmatpush.msra.mxu0 0.0
    %5870 = vmatpush.msra.mxu0 0.0
    %5871 = vmatpush.msra.mxu0 0.0
    %5872 = vmatpush.msra.mxu0 0.0
    %5873 = vmatpush.msra.mxu0 0.0
    %5874 = vmatpush.msra.mxu0 0.0
    %5875 = vmatpush.msra.mxu0 0.0
    %5876 = vmatpush.msra.mxu0 0.0
    %5877 = vmatpush.msra.mxu0 %v5193
    %5878 = vmatmul.f32.gmra.mxu0 %v5860
    %v5879 = vpop.f32.mrf.mxu0
    %v5880 = vadd.f32 0.0, %v5879
    %5881 = vdwg.mxu0
    %v5883 = vsel %vm185, %v5811, 0
    %5885 = vmatpush.msra.mxu0 0.0
    %5886 = vmatpush.msra.mxu0 0.0
    %5887 = vmatpush.msra.mxu0 0.0
    %5888 = vmatpush.msra.mxu0 0.0
    %5889 = vmatpush.msra.mxu0 0.0
    %5890 = vmatpush.msra.mxu0 0.0
    %5891 = vmatpush.msra.mxu0 0.0
    %5892 = vmatpush.msra.mxu0 0.0
    %5893 = vmatpush.msra.mxu0 0.0
    %5894 = vmatpush.msra.mxu0 0.0
    %5895 = vmatpush.msra.mxu0 0.0
    %5896 = vmatpush.msra.mxu0 0.0
    %5897 = vmatpush.msra.mxu0 0.0
    %5898 = vmatpush.msra.mxu0 0.0
    %5899 = vmatpush.msra.mxu0 0.0
    %5900 = vmatpush.msra.mxu0 %v5194
    %5901 = vmatmul.f32.gmra.mxu0 %v5883
    %v5902 = vpop.f32.mrf.mxu0
    %v5903 = vadd.f32 0.0, %v5902
    %5904 = vdwg.mxu0
    %v5905 = vsel %vm36, %v5834, 0.0
    %v5906 = vsel %vm36, %v5857, 0.0
    %v5907 = vadd.f32 %v5905, %v5906
    %v5908 = vsel %vm36, %v5880, 0.0
    %v5909 = vadd.f32 %v5907, %v5908
    %v5910 = vsel %vm36, %v5903, 0.0
    %v5911 = vadd.f32 %v5909, %v5910
    %v5912 = vadd.f32 %v5911, %v5553
    %5915 = vrot.lane.b32.xlu0 %v5554, 32
    %v5916 = vpop.permute.xlu0 %5915
    %5917 = vrot.lane.b32.xlu0 %v5912, 32
    %v5918 = vpop.permute.xlu0 %5917
    %v5921 = vadd.f32 %v5017, %v5916
    %v5922 = vadd.f32 %v5018, %v5918
    %5925 = vrot.lane.b32.xlu0 %v5921, 96
    %v5926 = vpop.permute.xlu0 %5925
    %5927 = vrot.lane.b32.xlu0 %v5922, 96
    %v5928 = vpop.permute.xlu0 %5927
    %v5931 = vsel %vm36, %v5926, 0.0
    %5932 = vadd.xlane.f32.xlu0 %v5931
    %v5933 = vpop.xlane.xlu0 %5932
    %v5934 = vsel %vm36, %v5928, 0.0
    %5935 = vadd.xlane.f32.xlu0 %v5934
    %v5936 = vpop.xlane.xlu0 %5935
    %v5937 = vmul.f32 %v5933, %v49
    %v5938 = vmul.f32 %v5936, %v49
    %v5939 = vsub.f32 %v5921, %v5937
    %v5940 = vsub.f32 %v5922, %v5938
    %v5941 = vmul.f32 %v5939, %v5939
    %v5942 = vmul.f32 %v5940, %v5940
    %5945 = vrot.lane.b32.xlu0 %v5941, 96
    %v5946 = vpop.permute.xlu0 %5945
    %5947 = vrot.lane.b32.xlu0 %v5942, 96
    %v5948 = vpop.permute.xlu0 %5947
    %v5951 = vsel %vm36, %v5946, 0.0
    %5952 = vadd.xlane.f32.xlu0 %v5951
    %v5953 = vpop.xlane.xlu0 %5952
    %v5954 = vsel %vm36, %v5948, 0.0
    %5955 = vadd.xlane.f32.xlu0 %v5954
    %v5956 = vpop.xlane.xlu0 %5955
    %v5957 = vmul.f32 %v5953, %v68
    %v5958 = vmul.f32 %v5956, %v68
    %v5959 = vrsqrt.pop %v5957
    %v5960 = vmul.f32 %v5959, %v5957
    %v5961 = vmul.f32 %v5960, %v5959
    %v5962 = vmul.f32 0.5, %v5961
    %v5963 = vsub.f32 1.5, %v5962
    %v5964 = vmul.f32 %v5959, %v5963
    %v5965 = vmul.f32 %v5957, %v5964
    %vm5966 = vcmp.eq.f32.partialorder %v5957, inf
    %v5967 = vsel %vm5966, %v5957, %v5965
    %vm5968 = vcmp.eq.f32.partialorder %v5957, 0.0
    %v5969 = vand.u32 %v5957, 2147483648
    %v5970 = vsel %vm5968, %v5969, %v5967
    %v5971 = vrsqrt.pop %v5958
    %v5972 = vmul.f32 %v5971, %v5958
    %v5973 = vmul.f32 %v5972, %v5971
    %v5974 = vmul.f32 0.5, %v5973
    %v5975 = vsub.f32 1.5, %v5974
    %v5976 = vmul.f32 %v5971, %v5975
    %v5977 = vmul.f32 %v5958, %v5976
    %vm5978 = vcmp.eq.f32.partialorder %v5958, inf
    %v5979 = vsel %vm5978, %v5958, %v5977
    %vm5980 = vcmp.eq.f32.partialorder %v5958, 0.0
    %v5981 = vand.u32 %v5958, 2147483648
    %v5982 = vsel %vm5980, %v5981, %v5979
    %v5983 = vld [vmem:[%s3 + $0x28] sm:$0x1]
    %v5984 = vperm.slane %v5983, 0
    %5987 = vrot.lane.b32.xlu0 %v5939, 96
    %v5988 = vpop.permute.xlu0 %5987
    %5989 = vrot.lane.b32.xlu0 %v5940, 96
    %v5990 = vpop.permute.xlu0 %5989
    %v5993 = vmul.f32 %v5984, %v5988
    %v5994 = vmul.f32 %v5984, %v5990
    %v5995 = vadd.f32 %v5970, 1e-06
    %v5996 = vadd.f32 %v5982, 1e-06
    %v5997 = vrcp.pop %v5995
    %v5998 = vmul.f32 %v5995, %v5997
    %v5999 = vsub.f32 1.0, %v5998
    %v6000 = vmul.f32 %v5997, %v5999
    %v6001 = vadd.f32 %v5997, %v6000
    %vm6002 = vweird.f32 %v5995
    %vm6003 = vweird.f32 %v5997
    %vm6004 = vmor %vm6002, %vm6003
    %v6005 = vsel %vm6004, %v5997, %v6001
    %v6006 = vand.u32 2147483647, %v5995
    %vm6007 = vcmp.eq.f32.partialorder %v6006, 8.507059e+37
    %v6008 = vand.u32 %v5995, 2147483648
    %v6009 = vor.u32 1.1754944e-38, %v6008
    %v6010 = vsel %vm6007, %v6009, %v6005
    %v6011 = vmul.f32 %v5993, %v6010
    %v6012 = vrcp.pop %v5996
    %v6013 = vmul.f32 %v5996, %v6012
    %v6014 = vsub.f32 1.0, %v6013
    %v6015 = vmul.f32 %v6012, %v6014
    %v6016 = vadd.f32 %v6012, %v6015
    %vm6017 = vweird.f32 %v5996
    %vm6018 = vweird.f32 %v6012
    %vm6019 = vmor %vm6017, %vm6018
    %v6020 = vsel %vm6019, %v6012, %v6016
    %v6021 = vand.u32 2147483647, %v5996
    %vm6022 = vcmp.eq.f32.partialorder %v6021, 8.507059e+37
    %v6023 = vand.u32 %v5996, 2147483648
    %v6024 = vor.u32 1.1754944e-38, %v6023
    %v6025 = vsel %vm6022, %v6024, %v6020
    %v6026 = vmul.f32 %v5994, %v6025
    %v6027 = vld [vmem:[%s3 + $0x29] sm:$0x1]
    %v6028 = vperm.slane %v6027, 0
    %v6029 = vadd.f32 %v6011, %v6028
    %v6030 = vadd.f32 %v6026, %v6028
    %v6031 = vld [vmem:[#allocation2 + $0x2e0] sm:$0xff]
    %v6032 = vld [vmem:[#allocation2 + $0x2e8] sm:$0xff]
    %v6033 = vld [vmem:[#allocation2 + $0x2f0] sm:$0xff]
    %v6034 = vld [vmem:[#allocation2 + $0x2f8] sm:$0xff]
    %v6035 = vld [vmem:[%s3 + $0x2a] sm:$0x1]
    %v6036 = vperm.slane %v6035, 0
    %v6038 = vsel %vm36, %v6029, 0
    %v6041 = vsel %vm36, %v6030, 0
    %6043 = vmatpush.msra.mxu0 0.0
    %6044 = vmatpush.msra.mxu0 0.0
    %6045 = vmatpush.msra.mxu0 0.0
    %6046 = vmatpush.msra.mxu0 0.0
    %6047 = vmatpush.msra.mxu0 0.0
    %6048 = vmatpush.msra.mxu0 0.0
    %6049 = vmatpush.msra.mxu0 0.0
    %6050 = vmatpush.msra.mxu0 0.0
    %6051 = vmatpush.msra.mxu0 0.0
    %6052 = vmatpush.msra.mxu0 0.0
    %6053 = vmatpush.msra.mxu0 0.0
    %6054 = vmatpush.msra.mxu0 0.0
    %6055 = vmatpush.msra.mxu0 %v6034
    %6056 = vmatpush.msra.mxu0 %v6033
    %6057 = vmatpush.msra.mxu0 %v6032
    %6058 = vmatpush.msra.mxu0 %v6031
    %6059 = vmatmul.f32.gmra.mxu0 %v6038
    %v6060 = vpop.f32.mrf.mxu0
    %v6061 = vadd.f32 %v6036, %v6060
    %6062 = vmatmul.f32.gmra.mxu0 %v6041
    %v6063 = vpop.f32.mrf.mxu0
    %v6064 = vadd.f32 %v6036, %v6063
    %6065 = vdwg.mxu0
    %v6066 = vmax.f32 %v6061, 0.0
    %v6067 = vmax.f32 %v6064, 0.0
    %v6068 = vld [vmem:[#allocation2 + $0x300] sm:$0xff]
    %v6069 = vld [vmem:[#allocation2 + $0x308] sm:$0xff]
    %v6070 = vld [vmem:[#allocation2 + $0x310] sm:$0xff]
    %v6071 = vld [vmem:[#allocation2 + $0x318] sm:$0xff]
    %v6072 = vld [vmem:[#allocation2 + $0x320] sm:$0xff]
    %v6073 = vld [vmem:[#allocation2 + $0x328] sm:$0xff]
    %v6074 = vld [vmem:[#allocation2 + $0x330] sm:$0xff]
    %v6075 = vld [vmem:[#allocation2 + $0x338] sm:$0xff]
    %v6076 = vld [vmem:[%s3 + $0x2b] sm:$0x1]
    %v6077 = vperm.slane %v6076, 0
    %v6079 = vsel %vm1030, %v6066, 0
    %v6082 = vsel %vm1030, %v6067, 0
    %6084 = vmatpush.msra.mxu0 0.0
    %6085 = vmatpush.msra.mxu0 0.0
    %6086 = vmatpush.msra.mxu0 0.0
    %6087 = vmatpush.msra.mxu0 0.0
    %6088 = vmatpush.msra.mxu0 0.0
    %6089 = vmatpush.msra.mxu0 0.0
    %6090 = vmatpush.msra.mxu0 0.0
    %6091 = vmatpush.msra.mxu0 0.0
    %6092 = vmatpush.msra.mxu0 %v6075
    %6093 = vmatpush.msra.mxu0 %v6074
    %6094 = vmatpush.msra.mxu0 %v6073
    %6095 = vmatpush.msra.mxu0 %v6072
    %6096 = vmatpush.msra.mxu0 %v6071
    %6097 = vmatpush.msra.mxu0 %v6070
    %6098 = vmatpush.msra.mxu0 %v6069
    %6099 = vmatpush.msra.mxu0 %v6068
    %6100 = vmatmul.f32.gmra.mxu0 %v6079
    %v6101 = vpop.f32.mrf.mxu0
    %v6102 = vadd.f32 %v6077, %v6101
    %6103 = vmatmul.f32.gmra.mxu0 %v6082
    %v6104 = vpop.f32.mrf.mxu0
    %v6105 = vadd.f32 %v6077, %v6104
    %6106 = vdwg.mxu0
    %6109 = vrot.lane.b32.xlu0 %v6102, 32
    %v6110 = vpop.permute.xlu0 %6109
    %6111 = vrot.lane.b32.xlu0 %v6105, 32
    %v6112 = vpop.permute.xlu0 %6111
    %v6115 = vadd.f32 %v5921, %v6110
    %v6116 = vadd.f32 %v5922, %v6112
    %6119 = vrot.lane.b32.xlu0 %v6115, 96
    %v6120 = vpop.permute.xlu0 %6119
    %6121 = vrot.lane.b32.xlu0 %v6116, 96
    %v6122 = vpop.permute.xlu0 %6121
    %v6125 = vsel %vm36, %v6120, 0.0
    %6126 = vadd.xlane.f32.xlu0 %v6125
    %v6127 = vpop.xlane.xlu0 %6126
    %v6128 = vsel %vm36, %v6122, 0.0
    %6129 = vadd.xlane.f32.xlu0 %v6128
    %v6130 = vpop.xlane.xlu0 %6129
    %v6131 = vmul.f32 %v6127, %v49
    %v6132 = vmul.f32 %v6130, %v49
    %v6133 = vsub.f32 %v6115, %v6131
    %v6134 = vsub.f32 %v6116, %v6132
    %v6135 = vmul.f32 %v6133, %v6133
    %v6136 = vmul.f32 %v6134, %v6134
    %6139 = vrot.lane.b32.xlu0 %v6135, 96
    %v6140 = vpop.permute.xlu0 %6139
    %6141 = vrot.lane.b32.xlu0 %v6136, 96
    %v6142 = vpop.permute.xlu0 %6141
    %v6145 = vsel %vm36, %v6140, 0.0
    %6146 = vadd.xlane.f32.xlu0 %v6145
    %v6147 = vpop.xlane.xlu0 %6146
    %v6148 = vsel %vm36, %v6142, 0.0
    %6149 = vadd.xlane.f32.xlu0 %v6148
    %v6150 = vpop.xlane.xlu0 %6149
    %v6151 = vmul.f32 %v6147, %v68
    %v6152 = vmul.f32 %v6150, %v68
    %v6153 = vrsqrt.pop %v6151
    %v6154 = vmul.f32 %v6153, %v6151
    %v6155 = vmul.f32 %v6154, %v6153
    %v6156 = vmul.f32 0.5, %v6155
    %v6157 = vsub.f32 1.5, %v6156
    %v6158 = vmul.f32 %v6153, %v6157
    %v6159 = vmul.f32 %v6151, %v6158
    %vm6160 = vcmp.eq.f32.partialorder %v6151, inf
    %v6161 = vsel %vm6160, %v6151, %v6159
    %vm6162 = vcmp.eq.f32.partialorder %v6151, 0.0
    %v6163 = vand.u32 %v6151, 2147483648
    %v6164 = vsel %vm6162, %v6163, %v6161
    %v6165 = vrsqrt.pop %v6152
    %v6166 = vmul.f32 %v6165, %v6152
    %v6167 = vmul.f32 %v6166, %v6165
    %v6168 = vmul.f32 0.5, %v6167
    %v6169 = vsub.f32 1.5, %v6168
    %v6170 = vmul.f32 %v6165, %v6169
    %v6171 = vmul.f32 %v6152, %v6170
    %vm6172 = vcmp.eq.f32.partialorder %v6152, inf
    %v6173 = vsel %vm6172, %v6152, %v6171
    %vm6174 = vcmp.eq.f32.partialorder %v6152, 0.0
    %v6175 = vand.u32 %v6152, 2147483648
    %v6176 = vsel %vm6174, %v6175, %v6173
    %v6177 = vld [vmem:[%s3 + $0x2c] sm:$0x1]
    %v6178 = vperm.slane %v6177, 0
    %6181 = vrot.lane.b32.xlu0 %v6133, 96
    %v6182 = vpop.permute.xlu0 %6181
    %6183 = vrot.lane.b32.xlu0 %v6134, 96
    %v6184 = vpop.permute.xlu0 %6183
    %v6187 = vmul.f32 %v6178, %v6182
    %v6188 = vmul.f32 %v6178, %v6184
    %v6189 = vadd.f32 %v6164, 1e-06
    %v6190 = vadd.f32 %v6176, 1e-06
    %v6191 = vrcp.pop %v6189
    %v6192 = vmul.f32 %v6189, %v6191
    %v6193 = vsub.f32 1.0, %v6192
    %v6194 = vmul.f32 %v6191, %v6193
    %v6195 = vadd.f32 %v6191, %v6194
    %vm6196 = vweird.f32 %v6189
    %vm6197 = vweird.f32 %v6191
    %vm6198 = vmor %vm6196, %vm6197
    %v6199 = vsel %vm6198, %v6191, %v6195
    %v6200 = vand.u32 2147483647, %v6189
    %vm6201 = vcmp.eq.f32.partialorder %v6200, 8.507059e+37
    %v6202 = vand.u32 %v6189, 2147483648
    %v6203 = vor.u32 1.1754944e-38, %v6202
    %v6204 = vsel %vm6201, %v6203, %v6199
    %v6205 = vmul.f32 %v6187, %v6204
    %v6206 = vrcp.pop %v6190
    %v6207 = vmul.f32 %v6190, %v6206
    %v6208 = vsub.f32 1.0, %v6207
    %v6209 = vmul.f32 %v6206, %v6208
    %v6210 = vadd.f32 %v6206, %v6209
    %vm6211 = vweird.f32 %v6190
    %vm6212 = vweird.f32 %v6206
    %vm6213 = vmor %vm6211, %vm6212
    %v6214 = vsel %vm6213, %v6206, %v6210
    %v6215 = vand.u32 2147483647, %v6190
    %vm6216 = vcmp.eq.f32.partialorder %v6215, 8.507059e+37
    %v6217 = vand.u32 %v6190, 2147483648
    %v6218 = vor.u32 1.1754944e-38, %v6217
    %v6219 = vsel %vm6216, %v6218, %v6214
    %v6220 = vmul.f32 %v6188, %v6219
    %v6221 = vld [vmem:[%s3 + $0x2d] sm:$0x1]
    %v6222 = vperm.slane %v6221, 0
    %v6223 = vadd.f32 %v6205, %v6222
    %v6224 = vadd.f32 %v6220, %v6222
    %6225 = vst.msk [vmem:[#allocation5] sm:$0xff] %vm36, %v6223
    %6226 = vst.msk [vmem:[#allocation5 + $0x8] sm:$0xff] %vm36, %v6224
    // Predicated region
    $region22: #{encoder_decoder_forward.1} parent=1 // pred_check
      _
    $region23: #{encoder_decoder_forward.1} parent=1 // pred_check_branch
      %6228 = sbr.rel (0) target = $region25
    $region24: #{encoder_decoder_forward.1} parent=1 // pred_region
      %6230 = vsyncadd [#allocation4], 0
      %s6231 = sshll.u32 [#allocation5], 4
      %s6232 = int_to_ptr.vmem [resolvable:$true] %s6231
      %s6233 = sshll.u32 %s4, 4
      %s6234 = int_to_ptr.hbm [resolvable:$true] %s6233
      %6239 = dma.vmem_to_hbm [thread:$0]  %s6232, 256, %s6234, [#allocation4], 128, 128, 8
    $region25: #{encoder_decoder_forward.1} parent=1 // pred_fallthru
      _
    // Predicated region
    $region26: #{encoder_decoder_forward.1} parent=1 // pred_check
      _
    $region27: #{encoder_decoder_forward.1} parent=1 // pred_check_branch
      %6241 = sbr.rel (0) target = $region29
    $region28: #{encoder_decoder_forward.1} parent=1 // pred_region
      %6243 = dma.done [#allocation4], 256
    $region29: #{encoder_decoder_forward.1} parent=1 // pred_fallthru
      _
    %6244 = vsyncpa [#allocation3], 1
    %6245 = vsyncpa [#allocation4], 1

</llo_original>
